<compile_context>
chip_gen: v7x
topology: tpu7x:2x2x1
jax: 0.10.0
libtpu: 0.0.40
codegen_flags: <defaults>
</compile_context>

<pallas_src>
import functools

import jax
import jax.numpy as jnp
import numpy as np
from jax.experimental import pallas as pl
from jax.experimental.pallas import tpu as pltpu

# ----------------------------- architecture constants ------------------------
HIDDEN = 13                    # LSTM hidden size
HP = 128                       # lane-padded hidden size inside the kernel
C_IN, H_IMG, W_IMG = 2, 8, 550

# Widths: 550 -conv1(7,s3)+pool2-> 91 -conv2(5,s2)+pool2-> 22 -conv3(4,s2)+pool2-> 5
W3P = 5                        # conv3 pooled width (= column groups per (b, h))
ROWS_PER_B = H_IMG * W3P       # 40 kernel rows per batch element

# Per-row (= one conv3 output column) window sizes / lane-dense layouts.
IN_COLS = 166                  # input columns feeding one conv3 output column
IN_LANES = 384                 # 166 cols * 2 ch = 332, padded to 384
C1_COLS, C1_LANES = 27, 512    # 27 conv1-pooled cols * 16 ch = 432 -> 512
C2_COLS, C2_LANES = 6, 256     # 6 conv2-pooled cols * 32 ch = 192 -> 256
C3_LANES = 128                 # 1 conv3-pooled col * 64 ch = 64 -> 128
FC_K = ROWS_PER_B * C3_LANES   # 5120 (fc1 contraction, 2560 useful)

WKEYS = ("w1", "b1", "w2", "b2", "w3", "b3", "gfc", "bfc", "wih", "whh", "blstm")


# --------------------------------- kernel ------------------------------------

def _fused_kernel(x_ref, w1, b1, w2, b2, w3, b3, gfc, bfc, wih, whh, blstm,
                  out_ref, y1_scr, y2_scr, y3_scr, fcin_scr, fc_scr,
                  *, tb, batch):
    step = pl.program_id(0)

    def conv_block(src, w_ref, b_ref, half):
        # conv(1xK, stride) + bias + ReLU + maxpool(1x2) as ONE aligned matmul:
        # lanes [0:half) / [half:2*half) hold the even / odd conv column of each
        # pooling pair; relu(max(even, odd) + bias) == maxpool(relu(conv + bias)).
        pre = jnp.dot(src, w_ref[...], preferred_element_type=jnp.float32)
        pooled = jnp.maximum(pre[:, :half], pre[:, half:]) + b_ref[...]
        return jnp.maximum(pooled, 0.0)

    # Each matmul's output IS the next layer's phase-major, lane-dense input.
    y1_scr[...] = conv_block(x_ref[...], w1, b1, C1_LANES).astype(jnp.bfloat16)
    y2_scr[...] = conv_block(y1_scr[...], w2, b2, C2_LANES).astype(jnp.bfloat16)
    y3_scr[...] = conv_block(y2_scr[...], w3, b3, C3_LANES)            # f32

    # fc1: conv3 rows are ordered (h, w3, b_local); 40 aligned (tb, 128) block
    # copies build a lane-major (tb, 5120) slab, then ONE K=5120 matmul.
    for q in range(ROWS_PER_B):
        fcin_scr[:, q * C3_LANES:(q + 1) * C3_LANES] = (
            y3_scr[q * tb:(q + 1) * tb, :].astype(jnp.bfloat16))
    fc_out = jnp.maximum(
        jnp.dot(fcin_scr[...], gfc[...], preferred_element_type=jnp.float32)
        + bfc[...], 0.0)                                               # (tb, 128)
    fc_scr[pl.ds(pl.multiple_of(step * tb, tb), tb), :] = fc_out

    # LSTM(input=128, hidden=13) over the unbatched length-`batch` sequence,
    # run once after the last batch tile.  Hidden dim is zero-padded to 128
    # lanes; padded gate pre-activations are 0, so padded h/c lanes stay 0.
    @pl.when(step == pl.num_programs(0) - 1)
    def _():
        gates_x = (jnp.dot(fc_scr[...], wih[...],
                           preferred_element_type=jnp.float32) + blstm[...])
        h_t = jnp.zeros((1, HP), jnp.float32)
        c_t = jnp.zeros((1, HP), jnp.float32)
        # TODO(synk): switch to lax.fori_loop (h/c carry, dynamic out_ref store)
        # if the sequence length (== batch) ever grows large.
        for t in range(batch):
            g = (gates_x[t:t + 1, :]
                 + jnp.dot(h_t, whh[...], preferred_element_type=jnp.float32))
            i_g = jax.nn.sigmoid(g[:, 0 * HP:1 * HP])
            f_g = jax.nn.sigmoid(g[:, 1 * HP:2 * HP])
            g_g = jnp.tanh(g[:, 2 * HP:3 * HP])
            o_g = jax.nn.sigmoid(g[:, 3 * HP:4 * HP])
            c_t = f_g * c_t + i_g * g_g
            h_t = o_g * jnp.tanh(c_t)
            out_ref[t:t + 1, :] = h_t            # full 128-lane row store


# ------------------------------- wrappers -------------------------------------

def _prep_input(x, tb):
    """NCHW (B,2,8,550) -> kernel row layout (nbt*40*tb, 384) bf16.

    Row (tile, h, w3, b_local) holds input columns [96*w3, 96*w3+166) of
    x[b, :, h, :] with lanes ordered (column, channel) — exactly the window one
    conv3 output column depends on, so every conv layer is a single aligned
    matmul (no in-kernel shifts or rephasing).  Pure reshape/slice plumbing.
    """
    b = x.shape[0]
    nbt = pl.cdiv(b, tb)
    bp = nbt * tb
    if bp != b:
        x = jnp.pad(x, ((0, bp - b), (0, 0), (0, 0), (0, 0)))
    wins = jnp.stack([x[:, :, :, 96 * k:96 * k + IN_COLS] for k in range(W3P)],
                     axis=3)                                   # (bp, 2, 8, 5, 166)
    wins = wins.reshape(nbt, tb, C_IN, H_IMG, W3P, IN_COLS)
    wins = jnp.transpose(wins, (0, 3, 4, 1, 5, 2))             # (nbt, 8, 5, tb, 166, 2)
    wins = wins.reshape(nbt * H_IMG * W3P * tb, IN_COLS * C_IN)
    wins = jnp.pad(wins, ((0, 0), (0, IN_LANES - IN_COLS * C_IN)))
    return wins.astype(jnp.bfloat16), nbt, bp


def cnn_lstm_forward(prep, x, tile_b=8):
    b = x.shape[0]
    assert x.shape[1:] == (C_IN, H_IMG, W_IMG), x.shape
    tb = min(tile_b, b)
    xw, nbt, bp = _prep_input(x, tb)
    rows = ROWS_PER_B * tb

    full = lambda a: pl.BlockSpec(a.shape, lambda i: (0, 0))
    wspecs = [full(prep[k]) for k in WKEYS]

    flops = (2 * nbt * rows * (IN_LANES * 2 * C1_LANES
                               + C1_LANES * 2 * C2_LANES
                               + C2_LANES * 2 * C3_LANES)
             + 2 * nbt * tb * FC_K * HP
             + 2 * bp * HP * 4 * HP + 2 * b * HP * 4 * HP)
    bytes_accessed = (int(xw.size) * 2
                      + sum(int(prep[k].size) * prep[k].dtype.itemsize for k in WKEYS)
                      + b * HP * 4)

    out = pl.pallas_call(
        functools.partial(_fused_kernel, tb=tb, batch=b),
        out_shape=jax.ShapeDtypeStruct((b, HP), jnp.float32),
        grid=(nbt,),
        in_specs=[pl.BlockSpec((rows, IN_LANES), lambda i: (i, 0))] + wspecs,
        out_specs=pl.BlockSpec((b, HP), lambda i: (0, 0)),
        scratch_shapes=[
            pltpu.VMEM((rows, C1_LANES), jnp.bfloat16),   # conv1 pooled (= conv2 input)
            pltpu.VMEM((rows, C2_LANES), jnp.bfloat16),   # conv2 pooled (= conv3 input)
            pltpu.VMEM((rows, C3_LANES), jnp.float32),    # conv3 pooled
            pltpu.VMEM((tb, FC_K), jnp.bfloat16),         # fc1 lane-major input slab
            pltpu.VMEM((bp, HP), jnp.float32),            # fc1 output (persists across grid)
        ],
        compiler_params=pltpu.CompilerParams(
            # "arbitrary": fc_scr carries across steps and the LSTM (which couples
            # the whole batch sequentially) runs only on the last step.
            # TODO(synk): on v7x, split the CNN/fc1 stage across TensorCores via
            # pl.core_map and keep only the LSTM tail on one core.
            dimension_semantics=("arbitrary",),
            vmem_limit_bytes=32 * 1024 * 1024,
        ),
        cost_estimate=pl.CostEstimate(flops=flops,
                                      transcendentals=b * 5 * HP,
                                      bytes_accessed=bytes_accessed),
    )(xw, *(prep[k] for k in WKEYS))
    return out[:, :HIDDEN]


# --------------------------- one-time parameter prep --------------------------

def prepare_params(params):
    """One-time re-layout of PyTorch-style parameters for the fused kernel."""
    p = {k: np.asarray(v, np.float32) for k, v in params.items()}

    # conv1: w1[(6p+3*par+k)*2 + c, par*512 + 16p + co] = conv1_w[co, c, 0, k]
    w1 = np.zeros((IN_LANES, 2 * C1_LANES), np.float32)
    for pp in range(C1_COLS):
        for par in range(2):
            for k in range(7):
                j = 6 * pp + 3 * par + k
                w1[2 * j:2 * j + 2,
                   par * C1_LANES + 16 * pp:par * C1_LANES + 16 * pp + 16] = \
                    p["conv1_w"][:, :, 0, k].T
    b1 = np.zeros((1, C1_LANES), np.float32)
    for pp in range(C1_COLS):
        b1[0, 16 * pp:16 * pp + 16] = p["conv1_b"]

    # conv2: w2[(4q+2*par+k)*16 + ci, par*256 + 32q + co] = conv2_w[co, ci, 0, k]
    w2 = np.zeros((C1_LANES, 2 * C2_LANES), np.float32)
    for q in range(C2_COLS):
        for par in range(2):
            for k in range(5):
                pp = 4 * q + 2 * par + k
                w2[16 * pp:16 * pp + 16,
                   par * C2_LANES + 32 * q:par * C2_LANES + 32 * q + 32] = \
                    p["conv2_w"][:, :, 0, k].T
    b2 = np.zeros((1, C2_LANES), np.float32)
    for q in range(C2_COLS):
        b2[0, 32 * q:32 * q + 32] = p["conv2_b"]

    # conv3: w3[(2*par+k)*32 + ci, par*128 + co] = conv3_w[co, ci, 0, k]
    w3 = np.zeros((C2_LANES, 2 * C3_LANES), np.float32)
    for par in range(2):
        for k in range(4):
            q = 2 * par + k
            w3[32 * q:32 * q + 32, par * C3_LANES:par * C3_LANES + 64] = \
                p["conv3_w"][:, :, 0, k].T
    b3 = np.zeros((1, C3_LANES), np.float32)
    b3[0, :64] = p["conv3_b"]

    # fc1: NCHW flatten order is feature = co*40 + (h*5 + w3) = co*40 + q.
    gfc = np.zeros((FC_K, HP), np.float32)
    wf = p["fc1_w"].reshape(HP, 64, ROWS_PER_B)           # [n, co, q]
    for q in range(ROWS_PER_B):
        gfc[q * C3_LANES:q * C3_LANES + 64, :] = wf[:, :, q].T
    bfc = p["fc1_b"].reshape(1, HP)

    # LSTM (gate order i, f, g, o); each gate's hidden dim zero-padded 13 -> 128.
    wih = np.zeros((HP, 4 * HP), np.float32)
    whh = np.zeros((HP, 4 * HP), np.float32)
    blstm = np.zeros((1, 4 * HP), np.float32)
    for g in range(4):
        wih[:, g * HP:g * HP + HIDDEN] = p["lstm_w_ih"][g * HIDDEN:(g + 1) * HIDDEN, :].T
        whh[:HIDDEN, g * HP:g * HP + HIDDEN] = p["lstm_w_hh"][g * HIDDEN:(g + 1) * HIDDEN, :].T
        blstm[0, g * HP:g * HP + HIDDEN] = (p["lstm_b_ih"][g * HIDDEN:(g + 1) * HIDDEN]
                                            + p["lstm_b_hh"][g * HIDDEN:(g + 1) * HIDDEN])

    jf32 = lambda a: jnp.asarray(a, jnp.float32)
    jbf16 = lambda a: jnp.asarray(a, jnp.bfloat16)
    return {"w1": jbf16(w1), "b1": jf32(b1),
            "w2": jbf16(w2), "b2": jf32(b2),
            "w3": jbf16(w3), "b3": jf32(b3),
            "gfc": jbf16(gfc), "bfc": jf32(bfc),
            "wih": jf32(wih), "whh": jf32(whh), "blstm": jf32(blstm)}


# ----------------------------- parameter init ---------------------------------

def init_params(key):
    ks = jax.random.split(key, 12)

    def u(k, shape, fan_in):
        bound = 1.0 / jnp.sqrt(jnp.float32(fan_in))
        return jax.random.uniform(k, shape, jnp.float32, -bound, bound)

    return {
        "conv1_w": u(ks[0], (16, 2, 1, 7), 2 * 7),
        "conv1_b": u(ks[1], (16,), 2 * 7),
        "conv2_w": u(ks[2], (32, 16, 1, 5), 16 * 5),
        "conv2_b": u(ks[3], (32,), 16 * 5),
        "conv3_w": u(ks[4], (64, 32, 1, 4), 32 * 4),
        "conv3_b": u(ks[5], (64,), 32 * 4),
        "fc1_w": u(ks[6], (128, 64 * 8 * 5), 64 * 8 * 5),
        "fc1_b": u(ks[7], (128,), 64 * 8 * 5),
        "lstm_w_ih": u(ks[8], (4 * HIDDEN, 128), HIDDEN),
        "lstm_w_hh": u(ks[9], (4 * HIDDEN, HIDDEN), HIDDEN),
        "lstm_b_ih": u(ks[10], (4 * HIDDEN,), HIDDEN),
        "lstm_b_hh": u(ks[11], (4 * HIDDEN,), HIDDEN),
    }


# ------------------------------ pure-JAX reference ----------------------------

def _reference_forward(params, x):
    """Pure-JAX mirror of the PyTorch forward, used only for validation."""
    dn = ("NCHW", "OIHW", "NCHW")
    hp = jax.lax.Precision.HIGHEST

    def block(y, w, b, stride):
        y = jax.lax.conv_general_dilated(y, w, (1, stride), "VALID",
                                         dimension_numbers=dn, precision=hp)
        y = jax.nn.relu(y + b.reshape(1, -1, 1, 1))
        return jax.lax.reduce_window(y, -jnp.inf, jax.lax.max,
                                     (1, 1, 1, 2), (1, 1, 1, 2), "VALID")

    y = block(x, params["conv1_w"], params["conv1_b"], 3)
    y = block(y, params["conv2_w"], params["conv2_b"], 2)
    y = block(y, params["conv3_w"], params["conv3_b"], 2)
    feats = y.reshape(y.shape[0], -1)                                 # NCHW flatten
    fc = jax.nn.relu(jnp.dot(feats, params["fc1_w"].T, precision=hp)
                     + params["fc1_b"])
    h = jnp.zeros((HIDDEN,), jnp.float32)
    c = jnp.zeros((HIDDEN,), jnp.float32)
    outs = []
    for t in range(fc.shape[0]):                                      # unbatched sequence
        g = (params["lstm_w_ih"] @ fc[t] + params["lstm_w_hh"] @ h
             + params["lstm_b_ih"] + params["lstm_b_hh"])
        i_g = jax.nn.sigmoid(g[0 * HIDDEN:1 * HIDDEN])
        f_g = jax.nn.sigmoid(g[1 * HIDDEN:2 * HIDDEN])
        g_g = jnp.tanh(g[2 * HIDDEN:3 * HIDDEN])
        o_g = jax.nn.sigmoid(g[3 * HIDDEN:4 * HIDDEN])
        c = f_g * c + i_g * g_g
        h = o_g * jnp.tanh(c)
        outs.append(h)
    return jnp.stack(outs)


if __name__ == "__main__":
    key = jax.random.PRNGKey(0)
    pkey, xkey = jax.random.split(key)
    params = init_params(pkey)
    prep = prepare_params(params)        # one-time weight re-layout, off the hot path

    # Width 550: conv/pool widths 182->91, 44->22, 10->5, height stays 8, so the
    # flattened feature is 64*8*5 = 2560, matching fc1's in_features.
    x = jax.random.normal(xkey, (2, C_IN, H_IMG, W_IMG), jnp.float32)   # NCHW like PyTorch

    fwd = jax.jit(cnn_lstm_forward)
    out = jax.block_until_ready(fwd(prep, x))
    assert out.shape == (2, HIDDEN), out.shape
    assert bool(jnp.all(jnp.isfinite(out)))

    ref = _reference_forward(params, x)
    max_diff = float(jnp.max(jnp.abs(out - ref)))
    assert max_diff < 2e-2, f"kernel/reference mismatch: max |diff| = {max_diff}"
    print("KERNEL_OK")
</pallas_src>

<mosaic_0001>
module attributes {stable_mosaic.version = 11 : i64} {
  func.func @_fused_kernel(%arg0: i32, %arg1: memref<80x384xbf16, #tpu.memory_space<vmem>>, %arg2: memref<384x1024xbf16, #tpu.memory_space<vmem>>, %arg3: memref<1x512xf32, #tpu.memory_space<vmem>>, %arg4: memref<512x512xbf16, #tpu.memory_space<vmem>>, %arg5: memref<1x256xf32, #tpu.memory_space<vmem>>, %arg6: memref<256x256xbf16, #tpu.memory_space<vmem>>, %arg7: memref<1x128xf32, #tpu.memory_space<vmem>>, %arg8: memref<5120x128xbf16, #tpu.memory_space<vmem>>, %arg9: memref<1x128xf32, #tpu.memory_space<vmem>>, %arg10: memref<128x512xf32, #tpu.memory_space<vmem>>, %arg11: memref<128x512xf32, #tpu.memory_space<vmem>>, %arg12: memref<1x512xf32, #tpu.memory_space<vmem>>, %arg13: memref<2x128xf32, #tpu.memory_space<vmem>>, %arg14: memref<80x512xbf16, #tpu.memory_space<vmem>>, %arg15: memref<80x256xbf16, #tpu.memory_space<vmem>>, %arg16: memref<80x128xf32, #tpu.memory_space<vmem>>, %arg17: memref<2x5120xbf16, #tpu.memory_space<vmem>>, %arg18: memref<2x128xf32, #tpu.memory_space<vmem>>) attributes {dimension_semantics = [#tpu.dimension_semantics<arbitrary>], iteration_bounds = array<i64: 1>, scalar_prefetch = 0 : i64, scratch_operands = 5 : i64, tpu.core_type = #tpu.core_type<tc>, window_params = [{transform_indices = @transform_0, window_bounds = array<i64: 80, 384>}, {pipeline_mode = #tpu.pipeline_mode<synchronous>, transform_indices = @transform_1, window_bounds = array<i64: 384, 1024>}, {pipeline_mode = #tpu.pipeline_mode<synchronous>, transform_indices = @transform_2, window_bounds = array<i64: 1, 512>}, {pipeline_mode = #tpu.pipeline_mode<synchronous>, transform_indices = @transform_3, window_bounds = array<i64: 512, 512>}, {pipeline_mode = #tpu.pipeline_mode<synchronous>, transform_indices = @transform_4, window_bounds = array<i64: 1, 256>}, {pipeline_mode = #tpu.pipeline_mode<synchronous>, transform_indices = @transform_5, window_bounds = array<i64: 256, 256>}, {pipeline_mode = #tpu.pipeline_mode<synchronous>, transform_indices = @transform_6, window_bounds = array<i64: 1, 128>}, {pipeline_mode = #tpu.pipeline_mode<synchronous>, transform_indices = @transform_7, window_bounds = array<i64: 5120, 128>}, {pipeline_mode = #tpu.pipeline_mode<synchronous>, transform_indices = @transform_8, window_bounds = array<i64: 1, 128>}, {pipeline_mode = #tpu.pipeline_mode<synchronous>, transform_indices = @transform_9, window_bounds = array<i64: 128, 512>}, {pipeline_mode = #tpu.pipeline_mode<synchronous>, transform_indices = @transform_10, window_bounds = array<i64: 128, 512>}, {pipeline_mode = #tpu.pipeline_mode<synchronous>, transform_indices = @transform_11, window_bounds = array<i64: 1, 512>}, {pipeline_mode = #tpu.pipeline_mode<synchronous>, transform_indices = @transform_12, window_bounds = array<i64: 2, 128>}]} {
    %c0 = arith.constant 0 : index
    %c0_0 = arith.constant 0 : index
    %0 = vector.load %arg1[%c0, %c0_0] : memref<80x384xbf16, #tpu.memory_space<vmem>>, vector<80x384xbf16>
    %c0_1 = arith.constant 0 : index
    %c0_2 = arith.constant 0 : index
    %1 = vector.load %arg2[%c0_1, %c0_2] : memref<384x1024xbf16, #tpu.memory_space<vmem>>, vector<384x1024xbf16>
    %cst = arith.constant dense<0.000000e+00> : vector<80x1024xf32>
    %2 = tpu.matmul %0, %1, %cst {dimension_numbers = #tpu.dot_dimension_numbers<[1], [0], [0], [1], [0, 0, 1, 1], [], []>} : vector<80x384xbf16>, vector<384x1024xbf16>, vector<80x1024xf32> -> vector<80x1024xf32>
    %3 = vector.extract_strided_slice %2 {offsets = [0, 0], sizes = [80, 512], strides = [1, 1]} : vector<80x1024xf32> to vector<80x512xf32>
    %4 = vector.extract_strided_slice %2 {offsets = [0, 512], sizes = [80, 512], strides = [1, 1]} : vector<80x1024xf32> to vector<80x512xf32>
    %5 = arith.maximumf %3, %4 : vector<80x512xf32>
    %c0_3 = arith.constant 0 : index
    %c0_4 = arith.constant 0 : index
    %6 = vector.load %arg3[%c0_3, %c0_4] : memref<1x512xf32, #tpu.memory_space<vmem>>, vector<1x512xf32>
    %7 = vector.broadcast %6 : vector<1x512xf32> to vector<80x512xf32>
    %8 = arith.addf %5, %7 : vector<80x512xf32>
    %cst_5 = arith.constant 0.000000e+00 : f32
    %9 = vector.broadcast %cst_5 : f32 to vector<80x512xf32>
    %10 = arith.maximumf %8, %9 : vector<80x512xf32>
    %11 = arith.truncf %10 : vector<80x512xf32> to vector<80x512xbf16>
    %c0_6 = arith.constant 0 : index
    %c0_7 = arith.constant 0 : index
    %12 = vector.load %arg14[%c0_6, %c0_7] : memref<80x512xbf16, #tpu.memory_space<vmem>>, vector<80x512xbf16>
    tpu.vector_store %arg14[%c0_6, %c0_7], %11 {strides = array<i32>} : memref<80x512xbf16, #tpu.memory_space<vmem>>, vector<80x512xbf16>,
    %c0_8 = arith.constant 0 : index
    %c0_9 = arith.constant 0 : index
    %13 = vector.load %arg14[%c0_8, %c0_9] : memref<80x512xbf16, #tpu.memory_space<vmem>>, vector<80x512xbf16>
    %c0_10 = arith.constant 0 : index
    %c0_11 = arith.constant 0 : index
    %14 = vector.load %arg4[%c0_10, %c0_11] : memref<512x512xbf16, #tpu.memory_space<vmem>>, vector<512x512xbf16>
    %cst_12 = arith.constant dense<0.000000e+00> : vector<80x512xf32>
    %15 = tpu.matmul %13, %14, %cst_12 {dimension_numbers = #tpu.dot_dimension_numbers<[1], [0], [0], [1], [0, 0, 1, 1], [], []>} : vector<80x512xbf16>, vector<512x512xbf16>, vector<80x512xf32> -> vector<80x512xf32>
    %16 = vector.extract_strided_slice %15 {offsets = [0, 0], sizes = [80, 256], strides = [1, 1]} : vector<80x512xf32> to vector<80x256xf32>
    %17 = vector.extract_strided_slice %15 {offsets = [0, 256], sizes = [80, 256], strides = [1, 1]} : vector<80x512xf32> to vector<80x256xf32>
    %18 = arith.maximumf %16, %17 : vector<80x256xf32>
    %c0_13 = arith.constant 0 : index
    %c0_14 = arith.constant 0 : index
    %19 = vector.load %arg5[%c0_13, %c0_14] : memref<1x256xf32, #tpu.memory_space<vmem>>, vector<1x256xf32>
    %20 = vector.broadcast %19 : vector<1x256xf32> to vector<80x256xf32>
    %21 = arith.addf %18, %20 : vector<80x256xf32>
    %cst_15 = arith.constant 0.000000e+00 : f32
    %22 = vector.broadcast %cst_15 : f32 to vector<80x256xf32>
    %23 = arith.maximumf %21, %22 : vector<80x256xf32>
    %24 = arith.truncf %23 : vector<80x256xf32> to vector<80x256xbf16>
    %c0_16 = arith.constant 0 : index
    %c0_17 = arith.constant 0 : index
    %25 = vector.load %arg15[%c0_16, %c0_17] : memref<80x256xbf16, #tpu.memory_space<vmem>>, vector<80x256xbf16>
    tpu.vector_store %arg15[%c0_16, %c0_17], %24 {strides = array<i32>} : memref<80x256xbf16, #tpu.memory_space<vmem>>, vector<80x256xbf16>,
    %c0_18 = arith.constant 0 : index
    %c0_19 = arith.constant 0 : index
    %26 = vector.load %arg15[%c0_18, %c0_19] : memref<80x256xbf16, #tpu.memory_space<vmem>>, vector<80x256xbf16>
    %c0_20 = arith.constant 0 : index
    %c0_21 = arith.constant 0 : index
    %27 = vector.load %arg6[%c0_20, %c0_21] : memref<256x256xbf16, #tpu.memory_space<vmem>>, vector<256x256xbf16>
    %cst_22 = arith.constant dense<0.000000e+00> : vector<80x256xf32>
    %28 = tpu.matmul %26, %27, %cst_22 {dimension_numbers = #tpu.dot_dimension_numbers<[1], [0], [0], [1], [0, 0, 1, 1], [], []>} : vector<80x256xbf16>, vector<256x256xbf16>, vector<80x256xf32> -> vector<80x256xf32>
    %29 = vector.extract_strided_slice %28 {offsets = [0, 0], sizes = [80, 128], strides = [1, 1]} : vector<80x256xf32> to vector<80x128xf32>
    %30 = vector.extract_strided_slice %28 {offsets = [0, 128], sizes = [80, 128], strides = [1, 1]} : vector<80x256xf32> to vector<80x128xf32>
    %31 = arith.maximumf %29, %30 : vector<80x128xf32>
    %c0_23 = arith.constant 0 : index
    %c0_24 = arith.constant 0 : index
    %32 = vector.load %arg7[%c0_23, %c0_24] : memref<1x128xf32, #tpu.memory_space<vmem>>, vector<1x128xf32>
    %33 = vector.broadcast %32 : vector<1x128xf32> to vector<80x128xf32>
    %34 = arith.addf %31, %33 : vector<80x128xf32>
    %cst_25 = arith.constant 0.000000e+00 : f32
    %35 = vector.broadcast %cst_25 : f32 to vector<80x128xf32>
    %36 = arith.maximumf %34, %35 : vector<80x128xf32>
    %c0_26 = arith.constant 0 : index
    %c0_27 = arith.constant 0 : index
    %37 = vector.load %arg16[%c0_26, %c0_27] : memref<80x128xf32, #tpu.memory_space<vmem>>, vector<80x128xf32>
    tpu.vector_store %arg16[%c0_26, %c0_27], %36 {strides = array<i32>} : memref<80x128xf32, #tpu.memory_space<vmem>>, vector<80x128xf32>,
    %c0_28 = arith.constant 0 : index
    %c0_29 = arith.constant 0 : index
    %38 = vector.load %arg16[%c0_28, %c0_29] : memref<80x128xf32, #tpu.memory_space<vmem>>, vector<2x128xf32>
    %39 = arith.truncf %38 : vector<2x128xf32> to vector<2x128xbf16>
    %c0_30 = arith.constant 0 : index
    %c0_31 = arith.constant 0 : index
    %40 = vector.load %arg17[%c0_30, %c0_31] : memref<2x5120xbf16, #tpu.memory_space<vmem>>, vector<2x128xbf16>
    tpu.vector_store %arg17[%c0_30, %c0_31], %39 {strides = array<i32>} : memref<2x5120xbf16, #tpu.memory_space<vmem>>, vector<2x128xbf16>,
    %c2 = arith.constant 2 : index
    %c0_32 = arith.constant 0 : index
    %41 = vector.load %arg16[%c2, %c0_32] : memref<80x128xf32, #tpu.memory_space<vmem>>, vector<2x128xf32>
    %42 = arith.truncf %41 : vector<2x128xf32> to vector<2x128xbf16>
    %c0_33 = arith.constant 0 : index
    %c128 = arith.constant 128 : index
    %43 = vector.load %arg17[%c0_33, %c128] : memref<2x5120xbf16, #tpu.memory_space<vmem>>, vector<2x128xbf16>
    tpu.vector_store %arg17[%c0_33, %c128], %42 {strides = array<i32>} : memref<2x5120xbf16, #tpu.memory_space<vmem>>, vector<2x128xbf16>,
    %c4 = arith.constant 4 : index
    %c0_34 = arith.constant 0 : index
    %44 = vector.load %arg16[%c4, %c0_34] : memref<80x128xf32, #tpu.memory_space<vmem>>, vector<2x128xf32>
    %45 = arith.truncf %44 : vector<2x128xf32> to vector<2x128xbf16>
    %c0_35 = arith.constant 0 : index
    %c256 = arith.constant 256 : index
    %46 = vector.load %arg17[%c0_35, %c256] : memref<2x5120xbf16, #tpu.memory_space<vmem>>, vector<2x128xbf16>
    tpu.vector_store %arg17[%c0_35, %c256], %45 {strides = array<i32>} : memref<2x5120xbf16, #tpu.memory_space<vmem>>, vector<2x128xbf16>,
    %c6 = arith.constant 6 : index
    %c0_36 = arith.constant 0 : index
    %47 = vector.load %arg16[%c6, %c0_36] : memref<80x128xf32, #tpu.memory_space<vmem>>, vector<2x128xf32>
    %48 = arith.truncf %47 : vector<2x128xf32> to vector<2x128xbf16>
    %c0_37 = arith.constant 0 : index
    %c384 = arith.constant 384 : index
    %49 = vector.load %arg17[%c0_37, %c384] : memref<2x5120xbf16, #tpu.memory_space<vmem>>, vector<2x128xbf16>
    tpu.vector_store %arg17[%c0_37, %c384], %48 {strides = array<i32>} : memref<2x5120xbf16, #tpu.memory_space<vmem>>, vector<2x128xbf16>,
    %c8 = arith.constant 8 : index
    %c0_38 = arith.constant 0 : index
    %50 = vector.load %arg16[%c8, %c0_38] : memref<80x128xf32, #tpu.memory_space<vmem>>, vector<2x128xf32>
    %51 = arith.truncf %50 : vector<2x128xf32> to vector<2x128xbf16>
    %c0_39 = arith.constant 0 : index
    %c512 = arith.constant 512 : index
    %52 = vector.load %arg17[%c0_39, %c512] : memref<2x5120xbf16, #tpu.memory_space<vmem>>, vector<2x128xbf16>
    tpu.vector_store %arg17[%c0_39, %c512], %51 {strides = array<i32>} : memref<2x5120xbf16, #tpu.memory_space<vmem>>, vector<2x128xbf16>,
    %c10 = arith.constant 10 : index
    %c0_40 = arith.constant 0 : index
    %53 = vector.load %arg16[%c10, %c0_40] : memref<80x128xf32, #tpu.memory_space<vmem>>, vector<2x128xf32>
    %54 = arith.truncf %53 : vector<2x128xf32> to vector<2x128xbf16>
    %c0_41 = arith.constant 0 : index
    %c640 = arith.constant 640 : index
    %55 = vector.load %arg17[%c0_41, %c640] : memref<2x5120xbf16, #tpu.memory_space<vmem>>, vector<2x128xbf16>
    tpu.vector_store %arg17[%c0_41, %c640], %54 {strides = array<i32>} : memref<2x5120xbf16, #tpu.memory_space<vmem>>, vector<2x128xbf16>,
    %c12 = arith.constant 12 : index
    %c0_42 = arith.constant 0 : index
    %56 = vector.load %arg16[%c12, %c0_42] : memref<80x128xf32, #tpu.memory_space<vmem>>, vector<2x128xf32>
    %57 = arith.truncf %56 : vector<2x128xf32> to vector<2x128xbf16>
    %c0_43 = arith.constant 0 : index
    %c768 = arith.constant 768 : index
    %58 = vector.load %arg17[%c0_43, %c768] : memref<2x5120xbf16, #tpu.memory_space<vmem>>, vector<2x128xbf16>
    tpu.vector_store %arg17[%c0_43, %c768], %57 {strides = array<i32>} : memref<2x5120xbf16, #tpu.memory_space<vmem>>, vector<2x128xbf16>,
    %c14 = arith.constant 14 : index
    %c0_44 = arith.constant 0 : index
    %59 = vector.load %arg16[%c14, %c0_44] : memref<80x128xf32, #tpu.memory_space<vmem>>, vector<2x128xf32>
    %60 = arith.truncf %59 : vector<2x128xf32> to vector<2x128xbf16>
    %c0_45 = arith.constant 0 : index
    %c896 = arith.constant 896 : index
    %61 = vector.load %arg17[%c0_45, %c896] : memref<2x5120xbf16, #tpu.memory_space<vmem>>, vector<2x128xbf16>
    tpu.vector_store %arg17[%c0_45, %c896], %60 {strides = array<i32>} : memref<2x5120xbf16, #tpu.memory_space<vmem>>, vector<2x128xbf16>,
    %c16 = arith.constant 16 : index
    %c0_46 = arith.constant 0 : index
    %62 = vector.load %arg16[%c16, %c0_46] : memref<80x128xf32, #tpu.memory_space<vmem>>, vector<2x128xf32>
    %63 = arith.truncf %62 : vector<2x128xf32> to vector<2x128xbf16>
    %c0_47 = arith.constant 0 : index
    %c1024 = arith.constant 1024 : index
    %64 = vector.load %arg17[%c0_47, %c1024] : memref<2x5120xbf16, #tpu.memory_space<vmem>>, vector<2x128xbf16>
    tpu.vector_store %arg17[%c0_47, %c1024], %63 {strides = array<i32>} : memref<2x5120xbf16, #tpu.memory_space<vmem>>, vector<2x128xbf16>,
    %c18 = arith.constant 18 : index
    %c0_48 = arith.constant 0 : index
    %65 = vector.load %arg16[%c18, %c0_48] : memref<80x128xf32, #tpu.memory_space<vmem>>, vector<2x128xf32>
    %66 = arith.truncf %65 : vector<2x128xf32> to vector<2x128xbf16>
    %c0_49 = arith.constant 0 : index
    %c1152 = arith.constant 1152 : index
    %67 = vector.load %arg17[%c0_49, %c1152] : memref<2x5120xbf16, #tpu.memory_space<vmem>>, vector<2x128xbf16>
    tpu.vector_store %arg17[%c0_49, %c1152], %66 {strides = array<i32>} : memref<2x5120xbf16, #tpu.memory_space<vmem>>, vector<2x128xbf16>,
    %c20 = arith.constant 20 : index
    %c0_50 = arith.constant 0 : index
    %68 = vector.load %arg16[%c20, %c0_50] : memref<80x128xf32, #tpu.memory_space<vmem>>, vector<2x128xf32>
    %69 = arith.truncf %68 : vector<2x128xf32> to vector<2x128xbf16>
    %c0_51 = arith.constant 0 : index
    %c1280 = arith.constant 1280 : index
    %70 = vector.load %arg17[%c0_51, %c1280] : memref<2x5120xbf16, #tpu.memory_space<vmem>>, vector<2x128xbf16>
    tpu.vector_store %arg17[%c0_51, %c1280], %69 {strides = array<i32>} : memref<2x5120xbf16, #tpu.memory_space<vmem>>, vector<2x128xbf16>,
    %c22 = arith.constant 22 : index
    %c0_52 = arith.constant 0 : index
    %71 = vector.load %arg16[%c22, %c0_52] : memref<80x128xf32, #tpu.memory_space<vmem>>, vector<2x128xf32>
    %72 = arith.truncf %71 : vector<2x128xf32> to vector<2x128xbf16>
    %c0_53 = arith.constant 0 : index
    %c1408 = arith.constant 1408 : index
    %73 = vector.load %arg17[%c0_53, %c1408] : memref<2x5120xbf16, #tpu.memory_space<vmem>>, vector<2x128xbf16>
    tpu.vector_store %arg17[%c0_53, %c1408], %72 {strides = array<i32>} : memref<2x5120xbf16, #tpu.memory_space<vmem>>, vector<2x128xbf16>,
    %c24 = arith.constant 24 : index
    %c0_54 = arith.constant 0 : index
    %74 = vector.load %arg16[%c24, %c0_54] : memref<80x128xf32, #tpu.memory_space<vmem>>, vector<2x128xf32>
    %75 = arith.truncf %74 : vector<2x128xf32> to vector<2x128xbf16>
    %c0_55 = arith.constant 0 : index
    %c1536 = arith.constant 1536 : index
    %76 = vector.load %arg17[%c0_55, %c1536] : memref<2x5120xbf16, #tpu.memory_space<vmem>>, vector<2x128xbf16>
    tpu.vector_store %arg17[%c0_55, %c1536], %75 {strides = array<i32>} : memref<2x5120xbf16, #tpu.memory_space<vmem>>, vector<2x128xbf16>,
    %c26 = arith.constant 26 : index
    %c0_56 = arith.constant 0 : index
    %77 = vector.load %arg16[%c26, %c0_56] : memref<80x128xf32, #tpu.memory_space<vmem>>, vector<2x128xf32>
    %78 = arith.truncf %77 : vector<2x128xf32> to vector<2x128xbf16>
    %c0_57 = arith.constant 0 : index
    %c1664 = arith.constant 1664 : index
    %79 = vector.load %arg17[%c0_57, %c1664] : memref<2x5120xbf16, #tpu.memory_space<vmem>>, vector<2x128xbf16>
    tpu.vector_store %arg17[%c0_57, %c1664], %78 {strides = array<i32>} : memref<2x5120xbf16, #tpu.memory_space<vmem>>, vector<2x128xbf16>,
    %c28 = arith.constant 28 : index
    %c0_58 = arith.constant 0 : index
    %80 = vector.load %arg16[%c28, %c0_58] : memref<80x128xf32, #tpu.memory_space<vmem>>, vector<2x128xf32>
    %81 = arith.truncf %80 : vector<2x128xf32> to vector<2x128xbf16>
    %c0_59 = arith.constant 0 : index
    %c1792 = arith.constant 1792 : index
    %82 = vector.load %arg17[%c0_59, %c1792] : memref<2x5120xbf16, #tpu.memory_space<vmem>>, vector<2x128xbf16>
    tpu.vector_store %arg17[%c0_59, %c1792], %81 {strides = array<i32>} : memref<2x5120xbf16, #tpu.memory_space<vmem>>, vector<2x128xbf16>,
    %c30 = arith.constant 30 : index
    %c0_60 = arith.constant 0 : index
    %83 = vector.load %arg16[%c30, %c0_60] : memref<80x128xf32, #tpu.memory_space<vmem>>, vector<2x128xf32>
    %84 = arith.truncf %83 : vector<2x128xf32> to vector<2x128xbf16>
    %c0_61 = arith.constant 0 : index
    %c1920 = arith.constant 1920 : index
    %85 = vector.load %arg17[%c0_61, %c1920] : memref<2x5120xbf16, #tpu.memory_space<vmem>>, vector<2x128xbf16>
    tpu.vector_store %arg17[%c0_61, %c1920], %84 {strides = array<i32>} : memref<2x5120xbf16, #tpu.memory_space<vmem>>, vector<2x128xbf16>,
    %c32 = arith.constant 32 : index
    %c0_62 = arith.constant 0 : index
    %86 = vector.load %arg16[%c32, %c0_62] : memref<80x128xf32, #tpu.memory_space<vmem>>, vector<2x128xf32>
    %87 = arith.truncf %86 : vector<2x128xf32> to vector<2x128xbf16>
    %c0_63 = arith.constant 0 : index
    %c2048 = arith.constant 2048 : index
    %88 = vector.load %arg17[%c0_63, %c2048] : memref<2x5120xbf16, #tpu.memory_space<vmem>>, vector<2x128xbf16>
    tpu.vector_store %arg17[%c0_63, %c2048], %87 {strides = array<i32>} : memref<2x5120xbf16, #tpu.memory_space<vmem>>, vector<2x128xbf16>,
    %c34 = arith.constant 34 : index
    %c0_64 = arith.constant 0 : index
    %89 = vector.load %arg16[%c34, %c0_64] : memref<80x128xf32, #tpu.memory_space<vmem>>, vector<2x128xf32>
    %90 = arith.truncf %89 : vector<2x128xf32> to vector<2x128xbf16>
    %c0_65 = arith.constant 0 : index
    %c2176 = arith.constant 2176 : index
    %91 = vector.load %arg17[%c0_65, %c2176] : memref<2x5120xbf16, #tpu.memory_space<vmem>>, vector<2x128xbf16>
    tpu.vector_store %arg17[%c0_65, %c2176], %90 {strides = array<i32>} : memref<2x5120xbf16, #tpu.memory_space<vmem>>, vector<2x128xbf16>,
    %c36 = arith.constant 36 : index
    %c0_66 = arith.constant 0 : index
    %92 = vector.load %arg16[%c36, %c0_66] : memref<80x128xf32, #tpu.memory_space<vmem>>, vector<2x128xf32>
    %93 = arith.truncf %92 : vector<2x128xf32> to vector<2x128xbf16>
    %c0_67 = arith.constant 0 : index
    %c2304 = arith.constant 2304 : index
    %94 = vector.load %arg17[%c0_67, %c2304] : memref<2x5120xbf16, #tpu.memory_space<vmem>>, vector<2x128xbf16>
    tpu.vector_store %arg17[%c0_67, %c2304], %93 {strides = array<i32>} : memref<2x5120xbf16, #tpu.memory_space<vmem>>, vector<2x128xbf16>,
    %c38 = arith.constant 38 : index
    %c0_68 = arith.constant 0 : index
    %95 = vector.load %arg16[%c38, %c0_68] : memref<80x128xf32, #tpu.memory_space<vmem>>, vector<2x128xf32>
    %96 = arith.truncf %95 : vector<2x128xf32> to vector<2x128xbf16>
    %c0_69 = arith.constant 0 : index
    %c2432 = arith.constant 2432 : index
    %97 = vector.load %arg17[%c0_69, %c2432] : memref<2x5120xbf16, #tpu.memory_space<vmem>>, vector<2x128xbf16>
    tpu.vector_store %arg17[%c0_69, %c2432], %96 {strides = array<i32>} : memref<2x5120xbf16, #tpu.memory_space<vmem>>, vector<2x128xbf16>,
    %c40 = arith.constant 40 : index
    %c0_70 = arith.constant 0 : index
    %98 = vector.load %arg16[%c40, %c0_70] : memref<80x128xf32, #tpu.memory_space<vmem>>, vector<2x128xf32>
    %99 = arith.truncf %98 : vector<2x128xf32> to vector<2x128xbf16>
    %c0_71 = arith.constant 0 : index
    %c2560 = arith.constant 2560 : index
    %100 = vector.load %arg17[%c0_71, %c2560] : memref<2x5120xbf16, #tpu.memory_space<vmem>>, vector<2x128xbf16>
    tpu.vector_store %arg17[%c0_71, %c2560], %99 {strides = array<i32>} : memref<2x5120xbf16, #tpu.memory_space<vmem>>, vector<2x128xbf16>,
    %c42 = arith.constant 42 : index
    %c0_72 = arith.constant 0 : index
    %101 = vector.load %arg16[%c42, %c0_72] : memref<80x128xf32, #tpu.memory_space<vmem>>, vector<2x128xf32>
    %102 = arith.truncf %101 : vector<2x128xf32> to vector<2x128xbf16>
    %c0_73 = arith.constant 0 : index
    %c2688 = arith.constant 2688 : index
    %103 = vector.load %arg17[%c0_73, %c2688] : memref<2x5120xbf16, #tpu.memory_space<vmem>>, vector<2x128xbf16>
    tpu.vector_store %arg17[%c0_73, %c2688], %102 {strides = array<i32>} : memref<2x5120xbf16, #tpu.memory_space<vmem>>, vector<2x128xbf16>,
    %c44 = arith.constant 44 : index
    %c0_74 = arith.constant 0 : index
    %104 = vector.load %arg16[%c44, %c0_74] : memref<80x128xf32, #tpu.memory_space<vmem>>, vector<2x128xf32>
    %105 = arith.truncf %104 : vector<2x128xf32> to vector<2x128xbf16>
    %c0_75 = arith.constant 0 : index
    %c2816 = arith.constant 2816 : index
    %106 = vector.load %arg17[%c0_75, %c2816] : memref<2x5120xbf16, #tpu.memory_space<vmem>>, vector<2x128xbf16>
    tpu.vector_store %arg17[%c0_75, %c2816], %105 {strides = array<i32>} : memref<2x5120xbf16, #tpu.memory_space<vmem>>, vector<2x128xbf16>,
    %c46 = arith.constant 46 : index
    %c0_76 = arith.constant 0 : index
    %107 = vector.load %arg16[%c46, %c0_76] : memref<80x128xf32, #tpu.memory_space<vmem>>, vector<2x128xf32>
    %108 = arith.truncf %107 : vector<2x128xf32> to vector<2x128xbf16>
    %c0_77 = arith.constant 0 : index
    %c2944 = arith.constant 2944 : index
    %109 = vector.load %arg17[%c0_77, %c2944] : memref<2x5120xbf16, #tpu.memory_space<vmem>>, vector<2x128xbf16>
    tpu.vector_store %arg17[%c0_77, %c2944], %108 {strides = array<i32>} : memref<2x5120xbf16, #tpu.memory_space<vmem>>, vector<2x128xbf16>,
    %c48 = arith.constant 48 : index
    %c0_78 = arith.constant 0 : index
    %110 = vector.load %arg16[%c48, %c0_78] : memref<80x128xf32, #tpu.memory_space<vmem>>, vector<2x128xf32>
    %111 = arith.truncf %110 : vector<2x128xf32> to vector<2x128xbf16>
    %c0_79 = arith.constant 0 : index
    %c3072 = arith.constant 3072 : index
    %112 = vector.load %arg17[%c0_79, %c3072] : memref<2x5120xbf16, #tpu.memory_space<vmem>>, vector<2x128xbf16>
    tpu.vector_store %arg17[%c0_79, %c3072], %111 {strides = array<i32>} : memref<2x5120xbf16, #tpu.memory_space<vmem>>, vector<2x128xbf16>,
    %c50 = arith.constant 50 : index
    %c0_80 = arith.constant 0 : index
    %113 = vector.load %arg16[%c50, %c0_80] : memref<80x128xf32, #tpu.memory_space<vmem>>, vector<2x128xf32>
    %114 = arith.truncf %113 : vector<2x128xf32> to vector<2x128xbf16>
    %c0_81 = arith.constant 0 : index
    %c3200 = arith.constant 3200 : index
    %115 = vector.load %arg17[%c0_81, %c3200] : memref<2x5120xbf16, #tpu.memory_space<vmem>>, vector<2x128xbf16>
    tpu.vector_store %arg17[%c0_81, %c3200], %114 {strides = array<i32>} : memref<2x5120xbf16, #tpu.memory_space<vmem>>, vector<2x128xbf16>,
    %c52 = arith.constant 52 : index
    %c0_82 = arith.constant 0 : index
    %116 = vector.load %arg16[%c52, %c0_82] : memref<80x128xf32, #tpu.memory_space<vmem>>, vector<2x128xf32>
    %117 = arith.truncf %116 : vector<2x128xf32> to vector<2x128xbf16>
    %c0_83 = arith.constant 0 : index
    %c3328 = arith.constant 3328 : index
    %118 = vector.load %arg17[%c0_83, %c3328] : memref<2x5120xbf16, #tpu.memory_space<vmem>>, vector<2x128xbf16>
    tpu.vector_store %arg17[%c0_83, %c3328], %117 {strides = array<i32>} : memref<2x5120xbf16, #tpu.memory_space<vmem>>, vector<2x128xbf16>,
    %c54 = arith.constant 54 : index
    %c0_84 = arith.constant 0 : index
    %119 = vector.load %arg16[%c54, %c0_84] : memref<80x128xf32, #tpu.memory_space<vmem>>, vector<2x128xf32>
    %120 = arith.truncf %119 : vector<2x128xf32> to vector<2x128xbf16>
    %c0_85 = arith.constant 0 : index
    %c3456 = arith.constant 3456 : index
    %121 = vector.load %arg17[%c0_85, %c3456] : memref<2x5120xbf16, #tpu.memory_space<vmem>>, vector<2x128xbf16>
    tpu.vector_store %arg17[%c0_85, %c3456], %120 {strides = array<i32>} : memref<2x5120xbf16, #tpu.memory_space<vmem>>, vector<2x128xbf16>,
    %c56 = arith.constant 56 : index
    %c0_86 = arith.constant 0 : index
    %122 = vector.load %arg16[%c56, %c0_86] : memref<80x128xf32, #tpu.memory_space<vmem>>, vector<2x128xf32>
    %123 = arith.truncf %122 : vector<2x128xf32> to vector<2x128xbf16>
    %c0_87 = arith.constant 0 : index
    %c3584 = arith.constant 3584 : index
    %124 = vector.load %arg17[%c0_87, %c3584] : memref<2x5120xbf16, #tpu.memory_space<vmem>>, vector<2x128xbf16>
    tpu.vector_store %arg17[%c0_87, %c3584], %123 {strides = array<i32>} : memref<2x5120xbf16, #tpu.memory_space<vmem>>, vector<2x128xbf16>,
    %c58 = arith.constant 58 : index
    %c0_88 = arith.constant 0 : index
    %125 = vector.load %arg16[%c58, %c0_88] : memref<80x128xf32, #tpu.memory_space<vmem>>, vector<2x128xf32>
    %126 = arith.truncf %125 : vector<2x128xf32> to vector<2x128xbf16>
    %c0_89 = arith.constant 0 : index
    %c3712 = arith.constant 3712 : index
    %127 = vector.load %arg17[%c0_89, %c3712] : memref<2x5120xbf16, #tpu.memory_space<vmem>>, vector<2x128xbf16>
    tpu.vector_store %arg17[%c0_89, %c3712], %126 {strides = array<i32>} : memref<2x5120xbf16, #tpu.memory_space<vmem>>, vector<2x128xbf16>,
    %c60 = arith.constant 60 : index
    %c0_90 = arith.constant 0 : index
    %128 = vector.load %arg16[%c60, %c0_90] : memref<80x128xf32, #tpu.memory_space<vmem>>, vector<2x128xf32>
    %129 = arith.truncf %128 : vector<2x128xf32> to vector<2x128xbf16>
    %c0_91 = arith.constant 0 : index
    %c3840 = arith.constant 3840 : index
    %130 = vector.load %arg17[%c0_91, %c3840] : memref<2x5120xbf16, #tpu.memory_space<vmem>>, vector<2x128xbf16>
    tpu.vector_store %arg17[%c0_91, %c3840], %129 {strides = array<i32>} : memref<2x5120xbf16, #tpu.memory_space<vmem>>, vector<2x128xbf16>,
    %c62 = arith.constant 62 : index
    %c0_92 = arith.constant 0 : index
    %131 = vector.load %arg16[%c62, %c0_92] : memref<80x128xf32, #tpu.memory_space<vmem>>, vector<2x128xf32>
    %132 = arith.truncf %131 : vector<2x128xf32> to vector<2x128xbf16>
    %c0_93 = arith.constant 0 : index
    %c3968 = arith.constant 3968 : index
    %133 = vector.load %arg17[%c0_93, %c3968] : memref<2x5120xbf16, #tpu.memory_space<vmem>>, vector<2x128xbf16>
    tpu.vector_store %arg17[%c0_93, %c3968], %132 {strides = array<i32>} : memref<2x5120xbf16, #tpu.memory_space<vmem>>, vector<2x128xbf16>,
    %c64 = arith.constant 64 : index
    %c0_94 = arith.constant 0 : index
    %134 = vector.load %arg16[%c64, %c0_94] : memref<80x128xf32, #tpu.memory_space<vmem>>, vector<2x128xf32>
    %135 = arith.truncf %134 : vector<2x128xf32> to vector<2x128xbf16>
    %c0_95 = arith.constant 0 : index
    %c4096 = arith.constant 4096 : index
    %136 = vector.load %arg17[%c0_95, %c4096] : memref<2x5120xbf16, #tpu.memory_space<vmem>>, vector<2x128xbf16>
    tpu.vector_store %arg17[%c0_95, %c4096], %135 {strides = array<i32>} : memref<2x5120xbf16, #tpu.memory_space<vmem>>, vector<2x128xbf16>,
    %c66 = arith.constant 66 : index
    %c0_96 = arith.constant 0 : index
    %137 = vector.load %arg16[%c66, %c0_96] : memref<80x128xf32, #tpu.memory_space<vmem>>, vector<2x128xf32>
    %138 = arith.truncf %137 : vector<2x128xf32> to vector<2x128xbf16>
    %c0_97 = arith.constant 0 : index
    %c4224 = arith.constant 4224 : index
    %139 = vector.load %arg17[%c0_97, %c4224] : memref<2x5120xbf16, #tpu.memory_space<vmem>>, vector<2x128xbf16>
    tpu.vector_store %arg17[%c0_97, %c4224], %138 {strides = array<i32>} : memref<2x5120xbf16, #tpu.memory_space<vmem>>, vector<2x128xbf16>,
    %c68 = arith.constant 68 : index
    %c0_98 = arith.constant 0 : index
    %140 = vector.load %arg16[%c68, %c0_98] : memref<80x128xf32, #tpu.memory_space<vmem>>, vector<2x128xf32>
    %141 = arith.truncf %140 : vector<2x128xf32> to vector<2x128xbf16>
    %c0_99 = arith.constant 0 : index
    %c4352 = arith.constant 4352 : index
    %142 = vector.load %arg17[%c0_99, %c4352] : memref<2x5120xbf16, #tpu.memory_space<vmem>>, vector<2x128xbf16>
    tpu.vector_store %arg17[%c0_99, %c4352], %141 {strides = array<i32>} : memref<2x5120xbf16, #tpu.memory_space<vmem>>, vector<2x128xbf16>,
    %c70 = arith.constant 70 : index
    %c0_100 = arith.constant 0 : index
    %143 = vector.load %arg16[%c70, %c0_100] : memref<80x128xf32, #tpu.memory_space<vmem>>, vector<2x128xf32>
    %144 = arith.truncf %143 : vector<2x128xf32> to vector<2x128xbf16>
    %c0_101 = arith.constant 0 : index
    %c4480 = arith.constant 4480 : index
    %145 = vector.load %arg17[%c0_101, %c4480] : memref<2x5120xbf16, #tpu.memory_space<vmem>>, vector<2x128xbf16>
    tpu.vector_store %arg17[%c0_101, %c4480], %144 {strides = array<i32>} : memref<2x5120xbf16, #tpu.memory_space<vmem>>, vector<2x128xbf16>,
    %c72 = arith.constant 72 : index
    %c0_102 = arith.constant 0 : index
    %146 = vector.load %arg16[%c72, %c0_102] : memref<80x128xf32, #tpu.memory_space<vmem>>, vector<2x128xf32>
    %147 = arith.truncf %146 : vector<2x128xf32> to vector<2x128xbf16>
    %c0_103 = arith.constant 0 : index
    %c4608 = arith.constant 4608 : index
    %148 = vector.load %arg17[%c0_103, %c4608] : memref<2x5120xbf16, #tpu.memory_space<vmem>>, vector<2x128xbf16>
    tpu.vector_store %arg17[%c0_103, %c4608], %147 {strides = array<i32>} : memref<2x5120xbf16, #tpu.memory_space<vmem>>, vector<2x128xbf16>,
    %c74 = arith.constant 74 : index
    %c0_104 = arith.constant 0 : index
    %149 = vector.load %arg16[%c74, %c0_104] : memref<80x128xf32, #tpu.memory_space<vmem>>, vector<2x128xf32>
    %150 = arith.truncf %149 : vector<2x128xf32> to vector<2x128xbf16>
    %c0_105 = arith.constant 0 : index
    %c4736 = arith.constant 4736 : index
    %151 = vector.load %arg17[%c0_105, %c4736] : memref<2x5120xbf16, #tpu.memory_space<vmem>>, vector<2x128xbf16>
    tpu.vector_store %arg17[%c0_105, %c4736], %150 {strides = array<i32>} : memref<2x5120xbf16, #tpu.memory_space<vmem>>, vector<2x128xbf16>,
    %c76 = arith.constant 76 : index
    %c0_106 = arith.constant 0 : index
    %152 = vector.load %arg16[%c76, %c0_106] : memref<80x128xf32, #tpu.memory_space<vmem>>, vector<2x128xf32>
    %153 = arith.truncf %152 : vector<2x128xf32> to vector<2x128xbf16>
    %c0_107 = arith.constant 0 : index
    %c4864 = arith.constant 4864 : index
    %154 = vector.load %arg17[%c0_107, %c4864] : memref<2x5120xbf16, #tpu.memory_space<vmem>>, vector<2x128xbf16>
    tpu.vector_store %arg17[%c0_107, %c4864], %153 {strides = array<i32>} : memref<2x5120xbf16, #tpu.memory_space<vmem>>, vector<2x128xbf16>,
    %c78 = arith.constant 78 : index
    %c0_108 = arith.constant 0 : index
    %155 = vector.load %arg16[%c78, %c0_108] : memref<80x128xf32, #tpu.memory_space<vmem>>, vector<2x128xf32>
    %156 = arith.truncf %155 : vector<2x128xf32> to vector<2x128xbf16>
    %c0_109 = arith.constant 0 : index
    %c4992 = arith.constant 4992 : index
    %157 = vector.load %arg17[%c0_109, %c4992] : memref<2x5120xbf16, #tpu.memory_space<vmem>>, vector<2x128xbf16>
    tpu.vector_store %arg17[%c0_109, %c4992], %156 {strides = array<i32>} : memref<2x5120xbf16, #tpu.memory_space<vmem>>, vector<2x128xbf16>,
    %c0_110 = arith.constant 0 : index
    %c0_111 = arith.constant 0 : index
    %158 = vector.load %arg17[%c0_110, %c0_111] : memref<2x5120xbf16, #tpu.memory_space<vmem>>, vector<2x5120xbf16>
    %c0_112 = arith.constant 0 : index
    %c0_113 = arith.constant 0 : index
    %159 = vector.load %arg8[%c0_112, %c0_113] : memref<5120x128xbf16, #tpu.memory_space<vmem>>, vector<5120x128xbf16>
    %cst_114 = arith.constant dense<0.000000e+00> : vector<2x128xf32>
    %160 = tpu.matmul %158, %159, %cst_114 {dimension_numbers = #tpu.dot_dimension_numbers<[1], [0], [0], [1], [0, 0, 1, 1], [], []>} : vector<2x5120xbf16>, vector<5120x128xbf16>, vector<2x128xf32> -> vector<2x128xf32>
    %c0_115 = arith.constant 0 : index
    %c0_116 = arith.constant 0 : index
    %161 = vector.load %arg9[%c0_115, %c0_116] : memref<1x128xf32, #tpu.memory_space<vmem>>, vector<1x128xf32>
    %162 = vector.broadcast %161 : vector<1x128xf32> to vector<2x128xf32>
    %163 = arith.addf %160, %162 : vector<2x128xf32>
    %cst_117 = arith.constant 0.000000e+00 : f32
    %164 = vector.broadcast %cst_117 : f32 to vector<2x128xf32>
    %165 = arith.maximumf %163, %164 : vector<2x128xf32>
    %c2_i32 = arith.constant 2 : i32
    %166 = arith.muli %arg0, %c2_i32 : i32
    %167 = tpu.assume_multiple %166, 2 : i32
    %168 = arith.index_cast %167 : i32 to index
    %c0_118 = arith.constant 0 : index
    %169 = vector.load %arg18[%168, %c0_118] : memref<2x128xf32, #tpu.memory_space<vmem>>, vector<2x128xf32>
    tpu.vector_store %arg18[%168, %c0_118], %165 {strides = array<i32>} : memref<2x128xf32, #tpu.memory_space<vmem>>, vector<2x128xf32>,
    %c0_i32 = arith.constant 0 : i32
    %170 = arith.cmpi eq, %arg0, %c0_i32 : i32
    %171 = arith.extui %170 : i1 to i32
    %c0_i32_119 = arith.constant 0 : i32
    %172 = arith.cmpi ne, %171, %c0_i32_119 : i32
    scf.if %172 {
      %c0_120 = arith.constant 0 : index
      %c0_121 = arith.constant 0 : index
      %173 = vector.load %arg18[%c0_120, %c0_121] : memref<2x128xf32, #tpu.memory_space<vmem>>, vector<2x128xf32>
      %c0_122 = arith.constant 0 : index
      %c0_123 = arith.constant 0 : index
      %174 = vector.load %arg10[%c0_122, %c0_123] : memref<128x512xf32, #tpu.memory_space<vmem>>, vector<128x512xf32>
      %cst_124 = arith.constant dense<0.000000e+00> : vector<2x512xf32>
      %175 = tpu.matmul %173, %174, %cst_124 {dimension_numbers = #tpu.dot_dimension_numbers<[1], [0], [0], [1], [0, 0, 1, 1], [], []>} : vector<2x128xf32>, vector<128x512xf32>, vector<2x512xf32> -> vector<2x512xf32>
      %c0_125 = arith.constant 0 : index
      %c0_126 = arith.constant 0 : index
      %176 = vector.load %arg12[%c0_125, %c0_126] : memref<1x512xf32, #tpu.memory_space<vmem>>, vector<1x512xf32>
      %177 = vector.broadcast %176 : vector<1x512xf32> to vector<2x512xf32>
      %178 = arith.addf %175, %177 : vector<2x512xf32>
      %cst_127 = arith.constant 0.000000e+00 : f32
      %179 = vector.broadcast %cst_127 : f32 to vector<1x128xf32>
      %cst_128 = arith.constant 0.000000e+00 : f32
      %180 = vector.broadcast %cst_128 : f32 to vector<1x128xf32>
      %181 = vector.extract_strided_slice %178 {offsets = [0, 0], sizes = [1, 512], strides = [1, 1]} : vector<2x512xf32> to vector<1x512xf32>
      %c0_129 = arith.constant 0 : index
      %c0_130 = arith.constant 0 : index
      %182 = vector.load %arg11[%c0_129, %c0_130] : memref<128x512xf32, #tpu.memory_space<vmem>>, vector<128x512xf32>
      %cst_131 = arith.constant dense<0.000000e+00> : vector<1x512xf32>
      %183 = tpu.matmul %179, %182, %cst_131 {dimension_numbers = #tpu.dot_dimension_numbers<[1], [0], [0], [1], [0, 0, 1, 1], [], []>} : vector<1x128xf32>, vector<128x512xf32>, vector<1x512xf32> -> vector<1x512xf32>
      %184 = arith.addf %181, %183 : vector<1x512xf32>
      %185 = vector.extract_strided_slice %184 {offsets = [0, 0], sizes = [1, 128], strides = [1, 1]} : vector<1x512xf32> to vector<1x128xf32>
      %186 = arith.negf %185 : vector<1x128xf32>
      %187 = math.exp %186 : vector<1x128xf32>
      %cst_132 = arith.constant 1.000000e+00 : f32
      %188 = vector.broadcast %cst_132 : f32 to vector<1x128xf32>
      %189 = arith.addf %188, %187 : vector<1x128xf32>
      %190 = arith.divf %188, %189 : vector<1x128xf32>
      %191 = vector.extract_strided_slice %184 {offsets = [0, 128], sizes = [1, 128], strides = [1, 1]} : vector<1x512xf32> to vector<1x128xf32>
      %192 = arith.negf %191 : vector<1x128xf32>
      %193 = math.exp %192 : vector<1x128xf32>
      %cst_133 = arith.constant 1.000000e+00 : f32
      %194 = vector.broadcast %cst_133 : f32 to vector<1x128xf32>
      %195 = arith.addf %194, %193 : vector<1x128xf32>
      %196 = arith.divf %194, %195 : vector<1x128xf32>
      %197 = vector.extract_strided_slice %184 {offsets = [0, 256], sizes = [1, 128], strides = [1, 1]} : vector<1x512xf32> to vector<1x128xf32>
      %198 = math.tanh %197 : vector<1x128xf32>
      %199 = vector.extract_strided_slice %184 {offsets = [0, 384], sizes = [1, 128], strides = [1, 1]} : vector<1x512xf32> to vector<1x128xf32>
      %200 = arith.negf %199 : vector<1x128xf32>
      %201 = math.exp %200 : vector<1x128xf32>
      %cst_134 = arith.constant 1.000000e+00 : f32
      %202 = vector.broadcast %cst_134 : f32 to vector<1x128xf32>
      %203 = arith.addf %202, %201 : vector<1x128xf32>
      %204 = arith.divf %202, %203 : vector<1x128xf32>
      %205 = arith.mulf %196, %180 : vector<1x128xf32>
      %206 = arith.mulf %190, %198 : vector<1x128xf32>
      %207 = arith.addf %205, %206 : vector<1x128xf32>
      %208 = math.tanh %207 : vector<1x128xf32>
      %209 = arith.mulf %204, %208 : vector<1x128xf32>
      %c0_135 = arith.constant 0 : index
      %c0_136 = arith.constant 0 : index
      %210 = vector.load %arg13[%c0_135, %c0_136] : memref<2x128xf32, #tpu.memory_space<vmem>>, vector<1x128xf32>
      tpu.vector_store %arg13[%c0_135, %c0_136], %209 {strides = array<i32>} : memref<2x128xf32, #tpu.memory_space<vmem>>, vector<1x128xf32>,
      %211 = vector.extract_strided_slice %178 {offsets = [1, 0], sizes = [1, 512], strides = [1, 1]} : vector<2x512xf32> to vector<1x512xf32>
      %c0_137 = arith.constant 0 : index
      %c0_138 = arith.constant 0 : index
      %212 = vector.load %arg11[%c0_137, %c0_138] : memref<128x512xf32, #tpu.memory_space<vmem>>, vector<128x512xf32>
      %cst_139 = arith.constant dense<0.000000e+00> : vector<1x512xf32>
      %213 = tpu.matmul %209, %212, %cst_139 {dimension_numbers = #tpu.dot_dimension_numbers<[1], [0], [0], [1], [0, 0, 1, 1], [], []>} : vector<1x128xf32>, vector<128x512xf32>, vector<1x512xf32> -> vector<1x512xf32>
      %214 = arith.addf %211, %213 : vector<1x512xf32>
      %215 = vector.extract_strided_slice %214 {offsets = [0, 0], sizes = [1, 128], strides = [1, 1]} : vector<1x512xf32> to vector<1x128xf32>
      %216 = arith.negf %215 : vector<1x128xf32>
      %217 = math.exp %216 : vector<1x128xf32>
      %cst_140 = arith.constant 1.000000e+00 : f32
      %218 = vector.broadcast %cst_140 : f32 to vector<1x128xf32>
      %219 = arith.addf %218, %217 : vector<1x128xf32>
      %220 = arith.divf %218, %219 : vector<1x128xf32>
      %221 = vector.extract_strided_slice %214 {offsets = [0, 128], sizes = [1, 128], strides = [1, 1]} : vector<1x512xf32> to vector<1x128xf32>
      %222 = arith.negf %221 : vector<1x128xf32>
      %223 = math.exp %222 : vector<1x128xf32>
      %cst_141 = arith.constant 1.000000e+00 : f32
      %224 = vector.broadcast %cst_141 : f32 to vector<1x128xf32>
      %225 = arith.addf %224, %223 : vector<1x128xf32>
      %226 = arith.divf %224, %225 : vector<1x128xf32>
      %227 = vector.extract_strided_slice %214 {offsets = [0, 256], sizes = [1, 128], strides = [1, 1]} : vector<1x512xf32> to vector<1x128xf32>
      %228 = math.tanh %227 : vector<1x128xf32>
      %229 = vector.extract_strided_slice %214 {offsets = [0, 384], sizes = [1, 128], strides = [1, 1]} : vector<1x512xf32> to vector<1x128xf32>
      %230 = arith.negf %229 : vector<1x128xf32>
      %231 = math.exp %230 : vector<1x128xf32>
      %cst_142 = arith.constant 1.000000e+00 : f32
      %232 = vector.broadcast %cst_142 : f32 to vector<1x128xf32>
      %233 = arith.addf %232, %231 : vector<1x128xf32>
      %234 = arith.divf %232, %233 : vector<1x128xf32>
      %235 = arith.mulf %226, %207 : vector<1x128xf32>
      %236 = arith.mulf %220, %228 : vector<1x128xf32>
      %237 = arith.addf %235, %236 : vector<1x128xf32>
      %238 = math.tanh %237 : vector<1x128xf32>
      %239 = arith.mulf %234, %238 : vector<1x128xf32>
      %c1 = arith.constant 1 : index
      %c0_143 = arith.constant 0 : index
      %240 = vector.load %arg13[%c1, %c0_143] : memref<2x128xf32, #tpu.memory_space<vmem>>, vector<1x128xf32>
      tpu.vector_store %arg13[%c1, %c0_143], %239 {strides = array<i32>} : memref<2x128xf32, #tpu.memory_space<vmem>>, vector<1x128xf32>,
    } else {
    }
    return
  }
  func.func @transform_0(%arg0: i32) -> (i32, i32) {
    %c0_i32 = arith.constant 0 : i32
    %c0_i32_0 = arith.constant 0 : i32
    return %arg0, %c0_i32 : i32, i32
  }
  func.func @transform_1(%arg0: i32) -> (i32, i32) {
    %c0_i32 = arith.constant 0 : i32
    %c0_i32_0 = arith.constant 0 : i32
    %c0_i32_1 = arith.constant 0 : i32
    return %c0_i32, %c0_i32_0 : i32, i32
  }
  func.func @transform_2(%arg0: i32) -> (i32, i32) {
    %c0_i32 = arith.constant 0 : i32
    %c0_i32_0 = arith.constant 0 : i32
    %c0_i32_1 = arith.constant 0 : i32
    return %c0_i32, %c0_i32_0 : i32, i32
  }
  func.func @transform_3(%arg0: i32) -> (i32, i32) {
    %c0_i32 = arith.constant 0 : i32
    %c0_i32_0 = arith.constant 0 : i32
    %c0_i32_1 = arith.constant 0 : i32
    return %c0_i32, %c0_i32_0 : i32, i32
  }
  func.func @transform_4(%arg0: i32) -> (i32, i32) {
    %c0_i32 = arith.constant 0 : i32
    %c0_i32_0 = arith.constant 0 : i32
    %c0_i32_1 = arith.constant 0 : i32
    return %c0_i32, %c0_i32_0 : i32, i32
  }
  func.func @transform_5(%arg0: i32) -> (i32, i32) {
    %c0_i32 = arith.constant 0 : i32
    %c0_i32_0 = arith.constant 0 : i32
    %c0_i32_1 = arith.constant 0 : i32
    return %c0_i32, %c0_i32_0 : i32, i32
  }
  func.func @transform_6(%arg0: i32) -> (i32, i32) {
    %c0_i32 = arith.constant 0 : i32
    %c0_i32_0 = arith.constant 0 : i32
    %c0_i32_1 = arith.constant 0 : i32
    return %c0_i32, %c0_i32_0 : i32, i32
  }
  func.func @transform_7(%arg0: i32) -> (i32, i32) {
    %c0_i32 = arith.constant 0 : i32
    %c0_i32_0 = arith.constant 0 : i32
    %c0_i32_1 = arith.constant 0 : i32
    return %c0_i32, %c0_i32_0 : i32, i32
  }
  func.func @transform_8(%arg0: i32) -> (i32, i32) {
    %c0_i32 = arith.constant 0 : i32
    %c0_i32_0 = arith.constant 0 : i32
    %c0_i32_1 = arith.constant 0 : i32
    return %c0_i32, %c0_i32_0 : i32, i32
  }
  func.func @transform_9(%arg0: i32) -> (i32, i32) {
    %c0_i32 = arith.constant 0 : i32
    %c0_i32_0 = arith.constant 0 : i32
    %c0_i32_1 = arith.constant 0 : i32
    return %c0_i32, %c0_i32_0 : i32, i32
  }
  func.func @transform_10(%arg0: i32) -> (i32, i32) {
    %c0_i32 = arith.constant 0 : i32
    %c0_i32_0 = arith.constant 0 : i32
    %c0_i32_1 = arith.constant 0 : i32
    return %c0_i32, %c0_i32_0 : i32, i32
  }
  func.func @transform_11(%arg0: i32) -> (i32, i32) {
    %c0_i32 = arith.constant 0 : i32
    %c0_i32_0 = arith.constant 0 : i32
    %c0_i32_1 = arith.constant 0 : i32
    return %c0_i32, %c0_i32_0 : i32, i32
  }
  func.func @transform_12(%arg0: i32) -> (i32, i32) {
    %c0_i32 = arith.constant 0 : i32
    %c0_i32_0 = arith.constant 0 : i32
    %c0_i32_1 = arith.constant 0 : i32
    return %c0_i32, %c0_i32_0 : i32, i32
  }
}

</mosaic_0001>

<llo_original>
// kernel: cnn_lstm_forward.1
$region0: #{cnn_lstm_forward.1}
  #allocation0 [shape = 'u32[]', space=smem, size = 0x4, offset = 0x4, fixed_abs, tag = 'smem constant byte address 0x4 - core index']
  #allocation1 [shape = 'u32[144,128]{1,0:T(1,128)}', space=vmem, size = 0x12000, scoped, tag = 'internal scratch']
  #allocation2 [shape = 'bf16[80,512]{1,0:T(16,128)(2,1)}', space=vmem, size = 0x14000, scoped, tag = 'scratch operand']
  #allocation3 [shape = 'bf16[80,256]{1,0:T(16,128)(2,1)}', space=vmem, size = 0xa000, scoped, tag = 'scratch operand']
  #allocation4 [shape = 'f32[80,128]{1,0:T(8,128)}', space=vmem, size = 0xa000, scoped, tag = 'scratch operand']
  #allocation5 [shape = 'bf16[2,5120]{1,0:T(2,128)(2,1)}', space=vmem, size = 0x5000, scoped, tag = 'scratch operand']
  #allocation6 [shape = 'f32[2,128]{1,0:T(2,128)}', space=vmem, size = 0x400, scoped, tag = 'scratch operand']
  %s0 = inlined_call_operand.vmem [shape: bf16[80,384], index: 0, kind: input, shape index: {}]
  %s1 = inlined_call_operand.vmem [shape: bf16[384,1024], index: 1, kind: input, shape index: {}]
  %s2 = inlined_call_operand.vmem [shape: f32[1,512], index: 2, kind: input, shape index: {}]
  %s3 = inlined_call_operand.vmem [shape: bf16[512,512], index: 3, kind: input, shape index: {}]
  %s4 = inlined_call_operand.vmem [shape: f32[1,256], index: 4, kind: input, shape index: {}]
  %s5 = inlined_call_operand.vmem [shape: bf16[256,256], index: 5, kind: input, shape index: {}]
  %s6 = inlined_call_operand.vmem [shape: f32[1,128], index: 6, kind: input, shape index: {}]
  %s7 = inlined_call_operand.vmem [shape: bf16[5120,128], index: 7, kind: input, shape index: {}]
  %s8 = inlined_call_operand.vmem [shape: f32[1,128], index: 8, kind: input, shape index: {}]
  %s9 = inlined_call_operand.vmem [shape: f32[128,512], index: 9, kind: input, shape index: {}]
  %s10 = inlined_call_operand.vmem [shape: f32[128,512], index: 10, kind: input, shape index: {}]
  %s11 = inlined_call_operand.vmem [shape: f32[1,512], index: 11, kind: input, shape index: {}]
  %s12 = inlined_call_operand.hbm [shape: f32[2,128], index: 12, kind: output, shape index: {}]
  %s13 = sld [smem:[#allocation0]]
  $region62: #{cnn_lstm_forward.1} parent=0
    _
  %s15 = ssub.s32 1, %s13
  %s16 = scalar_select 0, %s15, %s13
  $region1: #{cnn_lstm_forward.1} parent=0
    #allocation7 [shape = 'u8[1024]{0}', space=vmem, size = 0x400, scoped, tag = 'output window, operand 0, single buffered']
    #allocation8 [shape = 's32[1]{0}', space=sflag, size = 0x4, scoped, tag = 'scoped memory for cnn_lstm_forward.1']
    %17 = vsyncpa [#allocation8], 0
    // Predicated region
    $region2: #{cnn_lstm_forward.1} parent=1 // pred_check
      _
    $region3: #{cnn_lstm_forward.1} parent=1 // pred_check_branch
      %19 = sbr.rel (0) target = $region5
    $region4: #{cnn_lstm_forward.1} parent=1 // pred_region
      _
    $region5: #{cnn_lstm_forward.1} parent=1 // pred_fallthru
      _
    // Predicated region
    $region6: #{cnn_lstm_forward.1} parent=1 // pred_check
      _
    $region7: #{cnn_lstm_forward.1} parent=1 // pred_check_branch
      %21 = sbr.rel (0) target = $region9
    $region8: #{cnn_lstm_forward.1} parent=1 // pred_region
      _
    $region9: #{cnn_lstm_forward.1} parent=1 // pred_fallthru
      _
    // Predicated region
    $region10: #{cnn_lstm_forward.1} parent=1 // pred_check
      _
    $region11: #{cnn_lstm_forward.1} parent=1 // pred_check_branch
      %23 = sbr.rel (0) target = $region13
    $region12: #{cnn_lstm_forward.1} parent=1 // pred_region
      _
    $region13: #{cnn_lstm_forward.1} parent=1 // pred_fallthru
      _
    // Predicated region
    $region14: #{cnn_lstm_forward.1} parent=1 // pred_check
      _
    $region15: #{cnn_lstm_forward.1} parent=1 // pred_check_branch
      %25 = sbr.rel (0) target = $region17
    $region16: #{cnn_lstm_forward.1} parent=1 // pred_region
      _
    $region17: #{cnn_lstm_forward.1} parent=1 // pred_fallthru
      _
    // Predicated region
    $region18: #{cnn_lstm_forward.1} parent=1 // pred_check
      _
    $region19: #{cnn_lstm_forward.1} parent=1 // pred_check_branch
      %27 = sbr.rel (0) target = $region21
    $region20: #{cnn_lstm_forward.1} parent=1 // pred_region
      _
    $region21: #{cnn_lstm_forward.1} parent=1 // pred_fallthru
      _
    // Predicated region
    $region22: #{cnn_lstm_forward.1} parent=1 // pred_check
      _
    $region23: #{cnn_lstm_forward.1} parent=1 // pred_check_branch
      %29 = sbr.rel (0) target = $region25
    $region24: #{cnn_lstm_forward.1} parent=1 // pred_region
      _
    $region25: #{cnn_lstm_forward.1} parent=1 // pred_fallthru
      _
    // Predicated region
    $region26: #{cnn_lstm_forward.1} parent=1 // pred_check
      _
    $region27: #{cnn_lstm_forward.1} parent=1 // pred_check_branch
      %31 = sbr.rel (0) target = $region29
    $region28: #{cnn_lstm_forward.1} parent=1 // pred_region
      _
    $region29: #{cnn_lstm_forward.1} parent=1 // pred_fallthru
      _
    // Predicated region
    $region30: #{cnn_lstm_forward.1} parent=1 // pred_check
      _
    $region31: #{cnn_lstm_forward.1} parent=1 // pred_check_branch
      %33 = sbr.rel (0) target = $region33
    $region32: #{cnn_lstm_forward.1} parent=1 // pred_region
      _
    $region33: #{cnn_lstm_forward.1} parent=1 // pred_fallthru
      _
    // Predicated region
    $region34: #{cnn_lstm_forward.1} parent=1 // pred_check
      _
    $region35: #{cnn_lstm_forward.1} parent=1 // pred_check_branch
      %35 = sbr.rel (0) target = $region37
    $region36: #{cnn_lstm_forward.1} parent=1 // pred_region
      _
    $region37: #{cnn_lstm_forward.1} parent=1 // pred_fallthru
      _
    // Predicated region
    $region38: #{cnn_lstm_forward.1} parent=1 // pred_check
      _
    $region39: #{cnn_lstm_forward.1} parent=1 // pred_check_branch
      %37 = sbr.rel (0) target = $region41
    $region40: #{cnn_lstm_forward.1} parent=1 // pred_region
      _
    $region41: #{cnn_lstm_forward.1} parent=1 // pred_fallthru
      _
    // Predicated region
    $region42: #{cnn_lstm_forward.1} parent=1 // pred_check
      _
    $region43: #{cnn_lstm_forward.1} parent=1 // pred_check_branch
      %39 = sbr.rel (0) target = $region45
    $region44: #{cnn_lstm_forward.1} parent=1 // pred_region
      _
    $region45: #{cnn_lstm_forward.1} parent=1 // pred_fallthru
      _
    // Predicated region
    $region46: #{cnn_lstm_forward.1} parent=1 // pred_check
      _
    $region47: #{cnn_lstm_forward.1} parent=1 // pred_check_branch
      %41 = sbr.rel (0) target = $region49
    $region48: #{cnn_lstm_forward.1} parent=1 // pred_region
      _
    $region49: #{cnn_lstm_forward.1} parent=1 // pred_fallthru
      _
    %v43 = vld [vmem:[%s0] sm:$0xff]
    %v44 = vld [vmem:[%s0 + $0x8] sm:$0xf]
    %v45 = vld [vmem:[%s0 + $0xc] sm:$0xff]
    %v46 = vld [vmem:[%s0 + $0x14] sm:$0xf]
    %v47 = vld [vmem:[%s0 + $0x18] sm:$0xff]
    %v48 = vld [vmem:[%s0 + $0x20] sm:$0xf]
    %v49 = vld [vmem:[%s0 + $0x24] sm:$0xff]
    %v50 = vld [vmem:[%s0 + $0x2c] sm:$0xf]
    %v51 = vld [vmem:[%s0 + $0x30] sm:$0xff]
    %v52 = vld [vmem:[%s0 + $0x38] sm:$0xf]
    %v53 = vld [vmem:[%s0 + $0x3c] sm:$0xff]
    %v54 = vld [vmem:[%s0 + $0x44] sm:$0xf]
    %v55 = vld [vmem:[%s0 + $0x48] sm:$0xff]
    %v56 = vld [vmem:[%s0 + $0x50] sm:$0xf]
    %v57 = vld [vmem:[%s0 + $0x54] sm:$0xff]
    %v58 = vld [vmem:[%s0 + $0x5c] sm:$0xf]
    %v59 = vld [vmem:[%s0 + $0x60] sm:$0xff]
    %v60 = vld [vmem:[%s0 + $0x68] sm:$0xf]
    %v61 = vld [vmem:[%s0 + $0x6c] sm:$0xff]
    %v62 = vld [vmem:[%s0 + $0x74] sm:$0xf]
    %v63 = vld [vmem:[%s1] sm:$0xff]
    %v64 = vld [vmem:[%s1 + $0x8] sm:$0xff]
    %v65 = vld [vmem:[%s1 + $0x10] sm:$0xff]
    %v66 = vld [vmem:[%s1 + $0x18] sm:$0xff]
    %v67 = vld [vmem:[%s1 + $0x20] sm:$0xff]
    %v68 = vld [vmem:[%s1 + $0x28] sm:$0xff]
    %v69 = vld [vmem:[%s1 + $0x30] sm:$0xff]
    %v70 = vld [vmem:[%s1 + $0x38] sm:$0xff]
    %v71 = vld [vmem:[%s1 + $0x40] sm:$0xff]
    %v72 = vld [vmem:[%s1 + $0x48] sm:$0xff]
    %v73 = vld [vmem:[%s1 + $0x50] sm:$0xff]
    %v74 = vld [vmem:[%s1 + $0x58] sm:$0xff]
    %v75 = vld [vmem:[%s1 + $0x60] sm:$0xff]
    %v76 = vld [vmem:[%s1 + $0x68] sm:$0xff]
    %v77 = vld [vmem:[%s1 + $0x70] sm:$0xff]
    %v78 = vld [vmem:[%s1 + $0x78] sm:$0xff]
    %v79 = vld [vmem:[%s1 + $0x80] sm:$0xff]
    %v80 = vld [vmem:[%s1 + $0x88] sm:$0xff]
    %v81 = vld [vmem:[%s1 + $0x90] sm:$0xff]
    %v82 = vld [vmem:[%s1 + $0x98] sm:$0xff]
    %v83 = vld [vmem:[%s1 + $0xa0] sm:$0xff]
    %v84 = vld [vmem:[%s1 + $0xa8] sm:$0xff]
    %v85 = vld [vmem:[%s1 + $0xb0] sm:$0xff]
    %v86 = vld [vmem:[%s1 + $0xb8] sm:$0xff]
    %v87 = vld [vmem:[%s1 + $0xc0] sm:$0xff]
    %v88 = vld [vmem:[%s1 + $0xc8] sm:$0xff]
    %v89 = vld [vmem:[%s1 + $0xd0] sm:$0xff]
    %v90 = vld [vmem:[%s1 + $0xd8] sm:$0xff]
    %v91 = vld [vmem:[%s1 + $0xe0] sm:$0xff]
    %v92 = vld [vmem:[%s1 + $0xe8] sm:$0xff]
    %v93 = vld [vmem:[%s1 + $0xf0] sm:$0xff]
    %v94 = vld [vmem:[%s1 + $0xf8] sm:$0xff]
    %v95 = vld [vmem:[%s1 + $0x100] sm:$0xff]
    %v96 = vld [vmem:[%s1 + $0x108] sm:$0xff]
    %v97 = vld [vmem:[%s1 + $0x110] sm:$0xff]
    %v98 = vld [vmem:[%s1 + $0x118] sm:$0xff]
    %v99 = vld [vmem:[%s1 + $0x120] sm:$0xff]
    %v100 = vld [vmem:[%s1 + $0x128] sm:$0xff]
    %v101 = vld [vmem:[%s1 + $0x130] sm:$0xff]
    %v102 = vld [vmem:[%s1 + $0x138] sm:$0xff]
    %v103 = vld [vmem:[%s1 + $0x140] sm:$0xff]
    %v104 = vld [vmem:[%s1 + $0x148] sm:$0xff]
    %v105 = vld [vmem:[%s1 + $0x150] sm:$0xff]
    %v106 = vld [vmem:[%s1 + $0x158] sm:$0xff]
    %v107 = vld [vmem:[%s1 + $0x160] sm:$0xff]
    %v108 = vld [vmem:[%s1 + $0x168] sm:$0xff]
    %v109 = vld [vmem:[%s1 + $0x170] sm:$0xff]
    %v110 = vld [vmem:[%s1 + $0x178] sm:$0xff]
    %v111 = vld [vmem:[%s1 + $0x180] sm:$0xff]
    %v112 = vld [vmem:[%s1 + $0x188] sm:$0xff]
    %v113 = vld [vmem:[%s1 + $0x190] sm:$0xff]
    %v114 = vld [vmem:[%s1 + $0x198] sm:$0xff]
    %v115 = vld [vmem:[%s1 + $0x1a0] sm:$0xff]
    %v116 = vld [vmem:[%s1 + $0x1a8] sm:$0xff]
    %v117 = vld [vmem:[%s1 + $0x1b0] sm:$0xff]
    %v118 = vld [vmem:[%s1 + $0x1b8] sm:$0xff]
    %v119 = vld [vmem:[%s1 + $0x1c0] sm:$0xff]
    %v120 = vld [vmem:[%s1 + $0x1c8] sm:$0xff]
    %v121 = vld [vmem:[%s1 + $0x1d0] sm:$0xff]
    %v122 = vld [vmem:[%s1 + $0x1d8] sm:$0xff]
    %v123 = vld [vmem:[%s1 + $0x1e0] sm:$0xff]
    %v124 = vld [vmem:[%s1 + $0x1e8] sm:$0xff]
    %v125 = vld [vmem:[%s1 + $0x1f0] sm:$0xff]
    %v126 = vld [vmem:[%s1 + $0x1f8] sm:$0xff]
    %v127 = vld [vmem:[%s1 + $0x200] sm:$0xff]
    %v128 = vld [vmem:[%s1 + $0x208] sm:$0xff]
    %v129 = vld [vmem:[%s1 + $0x210] sm:$0xff]
    %v130 = vld [vmem:[%s1 + $0x218] sm:$0xff]
    %v131 = vld [vmem:[%s1 + $0x220] sm:$0xff]
    %v132 = vld [vmem:[%s1 + $0x228] sm:$0xff]
    %v133 = vld [vmem:[%s1 + $0x230] sm:$0xff]
    %v134 = vld [vmem:[%s1 + $0x238] sm:$0xff]
    %v135 = vld [vmem:[%s1 + $0x240] sm:$0xff]
    %v136 = vld [vmem:[%s1 + $0x248] sm:$0xff]
    %v137 = vld [vmem:[%s1 + $0x250] sm:$0xff]
    %v138 = vld [vmem:[%s1 + $0x258] sm:$0xff]
    %v139 = vld [vmem:[%s1 + $0x260] sm:$0xff]
    %v140 = vld [vmem:[%s1 + $0x268] sm:$0xff]
    %v141 = vld [vmem:[%s1 + $0x270] sm:$0xff]
    %v142 = vld [vmem:[%s1 + $0x278] sm:$0xff]
    %v143 = vld [vmem:[%s1 + $0x280] sm:$0xff]
    %v144 = vld [vmem:[%s1 + $0x288] sm:$0xff]
    %v145 = vld [vmem:[%s1 + $0x290] sm:$0xff]
    %v146 = vld [vmem:[%s1 + $0x298] sm:$0xff]
    %v147 = vld [vmem:[%s1 + $0x2a0] sm:$0xff]
    %v148 = vld [vmem:[%s1 + $0x2a8] sm:$0xff]
    %v149 = vld [vmem:[%s1 + $0x2b0] sm:$0xff]
    %v150 = vld [vmem:[%s1 + $0x2b8] sm:$0xff]
    %v151 = vld [vmem:[%s1 + $0x2c0] sm:$0xff]
    %v152 = vld [vmem:[%s1 + $0x2c8] sm:$0xff]
    %v153 = vld [vmem:[%s1 + $0x2d0] sm:$0xff]
    %v154 = vld [vmem:[%s1 + $0x2d8] sm:$0xff]
    %v155 = vld [vmem:[%s1 + $0x2e0] sm:$0xff]
    %v156 = vld [vmem:[%s1 + $0x2e8] sm:$0xff]
    %v157 = vld [vmem:[%s1 + $0x2f0] sm:$0xff]
    %v158 = vld [vmem:[%s1 + $0x2f8] sm:$0xff]
    %v159 = vld [vmem:[%s1 + $0x300] sm:$0xff]
    %v160 = vld [vmem:[%s1 + $0x308] sm:$0xff]
    %v161 = vld [vmem:[%s1 + $0x310] sm:$0xff]
    %v162 = vld [vmem:[%s1 + $0x318] sm:$0xff]
    %v163 = vld [vmem:[%s1 + $0x320] sm:$0xff]
    %v164 = vld [vmem:[%s1 + $0x328] sm:$0xff]
    %v165 = vld [vmem:[%s1 + $0x330] sm:$0xff]
    %v166 = vld [vmem:[%s1 + $0x338] sm:$0xff]
    %v167 = vld [vmem:[%s1 + $0x340] sm:$0xff]
    %v168 = vld [vmem:[%s1 + $0x348] sm:$0xff]
    %v169 = vld [vmem:[%s1 + $0x350] sm:$0xff]
    %v170 = vld [vmem:[%s1 + $0x358] sm:$0xff]
    %v171 = vld [vmem:[%s1 + $0x360] sm:$0xff]
    %v172 = vld [vmem:[%s1 + $0x368] sm:$0xff]
    %v173 = vld [vmem:[%s1 + $0x370] sm:$0xff]
    %v174 = vld [vmem:[%s1 + $0x378] sm:$0xff]
    %v175 = vld [vmem:[%s1 + $0x380] sm:$0xff]
    %v176 = vld [vmem:[%s1 + $0x388] sm:$0xff]
    %v177 = vld [vmem:[%s1 + $0x390] sm:$0xff]
    %v178 = vld [vmem:[%s1 + $0x398] sm:$0xff]
    %v179 = vld [vmem:[%s1 + $0x3a0] sm:$0xff]
    %v180 = vld [vmem:[%s1 + $0x3a8] sm:$0xff]
    %v181 = vld [vmem:[%s1 + $0x3b0] sm:$0xff]
    %v182 = vld [vmem:[%s1 + $0x3b8] sm:$0xff]
    %v183 = vld [vmem:[%s1 + $0x3c0] sm:$0xff]
    %v184 = vld [vmem:[%s1 + $0x3c8] sm:$0xff]
    %v185 = vld [vmem:[%s1 + $0x3d0] sm:$0xff]
    %v186 = vld [vmem:[%s1 + $0x3d8] sm:$0xff]
    %v187 = vld [vmem:[%s1 + $0x3e0] sm:$0xff]
    %v188 = vld [vmem:[%s1 + $0x3e8] sm:$0xff]
    %v189 = vld [vmem:[%s1 + $0x3f0] sm:$0xff]
    %v190 = vld [vmem:[%s1 + $0x3f8] sm:$0xff]
    %v191 = vld [vmem:[%s1 + $0x400] sm:$0xff]
    %v192 = vld [vmem:[%s1 + $0x408] sm:$0xff]
    %v193 = vld [vmem:[%s1 + $0x410] sm:$0xff]
    %v194 = vld [vmem:[%s1 + $0x418] sm:$0xff]
    %v195 = vld [vmem:[%s1 + $0x420] sm:$0xff]
    %v196 = vld [vmem:[%s1 + $0x428] sm:$0xff]
    %v197 = vld [vmem:[%s1 + $0x430] sm:$0xff]
    %v198 = vld [vmem:[%s1 + $0x438] sm:$0xff]
    %v199 = vld [vmem:[%s1 + $0x440] sm:$0xff]
    %v200 = vld [vmem:[%s1 + $0x448] sm:$0xff]
    %v201 = vld [vmem:[%s1 + $0x450] sm:$0xff]
    %v202 = vld [vmem:[%s1 + $0x458] sm:$0xff]
    %v203 = vld [vmem:[%s1 + $0x460] sm:$0xff]
    %v204 = vld [vmem:[%s1 + $0x468] sm:$0xff]
    %v205 = vld [vmem:[%s1 + $0x470] sm:$0xff]
    %v206 = vld [vmem:[%s1 + $0x478] sm:$0xff]
    %v207 = vld [vmem:[%s1 + $0x480] sm:$0xff]
    %v208 = vld [vmem:[%s1 + $0x488] sm:$0xff]
    %v209 = vld [vmem:[%s1 + $0x490] sm:$0xff]
    %v210 = vld [vmem:[%s1 + $0x498] sm:$0xff]
    %v211 = vld [vmem:[%s1 + $0x4a0] sm:$0xff]
    %v212 = vld [vmem:[%s1 + $0x4a8] sm:$0xff]
    %v213 = vld [vmem:[%s1 + $0x4b0] sm:$0xff]
    %v214 = vld [vmem:[%s1 + $0x4b8] sm:$0xff]
    %v215 = vld [vmem:[%s1 + $0x4c0] sm:$0xff]
    %v216 = vld [vmem:[%s1 + $0x4c8] sm:$0xff]
    %v217 = vld [vmem:[%s1 + $0x4d0] sm:$0xff]
    %v218 = vld [vmem:[%s1 + $0x4d8] sm:$0xff]
    %v219 = vld [vmem:[%s1 + $0x4e0] sm:$0xff]
    %v220 = vld [vmem:[%s1 + $0x4e8] sm:$0xff]
    %v221 = vld [vmem:[%s1 + $0x4f0] sm:$0xff]
    %v222 = vld [vmem:[%s1 + $0x4f8] sm:$0xff]
    %v223 = vld [vmem:[%s1 + $0x500] sm:$0xff]
    %v224 = vld [vmem:[%s1 + $0x508] sm:$0xff]
    %v225 = vld [vmem:[%s1 + $0x510] sm:$0xff]
    %v226 = vld [vmem:[%s1 + $0x518] sm:$0xff]
    %v227 = vld [vmem:[%s1 + $0x520] sm:$0xff]
    %v228 = vld [vmem:[%s1 + $0x528] sm:$0xff]
    %v229 = vld [vmem:[%s1 + $0x530] sm:$0xff]
    %v230 = vld [vmem:[%s1 + $0x538] sm:$0xff]
    %v231 = vld [vmem:[%s1 + $0x540] sm:$0xff]
    %v232 = vld [vmem:[%s1 + $0x548] sm:$0xff]
    %v233 = vld [vmem:[%s1 + $0x550] sm:$0xff]
    %v234 = vld [vmem:[%s1 + $0x558] sm:$0xff]
    %v235 = vld [vmem:[%s1 + $0x560] sm:$0xff]
    %v236 = vld [vmem:[%s1 + $0x568] sm:$0xff]
    %v237 = vld [vmem:[%s1 + $0x570] sm:$0xff]
    %v238 = vld [vmem:[%s1 + $0x578] sm:$0xff]
    %v239 = vld [vmem:[%s1 + $0x580] sm:$0xff]
    %v240 = vld [vmem:[%s1 + $0x588] sm:$0xff]
    %v241 = vld [vmem:[%s1 + $0x590] sm:$0xff]
    %v242 = vld [vmem:[%s1 + $0x598] sm:$0xff]
    %v243 = vld [vmem:[%s1 + $0x5a0] sm:$0xff]
    %v244 = vld [vmem:[%s1 + $0x5a8] sm:$0xff]
    %v245 = vld [vmem:[%s1 + $0x5b0] sm:$0xff]
    %v246 = vld [vmem:[%s1 + $0x5b8] sm:$0xff]
    %v247 = vld [vmem:[%s1 + $0x5c0] sm:$0xff]
    %v248 = vld [vmem:[%s1 + $0x5c8] sm:$0xff]
    %v249 = vld [vmem:[%s1 + $0x5d0] sm:$0xff]
    %v250 = vld [vmem:[%s1 + $0x5d8] sm:$0xff]
    %v251 = vld [vmem:[%s1 + $0x5e0] sm:$0xff]
    %v252 = vld [vmem:[%s1 + $0x5e8] sm:$0xff]
    %v253 = vld [vmem:[%s1 + $0x5f0] sm:$0xff]
    %v254 = vld [vmem:[%s1 + $0x5f8] sm:$0xff]
    %v275 = vunpack.c.l.b16 %v43
    %v276 = vunpack.c.h.b16 %v43
    %v277 = vunpack.c.l.b16 %v44
    %v278 = vunpack.c.l.b16 %v45
    %v279 = vunpack.c.h.b16 %v45
    %v280 = vunpack.c.l.b16 %v46
    %v281 = vunpack.c.l.b16 %v47
    %v282 = vunpack.c.h.b16 %v47
    %v283 = vunpack.c.l.b16 %v48
    %v284 = vunpack.c.l.b16 %v49
    %v285 = vunpack.c.h.b16 %v49
    %v286 = vunpack.c.l.b16 %v50
    %v287 = vunpack.c.l.b16 %v51
    %v288 = vunpack.c.h.b16 %v51
    %v289 = vunpack.c.l.b16 %v52
    %v290 = vunpack.c.l.b16 %v53
    %v291 = vunpack.c.h.b16 %v53
    %v292 = vunpack.c.l.b16 %v54
    %v293 = vunpack.c.l.b16 %v55
    %v294 = vunpack.c.h.b16 %v55
    %v295 = vunpack.c.l.b16 %v56
    %v296 = vunpack.c.l.b16 %v57
    %v297 = vunpack.c.h.b16 %v57
    %v298 = vunpack.c.l.b16 %v58
    %v299 = vunpack.c.l.b16 %v59
    %v300 = vunpack.c.h.b16 %v59
    %v301 = vunpack.c.l.b16 %v60
    %v302 = vunpack.c.l.b16 %v61
    %v303 = vunpack.c.h.b16 %v61
    %v304 = vunpack.c.l.b16 %v62
    %v305 = vpack.c.b16 %v278, %v275
    %v306 = vpack.c.b16 %v279, %v276
    %v307 = vpack.c.b16 %v280, %v277
    %v308 = vpack.c.b16 %v284, %v281
    %v309 = vpack.c.b16 %v285, %v282
    %v310 = vpack.c.b16 %v286, %v283
    %v311 = vpack.c.b16 %v290, %v287
    %v312 = vpack.c.b16 %v291, %v288
    %v313 = vpack.c.b16 %v292, %v289
    %v314 = vpack.c.b16 %v296, %v293
    %v315 = vpack.c.b16 %v297, %v294
    %v316 = vpack.c.b16 %v298, %v295
    %v317 = vpack.c.b16 %v302, %v299
    %v318 = vpack.c.b16 %v303, %v300
    %v319 = vpack.c.b16 %v304, %v301
    %v527 = vunpack.c.l.b16 %v63
    %v528 = vunpack.c.h.b16 %v63
    %v529 = vunpack.c.l.b16 %v64
    %v530 = vunpack.c.h.b16 %v64
    %v531 = vunpack.c.l.b16 %v65
    %v532 = vunpack.c.h.b16 %v65
    %v533 = vunpack.c.l.b16 %v66
    %v534 = vunpack.c.h.b16 %v66
    %v535 = vunpack.c.l.b16 %v67
    %v536 = vunpack.c.h.b16 %v67
    %v537 = vunpack.c.l.b16 %v68
    %v538 = vunpack.c.h.b16 %v68
    %v539 = vunpack.c.l.b16 %v69
    %v540 = vunpack.c.h.b16 %v69
    %v541 = vunpack.c.l.b16 %v70
    %v542 = vunpack.c.h.b16 %v70
    %v543 = vunpack.c.l.b16 %v71
    %v544 = vunpack.c.h.b16 %v71
    %v545 = vunpack.c.l.b16 %v72
    %v546 = vunpack.c.h.b16 %v72
    %v547 = vunpack.c.l.b16 %v73
    %v548 = vunpack.c.h.b16 %v73
    %v549 = vunpack.c.l.b16 %v74
    %v550 = vunpack.c.h.b16 %v74
    %v551 = vunpack.c.l.b16 %v75
    %v552 = vunpack.c.h.b16 %v75
    %v553 = vunpack.c.l.b16 %v76
    %v554 = vunpack.c.h.b16 %v76
    %v555 = vunpack.c.l.b16 %v77
    %v556 = vunpack.c.h.b16 %v77
    %v557 = vunpack.c.l.b16 %v78
    %v558 = vunpack.c.h.b16 %v78
    %v559 = vunpack.c.l.b16 %v79
    %v560 = vunpack.c.h.b16 %v79
    %v561 = vunpack.c.l.b16 %v80
    %v562 = vunpack.c.h.b16 %v80
    %v563 = vunpack.c.l.b16 %v81
    %v564 = vunpack.c.h.b16 %v81
    %v565 = vunpack.c.l.b16 %v82
    %v566 = vunpack.c.h.b16 %v82
    %v567 = vunpack.c.l.b16 %v83
    %v568 = vunpack.c.h.b16 %v83
    %v569 = vunpack.c.l.b16 %v84
    %v570 = vunpack.c.h.b16 %v84
    %v571 = vunpack.c.l.b16 %v85
    %v572 = vunpack.c.h.b16 %v85
    %v573 = vunpack.c.l.b16 %v86
    %v574 = vunpack.c.h.b16 %v86
    %v575 = vunpack.c.l.b16 %v87
    %v576 = vunpack.c.h.b16 %v87
    %v577 = vunpack.c.l.b16 %v88
    %v578 = vunpack.c.h.b16 %v88
    %v579 = vunpack.c.l.b16 %v89
    %v580 = vunpack.c.h.b16 %v89
    %v581 = vunpack.c.l.b16 %v90
    %v582 = vunpack.c.h.b16 %v90
    %v583 = vunpack.c.l.b16 %v91
    %v584 = vunpack.c.h.b16 %v91
    %v585 = vunpack.c.l.b16 %v92
    %v586 = vunpack.c.h.b16 %v92
    %v587 = vunpack.c.l.b16 %v93
    %v588 = vunpack.c.h.b16 %v93
    %v589 = vunpack.c.l.b16 %v94
    %v590 = vunpack.c.h.b16 %v94
    %v591 = vunpack.c.l.b16 %v95
    %v592 = vunpack.c.h.b16 %v95
    %v593 = vunpack.c.l.b16 %v96
    %v594 = vunpack.c.h.b16 %v96
    %v595 = vunpack.c.l.b16 %v97
    %v596 = vunpack.c.h.b16 %v97
    %v597 = vunpack.c.l.b16 %v98
    %v598 = vunpack.c.h.b16 %v98
    %v599 = vunpack.c.l.b16 %v99
    %v600 = vunpack.c.h.b16 %v99
    %v601 = vunpack.c.l.b16 %v100
    %v602 = vunpack.c.h.b16 %v100
    %v603 = vunpack.c.l.b16 %v101
    %v604 = vunpack.c.h.b16 %v101
    %v605 = vunpack.c.l.b16 %v102
    %v606 = vunpack.c.h.b16 %v102
    %v607 = vunpack.c.l.b16 %v103
    %v608 = vunpack.c.h.b16 %v103
    %v609 = vunpack.c.l.b16 %v104
    %v610 = vunpack.c.h.b16 %v104
    %v611 = vunpack.c.l.b16 %v105
    %v612 = vunpack.c.h.b16 %v105
    %v613 = vunpack.c.l.b16 %v106
    %v614 = vunpack.c.h.b16 %v106
    %v615 = vunpack.c.l.b16 %v107
    %v616 = vunpack.c.h.b16 %v107
    %v617 = vunpack.c.l.b16 %v108
    %v618 = vunpack.c.h.b16 %v108
    %v619 = vunpack.c.l.b16 %v109
    %v620 = vunpack.c.h.b16 %v109
    %v621 = vunpack.c.l.b16 %v110
    %v622 = vunpack.c.h.b16 %v110
    %v623 = vunpack.c.l.b16 %v111
    %v624 = vunpack.c.h.b16 %v111
    %v625 = vunpack.c.l.b16 %v112
    %v626 = vunpack.c.h.b16 %v112
    %v627 = vunpack.c.l.b16 %v113
    %v628 = vunpack.c.h.b16 %v113
    %v629 = vunpack.c.l.b16 %v114
    %v630 = vunpack.c.h.b16 %v114
    %v631 = vunpack.c.l.b16 %v115
    %v632 = vunpack.c.h.b16 %v115
    %v633 = vunpack.c.l.b16 %v116
    %v634 = vunpack.c.h.b16 %v116
    %v635 = vunpack.c.l.b16 %v117
    %v636 = vunpack.c.h.b16 %v117
    %v637 = vunpack.c.l.b16 %v118
    %v638 = vunpack.c.h.b16 %v118
    %v639 = vunpack.c.l.b16 %v119
    %v640 = vunpack.c.h.b16 %v119
    %v641 = vunpack.c.l.b16 %v120
    %v642 = vunpack.c.h.b16 %v120
    %v643 = vunpack.c.l.b16 %v121
    %v644 = vunpack.c.h.b16 %v121
    %v645 = vunpack.c.l.b16 %v122
    %v646 = vunpack.c.h.b16 %v122
    %v647 = vunpack.c.l.b16 %v123
    %v648 = vunpack.c.h.b16 %v123
    %v649 = vunpack.c.l.b16 %v124
    %v650 = vunpack.c.h.b16 %v124
    %v651 = vunpack.c.l.b16 %v125
    %v652 = vunpack.c.h.b16 %v125
    %v653 = vunpack.c.l.b16 %v126
    %v654 = vunpack.c.h.b16 %v126
    %v655 = vunpack.c.l.b16 %v127
    %v656 = vunpack.c.h.b16 %v127
    %v657 = vunpack.c.l.b16 %v128
    %v658 = vunpack.c.h.b16 %v128
    %v659 = vunpack.c.l.b16 %v129
    %v660 = vunpack.c.h.b16 %v129
    %v661 = vunpack.c.l.b16 %v130
    %v662 = vunpack.c.h.b16 %v130
    %v663 = vunpack.c.l.b16 %v131
    %v664 = vunpack.c.h.b16 %v131
    %v665 = vunpack.c.l.b16 %v132
    %v666 = vunpack.c.h.b16 %v132
    %v667 = vunpack.c.l.b16 %v133
    %v668 = vunpack.c.h.b16 %v133
    %v669 = vunpack.c.l.b16 %v134
    %v670 = vunpack.c.h.b16 %v134
    %v671 = vunpack.c.l.b16 %v135
    %v672 = vunpack.c.h.b16 %v135
    %v673 = vunpack.c.l.b16 %v136
    %v674 = vunpack.c.h.b16 %v136
    %v675 = vunpack.c.l.b16 %v137
    %v676 = vunpack.c.h.b16 %v137
    %v677 = vunpack.c.l.b16 %v138
    %v678 = vunpack.c.h.b16 %v138
    %v679 = vunpack.c.l.b16 %v139
    %v680 = vunpack.c.h.b16 %v139
    %v681 = vunpack.c.l.b16 %v140
    %v682 = vunpack.c.h.b16 %v140
    %v683 = vunpack.c.l.b16 %v141
    %v684 = vunpack.c.h.b16 %v141
    %v685 = vunpack.c.l.b16 %v142
    %v686 = vunpack.c.h.b16 %v142
    %v687 = vunpack.c.l.b16 %v143
    %v688 = vunpack.c.h.b16 %v143
    %v689 = vunpack.c.l.b16 %v144
    %v690 = vunpack.c.h.b16 %v144
    %v691 = vunpack.c.l.b16 %v145
    %v692 = vunpack.c.h.b16 %v145
    %v693 = vunpack.c.l.b16 %v146
    %v694 = vunpack.c.h.b16 %v146
    %v695 = vunpack.c.l.b16 %v147
    %v696 = vunpack.c.h.b16 %v147
    %v697 = vunpack.c.l.b16 %v148
    %v698 = vunpack.c.h.b16 %v148
    %v699 = vunpack.c.l.b16 %v149
    %v700 = vunpack.c.h.b16 %v149
    %v701 = vunpack.c.l.b16 %v150
    %v702 = vunpack.c.h.b16 %v150
    %v703 = vunpack.c.l.b16 %v151
    %v704 = vunpack.c.h.b16 %v151
    %v705 = vunpack.c.l.b16 %v152
    %v706 = vunpack.c.h.b16 %v152
    %v707 = vunpack.c.l.b16 %v153
    %v708 = vunpack.c.h.b16 %v153
    %v709 = vunpack.c.l.b16 %v154
    %v710 = vunpack.c.h.b16 %v154
    %v711 = vunpack.c.l.b16 %v155
    %v712 = vunpack.c.h.b16 %v155
    %v713 = vunpack.c.l.b16 %v156
    %v714 = vunpack.c.h.b16 %v156
    %v715 = vunpack.c.l.b16 %v157
    %v716 = vunpack.c.h.b16 %v157
    %v717 = vunpack.c.l.b16 %v158
    %v718 = vunpack.c.h.b16 %v158
    %v719 = vunpack.c.l.b16 %v159
    %v720 = vunpack.c.h.b16 %v159
    %v721 = vunpack.c.l.b16 %v160
    %v722 = vunpack.c.h.b16 %v160
    %v723 = vunpack.c.l.b16 %v161
    %v724 = vunpack.c.h.b16 %v161
    %v725 = vunpack.c.l.b16 %v162
    %v726 = vunpack.c.h.b16 %v162
    %v727 = vunpack.c.l.b16 %v163
    %v728 = vunpack.c.h.b16 %v163
    %v729 = vunpack.c.l.b16 %v164
    %v730 = vunpack.c.h.b16 %v164
    %v731 = vunpack.c.l.b16 %v165
    %v732 = vunpack.c.h.b16 %v165
    %v733 = vunpack.c.l.b16 %v166
    %v734 = vunpack.c.h.b16 %v166
    %v735 = vunpack.c.l.b16 %v167
    %v736 = vunpack.c.h.b16 %v167
    %v737 = vunpack.c.l.b16 %v168
    %v738 = vunpack.c.h.b16 %v168
    %v739 = vunpack.c.l.b16 %v169
    %v740 = vunpack.c.h.b16 %v169
    %v741 = vunpack.c.l.b16 %v170
    %v742 = vunpack.c.h.b16 %v170
    %v743 = vunpack.c.l.b16 %v171
    %v744 = vunpack.c.h.b16 %v171
    %v745 = vunpack.c.l.b16 %v172
    %v746 = vunpack.c.h.b16 %v172
    %v747 = vunpack.c.l.b16 %v173
    %v748 = vunpack.c.h.b16 %v173
    %v749 = vunpack.c.l.b16 %v174
    %v750 = vunpack.c.h.b16 %v174
    %v751 = vunpack.c.l.b16 %v175
    %v752 = vunpack.c.h.b16 %v175
    %v753 = vunpack.c.l.b16 %v176
    %v754 = vunpack.c.h.b16 %v176
    %v755 = vunpack.c.l.b16 %v177
    %v756 = vunpack.c.h.b16 %v177
    %v757 = vunpack.c.l.b16 %v178
    %v758 = vunpack.c.h.b16 %v178
    %v759 = vunpack.c.l.b16 %v179
    %v760 = vunpack.c.h.b16 %v179
    %v761 = vunpack.c.l.b16 %v180
    %v762 = vunpack.c.h.b16 %v180
    %v763 = vunpack.c.l.b16 %v181
    %v764 = vunpack.c.h.b16 %v181
    %v765 = vunpack.c.l.b16 %v182
    %v766 = vunpack.c.h.b16 %v182
    %v767 = vunpack.c.l.b16 %v183
    %v768 = vunpack.c.h.b16 %v183
    %v769 = vunpack.c.l.b16 %v184
    %v770 = vunpack.c.h.b16 %v184
    %v771 = vunpack.c.l.b16 %v185
    %v772 = vunpack.c.h.b16 %v185
    %v773 = vunpack.c.l.b16 %v186
    %v774 = vunpack.c.h.b16 %v186
    %v775 = vunpack.c.l.b16 %v187
    %v776 = vunpack.c.h.b16 %v187
    %v777 = vunpack.c.l.b16 %v188
    %v778 = vunpack.c.h.b16 %v188
    %v779 = vunpack.c.l.b16 %v189
    %v780 = vunpack.c.h.b16 %v189
    %v781 = vunpack.c.l.b16 %v190
    %v782 = vunpack.c.h.b16 %v190
    %v783 = vunpack.c.l.b16 %v191
    %v784 = vunpack.c.h.b16 %v191
    %v785 = vunpack.c.l.b16 %v192
    %v786 = vunpack.c.h.b16 %v192
    %v787 = vunpack.c.l.b16 %v193
    %v788 = vunpack.c.h.b16 %v193
    %v789 = vunpack.c.l.b16 %v194
    %v790 = vunpack.c.h.b16 %v194
    %v791 = vunpack.c.l.b16 %v195
    %v792 = vunpack.c.h.b16 %v195
    %v793 = vunpack.c.l.b16 %v196
    %v794 = vunpack.c.h.b16 %v196
    %v795 = vunpack.c.l.b16 %v197
    %v796 = vunpack.c.h.b16 %v197
    %v797 = vunpack.c.l.b16 %v198
    %v798 = vunpack.c.h.b16 %v198
    %v799 = vunpack.c.l.b16 %v199
    %v800 = vunpack.c.h.b16 %v199
    %v801 = vunpack.c.l.b16 %v200
    %v802 = vunpack.c.h.b16 %v200
    %v803 = vunpack.c.l.b16 %v201
    %v804 = vunpack.c.h.b16 %v201
    %v805 = vunpack.c.l.b16 %v202
    %v806 = vunpack.c.h.b16 %v202
    %v807 = vunpack.c.l.b16 %v203
    %v808 = vunpack.c.h.b16 %v203
    %v809 = vunpack.c.l.b16 %v204
    %v810 = vunpack.c.h.b16 %v204
    %v811 = vunpack.c.l.b16 %v205
    %v812 = vunpack.c.h.b16 %v205
    %v813 = vunpack.c.l.b16 %v206
    %v814 = vunpack.c.h.b16 %v206
    %v815 = vunpack.c.l.b16 %v207
    %v816 = vunpack.c.h.b16 %v207
    %v817 = vunpack.c.l.b16 %v208
    %v818 = vunpack.c.h.b16 %v208
    %v819 = vunpack.c.l.b16 %v209
    %v820 = vunpack.c.h.b16 %v209
    %v821 = vunpack.c.l.b16 %v210
    %v822 = vunpack.c.h.b16 %v210
    %v823 = vunpack.c.l.b16 %v211
    %v824 = vunpack.c.h.b16 %v211
    %v825 = vunpack.c.l.b16 %v212
    %v826 = vunpack.c.h.b16 %v212
    %v827 = vunpack.c.l.b16 %v213
    %v828 = vunpack.c.h.b16 %v213
    %v829 = vunpack.c.l.b16 %v214
    %v830 = vunpack.c.h.b16 %v214
    %v831 = vunpack.c.l.b16 %v215
    %v832 = vunpack.c.h.b16 %v215
    %v833 = vunpack.c.l.b16 %v216
    %v834 = vunpack.c.h.b16 %v216
    %v835 = vunpack.c.l.b16 %v217
    %v836 = vunpack.c.h.b16 %v217
    %v837 = vunpack.c.l.b16 %v218
    %v838 = vunpack.c.h.b16 %v218
    %v839 = vunpack.c.l.b16 %v219
    %v840 = vunpack.c.h.b16 %v219
    %v841 = vunpack.c.l.b16 %v220
    %v842 = vunpack.c.h.b16 %v220
    %v843 = vunpack.c.l.b16 %v221
    %v844 = vunpack.c.h.b16 %v221
    %v845 = vunpack.c.l.b16 %v222
    %v846 = vunpack.c.h.b16 %v222
    %v847 = vunpack.c.l.b16 %v223
    %v848 = vunpack.c.h.b16 %v223
    %v849 = vunpack.c.l.b16 %v224
    %v850 = vunpack.c.h.b16 %v224
    %v851 = vunpack.c.l.b16 %v225
    %v852 = vunpack.c.h.b16 %v225
    %v853 = vunpack.c.l.b16 %v226
    %v854 = vunpack.c.h.b16 %v226
    %v855 = vunpack.c.l.b16 %v227
    %v856 = vunpack.c.h.b16 %v227
    %v857 = vunpack.c.l.b16 %v228
    %v858 = vunpack.c.h.b16 %v228
    %v859 = vunpack.c.l.b16 %v229
    %v860 = vunpack.c.h.b16 %v229
    %v861 = vunpack.c.l.b16 %v230
    %v862 = vunpack.c.h.b16 %v230
    %v863 = vunpack.c.l.b16 %v231
    %v864 = vunpack.c.h.b16 %v231
    %v865 = vunpack.c.l.b16 %v232
    %v866 = vunpack.c.h.b16 %v232
    %v867 = vunpack.c.l.b16 %v233
    %v868 = vunpack.c.h.b16 %v233
    %v869 = vunpack.c.l.b16 %v234
    %v870 = vunpack.c.h.b16 %v234
    %v871 = vunpack.c.l.b16 %v235
    %v872 = vunpack.c.h.b16 %v235
    %v873 = vunpack.c.l.b16 %v236
    %v874 = vunpack.c.h.b16 %v236
    %v875 = vunpack.c.l.b16 %v237
    %v876 = vunpack.c.h.b16 %v237
    %v877 = vunpack.c.l.b16 %v238
    %v878 = vunpack.c.h.b16 %v238
    %v879 = vunpack.c.l.b16 %v239
    %v880 = vunpack.c.h.b16 %v239
    %v881 = vunpack.c.l.b16 %v240
    %v882 = vunpack.c.h.b16 %v240
    %v883 = vunpack.c.l.b16 %v241
    %v884 = vunpack.c.h.b16 %v241
    %v885 = vunpack.c.l.b16 %v242
    %v886 = vunpack.c.h.b16 %v242
    %v887 = vunpack.c.l.b16 %v243
    %v888 = vunpack.c.h.b16 %v243
    %v889 = vunpack.c.l.b16 %v244
    %v890 = vunpack.c.h.b16 %v244
    %v891 = vunpack.c.l.b16 %v245
    %v892 = vunpack.c.h.b16 %v245
    %v893 = vunpack.c.l.b16 %v246
    %v894 = vunpack.c.h.b16 %v246
    %v895 = vunpack.c.l.b16 %v247
    %v896 = vunpack.c.h.b16 %v247
    %v897 = vunpack.c.l.b16 %v248
    %v898 = vunpack.c.h.b16 %v248
    %v899 = vunpack.c.l.b16 %v249
    %v900 = vunpack.c.h.b16 %v249
    %v901 = vunpack.c.l.b16 %v250
    %v902 = vunpack.c.h.b16 %v250
    %v903 = vunpack.c.l.b16 %v251
    %v904 = vunpack.c.h.b16 %v251
    %v905 = vunpack.c.l.b16 %v252
    %v906 = vunpack.c.h.b16 %v252
    %v907 = vunpack.c.l.b16 %v253
    %v908 = vunpack.c.h.b16 %v253
    %v909 = vunpack.c.l.b16 %v254
    %v910 = vunpack.c.h.b16 %v254
    %v911 = vpack.c.b16 %v535, %v527
    %v912 = vpack.c.b16 %v536, %v528
    %v913 = vpack.c.b16 %v537, %v529
    %v914 = vpack.c.b16 %v538, %v530
    %v915 = vpack.c.b16 %v539, %v531
    %v916 = vpack.c.b16 %v540, %v532
    %v917 = vpack.c.b16 %v541, %v533
    %v918 = vpack.c.b16 %v542, %v534
    %v919 = vpack.c.b16 %v551, %v543
    %v920 = vpack.c.b16 %v552, %v544
    %v921 = vpack.c.b16 %v553, %v545
    %v922 = vpack.c.b16 %v554, %v546
    %v923 = vpack.c.b16 %v555, %v547
    %v924 = vpack.c.b16 %v556, %v548
    %v925 = vpack.c.b16 %v557, %v549
    %v926 = vpack.c.b16 %v558, %v550
    %v927 = vpack.c.b16 %v567, %v559
    %v928 = vpack.c.b16 %v568, %v560
    %v929 = vpack.c.b16 %v569, %v561
    %v930 = vpack.c.b16 %v570, %v562
    %v931 = vpack.c.b16 %v571, %v563
    %v932 = vpack.c.b16 %v572, %v564
    %v933 = vpack.c.b16 %v573, %v565
    %v934 = vpack.c.b16 %v574, %v566
    %v935 = vpack.c.b16 %v583, %v575
    %v936 = vpack.c.b16 %v584, %v576
    %v937 = vpack.c.b16 %v585, %v577
    %v938 = vpack.c.b16 %v586, %v578
    %v939 = vpack.c.b16 %v587, %v579
    %v940 = vpack.c.b16 %v588, %v580
    %v941 = vpack.c.b16 %v589, %v581
    %v942 = vpack.c.b16 %v590, %v582
    %v943 = vpack.c.b16 %v599, %v591
    %v944 = vpack.c.b16 %v600, %v592
    %v945 = vpack.c.b16 %v601, %v593
    %v946 = vpack.c.b16 %v602, %v594
    %v947 = vpack.c.b16 %v603, %v595
    %v948 = vpack.c.b16 %v604, %v596
    %v949 = vpack.c.b16 %v605, %v597
    %v950 = vpack.c.b16 %v606, %v598
    %v951 = vpack.c.b16 %v615, %v607
    %v952 = vpack.c.b16 %v616, %v608
    %v953 = vpack.c.b16 %v617, %v609
    %v954 = vpack.c.b16 %v618, %v610
    %v955 = vpack.c.b16 %v619, %v611
    %v956 = vpack.c.b16 %v620, %v612
    %v957 = vpack.c.b16 %v621, %v613
    %v958 = vpack.c.b16 %v622, %v614
    %v959 = vpack.c.b16 %v631, %v623
    %v960 = vpack.c.b16 %v632, %v624
    %v961 = vpack.c.b16 %v633, %v625
    %v962 = vpack.c.b16 %v634, %v626
    %v963 = vpack.c.b16 %v635, %v627
    %v964 = vpack.c.b16 %v636, %v628
    %v965 = vpack.c.b16 %v637, %v629
    %v966 = vpack.c.b16 %v638, %v630
    %v967 = vpack.c.b16 %v647, %v639
    %v968 = vpack.c.b16 %v648, %v640
    %v969 = vpack.c.b16 %v649, %v641
    %v970 = vpack.c.b16 %v650, %v642
    %v971 = vpack.c.b16 %v651, %v643
    %v972 = vpack.c.b16 %v652, %v644
    %v973 = vpack.c.b16 %v653, %v645
    %v974 = vpack.c.b16 %v654, %v646
    %v975 = vpack.c.b16 %v663, %v655
    %v976 = vpack.c.b16 %v664, %v656
    %v977 = vpack.c.b16 %v665, %v657
    %v978 = vpack.c.b16 %v666, %v658
    %v979 = vpack.c.b16 %v667, %v659
    %v980 = vpack.c.b16 %v668, %v660
    %v981 = vpack.c.b16 %v669, %v661
    %v982 = vpack.c.b16 %v670, %v662
    %v983 = vpack.c.b16 %v679, %v671
    %v984 = vpack.c.b16 %v680, %v672
    %v985 = vpack.c.b16 %v681, %v673
    %v986 = vpack.c.b16 %v682, %v674
    %v987 = vpack.c.b16 %v683, %v675
    %v988 = vpack.c.b16 %v684, %v676
    %v989 = vpack.c.b16 %v685, %v677
    %v990 = vpack.c.b16 %v686, %v678
    %v991 = vpack.c.b16 %v695, %v687
    %v992 = vpack.c.b16 %v696, %v688
    %v993 = vpack.c.b16 %v697, %v689
    %v994 = vpack.c.b16 %v698, %v690
    %v995 = vpack.c.b16 %v699, %v691
    %v996 = vpack.c.b16 %v700, %v692
    %v997 = vpack.c.b16 %v701, %v693
    %v998 = vpack.c.b16 %v702, %v694
    %v999 = vpack.c.b16 %v711, %v703
    %v1000 = vpack.c.b16 %v712, %v704
    %v1001 = vpack.c.b16 %v713, %v705
    %v1002 = vpack.c.b16 %v714, %v706
    %v1003 = vpack.c.b16 %v715, %v707
    %v1004 = vpack.c.b16 %v716, %v708
    %v1005 = vpack.c.b16 %v717, %v709
    %v1006 = vpack.c.b16 %v718, %v710
    %v1007 = vpack.c.b16 %v727, %v719
    %v1008 = vpack.c.b16 %v728, %v720
    %v1009 = vpack.c.b16 %v729, %v721
    %v1010 = vpack.c.b16 %v730, %v722
    %v1011 = vpack.c.b16 %v731, %v723
    %v1012 = vpack.c.b16 %v732, %v724
    %v1013 = vpack.c.b16 %v733, %v725
    %v1014 = vpack.c.b16 %v734, %v726
    %v1015 = vpack.c.b16 %v743, %v735
    %v1016 = vpack.c.b16 %v744, %v736
    %v1017 = vpack.c.b16 %v745, %v737
    %v1018 = vpack.c.b16 %v746, %v738
    %v1019 = vpack.c.b16 %v747, %v739
    %v1020 = vpack.c.b16 %v748, %v740
    %v1021 = vpack.c.b16 %v749, %v741
    %v1022 = vpack.c.b16 %v750, %v742
    %v1023 = vpack.c.b16 %v759, %v751
    %v1024 = vpack.c.b16 %v760, %v752
    %v1025 = vpack.c.b16 %v761, %v753
    %v1026 = vpack.c.b16 %v762, %v754
    %v1027 = vpack.c.b16 %v763, %v755
    %v1028 = vpack.c.b16 %v764, %v756
    %v1029 = vpack.c.b16 %v765, %v757
    %v1030 = vpack.c.b16 %v766, %v758
    %v1031 = vpack.c.b16 %v775, %v767
    %v1032 = vpack.c.b16 %v776, %v768
    %v1033 = vpack.c.b16 %v777, %v769
    %v1034 = vpack.c.b16 %v778, %v770
    %v1035 = vpack.c.b16 %v779, %v771
    %v1036 = vpack.c.b16 %v780, %v772
    %v1037 = vpack.c.b16 %v781, %v773
    %v1038 = vpack.c.b16 %v782, %v774
    %v1039 = vpack.c.b16 %v791, %v783
    %v1040 = vpack.c.b16 %v792, %v784
    %v1041 = vpack.c.b16 %v793, %v785
    %v1042 = vpack.c.b16 %v794, %v786
    %v1043 = vpack.c.b16 %v795, %v787
    %v1044 = vpack.c.b16 %v796, %v788
    %v1045 = vpack.c.b16 %v797, %v789
    %v1046 = vpack.c.b16 %v798, %v790
    %v1047 = vpack.c.b16 %v807, %v799
    %v1048 = vpack.c.b16 %v808, %v800
    %v1049 = vpack.c.b16 %v809, %v801
    %v1050 = vpack.c.b16 %v810, %v802
    %v1051 = vpack.c.b16 %v811, %v803
    %v1052 = vpack.c.b16 %v812, %v804
    %v1053 = vpack.c.b16 %v813, %v805
    %v1054 = vpack.c.b16 %v814, %v806
    %v1055 = vpack.c.b16 %v823, %v815
    %v1056 = vpack.c.b16 %v824, %v816
    %v1057 = vpack.c.b16 %v825, %v817
    %v1058 = vpack.c.b16 %v826, %v818
    %v1059 = vpack.c.b16 %v827, %v819
    %v1060 = vpack.c.b16 %v828, %v820
    %v1061 = vpack.c.b16 %v829, %v821
    %v1062 = vpack.c.b16 %v830, %v822
    %v1063 = vpack.c.b16 %v839, %v831
    %v1064 = vpack.c.b16 %v840, %v832
    %v1065 = vpack.c.b16 %v841, %v833
    %v1066 = vpack.c.b16 %v842, %v834
    %v1067 = vpack.c.b16 %v843, %v835
    %v1068 = vpack.c.b16 %v844, %v836
    %v1069 = vpack.c.b16 %v845, %v837
    %v1070 = vpack.c.b16 %v846, %v838
    %v1071 = vpack.c.b16 %v855, %v847
    %v1072 = vpack.c.b16 %v856, %v848
    %v1073 = vpack.c.b16 %v857, %v849
    %v1074 = vpack.c.b16 %v858, %v850
    %v1075 = vpack.c.b16 %v859, %v851
    %v1076 = vpack.c.b16 %v860, %v852
    %v1077 = vpack.c.b16 %v861, %v853
    %v1078 = vpack.c.b16 %v862, %v854
    %v1079 = vpack.c.b16 %v871, %v863
    %v1080 = vpack.c.b16 %v872, %v864
    %v1081 = vpack.c.b16 %v873, %v865
    %v1082 = vpack.c.b16 %v874, %v866
    %v1083 = vpack.c.b16 %v875, %v867
    %v1084 = vpack.c.b16 %v876, %v868
    %v1085 = vpack.c.b16 %v877, %v869
    %v1086 = vpack.c.b16 %v878, %v870
    %v1087 = vpack.c.b16 %v887, %v879
    %v1088 = vpack.c.b16 %v888, %v880
    %v1089 = vpack.c.b16 %v889, %v881
    %v1090 = vpack.c.b16 %v890, %v882
    %v1091 = vpack.c.b16 %v891, %v883
    %v1092 = vpack.c.b16 %v892, %v884
    %v1093 = vpack.c.b16 %v893, %v885
    %v1094 = vpack.c.b16 %v894, %v886
    %v1095 = vpack.c.b16 %v903, %v895
    %v1096 = vpack.c.b16 %v904, %v896
    %v1097 = vpack.c.b16 %v905, %v897
    %v1098 = vpack.c.b16 %v906, %v898
    %v1099 = vpack.c.b16 %v907, %v899
    %v1100 = vpack.c.b16 %v908, %v900
    %v1101 = vpack.c.b16 %v909, %v901
    %v1102 = vpack.c.b16 %v910, %v902
    %1295 = vmatprep.subr.bf16.mxu0 %v912
    %1296 = vmatpush1.bf16.msra.mxu0 %v911
    %1297 = vmatprep.subr.bf16.mxu0 %v920
    %1298 = vmatpush1.bf16.msra.mxu0 %v919
    %1299 = vmatprep.subr.bf16.mxu0 %v928
    %1300 = vmatpush1.bf16.msra.mxu0 %v927
    %1301 = vmatprep.subr.bf16.mxu0 %v936
    %1302 = vmatpush1.bf16.msra.mxu0 %v935
    %1303 = vmatprep.subr.bf16.mxu0 %v944
    %1304 = vmatpush1.bf16.msra.mxu0 %v943
    %1305 = vmatprep.subr.bf16.mxu0 %v952
    %1306 = vmatpush1.bf16.msra.mxu0 %v951
    %1307 = vmatprep.subr.bf16.mxu0 %v960
    %1308 = vmatpush1.bf16.msra.mxu0 %v959
    %1309 = vmatprep.subr.bf16.mxu0 %v968
    %1310 = vmatpush1.bf16.msra.mxu0 %v967
    %1311 = vmatprep.subr.bf16.mxu0 %v976
    %1312 = vmatpush1.bf16.msra.mxu0 %v975
    %1313 = vmatprep.subr.bf16.mxu0 %v984
    %1314 = vmatpush1.bf16.msra.mxu0 %v983
    %1315 = vmatprep.subr.bf16.mxu0 %v992
    %1316 = vmatpush1.bf16.msra.mxu0 %v991
    %1317 = vmatprep.subr.bf16.mxu0 %v1000
    %1318 = vmatpush1.bf16.msra.mxu0 %v999
    %1319 = vmatprep.subr.bf16.mxu0 %v1008
    %1320 = vmatpush1.bf16.msra.mxu0 %v1007
    %1321 = vmatprep.subr.bf16.mxu0 %v1016
    %1322 = vmatpush1.bf16.msra.mxu0 %v1015
    %1323 = vmatprep.subr.bf16.mxu0 %v1024
    %1324 = vmatpush1.bf16.msra.mxu0 %v1023
    %1325 = vmatprep.subr.bf16.mxu0 %v1032
    %1326 = vmatpush1.bf16.msra.mxu0 %v1031
    %1327 = vmatprep.mubr.bf16.mxu0 %v306
    %1328 = vmatmul.mubr.bf16.gmra.mrb[0].mxu0 %v305
    %v1329 = vpop.f32.mrb[0].mxu0
    %v1330 = vadd.f32 0.0, %v1329
    %v1331 = vpop.f32.mrb[0].mxu0
    %v1332 = vadd.f32 0.0, %v1331
    %v1333 = vpop.f32.mrb[0].mxu0
    %v1334 = vadd.f32 0.0, %v1333
    %v1335 = vpop.f32.mrb[0].mxu0
    %v1336 = vadd.f32 0.0, %v1335
    %1337 = vmatprep.mubr.bf16.mxu0 %v309
    %1338 = vmatmul.mubr.bf16.gmra.mrb[0].mxu0 %v308
    %v1339 = vpop.f32.mrb[0].mxu0
    %v1340 = vadd.f32 0.0, %v1339
    %v1341 = vpop.f32.mrb[0].mxu0
    %v1342 = vadd.f32 0.0, %v1341
    %v1343 = vpop.f32.mrb[0].mxu0
    %v1344 = vadd.f32 0.0, %v1343
    %v1345 = vpop.f32.mrb[0].mxu0
    %v1346 = vadd.f32 0.0, %v1345
    %1347 = vmatprep.mubr.bf16.mxu0 %v312
    %1348 = vmatmul.mubr.bf16.gmra.mrb[0].mxu0 %v311
    %v1349 = vpop.f32.mrb[0].mxu0
    %v1350 = vadd.f32 0.0, %v1349
    %v1351 = vpop.f32.mrb[0].mxu0
    %v1352 = vadd.f32 0.0, %v1351
    %v1353 = vpop.f32.mrb[0].mxu0
    %v1354 = vadd.f32 0.0, %v1353
    %v1355 = vpop.f32.mrb[0].mxu0
    %v1356 = vadd.f32 0.0, %v1355
    %1357 = vmatprep.mubr.bf16.mxu0 %v315
    %1358 = vmatmul.mubr.bf16.gmra.mrb[0].mxu0 %v314
    %v1359 = vpop.f32.mrb[0].mxu0
    %v1360 = vadd.f32 0.0, %v1359
    %v1361 = vpop.f32.mrb[0].mxu0
    %v1362 = vadd.f32 0.0, %v1361
    %v1363 = vpop.f32.mrb[0].mxu0
    %v1364 = vadd.f32 0.0, %v1363
    %v1365 = vpop.f32.mrb[0].mxu0
    %v1366 = vadd.f32 0.0, %v1365
    %1367 = vmatprep.mubr.bf16.mxu0 %v318
    %1368 = vmatmul.mubr.bf16.gmra.mrb[0].mxu0 %v317
    %v1369 = vpop.f32.mrb[0].mxu0
    %v1370 = vadd.f32 0.0, %v1369
    %v1371 = vpop.f32.mrb[0].mxu0
    %v1372 = vadd.f32 0.0, %v1371
    %v1373 = vpop.f32.mrb[0].mxu0
    %v1374 = vadd.f32 0.0, %v1373
    %v1375 = vpop.f32.mrb[0].mxu0
    %v1376 = vadd.f32 0.0, %v1375
    %1377 = vdwg.mxu0
    %1378 = vmatprep.subr.bf16.mxu0 %v1040
    %1379 = vmatpush1.bf16.msra.mxu0 %v1039
    %1380 = vmatprep.subr.bf16.mxu0 %v1048
    %1381 = vmatpush1.bf16.msra.mxu0 %v1047
    %1382 = vmatprep.subr.bf16.mxu0 %v1056
    %1383 = vmatpush1.bf16.msra.mxu0 %v1055
    %1384 = vmatprep.subr.bf16.mxu0 %v1064
    %1385 = vmatpush1.bf16.msra.mxu0 %v1063
    %1386 = vmatprep.subr.bf16.mxu0 %v1072
    %1387 = vmatpush1.bf16.msra.mxu0 %v1071
    %1388 = vmatprep.subr.bf16.mxu0 %v1080
    %1389 = vmatpush1.bf16.msra.mxu0 %v1079
    %1390 = vmatprep.subr.bf16.mxu0 %v1088
    %1391 = vmatpush1.bf16.msra.mxu0 %v1087
    %1392 = vmatprep.subr.bf16.mxu0 %v1096
    %1393 = vmatpush1.bf16.msra.mxu0 %v1095
    %1394 = vmatprep.subr.bf16.mxu0 0
    %1395 = vmatpush1.bf16.msra.mxu0 0
    %1396 = vmatprep.subr.bf16.mxu0 0
    %1397 = vmatpush1.bf16.msra.mxu0 0
    %1398 = vmatprep.subr.bf16.mxu0 0
    %1399 = vmatpush1.bf16.msra.mxu0 0
    %1400 = vmatprep.subr.bf16.mxu0 0
    %1401 = vmatpush1.bf16.msra.mxu0 0
    %1402 = vmatprep.subr.bf16.mxu0 0
    %1403 = vmatpush1.bf16.msra.mxu0 0
    %1404 = vmatprep.subr.bf16.mxu0 0
    %1405 = vmatpush1.bf16.msra.mxu0 0
    %1406 = vmatprep.subr.bf16.mxu0 0
    %1407 = vmatpush1.bf16.msra.mxu0 0
    %1408 = vmatprep.subr.bf16.mxu0 0
    %1409 = vmatpush1.bf16.msra.mxu0 0
    %1410 = vmatprep.mubr.bf16.mxu0 0
    %1411 = vmatmul.mubr.bf16.gmra.mrb[0].mxu0 %v307
    %v1412 = vpop.f32.mrb[0].mxu0
    %v1413 = vadd.f32 %v1330, %v1412
    %v1414 = vpop.f32.mrb[0].mxu0
    %v1415 = vadd.f32 %v1332, %v1414
    %v1416 = vpop.f32.mrb[0].mxu0
    %v1417 = vadd.f32 %v1334, %v1416
    %v1418 = vpop.f32.mrb[0].mxu0
    %v1419 = vadd.f32 %v1336, %v1418
    %1420 = vmatprep.mubr.bf16.mxu0 0
    %1421 = vmatmul.mubr.bf16.gmra.mrb[0].mxu0 %v310
    %v1422 = vpop.f32.mrb[0].mxu0
    %v1423 = vadd.f32 %v1340, %v1422
    %v1424 = vpop.f32.mrb[0].mxu0
    %v1425 = vadd.f32 %v1342, %v1424
    %v1426 = vpop.f32.mrb[0].mxu0
    %v1427 = vadd.f32 %v1344, %v1426
    %v1428 = vpop.f32.mrb[0].mxu0
    %v1429 = vadd.f32 %v1346, %v1428
    %1430 = vmatprep.mubr.bf16.mxu0 0
    %1431 = vmatmul.mubr.bf16.gmra.mrb[0].mxu0 %v313
    %v1432 = vpop.f32.mrb[0].mxu0
    %v1433 = vadd.f32 %v1350, %v1432
    %v1434 = vpop.f32.mrb[0].mxu0
    %v1435 = vadd.f32 %v1352, %v1434
    %v1436 = vpop.f32.mrb[0].mxu0
    %v1437 = vadd.f32 %v1354, %v1436
    %v1438 = vpop.f32.mrb[0].mxu0
    %v1439 = vadd.f32 %v1356, %v1438
    %1440 = vmatprep.mubr.bf16.mxu0 0
    %1441 = vmatmul.mubr.bf16.gmra.mrb[0].mxu0 %v316
    %v1442 = vpop.f32.mrb[0].mxu0
    %v1443 = vadd.f32 %v1360, %v1442
    %v1444 = vpop.f32.mrb[0].mxu0
    %v1445 = vadd.f32 %v1362, %v1444
    %v1446 = vpop.f32.mrb[0].mxu0
    %v1447 = vadd.f32 %v1364, %v1446
    %v1448 = vpop.f32.mrb[0].mxu0
    %v1449 = vadd.f32 %v1366, %v1448
    %1450 = vmatprep.mubr.bf16.mxu0 0
    %1451 = vmatmul.mubr.bf16.gmra.mrb[0].mxu0 %v319
    %v1452 = vpop.f32.mrb[0].mxu0
    %v1453 = vadd.f32 %v1370, %v1452
    %v1454 = vpop.f32.mrb[0].mxu0
    %v1455 = vadd.f32 %v1372, %v1454
    %v1456 = vpop.f32.mrb[0].mxu0
    %v1457 = vadd.f32 %v1374, %v1456
    %v1458 = vpop.f32.mrb[0].mxu0
    %v1459 = vadd.f32 %v1376, %v1458
    %1460 = vdwg.mxu0
    %1461 = vmatprep.subr.bf16.mxu0 %v914
    %1462 = vmatpush1.bf16.msra.mxu0 %v913
    %1463 = vmatprep.subr.bf16.mxu0 %v922
    %1464 = vmatpush1.bf16.msra.mxu0 %v921
    %1465 = vmatprep.subr.bf16.mxu0 %v930
    %1466 = vmatpush1.bf16.msra.mxu0 %v929
    %1467 = vmatprep.subr.bf16.mxu0 %v938
    %1468 = vmatpush1.bf16.msra.mxu0 %v937
    %1469 = vmatprep.subr.bf16.mxu0 %v946
    %1470 = vmatpush1.bf16.msra.mxu0 %v945
    %1471 = vmatprep.subr.bf16.mxu0 %v954
    %1472 = vmatpush1.bf16.msra.mxu0 %v953
    %1473 = vmatprep.subr.bf16.mxu0 %v962
    %1474 = vmatpush1.bf16.msra.mxu0 %v961
    %1475 = vmatprep.subr.bf16.mxu0 %v970
    %1476 = vmatpush1.bf16.msra.mxu0 %v969
    %1477 = vmatprep.subr.bf16.mxu0 %v978
    %1478 = vmatpush1.bf16.msra.mxu0 %v977
    %1479 = vmatprep.subr.bf16.mxu0 %v986
    %1480 = vmatpush1.bf16.msra.mxu0 %v985
    %1481 = vmatprep.subr.bf16.mxu0 %v994
    %1482 = vmatpush1.bf16.msra.mxu0 %v993
    %1483 = vmatprep.subr.bf16.mxu0 %v1002
    %1484 = vmatpush1.bf16.msra.mxu0 %v1001
    %1485 = vmatprep.subr.bf16.mxu0 %v1010
    %1486 = vmatpush1.bf16.msra.mxu0 %v1009
    %1487 = vmatprep.subr.bf16.mxu0 %v1018
    %1488 = vmatpush1.bf16.msra.mxu0 %v1017
    %1489 = vmatprep.subr.bf16.mxu0 %v1026
    %1490 = vmatpush1.bf16.msra.mxu0 %v1025
    %1491 = vmatprep.subr.bf16.mxu0 %v1034
    %1492 = vmatpush1.bf16.msra.mxu0 %v1033
    %1493 = vmatprep.mubr.bf16.mxu0 %v306
    %1494 = vmatmul.mubr.bf16.gmra.mrb[0].mxu0 %v305
    %v1495 = vpop.f32.mrb[0].mxu0
    %v1496 = vadd.f32 0.0, %v1495
    %v1497 = vpop.f32.mrb[0].mxu0
    %v1498 = vadd.f32 0.0, %v1497
    %v1499 = vpop.f32.mrb[0].mxu0
    %v1500 = vadd.f32 0.0, %v1499
    %v1501 = vpop.f32.mrb[0].mxu0
    %v1502 = vadd.f32 0.0, %v1501
    %1503 = vmatprep.mubr.bf16.mxu0 %v309
    %1504 = vmatmul.mubr.bf16.gmra.mrb[0].mxu0 %v308
    %v1505 = vpop.f32.mrb[0].mxu0
    %v1506 = vadd.f32 0.0, %v1505
    %v1507 = vpop.f32.mrb[0].mxu0
    %v1508 = vadd.f32 0.0, %v1507
    %v1509 = vpop.f32.mrb[0].mxu0
    %v1510 = vadd.f32 0.0, %v1509
    %v1511 = vpop.f32.mrb[0].mxu0
    %v1512 = vadd.f32 0.0, %v1511
    %1513 = vmatprep.mubr.bf16.mxu0 %v312
    %1514 = vmatmul.mubr.bf16.gmra.mrb[0].mxu0 %v311
    %v1515 = vpop.f32.mrb[0].mxu0
    %v1516 = vadd.f32 0.0, %v1515
    %v1517 = vpop.f32.mrb[0].mxu0
    %v1518 = vadd.f32 0.0, %v1517
    %v1519 = vpop.f32.mrb[0].mxu0
    %v1520 = vadd.f32 0.0, %v1519
    %v1521 = vpop.f32.mrb[0].mxu0
    %v1522 = vadd.f32 0.0, %v1521
    %1523 = vmatprep.mubr.bf16.mxu0 %v315
    %1524 = vmatmul.mubr.bf16.gmra.mrb[0].mxu0 %v314
    %v1525 = vpop.f32.mrb[0].mxu0
    %v1526 = vadd.f32 0.0, %v1525
    %v1527 = vpop.f32.mrb[0].mxu0
    %v1528 = vadd.f32 0.0, %v1527
    %v1529 = vpop.f32.mrb[0].mxu0
    %v1530 = vadd.f32 0.0, %v1529
    %v1531 = vpop.f32.mrb[0].mxu0
    %v1532 = vadd.f32 0.0, %v1531
    %1533 = vmatprep.mubr.bf16.mxu0 %v318
    %1534 = vmatmul.mubr.bf16.gmra.mrb[0].mxu0 %v317
    %v1535 = vpop.f32.mrb[0].mxu0
    %v1536 = vadd.f32 0.0, %v1535
    %v1537 = vpop.f32.mrb[0].mxu0
    %v1538 = vadd.f32 0.0, %v1537
    %v1539 = vpop.f32.mrb[0].mxu0
    %v1540 = vadd.f32 0.0, %v1539
    %v1541 = vpop.f32.mrb[0].mxu0
    %v1542 = vadd.f32 0.0, %v1541
    %1543 = vdwg.mxu0
    %1544 = vmatprep.subr.bf16.mxu0 %v1042
    %1545 = vmatpush1.bf16.msra.mxu0 %v1041
    %1546 = vmatprep.subr.bf16.mxu0 %v1050
    %1547 = vmatpush1.bf16.msra.mxu0 %v1049
    %1548 = vmatprep.subr.bf16.mxu0 %v1058
    %1549 = vmatpush1.bf16.msra.mxu0 %v1057
    %1550 = vmatprep.subr.bf16.mxu0 %v1066
    %1551 = vmatpush1.bf16.msra.mxu0 %v1065
    %1552 = vmatprep.subr.bf16.mxu0 %v1074
    %1553 = vmatpush1.bf16.msra.mxu0 %v1073
    %1554 = vmatprep.subr.bf16.mxu0 %v1082
    %1555 = vmatpush1.bf16.msra.mxu0 %v1081
    %1556 = vmatprep.subr.bf16.mxu0 %v1090
    %1557 = vmatpush1.bf16.msra.mxu0 %v1089
    %1558 = vmatprep.subr.bf16.mxu0 %v1098
    %1559 = vmatpush1.bf16.msra.mxu0 %v1097
    %1560 = vmatprep.subr.bf16.mxu0 0
    %1561 = vmatpush1.bf16.msra.mxu0 0
    %1562 = vmatprep.subr.bf16.mxu0 0
    %1563 = vmatpush1.bf16.msra.mxu0 0
    %1564 = vmatprep.subr.bf16.mxu0 0
    %1565 = vmatpush1.bf16.msra.mxu0 0
    %1566 = vmatprep.subr.bf16.mxu0 0
    %1567 = vmatpush1.bf16.msra.mxu0 0
    %1568 = vmatprep.subr.bf16.mxu0 0
    %1569 = vmatpush1.bf16.msra.mxu0 0
    %1570 = vmatprep.subr.bf16.mxu0 0
    %1571 = vmatpush1.bf16.msra.mxu0 0
    %1572 = vmatprep.subr.bf16.mxu0 0
    %1573 = vmatpush1.bf16.msra.mxu0 0
    %1574 = vmatprep.subr.bf16.mxu0 0
    %1575 = vmatpush1.bf16.msra.mxu0 0
    %1576 = vmatprep.mubr.bf16.mxu0 0
    %1577 = vmatmul.mubr.bf16.gmra.mrb[0].mxu0 %v307
    %v1578 = vpop.f32.mrb[0].mxu0
    %v1579 = vadd.f32 %v1496, %v1578
    %v1580 = vpop.f32.mrb[0].mxu0
    %v1581 = vadd.f32 %v1498, %v1580
    %v1582 = vpop.f32.mrb[0].mxu0
    %v1583 = vadd.f32 %v1500, %v1582
    %v1584 = vpop.f32.mrb[0].mxu0
    %v1585 = vadd.f32 %v1502, %v1584
    %1586 = vmatprep.mubr.bf16.mxu0 0
    %1587 = vmatmul.mubr.bf16.gmra.mrb[0].mxu0 %v310
    %v1588 = vpop.f32.mrb[0].mxu0
    %v1589 = vadd.f32 %v1506, %v1588
    %v1590 = vpop.f32.mrb[0].mxu0
    %v1591 = vadd.f32 %v1508, %v1590
    %v1592 = vpop.f32.mrb[0].mxu0
    %v1593 = vadd.f32 %v1510, %v1592
    %v1594 = vpop.f32.mrb[0].mxu0
    %v1595 = vadd.f32 %v1512, %v1594
    %1596 = vmatprep.mubr.bf16.mxu0 0
    %1597 = vmatmul.mubr.bf16.gmra.mrb[0].mxu0 %v313
    %v1598 = vpop.f32.mrb[0].mxu0
    %v1599 = vadd.f32 %v1516, %v1598
    %v1600 = vpop.f32.mrb[0].mxu0
    %v1601 = vadd.f32 %v1518, %v1600
    %v1602 = vpop.f32.mrb[0].mxu0
    %v1603 = vadd.f32 %v1520, %v1602
    %v1604 = vpop.f32.mrb[0].mxu0
    %v1605 = vadd.f32 %v1522, %v1604
    %1606 = vmatprep.mubr.bf16.mxu0 0
    %1607 = vmatmul.mubr.bf16.gmra.mrb[0].mxu0 %v316
    %v1608 = vpop.f32.mrb[0].mxu0
    %v1609 = vadd.f32 %v1526, %v1608
    %v1610 = vpop.f32.mrb[0].mxu0
    %v1611 = vadd.f32 %v1528, %v1610
    %v1612 = vpop.f32.mrb[0].mxu0
    %v1613 = vadd.f32 %v1530, %v1612
    %v1614 = vpop.f32.mrb[0].mxu0
    %v1615 = vadd.f32 %v1532, %v1614
    %1616 = vmatprep.mubr.bf16.mxu0 0
    %1617 = vmatmul.mubr.bf16.gmra.mrb[0].mxu0 %v319
    %v1618 = vpop.f32.mrb[0].mxu0
    %v1619 = vadd.f32 %v1536, %v1618
    %v1620 = vpop.f32.mrb[0].mxu0
    %v1621 = vadd.f32 %v1538, %v1620
    %v1622 = vpop.f32.mrb[0].mxu0
    %v1623 = vadd.f32 %v1540, %v1622
    %v1624 = vpop.f32.mrb[0].mxu0
    %v1625 = vadd.f32 %v1542, %v1624
    %1626 = vdwg.mxu0
    %1627 = vmatprep.subr.bf16.mxu0 %v916
    %1628 = vmatpush1.bf16.msra.mxu0 %v915
    %1629 = vmatprep.subr.bf16.mxu0 %v924
    %1630 = vmatpush1.bf16.msra.mxu0 %v923
    %1631 = vmatprep.subr.bf16.mxu0 %v932
    %1632 = vmatpush1.bf16.msra.mxu0 %v931
    %1633 = vmatprep.subr.bf16.mxu0 %v940
    %1634 = vmatpush1.bf16.msra.mxu0 %v939
    %1635 = vmatprep.subr.bf16.mxu0 %v948
    %1636 = vmatpush1.bf16.msra.mxu0 %v947
    %1637 = vmatprep.subr.bf16.mxu0 %v956
    %1638 = vmatpush1.bf16.msra.mxu0 %v955
    %1639 = vmatprep.subr.bf16.mxu0 %v964
    %1640 = vmatpush1.bf16.msra.mxu0 %v963
    %1641 = vmatprep.subr.bf16.mxu0 %v972
    %1642 = vmatpush1.bf16.msra.mxu0 %v971
    %1643 = vmatprep.subr.bf16.mxu0 %v980
    %1644 = vmatpush1.bf16.msra.mxu0 %v979
    %1645 = vmatprep.subr.bf16.mxu0 %v988
    %1646 = vmatpush1.bf16.msra.mxu0 %v987
    %1647 = vmatprep.subr.bf16.mxu0 %v996
    %1648 = vmatpush1.bf16.msra.mxu0 %v995
    %1649 = vmatprep.subr.bf16.mxu0 %v1004
    %1650 = vmatpush1.bf16.msra.mxu0 %v1003
    %1651 = vmatprep.subr.bf16.mxu0 %v1012
    %1652 = vmatpush1.bf16.msra.mxu0 %v1011
    %1653 = vmatprep.subr.bf16.mxu0 %v1020
    %1654 = vmatpush1.bf16.msra.mxu0 %v1019
    %1655 = vmatprep.subr.bf16.mxu0 %v1028
    %1656 = vmatpush1.bf16.msra.mxu0 %v1027
    %1657 = vmatprep.subr.bf16.mxu0 %v1036
    %1658 = vmatpush1.bf16.msra.mxu0 %v1035
    %1659 = vmatprep.mubr.bf16.mxu0 %v306
    %1660 = vmatmul.mubr.bf16.gmra.mrb[0].mxu0 %v305
    %v1661 = vpop.f32.mrb[0].mxu0
    %v1662 = vadd.f32 0.0, %v1661
    %v1663 = vpop.f32.mrb[0].mxu0
    %v1664 = vadd.f32 0.0, %v1663
    %v1665 = vpop.f32.mrb[0].mxu0
    %v1666 = vadd.f32 0.0, %v1665
    %v1667 = vpop.f32.mrb[0].mxu0
    %v1668 = vadd.f32 0.0, %v1667
    %1669 = vmatprep.mubr.bf16.mxu0 %v309
    %1670 = vmatmul.mubr.bf16.gmra.mrb[0].mxu0 %v308
    %v1671 = vpop.f32.mrb[0].mxu0
    %v1672 = vadd.f32 0.0, %v1671
    %v1673 = vpop.f32.mrb[0].mxu0
    %v1674 = vadd.f32 0.0, %v1673
    %v1675 = vpop.f32.mrb[0].mxu0
    %v1676 = vadd.f32 0.0, %v1675
    %v1677 = vpop.f32.mrb[0].mxu0
    %v1678 = vadd.f32 0.0, %v1677
    %1679 = vmatprep.mubr.bf16.mxu0 %v312
    %1680 = vmatmul.mubr.bf16.gmra.mrb[0].mxu0 %v311
    %v1681 = vpop.f32.mrb[0].mxu0
    %v1682 = vadd.f32 0.0, %v1681
    %v1683 = vpop.f32.mrb[0].mxu0
    %v1684 = vadd.f32 0.0, %v1683
    %v1685 = vpop.f32.mrb[0].mxu0
    %v1686 = vadd.f32 0.0, %v1685
    %v1687 = vpop.f32.mrb[0].mxu0
    %v1688 = vadd.f32 0.0, %v1687
    %1689 = vmatprep.mubr.bf16.mxu0 %v315
    %1690 = vmatmul.mubr.bf16.gmra.mrb[0].mxu0 %v314
    %v1691 = vpop.f32.mrb[0].mxu0
    %v1692 = vadd.f32 0.0, %v1691
    %v1693 = vpop.f32.mrb[0].mxu0
    %v1694 = vadd.f32 0.0, %v1693
    %v1695 = vpop.f32.mrb[0].mxu0
    %v1696 = vadd.f32 0.0, %v1695
    %v1697 = vpop.f32.mrb[0].mxu0
    %v1698 = vadd.f32 0.0, %v1697
    %1699 = vmatprep.mubr.bf16.mxu0 %v318
    %1700 = vmatmul.mubr.bf16.gmra.mrb[0].mxu0 %v317
    %v1701 = vpop.f32.mrb[0].mxu0
    %v1702 = vadd.f32 0.0, %v1701
    %v1703 = vpop.f32.mrb[0].mxu0
    %v1704 = vadd.f32 0.0, %v1703
    %v1705 = vpop.f32.mrb[0].mxu0
    %v1706 = vadd.f32 0.0, %v1705
    %v1707 = vpop.f32.mrb[0].mxu0
    %v1708 = vadd.f32 0.0, %v1707
    %1709 = vdwg.mxu0
    %1710 = vmatprep.subr.bf16.mxu0 %v1044
    %1711 = vmatpush1.bf16.msra.mxu0 %v1043
    %1712 = vmatprep.subr.bf16.mxu0 %v1052
    %1713 = vmatpush1.bf16.msra.mxu0 %v1051
    %1714 = vmatprep.subr.bf16.mxu0 %v1060
    %1715 = vmatpush1.bf16.msra.mxu0 %v1059
    %1716 = vmatprep.subr.bf16.mxu0 %v1068
    %1717 = vmatpush1.bf16.msra.mxu0 %v1067
    %1718 = vmatprep.subr.bf16.mxu0 %v1076
    %1719 = vmatpush1.bf16.msra.mxu0 %v1075
    %1720 = vmatprep.subr.bf16.mxu0 %v1084
    %1721 = vmatpush1.bf16.msra.mxu0 %v1083
    %1722 = vmatprep.subr.bf16.mxu0 %v1092
    %1723 = vmatpush1.bf16.msra.mxu0 %v1091
    %1724 = vmatprep.subr.bf16.mxu0 %v1100
    %1725 = vmatpush1.bf16.msra.mxu0 %v1099
    %1726 = vmatprep.subr.bf16.mxu0 0
    %1727 = vmatpush1.bf16.msra.mxu0 0
    %1728 = vmatprep.subr.bf16.mxu0 0
    %1729 = vmatpush1.bf16.msra.mxu0 0
    %1730 = vmatprep.subr.bf16.mxu0 0
    %1731 = vmatpush1.bf16.msra.mxu0 0
    %1732 = vmatprep.subr.bf16.mxu0 0
    %1733 = vmatpush1.bf16.msra.mxu0 0
    %1734 = vmatprep.subr.bf16.mxu0 0
    %1735 = vmatpush1.bf16.msra.mxu0 0
    %1736 = vmatprep.subr.bf16.mxu0 0
    %1737 = vmatpush1.bf16.msra.mxu0 0
    %1738 = vmatprep.subr.bf16.mxu0 0
    %1739 = vmatpush1.bf16.msra.mxu0 0
    %1740 = vmatprep.subr.bf16.mxu0 0
    %1741 = vmatpush1.bf16.msra.mxu0 0
    %1742 = vmatprep.mubr.bf16.mxu0 0
    %1743 = vmatmul.mubr.bf16.gmra.mrb[0].mxu0 %v307
    %v1744 = vpop.f32.mrb[0].mxu0
    %v1745 = vadd.f32 %v1662, %v1744
    %v1746 = vpop.f32.mrb[0].mxu0
    %v1747 = vadd.f32 %v1664, %v1746
    %v1748 = vpop.f32.mrb[0].mxu0
    %v1749 = vadd.f32 %v1666, %v1748
    %v1750 = vpop.f32.mrb[0].mxu0
    %v1751 = vadd.f32 %v1668, %v1750
    %1752 = vmatprep.mubr.bf16.mxu0 0
    %1753 = vmatmul.mubr.bf16.gmra.mrb[0].mxu0 %v310
    %v1754 = vpop.f32.mrb[0].mxu0
    %v1755 = vadd.f32 %v1672, %v1754
    %v1756 = vpop.f32.mrb[0].mxu0
    %v1757 = vadd.f32 %v1674, %v1756
    %v1758 = vpop.f32.mrb[0].mxu0
    %v1759 = vadd.f32 %v1676, %v1758
    %v1760 = vpop.f32.mrb[0].mxu0
    %v1761 = vadd.f32 %v1678, %v1760
    %1762 = vmatprep.mubr.bf16.mxu0 0
    %1763 = vmatmul.mubr.bf16.gmra.mrb[0].mxu0 %v313
    %v1764 = vpop.f32.mrb[0].mxu0
    %v1765 = vadd.f32 %v1682, %v1764
    %v1766 = vpop.f32.mrb[0].mxu0
    %v1767 = vadd.f32 %v1684, %v1766
    %v1768 = vpop.f32.mrb[0].mxu0
    %v1769 = vadd.f32 %v1686, %v1768
    %v1770 = vpop.f32.mrb[0].mxu0
    %v1771 = vadd.f32 %v1688, %v1770
    %1772 = vmatprep.mubr.bf16.mxu0 0
    %1773 = vmatmul.mubr.bf16.gmra.mrb[0].mxu0 %v316
    %v1774 = vpop.f32.mrb[0].mxu0
    %v1775 = vadd.f32 %v1692, %v1774
    %v1776 = vpop.f32.mrb[0].mxu0
    %v1777 = vadd.f32 %v1694, %v1776
    %v1778 = vpop.f32.mrb[0].mxu0
    %v1779 = vadd.f32 %v1696, %v1778
    %v1780 = vpop.f32.mrb[0].mxu0
    %v1781 = vadd.f32 %v1698, %v1780
    %1782 = vmatprep.mubr.bf16.mxu0 0
    %1783 = vmatmul.mubr.bf16.gmra.mrb[0].mxu0 %v319
    %v1784 = vpop.f32.mrb[0].mxu0
    %v1785 = vadd.f32 %v1702, %v1784
    %v1786 = vpop.f32.mrb[0].mxu0
    %v1787 = vadd.f32 %v1704, %v1786
    %v1788 = vpop.f32.mrb[0].mxu0
    %v1789 = vadd.f32 %v1706, %v1788
    %v1790 = vpop.f32.mrb[0].mxu0
    %v1791 = vadd.f32 %v1708, %v1790
    %1792 = vdwg.mxu0
    %1793 = vmatprep.subr.bf16.mxu0 %v918
    %1794 = vmatpush1.bf16.msra.mxu0 %v917
    %1795 = vmatprep.subr.bf16.mxu0 %v926
    %1796 = vmatpush1.bf16.msra.mxu0 %v925
    %1797 = vmatprep.subr.bf16.mxu0 %v934
    %1798 = vmatpush1.bf16.msra.mxu0 %v933
    %1799 = vmatprep.subr.bf16.mxu0 %v942
    %1800 = vmatpush1.bf16.msra.mxu0 %v941
    %1801 = vmatprep.subr.bf16.mxu0 %v950
    %1802 = vmatpush1.bf16.msra.mxu0 %v949
    %1803 = vmatprep.subr.bf16.mxu0 %v958
    %1804 = vmatpush1.bf16.msra.mxu0 %v957
    %1805 = vmatprep.subr.bf16.mxu0 %v966
    %1806 = vmatpush1.bf16.msra.mxu0 %v965
    %1807 = vmatprep.subr.bf16.mxu0 %v974
    %1808 = vmatpush1.bf16.msra.mxu0 %v973
    %1809 = vmatprep.subr.bf16.mxu0 %v982
    %1810 = vmatpush1.bf16.msra.mxu0 %v981
    %1811 = vmatprep.subr.bf16.mxu0 %v990
    %1812 = vmatpush1.bf16.msra.mxu0 %v989
    %1813 = vmatprep.subr.bf16.mxu0 %v998
    %1814 = vmatpush1.bf16.msra.mxu0 %v997
    %1815 = vmatprep.subr.bf16.mxu0 %v1006
    %1816 = vmatpush1.bf16.msra.mxu0 %v1005
    %1817 = vmatprep.subr.bf16.mxu0 %v1014
    %1818 = vmatpush1.bf16.msra.mxu0 %v1013
    %1819 = vmatprep.subr.bf16.mxu0 %v1022
    %1820 = vmatpush1.bf16.msra.mxu0 %v1021
    %1821 = vmatprep.subr.bf16.mxu0 %v1030
    %1822 = vmatpush1.bf16.msra.mxu0 %v1029
    %1823 = vmatprep.subr.bf16.mxu0 %v1038
    %1824 = vmatpush1.bf16.msra.mxu0 %v1037
    %1825 = vmatprep.mubr.bf16.mxu0 %v306
    %1826 = vmatmul.mubr.bf16.gmra.mrb[0].mxu0 %v305
    %v1827 = vpop.f32.mrb[0].mxu0
    %v1828 = vadd.f32 0.0, %v1827
    %v1829 = vpop.f32.mrb[0].mxu0
    %v1830 = vadd.f32 0.0, %v1829
    %v1831 = vpop.f32.mrb[0].mxu0
    %v1832 = vadd.f32 0.0, %v1831
    %v1833 = vpop.f32.mrb[0].mxu0
    %v1834 = vadd.f32 0.0, %v1833
    %1835 = vmatprep.mubr.bf16.mxu0 %v309
    %1836 = vmatmul.mubr.bf16.gmra.mrb[0].mxu0 %v308
    %v1837 = vpop.f32.mrb[0].mxu0
    %v1838 = vadd.f32 0.0, %v1837
    %v1839 = vpop.f32.mrb[0].mxu0
    %v1840 = vadd.f32 0.0, %v1839
    %v1841 = vpop.f32.mrb[0].mxu0
    %v1842 = vadd.f32 0.0, %v1841
    %v1843 = vpop.f32.mrb[0].mxu0
    %v1844 = vadd.f32 0.0, %v1843
    %1845 = vmatprep.mubr.bf16.mxu0 %v312
    %1846 = vmatmul.mubr.bf16.gmra.mrb[0].mxu0 %v311
    %v1847 = vpop.f32.mrb[0].mxu0
    %v1848 = vadd.f32 0.0, %v1847
    %v1849 = vpop.f32.mrb[0].mxu0
    %v1850 = vadd.f32 0.0, %v1849
    %v1851 = vpop.f32.mrb[0].mxu0
    %v1852 = vadd.f32 0.0, %v1851
    %v1853 = vpop.f32.mrb[0].mxu0
    %v1854 = vadd.f32 0.0, %v1853
    %1855 = vmatprep.mubr.bf16.mxu0 %v315
    %1856 = vmatmul.mubr.bf16.gmra.mrb[0].mxu0 %v314
    %v1857 = vpop.f32.mrb[0].mxu0
    %v1858 = vadd.f32 0.0, %v1857
    %v1859 = vpop.f32.mrb[0].mxu0
    %v1860 = vadd.f32 0.0, %v1859
    %v1861 = vpop.f32.mrb[0].mxu0
    %v1862 = vadd.f32 0.0, %v1861
    %v1863 = vpop.f32.mrb[0].mxu0
    %v1864 = vadd.f32 0.0, %v1863
    %1865 = vmatprep.mubr.bf16.mxu0 %v318
    %1866 = vmatmul.mubr.bf16.gmra.mrb[0].mxu0 %v317
    %v1867 = vpop.f32.mrb[0].mxu0
    %v1868 = vadd.f32 0.0, %v1867
    %v1869 = vpop.f32.mrb[0].mxu0
    %v1870 = vadd.f32 0.0, %v1869
    %v1871 = vpop.f32.mrb[0].mxu0
    %v1872 = vadd.f32 0.0, %v1871
    %v1873 = vpop.f32.mrb[0].mxu0
    %v1874 = vadd.f32 0.0, %v1873
    %1875 = vdwg.mxu0
    %1876 = vmatprep.subr.bf16.mxu0 %v1046
    %1877 = vmatpush1.bf16.msra.mxu0 %v1045
    %1878 = vmatprep.subr.bf16.mxu0 %v1054
    %1879 = vmatpush1.bf16.msra.mxu0 %v1053
    %1880 = vmatprep.subr.bf16.mxu0 %v1062
    %1881 = vmatpush1.bf16.msra.mxu0 %v1061
    %1882 = vmatprep.subr.bf16.mxu0 %v1070
    %1883 = vmatpush1.bf16.msra.mxu0 %v1069
    %1884 = vmatprep.subr.bf16.mxu0 %v1078
    %1885 = vmatpush1.bf16.msra.mxu0 %v1077
    %1886 = vmatprep.subr.bf16.mxu0 %v1086
    %1887 = vmatpush1.bf16.msra.mxu0 %v1085
    %1888 = vmatprep.subr.bf16.mxu0 %v1094
    %1889 = vmatpush1.bf16.msra.mxu0 %v1093
    %1890 = vmatprep.subr.bf16.mxu0 %v1102
    %1891 = vmatpush1.bf16.msra.mxu0 %v1101
    %1892 = vmatprep.subr.bf16.mxu0 0
    %1893 = vmatpush1.bf16.msra.mxu0 0
    %1894 = vmatprep.subr.bf16.mxu0 0
    %1895 = vmatpush1.bf16.msra.mxu0 0
    %1896 = vmatprep.subr.bf16.mxu0 0
    %1897 = vmatpush1.bf16.msra.mxu0 0
    %1898 = vmatprep.subr.bf16.mxu0 0
    %1899 = vmatpush1.bf16.msra.mxu0 0
    %1900 = vmatprep.subr.bf16.mxu0 0
    %1901 = vmatpush1.bf16.msra.mxu0 0
    %1902 = vmatprep.subr.bf16.mxu0 0
    %1903 = vmatpush1.bf16.msra.mxu0 0
    %1904 = vmatprep.subr.bf16.mxu0 0
    %1905 = vmatpush1.bf16.msra.mxu0 0
    %1906 = vmatprep.subr.bf16.mxu0 0
    %1907 = vmatpush1.bf16.msra.mxu0 0
    %1908 = vmatprep.mubr.bf16.mxu0 0
    %1909 = vmatmul.mubr.bf16.gmra.mrb[0].mxu0 %v307
    %v1910 = vpop.f32.mrb[0].mxu0
    %v1911 = vadd.f32 %v1828, %v1910
    %v1912 = vpop.f32.mrb[0].mxu0
    %v1913 = vadd.f32 %v1830, %v1912
    %v1914 = vpop.f32.mrb[0].mxu0
    %v1915 = vadd.f32 %v1832, %v1914
    %v1916 = vpop.f32.mrb[0].mxu0
    %v1917 = vadd.f32 %v1834, %v1916
    %1918 = vmatprep.mubr.bf16.mxu0 0
    %1919 = vmatmul.mubr.bf16.gmra.mrb[0].mxu0 %v310
    %v1920 = vpop.f32.mrb[0].mxu0
    %v1921 = vadd.f32 %v1838, %v1920
    %v1922 = vpop.f32.mrb[0].mxu0
    %v1923 = vadd.f32 %v1840, %v1922
    %v1924 = vpop.f32.mrb[0].mxu0
    %v1925 = vadd.f32 %v1842, %v1924
    %v1926 = vpop.f32.mrb[0].mxu0
    %v1927 = vadd.f32 %v1844, %v1926
    %1928 = vmatprep.mubr.bf16.mxu0 0
    %1929 = vmatmul.mubr.bf16.gmra.mrb[0].mxu0 %v313
    %v1930 = vpop.f32.mrb[0].mxu0
    %v1931 = vadd.f32 %v1848, %v1930
    %v1932 = vpop.f32.mrb[0].mxu0
    %v1933 = vadd.f32 %v1850, %v1932
    %v1934 = vpop.f32.mrb[0].mxu0
    %v1935 = vadd.f32 %v1852, %v1934
    %v1936 = vpop.f32.mrb[0].mxu0
    %v1937 = vadd.f32 %v1854, %v1936
    %1938 = vmatprep.mubr.bf16.mxu0 0
    %1939 = vmatmul.mubr.bf16.gmra.mrb[0].mxu0 %v316
    %v1940 = vpop.f32.mrb[0].mxu0
    %v1941 = vadd.f32 %v1858, %v1940
    %v1942 = vpop.f32.mrb[0].mxu0
    %v1943 = vadd.f32 %v1860, %v1942
    %v1944 = vpop.f32.mrb[0].mxu0
    %v1945 = vadd.f32 %v1862, %v1944
    %v1946 = vpop.f32.mrb[0].mxu0
    %v1947 = vadd.f32 %v1864, %v1946
    %1948 = vmatprep.mubr.bf16.mxu0 0
    %1949 = vmatmul.mubr.bf16.gmra.mrb[0].mxu0 %v319
    %v1950 = vpop.f32.mrb[0].mxu0
    %v1951 = vadd.f32 %v1868, %v1950
    %v1952 = vpop.f32.mrb[0].mxu0
    %v1953 = vadd.f32 %v1870, %v1952
    %v1954 = vpop.f32.mrb[0].mxu0
    %v1955 = vadd.f32 %v1872, %v1954
    %v1956 = vpop.f32.mrb[0].mxu0
    %v1957 = vadd.f32 %v1874, %v1956
    %1958 = vdwg.mxu0
    %v1959 = vmax.f32 %v1413, %v1745
    %v1960 = vmax.f32 %v1415, %v1747
    %v1961 = vmax.f32 %v1579, %v1911
    %v1962 = vmax.f32 %v1581, %v1913
    %v1963 = vmax.f32 %v1417, %v1749
    %v1964 = vmax.f32 %v1419, %v1751
    %v1965 = vmax.f32 %v1583, %v1915
    %v1966 = vmax.f32 %v1585, %v1917
    %v1967 = vmax.f32 %v1423, %v1755
    %v1968 = vmax.f32 %v1425, %v1757
    %v1969 = vmax.f32 %v1589, %v1921
    %v1970 = vmax.f32 %v1591, %v1923
    %v1971 = vmax.f32 %v1427, %v1759
    %v1972 = vmax.f32 %v1429, %v1761
    %v1973 = vmax.f32 %v1593, %v1925
    %v1974 = vmax.f32 %v1595, %v1927
    %v1975 = vmax.f32 %v1433, %v1765
    %v1976 = vmax.f32 %v1435, %v1767
    %v1977 = vmax.f32 %v1599, %v1931
    %v1978 = vmax.f32 %v1601, %v1933
    %v1979 = vmax.f32 %v1437, %v1769
    %v1980 = vmax.f32 %v1439, %v1771
    %v1981 = vmax.f32 %v1603, %v1935
    %v1982 = vmax.f32 %v1605, %v1937
    %v1983 = vmax.f32 %v1443, %v1775
    %v1984 = vmax.f32 %v1445, %v1777
    %v1985 = vmax.f32 %v1609, %v1941
    %v1986 = vmax.f32 %v1611, %v1943
    %v1987 = vmax.f32 %v1447, %v1779
    %v1988 = vmax.f32 %v1449, %v1781
    %v1989 = vmax.f32 %v1613, %v1945
    %v1990 = vmax.f32 %v1615, %v1947
    %v1991 = vmax.f32 %v1453, %v1785
    %v1992 = vmax.f32 %v1455, %v1787
    %v1993 = vmax.f32 %v1619, %v1951
    %v1994 = vmax.f32 %v1621, %v1953
    %v1995 = vmax.f32 %v1457, %v1789
    %v1996 = vmax.f32 %v1459, %v1791
    %v1997 = vmax.f32 %v1623, %v1955
    %v1998 = vmax.f32 %v1625, %v1957
    %v1999 = vld [vmem:[%s2] sm:$0xf]
    %v2001 = vlaneseq
    %v2002 = vshrl.u32 %v2001, 7
    %v2003 = vsub.s32 0, %v2002
    %v2004 = vrot.slane %v1999, %v2003
    %v2005 = vlaneseq
    %v2006 = vshrl.u32 %v2005, 7
    %v2007 = vsub.s32 1, %v2006
    %v2008 = vrot.slane %v1999, %v2007
    %v2009 = vlaneseq
    %v2010 = vshrl.u32 %v2009, 7
    %v2011 = vsub.s32 2, %v2010
    %v2012 = vrot.slane %v1999, %v2011
    %v2013 = vlaneseq
    %v2014 = vshrl.u32 %v2013, 7
    %v2015 = vsub.s32 3, %v2014
    %v2016 = vrot.slane %v1999, %v2015
    %v2021 = vadd.f32 %v1959, %v2004
    %v2022 = vadd.f32 %v1960, %v2008
    %v2023 = vadd.f32 %v1961, %v2012
    %v2024 = vadd.f32 %v1962, %v2016
    %v2025 = vadd.f32 %v1963, %v2004
    %v2026 = vadd.f32 %v1964, %v2008
    %v2027 = vadd.f32 %v1965, %v2012
    %v2028 = vadd.f32 %v1966, %v2016
    %v2029 = vadd.f32 %v1967, %v2004
    %v2030 = vadd.f32 %v1968, %v2008
    %v2031 = vadd.f32 %v1969, %v2012
    %v2032 = vadd.f32 %v1970, %v2016
    %v2033 = vadd.f32 %v1971, %v2004
    %v2034 = vadd.f32 %v1972, %v2008
    %v2035 = vadd.f32 %v1973, %v2012
    %v2036 = vadd.f32 %v1974, %v2016
    %v2037 = vadd.f32 %v1975, %v2004
    %v2038 = vadd.f32 %v1976, %v2008
    %v2039 = vadd.f32 %v1977, %v2012
    %v2040 = vadd.f32 %v1978, %v2016
    %v2041 = vadd.f32 %v1979, %v2004
    %v2042 = vadd.f32 %v1980, %v2008
    %v2043 = vadd.f32 %v1981, %v2012
    %v2044 = vadd.f32 %v1982, %v2016
    %v2045 = vadd.f32 %v1983, %v2004
    %v2046 = vadd.f32 %v1984, %v2008
    %v2047 = vadd.f32 %v1985, %v2012
    %v2048 = vadd.f32 %v1986, %v2016
    %v2049 = vadd.f32 %v1987, %v2004
    %v2050 = vadd.f32 %v1988, %v2008
    %v2051 = vadd.f32 %v1989, %v2012
    %v2052 = vadd.f32 %v1990, %v2016
    %v2053 = vadd.f32 %v1991, %v2004
    %v2054 = vadd.f32 %v1992, %v2008
    %v2055 = vadd.f32 %v1993, %v2012
    %v2056 = vadd.f32 %v1994, %v2016
    %v2057 = vadd.f32 %v1995, %v2004
    %v2058 = vadd.f32 %v1996, %v2008
    %v2059 = vadd.f32 %v1997, %v2012
    %v2060 = vadd.f32 %v1998, %v2016
    %v2061 = vmax.f32 %v2021, 0.0
    %v2062 = vmax.f32 %v2022, 0.0
    %v2063 = vmax.f32 %v2023, 0.0
    %v2064 = vmax.f32 %v2024, 0.0
    %v2065 = vmax.f32 %v2025, 0.0
    %v2066 = vmax.f32 %v2026, 0.0
    %v2067 = vmax.f32 %v2027, 0.0
    %v2068 = vmax.f32 %v2028, 0.0
    %v2069 = vmax.f32 %v2029, 0.0
    %v2070 = vmax.f32 %v2030, 0.0
    %v2071 = vmax.f32 %v2031, 0.0
    %v2072 = vmax.f32 %v2032, 0.0
    %v2073 = vmax.f32 %v2033, 0.0
    %v2074 = vmax.f32 %v2034, 0.0
    %v2075 = vmax.f32 %v2035, 0.0
    %v2076 = vmax.f32 %v2036, 0.0
    %v2077 = vmax.f32 %v2037, 0.0
    %v2078 = vmax.f32 %v2038, 0.0
    %v2079 = vmax.f32 %v2039, 0.0
    %v2080 = vmax.f32 %v2040, 0.0
    %v2081 = vmax.f32 %v2041, 0.0
    %v2082 = vmax.f32 %v2042, 0.0
    %v2083 = vmax.f32 %v2043, 0.0
    %v2084 = vmax.f32 %v2044, 0.0
    %v2085 = vmax.f32 %v2045, 0.0
    %v2086 = vmax.f32 %v2046, 0.0
    %v2087 = vmax.f32 %v2047, 0.0
    %v2088 = vmax.f32 %v2048, 0.0
    %v2089 = vmax.f32 %v2049, 0.0
    %v2090 = vmax.f32 %v2050, 0.0
    %v2091 = vmax.f32 %v2051, 0.0
    %v2092 = vmax.f32 %v2052, 0.0
    %v2093 = vmax.f32 %v2053, 0.0
    %v2094 = vmax.f32 %v2054, 0.0
    %v2095 = vmax.f32 %v2055, 0.0
    %v2096 = vmax.f32 %v2056, 0.0
    %v2097 = vmax.f32 %v2057, 0.0
    %v2098 = vmax.f32 %v2058, 0.0
    %v2099 = vmax.f32 %v2059, 0.0
    %v2100 = vmax.f32 %v2060, 0.0
    %v2101 = vpack.c.bf16 %v2065, %v2061
    %v2102 = vpack.c.bf16 %v2066, %v2062
    %v2103 = vpack.c.bf16 %v2067, %v2063
    %v2104 = vpack.c.bf16 %v2068, %v2064
    %v2105 = vpack.c.bf16 %v2073, %v2069
    %v2106 = vpack.c.bf16 %v2074, %v2070
    %v2107 = vpack.c.bf16 %v2075, %v2071
    %v2108 = vpack.c.bf16 %v2076, %v2072
    %v2109 = vpack.c.bf16 %v2081, %v2077
    %v2110 = vpack.c.bf16 %v2082, %v2078
    %v2111 = vpack.c.bf16 %v2083, %v2079
    %v2112 = vpack.c.bf16 %v2084, %v2080
    %v2113 = vpack.c.bf16 %v2089, %v2085
    %v2114 = vpack.c.bf16 %v2090, %v2086
    %v2115 = vpack.c.bf16 %v2091, %v2087
    %v2116 = vpack.c.bf16 %v2092, %v2088
    %v2117 = vpack.c.bf16 %v2097, %v2093
    %v2118 = vpack.c.bf16 %v2098, %v2094
    %v2119 = vpack.c.bf16 %v2099, %v2095
    %v2120 = vpack.c.bf16 %v2100, %v2096
    %2121 = vst [vmem:[#allocation2] sm:$0xff] %v2101
    %2122 = vst [vmem:[#allocation2 + $0x8] sm:$0xff] %v2102
    %2123 = vst [vmem:[#allocation2 + $0x10] sm:$0xff] %v2103
    %2124 = vst [vmem:[#allocation2 + $0x18] sm:$0xff] %v2104
    %2125 = vst [vmem:[#allocation2 + $0x20] sm:$0xff] %v2105
    %2126 = vst [vmem:[#allocation2 + $0x28] sm:$0xff] %v2106
    %2127 = vst [vmem:[#allocation2 + $0x30] sm:$0xff] %v2107
    %2128 = vst [vmem:[#allocation2 + $0x38] sm:$0xff] %v2108
    %2129 = vst [vmem:[#allocation2 + $0x40] sm:$0xff] %v2109
    %2130 = vst [vmem:[#allocation2 + $0x48] sm:$0xff] %v2110
    %2131 = vst [vmem:[#allocation2 + $0x50] sm:$0xff] %v2111
    %2132 = vst [vmem:[#allocation2 + $0x58] sm:$0xff] %v2112
    %2133 = vst [vmem:[#allocation2 + $0x60] sm:$0xff] %v2113
    %2134 = vst [vmem:[#allocation2 + $0x68] sm:$0xff] %v2114
    %2135 = vst [vmem:[#allocation2 + $0x70] sm:$0xff] %v2115
    %2136 = vst [vmem:[#allocation2 + $0x78] sm:$0xff] %v2116
    %2137 = vst [vmem:[#allocation2 + $0x80] sm:$0xff] %v2117
    %2138 = vst [vmem:[#allocation2 + $0x88] sm:$0xff] %v2118
    %2139 = vst [vmem:[#allocation2 + $0x90] sm:$0xff] %v2119
    %2140 = vst [vmem:[#allocation2 + $0x98] sm:$0xff] %v2120
    %v2141 = vld [vmem:[#allocation2] sm:$0xff]
    %v2142 = vld [vmem:[#allocation2 + $0x8] sm:$0xff]
    %v2143 = vld [vmem:[#allocation2 + $0x10] sm:$0xff]
    %v2144 = vld [vmem:[#allocation2 + $0x18] sm:$0xff]
    %v2145 = vld [vmem:[#allocation2 + $0x20] sm:$0xff]
    %v2146 = vld [vmem:[#allocation2 + $0x28] sm:$0xff]
    %v2147 = vld [vmem:[#allocation2 + $0x30] sm:$0xff]
    %v2148 = vld [vmem:[#allocation2 + $0x38] sm:$0xff]
    %v2149 = vld [vmem:[#allocation2 + $0x40] sm:$0xff]
    %v2150 = vld [vmem:[#allocation2 + $0x48] sm:$0xff]
    %v2151 = vld [vmem:[#allocation2 + $0x50] sm:$0xff]
    %v2152 = vld [vmem:[#allocation2 + $0x58] sm:$0xff]
    %v2153 = vld [vmem:[#allocation2 + $0x60] sm:$0xff]
    %v2154 = vld [vmem:[#allocation2 + $0x68] sm:$0xff]
    %v2155 = vld [vmem:[#allocation2 + $0x70] sm:$0xff]
    %v2156 = vld [vmem:[#allocation2 + $0x78] sm:$0xff]
    %v2157 = vld [vmem:[#allocation2 + $0x80] sm:$0xff]
    %v2158 = vld [vmem:[#allocation2 + $0x88] sm:$0xff]
    %v2159 = vld [vmem:[#allocation2 + $0x90] sm:$0xff]
    %v2160 = vld [vmem:[#allocation2 + $0x98] sm:$0xff]
    %v2161 = vld [vmem:[%s3] sm:$0xff]
    %v2162 = vld [vmem:[%s3 + $0x8] sm:$0xff]
    %v2163 = vld [vmem:[%s3 + $0x10] sm:$0xff]
    %v2164 = vld [vmem:[%s3 + $0x18] sm:$0xff]
    %v2165 = vld [vmem:[%s3 + $0x20] sm:$0xff]
    %v2166 = vld [vmem:[%s3 + $0x28] sm:$0xff]
    %v2167 = vld [vmem:[%s3 + $0x30] sm:$0xff]
    %v2168 = vld [vmem:[%s3 + $0x38] sm:$0xff]
    %v2169 = vld [vmem:[%s3 + $0x40] sm:$0xff]
    %v2170 = vld [vmem:[%s3 + $0x48] sm:$0xff]
    %v2171 = vld [vmem:[%s3 + $0x50] sm:$0xff]
    %v2172 = vld [vmem:[%s3 + $0x58] sm:$0xff]
    %v2173 = vld [vmem:[%s3 + $0x60] sm:$0xff]
    %v2174 = vld [vmem:[%s3 + $0x68] sm:$0xff]
    %v2175 = vld [vmem:[%s3 + $0x70] sm:$0xff]
    %v2176 = vld [vmem:[%s3 + $0x78] sm:$0xff]
    %v2177 = vld [vmem:[%s3 + $0x80] sm:$0xff]
    %v2178 = vld [vmem:[%s3 + $0x88] sm:$0xff]
    %v2179 = vld [vmem:[%s3 + $0x90] sm:$0xff]
    %v2180 = vld [vmem:[%s3 + $0x98] sm:$0xff]
    %v2181 = vld [vmem:[%s3 + $0xa0] sm:$0xff]
    %v2182 = vld [vmem:[%s3 + $0xa8] sm:$0xff]
    %v2183 = vld [vmem:[%s3 + $0xb0] sm:$0xff]
    %v2184 = vld [vmem:[%s3 + $0xb8] sm:$0xff]
    %v2185 = vld [vmem:[%s3 + $0xc0] sm:$0xff]
    %v2186 = vld [vmem:[%s3 + $0xc8] sm:$0xff]
    %v2187 = vld [vmem:[%s3 + $0xd0] sm:$0xff]
    %v2188 = vld [vmem:[%s3 + $0xd8] sm:$0xff]
    %v2189 = vld [vmem:[%s3 + $0xe0] sm:$0xff]
    %v2190 = vld [vmem:[%s3 + $0xe8] sm:$0xff]
    %v2191 = vld [vmem:[%s3 + $0xf0] sm:$0xff]
    %v2192 = vld [vmem:[%s3 + $0xf8] sm:$0xff]
    %v2193 = vld [vmem:[%s3 + $0x100] sm:$0xff]
    %v2194 = vld [vmem:[%s3 + $0x108] sm:$0xff]
    %v2195 = vld [vmem:[%s3 + $0x110] sm:$0xff]
    %v2196 = vld [vmem:[%s3 + $0x118] sm:$0xff]
    %v2197 = vld [vmem:[%s3 + $0x120] sm:$0xff]
    %v2198 = vld [vmem:[%s3 + $0x128] sm:$0xff]
    %v2199 = vld [vmem:[%s3 + $0x130] sm:$0xff]
    %v2200 = vld [vmem:[%s3 + $0x138] sm:$0xff]
    %v2201 = vld [vmem:[%s3 + $0x140] sm:$0xff]
    %v2202 = vld [vmem:[%s3 + $0x148] sm:$0xff]
    %v2203 = vld [vmem:[%s3 + $0x150] sm:$0xff]
    %v2204 = vld [vmem:[%s3 + $0x158] sm:$0xff]
    %v2205 = vld [vmem:[%s3 + $0x160] sm:$0xff]
    %v2206 = vld [vmem:[%s3 + $0x168] sm:$0xff]
    %v2207 = vld [vmem:[%s3 + $0x170] sm:$0xff]
    %v2208 = vld [vmem:[%s3 + $0x178] sm:$0xff]
    %v2209 = vld [vmem:[%s3 + $0x180] sm:$0xff]
    %v2210 = vld [vmem:[%s3 + $0x188] sm:$0xff]
    %v2211 = vld [vmem:[%s3 + $0x190] sm:$0xff]
    %v2212 = vld [vmem:[%s3 + $0x198] sm:$0xff]
    %v2213 = vld [vmem:[%s3 + $0x1a0] sm:$0xff]
    %v2214 = vld [vmem:[%s3 + $0x1a8] sm:$0xff]
    %v2215 = vld [vmem:[%s3 + $0x1b0] sm:$0xff]
    %v2216 = vld [vmem:[%s3 + $0x1b8] sm:$0xff]
    %v2217 = vld [vmem:[%s3 + $0x1c0] sm:$0xff]
    %v2218 = vld [vmem:[%s3 + $0x1c8] sm:$0xff]
    %v2219 = vld [vmem:[%s3 + $0x1d0] sm:$0xff]
    %v2220 = vld [vmem:[%s3 + $0x1d8] sm:$0xff]
    %v2221 = vld [vmem:[%s3 + $0x1e0] sm:$0xff]
    %v2222 = vld [vmem:[%s3 + $0x1e8] sm:$0xff]
    %v2223 = vld [vmem:[%s3 + $0x1f0] sm:$0xff]
    %v2224 = vld [vmem:[%s3 + $0x1f8] sm:$0xff]
    %v2225 = vld [vmem:[%s3 + $0x200] sm:$0xff]
    %v2226 = vld [vmem:[%s3 + $0x208] sm:$0xff]
    %v2227 = vld [vmem:[%s3 + $0x210] sm:$0xff]
    %v2228 = vld [vmem:[%s3 + $0x218] sm:$0xff]
    %v2229 = vld [vmem:[%s3 + $0x220] sm:$0xff]
    %v2230 = vld [vmem:[%s3 + $0x228] sm:$0xff]
    %v2231 = vld [vmem:[%s3 + $0x230] sm:$0xff]
    %v2232 = vld [vmem:[%s3 + $0x238] sm:$0xff]
    %v2233 = vld [vmem:[%s3 + $0x240] sm:$0xff]
    %v2234 = vld [vmem:[%s3 + $0x248] sm:$0xff]
    %v2235 = vld [vmem:[%s3 + $0x250] sm:$0xff]
    %v2236 = vld [vmem:[%s3 + $0x258] sm:$0xff]
    %v2237 = vld [vmem:[%s3 + $0x260] sm:$0xff]
    %v2238 = vld [vmem:[%s3 + $0x268] sm:$0xff]
    %v2239 = vld [vmem:[%s3 + $0x270] sm:$0xff]
    %v2240 = vld [vmem:[%s3 + $0x278] sm:$0xff]
    %v2241 = vld [vmem:[%s3 + $0x280] sm:$0xff]
    %v2242 = vld [vmem:[%s3 + $0x288] sm:$0xff]
    %v2243 = vld [vmem:[%s3 + $0x290] sm:$0xff]
    %v2244 = vld [vmem:[%s3 + $0x298] sm:$0xff]
    %v2245 = vld [vmem:[%s3 + $0x2a0] sm:$0xff]
    %v2246 = vld [vmem:[%s3 + $0x2a8] sm:$0xff]
    %v2247 = vld [vmem:[%s3 + $0x2b0] sm:$0xff]
    %v2248 = vld [vmem:[%s3 + $0x2b8] sm:$0xff]
    %v2249 = vld [vmem:[%s3 + $0x2c0] sm:$0xff]
    %v2250 = vld [vmem:[%s3 + $0x2c8] sm:$0xff]
    %v2251 = vld [vmem:[%s3 + $0x2d0] sm:$0xff]
    %v2252 = vld [vmem:[%s3 + $0x2d8] sm:$0xff]
    %v2253 = vld [vmem:[%s3 + $0x2e0] sm:$0xff]
    %v2254 = vld [vmem:[%s3 + $0x2e8] sm:$0xff]
    %v2255 = vld [vmem:[%s3 + $0x2f0] sm:$0xff]
    %v2256 = vld [vmem:[%s3 + $0x2f8] sm:$0xff]
    %v2257 = vld [vmem:[%s3 + $0x300] sm:$0xff]
    %v2258 = vld [vmem:[%s3 + $0x308] sm:$0xff]
    %v2259 = vld [vmem:[%s3 + $0x310] sm:$0xff]
    %v2260 = vld [vmem:[%s3 + $0x318] sm:$0xff]
    %v2261 = vld [vmem:[%s3 + $0x320] sm:$0xff]
    %v2262 = vld [vmem:[%s3 + $0x328] sm:$0xff]
    %v2263 = vld [vmem:[%s3 + $0x330] sm:$0xff]
    %v2264 = vld [vmem:[%s3 + $0x338] sm:$0xff]
    %v2265 = vld [vmem:[%s3 + $0x340] sm:$0xff]
    %v2266 = vld [vmem:[%s3 + $0x348] sm:$0xff]
    %v2267 = vld [vmem:[%s3 + $0x350] sm:$0xff]
    %v2268 = vld [vmem:[%s3 + $0x358] sm:$0xff]
    %v2269 = vld [vmem:[%s3 + $0x360] sm:$0xff]
    %v2270 = vld [vmem:[%s3 + $0x368] sm:$0xff]
    %v2271 = vld [vmem:[%s3 + $0x370] sm:$0xff]
    %v2272 = vld [vmem:[%s3 + $0x378] sm:$0xff]
    %v2273 = vld [vmem:[%s3 + $0x380] sm:$0xff]
    %v2274 = vld [vmem:[%s3 + $0x388] sm:$0xff]
    %v2275 = vld [vmem:[%s3 + $0x390] sm:$0xff]
    %v2276 = vld [vmem:[%s3 + $0x398] sm:$0xff]
    %v2277 = vld [vmem:[%s3 + $0x3a0] sm:$0xff]
    %v2278 = vld [vmem:[%s3 + $0x3a8] sm:$0xff]
    %v2279 = vld [vmem:[%s3 + $0x3b0] sm:$0xff]
    %v2280 = vld [vmem:[%s3 + $0x3b8] sm:$0xff]
    %v2281 = vld [vmem:[%s3 + $0x3c0] sm:$0xff]
    %v2282 = vld [vmem:[%s3 + $0x3c8] sm:$0xff]
    %v2283 = vld [vmem:[%s3 + $0x3d0] sm:$0xff]
    %v2284 = vld [vmem:[%s3 + $0x3d8] sm:$0xff]
    %v2285 = vld [vmem:[%s3 + $0x3e0] sm:$0xff]
    %v2286 = vld [vmem:[%s3 + $0x3e8] sm:$0xff]
    %v2287 = vld [vmem:[%s3 + $0x3f0] sm:$0xff]
    %v2288 = vld [vmem:[%s3 + $0x3f8] sm:$0xff]
    %v2417 = vunpack.c.l.b16 %v2161
    %v2418 = vunpack.c.h.b16 %v2161
    %v2419 = vunpack.c.l.b16 %v2162
    %v2420 = vunpack.c.h.b16 %v2162
    %v2421 = vunpack.c.l.b16 %v2163
    %v2422 = vunpack.c.h.b16 %v2163
    %v2423 = vunpack.c.l.b16 %v2164
    %v2424 = vunpack.c.h.b16 %v2164
    %v2425 = vunpack.c.l.b16 %v2165
    %v2426 = vunpack.c.h.b16 %v2165
    %v2427 = vunpack.c.l.b16 %v2166
    %v2428 = vunpack.c.h.b16 %v2166
    %v2429 = vunpack.c.l.b16 %v2167
    %v2430 = vunpack.c.h.b16 %v2167
    %v2431 = vunpack.c.l.b16 %v2168
    %v2432 = vunpack.c.h.b16 %v2168
    %v2433 = vunpack.c.l.b16 %v2169
    %v2434 = vunpack.c.h.b16 %v2169
    %v2435 = vunpack.c.l.b16 %v2170
    %v2436 = vunpack.c.h.b16 %v2170
    %v2437 = vunpack.c.l.b16 %v2171
    %v2438 = vunpack.c.h.b16 %v2171
    %v2439 = vunpack.c.l.b16 %v2172
    %v2440 = vunpack.c.h.b16 %v2172
    %v2441 = vunpack.c.l.b16 %v2173
    %v2442 = vunpack.c.h.b16 %v2173
    %v2443 = vunpack.c.l.b16 %v2174
    %v2444 = vunpack.c.h.b16 %v2174
    %v2445 = vunpack.c.l.b16 %v2175
    %v2446 = vunpack.c.h.b16 %v2175
    %v2447 = vunpack.c.l.b16 %v2176
    %v2448 = vunpack.c.h.b16 %v2176
    %v2449 = vunpack.c.l.b16 %v2177
    %v2450 = vunpack.c.h.b16 %v2177
    %v2451 = vunpack.c.l.b16 %v2178
    %v2452 = vunpack.c.h.b16 %v2178
    %v2453 = vunpack.c.l.b16 %v2179
    %v2454 = vunpack.c.h.b16 %v2179
    %v2455 = vunpack.c.l.b16 %v2180
    %v2456 = vunpack.c.h.b16 %v2180
    %v2457 = vunpack.c.l.b16 %v2181
    %v2458 = vunpack.c.h.b16 %v2181
    %v2459 = vunpack.c.l.b16 %v2182
    %v2460 = vunpack.c.h.b16 %v2182
    %v2461 = vunpack.c.l.b16 %v2183
    %v2462 = vunpack.c.h.b16 %v2183
    %v2463 = vunpack.c.l.b16 %v2184
    %v2464 = vunpack.c.h.b16 %v2184
    %v2465 = vunpack.c.l.b16 %v2185
    %v2466 = vunpack.c.h.b16 %v2185
    %v2467 = vunpack.c.l.b16 %v2186
    %v2468 = vunpack.c.h.b16 %v2186
    %v2469 = vunpack.c.l.b16 %v2187
    %v2470 = vunpack.c.h.b16 %v2187
    %v2471 = vunpack.c.l.b16 %v2188
    %v2472 = vunpack.c.h.b16 %v2188
    %v2473 = vunpack.c.l.b16 %v2189
    %v2474 = vunpack.c.h.b16 %v2189
    %v2475 = vunpack.c.l.b16 %v2190
    %v2476 = vunpack.c.h.b16 %v2190
    %v2477 = vunpack.c.l.b16 %v2191
    %v2478 = vunpack.c.h.b16 %v2191
    %v2479 = vunpack.c.l.b16 %v2192
    %v2480 = vunpack.c.h.b16 %v2192
    %v2481 = vunpack.c.l.b16 %v2193
    %v2482 = vunpack.c.h.b16 %v2193
    %v2483 = vunpack.c.l.b16 %v2194
    %v2484 = vunpack.c.h.b16 %v2194
    %v2485 = vunpack.c.l.b16 %v2195
    %v2486 = vunpack.c.h.b16 %v2195
    %v2487 = vunpack.c.l.b16 %v2196
    %v2488 = vunpack.c.h.b16 %v2196
    %v2489 = vunpack.c.l.b16 %v2197
    %v2490 = vunpack.c.h.b16 %v2197
    %v2491 = vunpack.c.l.b16 %v2198
    %v2492 = vunpack.c.h.b16 %v2198
    %v2493 = vunpack.c.l.b16 %v2199
    %v2494 = vunpack.c.h.b16 %v2199
    %v2495 = vunpack.c.l.b16 %v2200
    %v2496 = vunpack.c.h.b16 %v2200
    %v2497 = vunpack.c.l.b16 %v2201
    %v2498 = vunpack.c.h.b16 %v2201
    %v2499 = vunpack.c.l.b16 %v2202
    %v2500 = vunpack.c.h.b16 %v2202
    %v2501 = vunpack.c.l.b16 %v2203
    %v2502 = vunpack.c.h.b16 %v2203
    %v2503 = vunpack.c.l.b16 %v2204
    %v2504 = vunpack.c.h.b16 %v2204
    %v2505 = vunpack.c.l.b16 %v2205
    %v2506 = vunpack.c.h.b16 %v2205
    %v2507 = vunpack.c.l.b16 %v2206
    %v2508 = vunpack.c.h.b16 %v2206
    %v2509 = vunpack.c.l.b16 %v2207
    %v2510 = vunpack.c.h.b16 %v2207
    %v2511 = vunpack.c.l.b16 %v2208
    %v2512 = vunpack.c.h.b16 %v2208
    %v2513 = vunpack.c.l.b16 %v2209
    %v2514 = vunpack.c.h.b16 %v2209
    %v2515 = vunpack.c.l.b16 %v2210
    %v2516 = vunpack.c.h.b16 %v2210
    %v2517 = vunpack.c.l.b16 %v2211
    %v2518 = vunpack.c.h.b16 %v2211
    %v2519 = vunpack.c.l.b16 %v2212
    %v2520 = vunpack.c.h.b16 %v2212
    %v2521 = vunpack.c.l.b16 %v2213
    %v2522 = vunpack.c.h.b16 %v2213
    %v2523 = vunpack.c.l.b16 %v2214
    %v2524 = vunpack.c.h.b16 %v2214
    %v2525 = vunpack.c.l.b16 %v2215
    %v2526 = vunpack.c.h.b16 %v2215
    %v2527 = vunpack.c.l.b16 %v2216
    %v2528 = vunpack.c.h.b16 %v2216
    %v2529 = vunpack.c.l.b16 %v2217
    %v2530 = vunpack.c.h.b16 %v2217
    %v2531 = vunpack.c.l.b16 %v2218
    %v2532 = vunpack.c.h.b16 %v2218
    %v2533 = vunpack.c.l.b16 %v2219
    %v2534 = vunpack.c.h.b16 %v2219
    %v2535 = vunpack.c.l.b16 %v2220
    %v2536 = vunpack.c.h.b16 %v2220
    %v2537 = vunpack.c.l.b16 %v2221
    %v2538 = vunpack.c.h.b16 %v2221
    %v2539 = vunpack.c.l.b16 %v2222
    %v2540 = vunpack.c.h.b16 %v2222
    %v2541 = vunpack.c.l.b16 %v2223
    %v2542 = vunpack.c.h.b16 %v2223
    %v2543 = vunpack.c.l.b16 %v2224
    %v2544 = vunpack.c.h.b16 %v2224
    %v2545 = vunpack.c.l.b16 %v2225
    %v2546 = vunpack.c.h.b16 %v2225
    %v2547 = vunpack.c.l.b16 %v2226
    %v2548 = vunpack.c.h.b16 %v2226
    %v2549 = vunpack.c.l.b16 %v2227
    %v2550 = vunpack.c.h.b16 %v2227
    %v2551 = vunpack.c.l.b16 %v2228
    %v2552 = vunpack.c.h.b16 %v2228
    %v2553 = vunpack.c.l.b16 %v2229
    %v2554 = vunpack.c.h.b16 %v2229
    %v2555 = vunpack.c.l.b16 %v2230
    %v2556 = vunpack.c.h.b16 %v2230
    %v2557 = vunpack.c.l.b16 %v2231
    %v2558 = vunpack.c.h.b16 %v2231
    %v2559 = vunpack.c.l.b16 %v2232
    %v2560 = vunpack.c.h.b16 %v2232
    %v2561 = vunpack.c.l.b16 %v2233
    %v2562 = vunpack.c.h.b16 %v2233
    %v2563 = vunpack.c.l.b16 %v2234
    %v2564 = vunpack.c.h.b16 %v2234
    %v2565 = vunpack.c.l.b16 %v2235
    %v2566 = vunpack.c.h.b16 %v2235
    %v2567 = vunpack.c.l.b16 %v2236
    %v2568 = vunpack.c.h.b16 %v2236
    %v2569 = vunpack.c.l.b16 %v2237
    %v2570 = vunpack.c.h.b16 %v2237
    %v2571 = vunpack.c.l.b16 %v2238
    %v2572 = vunpack.c.h.b16 %v2238
    %v2573 = vunpack.c.l.b16 %v2239
    %v2574 = vunpack.c.h.b16 %v2239
    %v2575 = vunpack.c.l.b16 %v2240
    %v2576 = vunpack.c.h.b16 %v2240
    %v2577 = vunpack.c.l.b16 %v2241
    %v2578 = vunpack.c.h.b16 %v2241
    %v2579 = vunpack.c.l.b16 %v2242
    %v2580 = vunpack.c.h.b16 %v2242
    %v2581 = vunpack.c.l.b16 %v2243
    %v2582 = vunpack.c.h.b16 %v2243
    %v2583 = vunpack.c.l.b16 %v2244
    %v2584 = vunpack.c.h.b16 %v2244
    %v2585 = vunpack.c.l.b16 %v2245
    %v2586 = vunpack.c.h.b16 %v2245
    %v2587 = vunpack.c.l.b16 %v2246
    %v2588 = vunpack.c.h.b16 %v2246
    %v2589 = vunpack.c.l.b16 %v2247
    %v2590 = vunpack.c.h.b16 %v2247
    %v2591 = vunpack.c.l.b16 %v2248
    %v2592 = vunpack.c.h.b16 %v2248
    %v2593 = vunpack.c.l.b16 %v2249
    %v2594 = vunpack.c.h.b16 %v2249
    %v2595 = vunpack.c.l.b16 %v2250
    %v2596 = vunpack.c.h.b16 %v2250
    %v2597 = vunpack.c.l.b16 %v2251
    %v2598 = vunpack.c.h.b16 %v2251
    %v2599 = vunpack.c.l.b16 %v2252
    %v2600 = vunpack.c.h.b16 %v2252
    %v2601 = vunpack.c.l.b16 %v2253
    %v2602 = vunpack.c.h.b16 %v2253
    %v2603 = vunpack.c.l.b16 %v2254
    %v2604 = vunpack.c.h.b16 %v2254
    %v2605 = vunpack.c.l.b16 %v2255
    %v2606 = vunpack.c.h.b16 %v2255
    %v2607 = vunpack.c.l.b16 %v2256
    %v2608 = vunpack.c.h.b16 %v2256
    %v2609 = vunpack.c.l.b16 %v2257
    %v2610 = vunpack.c.h.b16 %v2257
    %v2611 = vunpack.c.l.b16 %v2258
    %v2612 = vunpack.c.h.b16 %v2258
    %v2613 = vunpack.c.l.b16 %v2259
    %v2614 = vunpack.c.h.b16 %v2259
    %v2615 = vunpack.c.l.b16 %v2260
    %v2616 = vunpack.c.h.b16 %v2260
    %v2617 = vunpack.c.l.b16 %v2261
    %v2618 = vunpack.c.h.b16 %v2261
    %v2619 = vunpack.c.l.b16 %v2262
    %v2620 = vunpack.c.h.b16 %v2262
    %v2621 = vunpack.c.l.b16 %v2263
    %v2622 = vunpack.c.h.b16 %v2263
    %v2623 = vunpack.c.l.b16 %v2264
    %v2624 = vunpack.c.h.b16 %v2264
    %v2625 = vunpack.c.l.b16 %v2265
    %v2626 = vunpack.c.h.b16 %v2265
    %v2627 = vunpack.c.l.b16 %v2266
    %v2628 = vunpack.c.h.b16 %v2266
    %v2629 = vunpack.c.l.b16 %v2267
    %v2630 = vunpack.c.h.b16 %v2267
    %v2631 = vunpack.c.l.b16 %v2268
    %v2632 = vunpack.c.h.b16 %v2268
    %v2633 = vunpack.c.l.b16 %v2269
    %v2634 = vunpack.c.h.b16 %v2269
    %v2635 = vunpack.c.l.b16 %v2270
    %v2636 = vunpack.c.h.b16 %v2270
    %v2637 = vunpack.c.l.b16 %v2271
    %v2638 = vunpack.c.h.b16 %v2271
    %v2639 = vunpack.c.l.b16 %v2272
    %v2640 = vunpack.c.h.b16 %v2272
    %v2641 = vunpack.c.l.b16 %v2273
    %v2642 = vunpack.c.h.b16 %v2273
    %v2643 = vunpack.c.l.b16 %v2274
    %v2644 = vunpack.c.h.b16 %v2274
    %v2645 = vunpack.c.l.b16 %v2275
    %v2646 = vunpack.c.h.b16 %v2275
    %v2647 = vunpack.c.l.b16 %v2276
    %v2648 = vunpack.c.h.b16 %v2276
    %v2649 = vunpack.c.l.b16 %v2277
    %v2650 = vunpack.c.h.b16 %v2277
    %v2651 = vunpack.c.l.b16 %v2278
    %v2652 = vunpack.c.h.b16 %v2278
    %v2653 = vunpack.c.l.b16 %v2279
    %v2654 = vunpack.c.h.b16 %v2279
    %v2655 = vunpack.c.l.b16 %v2280
    %v2656 = vunpack.c.h.b16 %v2280
    %v2657 = vunpack.c.l.b16 %v2281
    %v2658 = vunpack.c.h.b16 %v2281
    %v2659 = vunpack.c.l.b16 %v2282
    %v2660 = vunpack.c.h.b16 %v2282
    %v2661 = vunpack.c.l.b16 %v2283
    %v2662 = vunpack.c.h.b16 %v2283
    %v2663 = vunpack.c.l.b16 %v2284
    %v2664 = vunpack.c.h.b16 %v2284
    %v2665 = vunpack.c.l.b16 %v2285
    %v2666 = vunpack.c.h.b16 %v2285
    %v2667 = vunpack.c.l.b16 %v2286
    %v2668 = vunpack.c.h.b16 %v2286
    %v2669 = vunpack.c.l.b16 %v2287
    %v2670 = vunpack.c.h.b16 %v2287
    %v2671 = vunpack.c.l.b16 %v2288
    %v2672 = vunpack.c.h.b16 %v2288
    %v2673 = vpack.c.b16 %v2421, %v2417
    %v2674 = vpack.c.b16 %v2422, %v2418
    %v2675 = vpack.c.b16 %v2423, %v2419
    %v2676 = vpack.c.b16 %v2424, %v2420
    %v2677 = vpack.c.b16 %v2429, %v2425
    %v2678 = vpack.c.b16 %v2430, %v2426
    %v2679 = vpack.c.b16 %v2431, %v2427
    %v2680 = vpack.c.b16 %v2432, %v2428
    %v2681 = vpack.c.b16 %v2437, %v2433
    %v2682 = vpack.c.b16 %v2438, %v2434
    %v2683 = vpack.c.b16 %v2439, %v2435
    %v2684 = vpack.c.b16 %v2440, %v2436
    %v2685 = vpack.c.b16 %v2445, %v2441
    %v2686 = vpack.c.b16 %v2446, %v2442
    %v2687 = vpack.c.b16 %v2447, %v2443
    %v2688 = vpack.c.b16 %v2448, %v2444
    %v2689 = vpack.c.b16 %v2453, %v2449
    %v2690 = vpack.c.b16 %v2454, %v2450
    %v2691 = vpack.c.b16 %v2455, %v2451
    %v2692 = vpack.c.b16 %v2456, %v2452
    %v2693 = vpack.c.b16 %v2461, %v2457
    %v2694 = vpack.c.b16 %v2462, %v2458
    %v2695 = vpack.c.b16 %v2463, %v2459
    %v2696 = vpack.c.b16 %v2464, %v2460
    %v2697 = vpack.c.b16 %v2469, %v2465
    %v2698 = vpack.c.b16 %v2470, %v2466
    %v2699 = vpack.c.b16 %v2471, %v2467
    %v2700 = vpack.c.b16 %v2472, %v2468
    %v2701 = vpack.c.b16 %v2477, %v2473
    %v2702 = vpack.c.b16 %v2478, %v2474
    %v2703 = vpack.c.b16 %v2479, %v2475
    %v2704 = vpack.c.b16 %v2480, %v2476
    %v2705 = vpack.c.b16 %v2485, %v2481
    %v2706 = vpack.c.b16 %v2486, %v2482
    %v2707 = vpack.c.b16 %v2487, %v2483
    %v2708 = vpack.c.b16 %v2488, %v2484
    %v2709 = vpack.c.b16 %v2493, %v2489
    %v2710 = vpack.c.b16 %v2494, %v2490
    %v2711 = vpack.c.b16 %v2495, %v2491
    %v2712 = vpack.c.b16 %v2496, %v2492
    %v2713 = vpack.c.b16 %v2501, %v2497
    %v2714 = vpack.c.b16 %v2502, %v2498
    %v2715 = vpack.c.b16 %v2503, %v2499
    %v2716 = vpack.c.b16 %v2504, %v2500
    %v2717 = vpack.c.b16 %v2509, %v2505
    %v2718 = vpack.c.b16 %v2510, %v2506
    %v2719 = vpack.c.b16 %v2511, %v2507
    %v2720 = vpack.c.b16 %v2512, %v2508
    %v2721 = vpack.c.b16 %v2517, %v2513
    %v2722 = vpack.c.b16 %v2518, %v2514
    %v2723 = vpack.c.b16 %v2519, %v2515
    %v2724 = vpack.c.b16 %v2520, %v2516
    %v2725 = vpack.c.b16 %v2525, %v2521
    %v2726 = vpack.c.b16 %v2526, %v2522
    %v2727 = vpack.c.b16 %v2527, %v2523
    %v2728 = vpack.c.b16 %v2528, %v2524
    %v2729 = vpack.c.b16 %v2533, %v2529
    %v2730 = vpack.c.b16 %v2534, %v2530
    %v2731 = vpack.c.b16 %v2535, %v2531
    %v2732 = vpack.c.b16 %v2536, %v2532
    %v2733 = vpack.c.b16 %v2541, %v2537
    %v2734 = vpack.c.b16 %v2542, %v2538
    %v2735 = vpack.c.b16 %v2543, %v2539
    %v2736 = vpack.c.b16 %v2544, %v2540
    %v2737 = vpack.c.b16 %v2549, %v2545
    %v2738 = vpack.c.b16 %v2550, %v2546
    %v2739 = vpack.c.b16 %v2551, %v2547
    %v2740 = vpack.c.b16 %v2552, %v2548
    %v2741 = vpack.c.b16 %v2557, %v2553
    %v2742 = vpack.c.b16 %v2558, %v2554
    %v2743 = vpack.c.b16 %v2559, %v2555
    %v2744 = vpack.c.b16 %v2560, %v2556
    %v2745 = vpack.c.b16 %v2565, %v2561
    %v2746 = vpack.c.b16 %v2566, %v2562
    %v2747 = vpack.c.b16 %v2567, %v2563
    %v2748 = vpack.c.b16 %v2568, %v2564
    %v2749 = vpack.c.b16 %v2573, %v2569
    %v2750 = vpack.c.b16 %v2574, %v2570
    %v2751 = vpack.c.b16 %v2575, %v2571
    %v2752 = vpack.c.b16 %v2576, %v2572
    %v2753 = vpack.c.b16 %v2581, %v2577
    %v2754 = vpack.c.b16 %v2582, %v2578
    %v2755 = vpack.c.b16 %v2583, %v2579
    %v2756 = vpack.c.b16 %v2584, %v2580
    %v2757 = vpack.c.b16 %v2589, %v2585
    %v2758 = vpack.c.b16 %v2590, %v2586
    %v2759 = vpack.c.b16 %v2591, %v2587
    %v2760 = vpack.c.b16 %v2592, %v2588
    %v2761 = vpack.c.b16 %v2597, %v2593
    %v2762 = vpack.c.b16 %v2598, %v2594
    %v2763 = vpack.c.b16 %v2599, %v2595
    %v2764 = vpack.c.b16 %v2600, %v2596
    %v2765 = vpack.c.b16 %v2605, %v2601
    %v2766 = vpack.c.b16 %v2606, %v2602
    %v2767 = vpack.c.b16 %v2607, %v2603
    %v2768 = vpack.c.b16 %v2608, %v2604
    %v2769 = vpack.c.b16 %v2613, %v2609
    %v2770 = vpack.c.b16 %v2614, %v2610
    %v2771 = vpack.c.b16 %v2615, %v2611
    %v2772 = vpack.c.b16 %v2616, %v2612
    %v2773 = vpack.c.b16 %v2621, %v2617
    %v2774 = vpack.c.b16 %v2622, %v2618
    %v2775 = vpack.c.b16 %v2623, %v2619
    %v2776 = vpack.c.b16 %v2624, %v2620
    %v2777 = vpack.c.b16 %v2629, %v2625
    %v2778 = vpack.c.b16 %v2630, %v2626
    %v2779 = vpack.c.b16 %v2631, %v2627
    %v2780 = vpack.c.b16 %v2632, %v2628
    %v2781 = vpack.c.b16 %v2637, %v2633
    %v2782 = vpack.c.b16 %v2638, %v2634
    %v2783 = vpack.c.b16 %v2639, %v2635
    %v2784 = vpack.c.b16 %v2640, %v2636
    %v2785 = vpack.c.b16 %v2645, %v2641
    %v2786 = vpack.c.b16 %v2646, %v2642
    %v2787 = vpack.c.b16 %v2647, %v2643
    %v2788 = vpack.c.b16 %v2648, %v2644
    %v2789 = vpack.c.b16 %v2653, %v2649
    %v2790 = vpack.c.b16 %v2654, %v2650
    %v2791 = vpack.c.b16 %v2655, %v2651
    %v2792 = vpack.c.b16 %v2656, %v2652
    %v2793 = vpack.c.b16 %v2661, %v2657
    %v2794 = vpack.c.b16 %v2662, %v2658
    %v2795 = vpack.c.b16 %v2663, %v2659
    %v2796 = vpack.c.b16 %v2664, %v2660
    %v2797 = vpack.c.b16 %v2669, %v2665
    %v2798 = vpack.c.b16 %v2670, %v2666
    %v2799 = vpack.c.b16 %v2671, %v2667
    %v2800 = vpack.c.b16 %v2672, %v2668
    %2929 = vmatprep.subr.bf16.mxu0 %v2674
    %2930 = vmatpush1.bf16.msra.mxu0 %v2673
    %2931 = vmatprep.subr.bf16.mxu0 %v2678
    %2932 = vmatpush1.bf16.msra.mxu0 %v2677
    %2933 = vmatprep.subr.bf16.mxu0 %v2682
    %2934 = vmatpush1.bf16.msra.mxu0 %v2681
    %2935 = vmatprep.subr.bf16.mxu0 %v2686
    %2936 = vmatpush1.bf16.msra.mxu0 %v2685
    %2937 = vmatprep.subr.bf16.mxu0 %v2690
    %2938 = vmatpush1.bf16.msra.mxu0 %v2689
    %2939 = vmatprep.subr.bf16.mxu0 %v2694
    %2940 = vmatpush1.bf16.msra.mxu0 %v2693
    %2941 = vmatprep.subr.bf16.mxu0 %v2698
    %2942 = vmatpush1.bf16.msra.mxu0 %v2697
    %2943 = vmatprep.subr.bf16.mxu0 %v2702
    %2944 = vmatpush1.bf16.msra.mxu0 %v2701
    %2945 = vmatprep.subr.bf16.mxu0 %v2706
    %2946 = vmatpush1.bf16.msra.mxu0 %v2705
    %2947 = vmatprep.subr.bf16.mxu0 %v2710
    %2948 = vmatpush1.bf16.msra.mxu0 %v2709
    %2949 = vmatprep.subr.bf16.mxu0 %v2714
    %2950 = vmatpush1.bf16.msra.mxu0 %v2713
    %2951 = vmatprep.subr.bf16.mxu0 %v2718
    %2952 = vmatpush1.bf16.msra.mxu0 %v2717
    %2953 = vmatprep.subr.bf16.mxu0 %v2722
    %2954 = vmatpush1.bf16.msra.mxu0 %v2721
    %2955 = vmatprep.subr.bf16.mxu0 %v2726
    %2956 = vmatpush1.bf16.msra.mxu0 %v2725
    %2957 = vmatprep.subr.bf16.mxu0 %v2730
    %2958 = vmatpush1.bf16.msra.mxu0 %v2729
    %2959 = vmatprep.subr.bf16.mxu0 %v2734
    %2960 = vmatpush1.bf16.msra.mxu0 %v2733
    %2961 = vmatprep.mubr.bf16.mxu0 %v2142
    %2962 = vmatmul.mubr.bf16.gmra.mrb[0].mxu0 %v2141
    %v2963 = vpop.f32.mrb[0].mxu0
    %v2964 = vadd.f32 0.0, %v2963
    %v2965 = vpop.f32.mrb[0].mxu0
    %v2966 = vadd.f32 0.0, %v2965
    %v2967 = vpop.f32.mrb[0].mxu0
    %v2968 = vadd.f32 0.0, %v2967
    %v2969 = vpop.f32.mrb[0].mxu0
    %v2970 = vadd.f32 0.0, %v2969
    %2971 = vmatprep.mubr.bf16.mxu0 %v2146
    %2972 = vmatmul.mubr.bf16.gmra.mrb[0].mxu0 %v2145
    %v2973 = vpop.f32.mrb[0].mxu0
    %v2974 = vadd.f32 0.0, %v2973
    %v2975 = vpop.f32.mrb[0].mxu0
    %v2976 = vadd.f32 0.0, %v2975
    %v2977 = vpop.f32.mrb[0].mxu0
    %v2978 = vadd.f32 0.0, %v2977
    %v2979 = vpop.f32.mrb[0].mxu0
    %v2980 = vadd.f32 0.0, %v2979
    %2981 = vmatprep.mubr.bf16.mxu0 %v2150
    %2982 = vmatmul.mubr.bf16.gmra.mrb[0].mxu0 %v2149
    %v2983 = vpop.f32.mrb[0].mxu0
    %v2984 = vadd.f32 0.0, %v2983
    %v2985 = vpop.f32.mrb[0].mxu0
    %v2986 = vadd.f32 0.0, %v2985
    %v2987 = vpop.f32.mrb[0].mxu0
    %v2988 = vadd.f32 0.0, %v2987
    %v2989 = vpop.f32.mrb[0].mxu0
    %v2990 = vadd.f32 0.0, %v2989
    %2991 = vmatprep.mubr.bf16.mxu0 %v2154
    %2992 = vmatmul.mubr.bf16.gmra.mrb[0].mxu0 %v2153
    %v2993 = vpop.f32.mrb[0].mxu0
    %v2994 = vadd.f32 0.0, %v2993
    %v2995 = vpop.f32.mrb[0].mxu0
    %v2996 = vadd.f32 0.0, %v2995
    %v2997 = vpop.f32.mrb[0].mxu0
    %v2998 = vadd.f32 0.0, %v2997
    %v2999 = vpop.f32.mrb[0].mxu0
    %v3000 = vadd.f32 0.0, %v2999
    %3001 = vmatprep.mubr.bf16.mxu0 %v2158
    %3002 = vmatmul.mubr.bf16.gmra.mrb[0].mxu0 %v2157
    %v3003 = vpop.f32.mrb[0].mxu0
    %v3004 = vadd.f32 0.0, %v3003
    %v3005 = vpop.f32.mrb[0].mxu0
    %v3006 = vadd.f32 0.0, %v3005
    %v3007 = vpop.f32.mrb[0].mxu0
    %v3008 = vadd.f32 0.0, %v3007
    %v3009 = vpop.f32.mrb[0].mxu0
    %v3010 = vadd.f32 0.0, %v3009
    %3011 = vdwg.mxu0
    %3012 = vmatprep.subr.bf16.mxu0 %v2738
    %3013 = vmatpush1.bf16.msra.mxu0 %v2737
    %3014 = vmatprep.subr.bf16.mxu0 %v2742
    %3015 = vmatpush1.bf16.msra.mxu0 %v2741
    %3016 = vmatprep.subr.bf16.mxu0 %v2746
    %3017 = vmatpush1.bf16.msra.mxu0 %v2745
    %3018 = vmatprep.subr.bf16.mxu0 %v2750
    %3019 = vmatpush1.bf16.msra.mxu0 %v2749
    %3020 = vmatprep.subr.bf16.mxu0 %v2754
    %3021 = vmatpush1.bf16.msra.mxu0 %v2753
    %3022 = vmatprep.subr.bf16.mxu0 %v2758
    %3023 = vmatpush1.bf16.msra.mxu0 %v2757
    %3024 = vmatprep.subr.bf16.mxu0 %v2762
    %3025 = vmatpush1.bf16.msra.mxu0 %v2761
    %3026 = vmatprep.subr.bf16.mxu0 %v2766
    %3027 = vmatpush1.bf16.msra.mxu0 %v2765
    %3028 = vmatprep.subr.bf16.mxu0 %v2770
    %3029 = vmatpush1.bf16.msra.mxu0 %v2769
    %3030 = vmatprep.subr.bf16.mxu0 %v2774
    %3031 = vmatpush1.bf16.msra.mxu0 %v2773
    %3032 = vmatprep.subr.bf16.mxu0 %v2778
    %3033 = vmatpush1.bf16.msra.mxu0 %v2777
    %3034 = vmatprep.subr.bf16.mxu0 %v2782
    %3035 = vmatpush1.bf16.msra.mxu0 %v2781
    %3036 = vmatprep.subr.bf16.mxu0 %v2786
    %3037 = vmatpush1.bf16.msra.mxu0 %v2785
    %3038 = vmatprep.subr.bf16.mxu0 %v2790
    %3039 = vmatpush1.bf16.msra.mxu0 %v2789
    %3040 = vmatprep.subr.bf16.mxu0 %v2794
    %3041 = vmatpush1.bf16.msra.mxu0 %v2793
    %3042 = vmatprep.subr.bf16.mxu0 %v2798
    %3043 = vmatpush1.bf16.msra.mxu0 %v2797
    %3044 = vmatprep.mubr.bf16.mxu0 %v2144
    %3045 = vmatmul.mubr.bf16.gmra.mrb[0].mxu0 %v2143
    %v3046 = vpop.f32.mrb[0].mxu0
    %v3047 = vadd.f32 %v2964, %v3046
    %v3048 = vpop.f32.mrb[0].mxu0
    %v3049 = vadd.f32 %v2966, %v3048
    %v3050 = vpop.f32.mrb[0].mxu0
    %v3051 = vadd.f32 %v2968, %v3050
    %v3052 = vpop.f32.mrb[0].mxu0
    %v3053 = vadd.f32 %v2970, %v3052
    %3054 = vmatprep.mubr.bf16.mxu0 %v2148
    %3055 = vmatmul.mubr.bf16.gmra.mrb[0].mxu0 %v2147
    %v3056 = vpop.f32.mrb[0].mxu0
    %v3057 = vadd.f32 %v2974, %v3056
    %v3058 = vpop.f32.mrb[0].mxu0
    %v3059 = vadd.f32 %v2976, %v3058
    %v3060 = vpop.f32.mrb[0].mxu0
    %v3061 = vadd.f32 %v2978, %v3060
    %v3062 = vpop.f32.mrb[0].mxu0
    %v3063 = vadd.f32 %v2980, %v3062
    %3064 = vmatprep.mubr.bf16.mxu0 %v2152
    %3065 = vmatmul.mubr.bf16.gmra.mrb[0].mxu0 %v2151
    %v3066 = vpop.f32.mrb[0].mxu0
    %v3067 = vadd.f32 %v2984, %v3066
    %v3068 = vpop.f32.mrb[0].mxu0
    %v3069 = vadd.f32 %v2986, %v3068
    %v3070 = vpop.f32.mrb[0].mxu0
    %v3071 = vadd.f32 %v2988, %v3070
    %v3072 = vpop.f32.mrb[0].mxu0
    %v3073 = vadd.f32 %v2990, %v3072
    %3074 = vmatprep.mubr.bf16.mxu0 %v2156
    %3075 = vmatmul.mubr.bf16.gmra.mrb[0].mxu0 %v2155
    %v3076 = vpop.f32.mrb[0].mxu0
    %v3077 = vadd.f32 %v2994, %v3076
    %v3078 = vpop.f32.mrb[0].mxu0
    %v3079 = vadd.f32 %v2996, %v3078
    %v3080 = vpop.f32.mrb[0].mxu0
    %v3081 = vadd.f32 %v2998, %v3080
    %v3082 = vpop.f32.mrb[0].mxu0
    %v3083 = vadd.f32 %v3000, %v3082
    %3084 = vmatprep.mubr.bf16.mxu0 %v2160
    %3085 = vmatmul.mubr.bf16.gmra.mrb[0].mxu0 %v2159
    %v3086 = vpop.f32.mrb[0].mxu0
    %v3087 = vadd.f32 %v3004, %v3086
    %v3088 = vpop.f32.mrb[0].mxu0
    %v3089 = vadd.f32 %v3006, %v3088
    %v3090 = vpop.f32.mrb[0].mxu0
    %v3091 = vadd.f32 %v3008, %v3090
    %v3092 = vpop.f32.mrb[0].mxu0
    %v3093 = vadd.f32 %v3010, %v3092
    %3094 = vdwg.mxu0
    %3095 = vmatprep.subr.bf16.mxu0 %v2676
    %3096 = vmatpush1.bf16.msra.mxu0 %v2675
    %3097 = vmatprep.subr.bf16.mxu0 %v2680
    %3098 = vmatpush1.bf16.msra.mxu0 %v2679
    %3099 = vmatprep.subr.bf16.mxu0 %v2684
    %3100 = vmatpush1.bf16.msra.mxu0 %v2683
    %3101 = vmatprep.subr.bf16.mxu0 %v2688
    %3102 = vmatpush1.bf16.msra.mxu0 %v2687
    %3103 = vmatprep.subr.bf16.mxu0 %v2692
    %3104 = vmatpush1.bf16.msra.mxu0 %v2691
    %3105 = vmatprep.subr.bf16.mxu0 %v2696
    %3106 = vmatpush1.bf16.msra.mxu0 %v2695
    %3107 = vmatprep.subr.bf16.mxu0 %v2700
    %3108 = vmatpush1.bf16.msra.mxu0 %v2699
    %3109 = vmatprep.subr.bf16.mxu0 %v2704
    %3110 = vmatpush1.bf16.msra.mxu0 %v2703
    %3111 = vmatprep.subr.bf16.mxu0 %v2708
    %3112 = vmatpush1.bf16.msra.mxu0 %v2707
    %3113 = vmatprep.subr.bf16.mxu0 %v2712
    %3114 = vmatpush1.bf16.msra.mxu0 %v2711
    %3115 = vmatprep.subr.bf16.mxu0 %v2716
    %3116 = vmatpush1.bf16.msra.mxu0 %v2715
    %3117 = vmatprep.subr.bf16.mxu0 %v2720
    %3118 = vmatpush1.bf16.msra.mxu0 %v2719
    %3119 = vmatprep.subr.bf16.mxu0 %v2724
    %3120 = vmatpush1.bf16.msra.mxu0 %v2723
    %3121 = vmatprep.subr.bf16.mxu0 %v2728
    %3122 = vmatpush1.bf16.msra.mxu0 %v2727
    %3123 = vmatprep.subr.bf16.mxu0 %v2732
    %3124 = vmatpush1.bf16.msra.mxu0 %v2731
    %3125 = vmatprep.subr.bf16.mxu0 %v2736
    %3126 = vmatpush1.bf16.msra.mxu0 %v2735
    %3127 = vmatprep.mubr.bf16.mxu0 %v2142
    %3128 = vmatmul.mubr.bf16.gmra.mrb[0].mxu0 %v2141
    %v3129 = vpop.f32.mrb[0].mxu0
    %v3130 = vadd.f32 0.0, %v3129
    %v3131 = vpop.f32.mrb[0].mxu0
    %v3132 = vadd.f32 0.0, %v3131
    %v3133 = vpop.f32.mrb[0].mxu0
    %v3134 = vadd.f32 0.0, %v3133
    %v3135 = vpop.f32.mrb[0].mxu0
    %v3136 = vadd.f32 0.0, %v3135
    %3137 = vmatprep.mubr.bf16.mxu0 %v2146
    %3138 = vmatmul.mubr.bf16.gmra.mrb[0].mxu0 %v2145
    %v3139 = vpop.f32.mrb[0].mxu0
    %v3140 = vadd.f32 0.0, %v3139
    %v3141 = vpop.f32.mrb[0].mxu0
    %v3142 = vadd.f32 0.0, %v3141
    %v3143 = vpop.f32.mrb[0].mxu0
    %v3144 = vadd.f32 0.0, %v3143
    %v3145 = vpop.f32.mrb[0].mxu0
    %v3146 = vadd.f32 0.0, %v3145
    %3147 = vmatprep.mubr.bf16.mxu0 %v2150
    %3148 = vmatmul.mubr.bf16.gmra.mrb[0].mxu0 %v2149
    %v3149 = vpop.f32.mrb[0].mxu0
    %v3150 = vadd.f32 0.0, %v3149
    %v3151 = vpop.f32.mrb[0].mxu0
    %v3152 = vadd.f32 0.0, %v3151
    %v3153 = vpop.f32.mrb[0].mxu0
    %v3154 = vadd.f32 0.0, %v3153
    %v3155 = vpop.f32.mrb[0].mxu0
    %v3156 = vadd.f32 0.0, %v3155
    %3157 = vmatprep.mubr.bf16.mxu0 %v2154
    %3158 = vmatmul.mubr.bf16.gmra.mrb[0].mxu0 %v2153
    %v3159 = vpop.f32.mrb[0].mxu0
    %v3160 = vadd.f32 0.0, %v3159
    %v3161 = vpop.f32.mrb[0].mxu0
    %v3162 = vadd.f32 0.0, %v3161
    %v3163 = vpop.f32.mrb[0].mxu0
    %v3164 = vadd.f32 0.0, %v3163
    %v3165 = vpop.f32.mrb[0].mxu0
    %v3166 = vadd.f32 0.0, %v3165
    %3167 = vmatprep.mubr.bf16.mxu0 %v2158
    %3168 = vmatmul.mubr.bf16.gmra.mrb[0].mxu0 %v2157
    %v3169 = vpop.f32.mrb[0].mxu0
    %v3170 = vadd.f32 0.0, %v3169
    %v3171 = vpop.f32.mrb[0].mxu0
    %v3172 = vadd.f32 0.0, %v3171
    %v3173 = vpop.f32.mrb[0].mxu0
    %v3174 = vadd.f32 0.0, %v3173
    %v3175 = vpop.f32.mrb[0].mxu0
    %v3176 = vadd.f32 0.0, %v3175
    %3177 = vdwg.mxu0
    %3178 = vmatprep.subr.bf16.mxu0 %v2740
    %3179 = vmatpush1.bf16.msra.mxu0 %v2739
    %3180 = vmatprep.subr.bf16.mxu0 %v2744
    %3181 = vmatpush1.bf16.msra.mxu0 %v2743
    %3182 = vmatprep.subr.bf16.mxu0 %v2748
    %3183 = vmatpush1.bf16.msra.mxu0 %v2747
    %3184 = vmatprep.subr.bf16.mxu0 %v2752
    %3185 = vmatpush1.bf16.msra.mxu0 %v2751
    %3186 = vmatprep.subr.bf16.mxu0 %v2756
    %3187 = vmatpush1.bf16.msra.mxu0 %v2755
    %3188 = vmatprep.subr.bf16.mxu0 %v2760
    %3189 = vmatpush1.bf16.msra.mxu0 %v2759
    %3190 = vmatprep.subr.bf16.mxu0 %v2764
    %3191 = vmatpush1.bf16.msra.mxu0 %v2763
    %3192 = vmatprep.subr.bf16.mxu0 %v2768
    %3193 = vmatpush1.bf16.msra.mxu0 %v2767
    %3194 = vmatprep.subr.bf16.mxu0 %v2772
    %3195 = vmatpush1.bf16.msra.mxu0 %v2771
    %3196 = vmatprep.subr.bf16.mxu0 %v2776
    %3197 = vmatpush1.bf16.msra.mxu0 %v2775
    %3198 = vmatprep.subr.bf16.mxu0 %v2780
    %3199 = vmatpush1.bf16.msra.mxu0 %v2779
    %3200 = vmatprep.subr.bf16.mxu0 %v2784
    %3201 = vmatpush1.bf16.msra.mxu0 %v2783
    %3202 = vmatprep.subr.bf16.mxu0 %v2788
    %3203 = vmatpush1.bf16.msra.mxu0 %v2787
    %3204 = vmatprep.subr.bf16.mxu0 %v2792
    %3205 = vmatpush1.bf16.msra.mxu0 %v2791
    %3206 = vmatprep.subr.bf16.mxu0 %v2796
    %3207 = vmatpush1.bf16.msra.mxu0 %v2795
    %3208 = vmatprep.subr.bf16.mxu0 %v2800
    %3209 = vmatpush1.bf16.msra.mxu0 %v2799
    %3210 = vmatprep.mubr.bf16.mxu0 %v2144
    %3211 = vmatmul.mubr.bf16.gmra.mrb[0].mxu0 %v2143
    %v3212 = vpop.f32.mrb[0].mxu0
    %v3213 = vadd.f32 %v3130, %v3212
    %v3214 = vpop.f32.mrb[0].mxu0
    %v3215 = vadd.f32 %v3132, %v3214
    %v3216 = vpop.f32.mrb[0].mxu0
    %v3217 = vadd.f32 %v3134, %v3216
    %v3218 = vpop.f32.mrb[0].mxu0
    %v3219 = vadd.f32 %v3136, %v3218
    %3220 = vmatprep.mubr.bf16.mxu0 %v2148
    %3221 = vmatmul.mubr.bf16.gmra.mrb[0].mxu0 %v2147
    %v3222 = vpop.f32.mrb[0].mxu0
    %v3223 = vadd.f32 %v3140, %v3222
    %v3224 = vpop.f32.mrb[0].mxu0
    %v3225 = vadd.f32 %v3142, %v3224
    %v3226 = vpop.f32.mrb[0].mxu0
    %v3227 = vadd.f32 %v3144, %v3226
    %v3228 = vpop.f32.mrb[0].mxu0
    %v3229 = vadd.f32 %v3146, %v3228
    %3230 = vmatprep.mubr.bf16.mxu0 %v2152
    %3231 = vmatmul.mubr.bf16.gmra.mrb[0].mxu0 %v2151
    %v3232 = vpop.f32.mrb[0].mxu0
    %v3233 = vadd.f32 %v3150, %v3232
    %v3234 = vpop.f32.mrb[0].mxu0
    %v3235 = vadd.f32 %v3152, %v3234
    %v3236 = vpop.f32.mrb[0].mxu0
    %v3237 = vadd.f32 %v3154, %v3236
    %v3238 = vpop.f32.mrb[0].mxu0
    %v3239 = vadd.f32 %v3156, %v3238
    %3240 = vmatprep.mubr.bf16.mxu0 %v2156
    %3241 = vmatmul.mubr.bf16.gmra.mrb[0].mxu0 %v2155
    %v3242 = vpop.f32.mrb[0].mxu0
    %v3243 = vadd.f32 %v3160, %v3242
    %v3244 = vpop.f32.mrb[0].mxu0
    %v3245 = vadd.f32 %v3162, %v3244
    %v3246 = vpop.f32.mrb[0].mxu0
    %v3247 = vadd.f32 %v3164, %v3246
    %v3248 = vpop.f32.mrb[0].mxu0
    %v3249 = vadd.f32 %v3166, %v3248
    %3250 = vmatprep.mubr.bf16.mxu0 %v2160
    %3251 = vmatmul.mubr.bf16.gmra.mrb[0].mxu0 %v2159
    %v3252 = vpop.f32.mrb[0].mxu0
    %v3253 = vadd.f32 %v3170, %v3252
    %v3254 = vpop.f32.mrb[0].mxu0
    %v3255 = vadd.f32 %v3172, %v3254
    %v3256 = vpop.f32.mrb[0].mxu0
    %v3257 = vadd.f32 %v3174, %v3256
    %v3258 = vpop.f32.mrb[0].mxu0
    %v3259 = vadd.f32 %v3176, %v3258
    %3260 = vdwg.mxu0
    %v3261 = vmax.f32 %v3047, %v3213
    %v3262 = vmax.f32 %v3049, %v3215
    %v3263 = vmax.f32 %v3051, %v3217
    %v3264 = vmax.f32 %v3053, %v3219
    %v3265 = vmax.f32 %v3057, %v3223
    %v3266 = vmax.f32 %v3059, %v3225
    %v3267 = vmax.f32 %v3061, %v3227
    %v3268 = vmax.f32 %v3063, %v3229
    %v3269 = vmax.f32 %v3067, %v3233
    %v3270 = vmax.f32 %v3069, %v3235
    %v3271 = vmax.f32 %v3071, %v3237
    %v3272 = vmax.f32 %v3073, %v3239
    %v3273 = vmax.f32 %v3077, %v3243
    %v3274 = vmax.f32 %v3079, %v3245
    %v3275 = vmax.f32 %v3081, %v3247
    %v3276 = vmax.f32 %v3083, %v3249
    %v3277 = vmax.f32 %v3087, %v3253
    %v3278 = vmax.f32 %v3089, %v3255
    %v3279 = vmax.f32 %v3091, %v3257
    %v3280 = vmax.f32 %v3093, %v3259
    %v3281 = vld [vmem:[%s4] sm:$0x3]
    %v3283 = vlaneseq
    %v3284 = vshrl.u32 %v3283, 7
    %v3285 = vsub.s32 0, %v3284
    %v3286 = vrot.slane %v3281, %v3285
    %v3287 = vlaneseq
    %v3288 = vshrl.u32 %v3287, 7
    %v3289 = vsub.s32 1, %v3288
    %v3290 = vrot.slane %v3281, %v3289
    %v3293 = vadd.f32 %v3261, %v3286
    %v3294 = vadd.f32 %v3262, %v3290
    %v3295 = vadd.f32 %v3263, %v3286
    %v3296 = vadd.f32 %v3264, %v3290
    %v3297 = vadd.f32 %v3265, %v3286
    %v3298 = vadd.f32 %v3266, %v3290
    %v3299 = vadd.f32 %v3267, %v3286
    %v3300 = vadd.f32 %v3268, %v3290
    %v3301 = vadd.f32 %v3269, %v3286
    %v3302 = vadd.f32 %v3270, %v3290
    %v3303 = vadd.f32 %v3271, %v3286
    %v3304 = vadd.f32 %v3272, %v3290
    %v3305 = vadd.f32 %v3273, %v3286
    %v3306 = vadd.f32 %v3274, %v3290
    %v3307 = vadd.f32 %v3275, %v3286
    %v3308 = vadd.f32 %v3276, %v3290
    %v3309 = vadd.f32 %v3277, %v3286
    %v3310 = vadd.f32 %v3278, %v3290
    %v3311 = vadd.f32 %v3279, %v3286
    %v3312 = vadd.f32 %v3280, %v3290
    %v3313 = vmax.f32 %v3293, 0.0
    %v3314 = vmax.f32 %v3294, 0.0
    %v3315 = vmax.f32 %v3295, 0.0
    %v3316 = vmax.f32 %v3296, 0.0
    %v3317 = vmax.f32 %v3297, 0.0
    %v3318 = vmax.f32 %v3298, 0.0
    %v3319 = vmax.f32 %v3299, 0.0
    %v3320 = vmax.f32 %v3300, 0.0
    %v3321 = vmax.f32 %v3301, 0.0
    %v3322 = vmax.f32 %v3302, 0.0
    %v3323 = vmax.f32 %v3303, 0.0
    %v3324 = vmax.f32 %v3304, 0.0
    %v3325 = vmax.f32 %v3305, 0.0
    %v3326 = vmax.f32 %v3306, 0.0
    %v3327 = vmax.f32 %v3307, 0.0
    %v3328 = vmax.f32 %v3308, 0.0
    %v3329 = vmax.f32 %v3309, 0.0
    %v3330 = vmax.f32 %v3310, 0.0
    %v3331 = vmax.f32 %v3311, 0.0
    %v3332 = vmax.f32 %v3312, 0.0
    %v3333 = vpack.c.bf16 %v3315, %v3313
    %v3334 = vpack.c.bf16 %v3316, %v3314
    %v3335 = vpack.c.bf16 %v3319, %v3317
    %v3336 = vpack.c.bf16 %v3320, %v3318
    %v3337 = vpack.c.bf16 %v3323, %v3321
    %v3338 = vpack.c.bf16 %v3324, %v3322
    %v3339 = vpack.c.bf16 %v3327, %v3325
    %v3340 = vpack.c.bf16 %v3328, %v3326
    %v3341 = vpack.c.bf16 %v3331, %v3329
    %v3342 = vpack.c.bf16 %v3332, %v3330
    %3343 = vst [vmem:[#allocation3] sm:$0xff] %v3333
    %3344 = vst [vmem:[#allocation3 + $0x8] sm:$0xff] %v3334
    %3345 = vst [vmem:[#allocation3 + $0x10] sm:$0xff] %v3335
    %3346 = vst [vmem:[#allocation3 + $0x18] sm:$0xff] %v3336
    %3347 = vst [vmem:[#allocation3 + $0x20] sm:$0xff] %v3337
    %3348 = vst [vmem:[#allocation3 + $0x28] sm:$0xff] %v3338
    %3349 = vst [vmem:[#allocation3 + $0x30] sm:$0xff] %v3339
    %3350 = vst [vmem:[#allocation3 + $0x38] sm:$0xff] %v3340
    %3351 = vst [vmem:[#allocation3 + $0x40] sm:$0xff] %v3341
    %3352 = vst [vmem:[#allocation3 + $0x48] sm:$0xff] %v3342
    %v3353 = vld [vmem:[#allocation3] sm:$0xff]
    %v3354 = vld [vmem:[#allocation3 + $0x8] sm:$0xff]
    %v3355 = vld [vmem:[#allocation3 + $0x10] sm:$0xff]
    %v3356 = vld [vmem:[#allocation3 + $0x18] sm:$0xff]
    %v3357 = vld [vmem:[#allocation3 + $0x20] sm:$0xff]
    %v3358 = vld [vmem:[#allocation3 + $0x28] sm:$0xff]
    %v3359 = vld [vmem:[#allocation3 + $0x30] sm:$0xff]
    %v3360 = vld [vmem:[#allocation3 + $0x38] sm:$0xff]
    %v3361 = vld [vmem:[#allocation3 + $0x40] sm:$0xff]
    %v3362 = vld [vmem:[#allocation3 + $0x48] sm:$0xff]
    %v3363 = vld [vmem:[%s5] sm:$0xff]
    %v3364 = vld [vmem:[%s5 + $0x8] sm:$0xff]
    %v3365 = vld [vmem:[%s5 + $0x10] sm:$0xff]
    %v3366 = vld [vmem:[%s5 + $0x18] sm:$0xff]
    %v3367 = vld [vmem:[%s5 + $0x20] sm:$0xff]
    %v3368 = vld [vmem:[%s5 + $0x28] sm:$0xff]
    %v3369 = vld [vmem:[%s5 + $0x30] sm:$0xff]
    %v3370 = vld [vmem:[%s5 + $0x38] sm:$0xff]
    %v3371 = vld [vmem:[%s5 + $0x40] sm:$0xff]
    %v3372 = vld [vmem:[%s5 + $0x48] sm:$0xff]
    %v3373 = vld [vmem:[%s5 + $0x50] sm:$0xff]
    %v3374 = vld [vmem:[%s5 + $0x58] sm:$0xff]
    %v3375 = vld [vmem:[%s5 + $0x60] sm:$0xff]
    %v3376 = vld [vmem:[%s5 + $0x68] sm:$0xff]
    %v3377 = vld [vmem:[%s5 + $0x70] sm:$0xff]
    %v3378 = vld [vmem:[%s5 + $0x78] sm:$0xff]
    %v3379 = vld [vmem:[%s5 + $0x80] sm:$0xff]
    %v3380 = vld [vmem:[%s5 + $0x88] sm:$0xff]
    %v3381 = vld [vmem:[%s5 + $0x90] sm:$0xff]
    %v3382 = vld [vmem:[%s5 + $0x98] sm:$0xff]
    %v3383 = vld [vmem:[%s5 + $0xa0] sm:$0xff]
    %v3384 = vld [vmem:[%s5 + $0xa8] sm:$0xff]
    %v3385 = vld [vmem:[%s5 + $0xb0] sm:$0xff]
    %v3386 = vld [vmem:[%s5 + $0xb8] sm:$0xff]
    %v3387 = vld [vmem:[%s5 + $0xc0] sm:$0xff]
    %v3388 = vld [vmem:[%s5 + $0xc8] sm:$0xff]
    %v3389 = vld [vmem:[%s5 + $0xd0] sm:$0xff]
    %v3390 = vld [vmem:[%s5 + $0xd8] sm:$0xff]
    %v3391 = vld [vmem:[%s5 + $0xe0] sm:$0xff]
    %v3392 = vld [vmem:[%s5 + $0xe8] sm:$0xff]
    %v3393 = vld [vmem:[%s5 + $0xf0] sm:$0xff]
    %v3394 = vld [vmem:[%s5 + $0xf8] sm:$0xff]
    %v3427 = vunpack.c.l.b16 %v3363
    %v3428 = vunpack.c.h.b16 %v3363
    %v3429 = vunpack.c.l.b16 %v3364
    %v3430 = vunpack.c.h.b16 %v3364
    %v3431 = vunpack.c.l.b16 %v3365
    %v3432 = vunpack.c.h.b16 %v3365
    %v3433 = vunpack.c.l.b16 %v3366
    %v3434 = vunpack.c.h.b16 %v3366
    %v3435 = vunpack.c.l.b16 %v3367
    %v3436 = vunpack.c.h.b16 %v3367
    %v3437 = vunpack.c.l.b16 %v3368
    %v3438 = vunpack.c.h.b16 %v3368
    %v3439 = vunpack.c.l.b16 %v3369
    %v3440 = vunpack.c.h.b16 %v3369
    %v3441 = vunpack.c.l.b16 %v3370
    %v3442 = vunpack.c.h.b16 %v3370
    %v3443 = vunpack.c.l.b16 %v3371
    %v3444 = vunpack.c.h.b16 %v3371
    %v3445 = vunpack.c.l.b16 %v3372
    %v3446 = vunpack.c.h.b16 %v3372
    %v3447 = vunpack.c.l.b16 %v3373
    %v3448 = vunpack.c.h.b16 %v3373
    %v3449 = vunpack.c.l.b16 %v3374
    %v3450 = vunpack.c.h.b16 %v3374
    %v3451 = vunpack.c.l.b16 %v3375
    %v3452 = vunpack.c.h.b16 %v3375
    %v3453 = vunpack.c.l.b16 %v3376
    %v3454 = vunpack.c.h.b16 %v3376
    %v3455 = vunpack.c.l.b16 %v3377
    %v3456 = vunpack.c.h.b16 %v3377
    %v3457 = vunpack.c.l.b16 %v3378
    %v3458 = vunpack.c.h.b16 %v3378
    %v3459 = vunpack.c.l.b16 %v3379
    %v3460 = vunpack.c.h.b16 %v3379
    %v3461 = vunpack.c.l.b16 %v3380
    %v3462 = vunpack.c.h.b16 %v3380
    %v3463 = vunpack.c.l.b16 %v3381
    %v3464 = vunpack.c.h.b16 %v3381
    %v3465 = vunpack.c.l.b16 %v3382
    %v3466 = vunpack.c.h.b16 %v3382
    %v3467 = vunpack.c.l.b16 %v3383
    %v3468 = vunpack.c.h.b16 %v3383
    %v3469 = vunpack.c.l.b16 %v3384
    %v3470 = vunpack.c.h.b16 %v3384
    %v3471 = vunpack.c.l.b16 %v3385
    %v3472 = vunpack.c.h.b16 %v3385
    %v3473 = vunpack.c.l.b16 %v3386
    %v3474 = vunpack.c.h.b16 %v3386
    %v3475 = vunpack.c.l.b16 %v3387
    %v3476 = vunpack.c.h.b16 %v3387
    %v3477 = vunpack.c.l.b16 %v3388
    %v3478 = vunpack.c.h.b16 %v3388
    %v3479 = vunpack.c.l.b16 %v3389
    %v3480 = vunpack.c.h.b16 %v3389
    %v3481 = vunpack.c.l.b16 %v3390
    %v3482 = vunpack.c.h.b16 %v3390
    %v3483 = vunpack.c.l.b16 %v3391
    %v3484 = vunpack.c.h.b16 %v3391
    %v3485 = vunpack.c.l.b16 %v3392
    %v3486 = vunpack.c.h.b16 %v3392
    %v3487 = vunpack.c.l.b16 %v3393
    %v3488 = vunpack.c.h.b16 %v3393
    %v3489 = vunpack.c.l.b16 %v3394
    %v3490 = vunpack.c.h.b16 %v3394
    %v3491 = vpack.c.b16 %v3429, %v3427
    %v3492 = vpack.c.b16 %v3430, %v3428
    %v3493 = vpack.c.b16 %v3433, %v3431
    %v3494 = vpack.c.b16 %v3434, %v3432
    %v3495 = vpack.c.b16 %v3437, %v3435
    %v3496 = vpack.c.b16 %v3438, %v3436
    %v3497 = vpack.c.b16 %v3441, %v3439
    %v3498 = vpack.c.b16 %v3442, %v3440
    %v3499 = vpack.c.b16 %v3445, %v3443
    %v3500 = vpack.c.b16 %v3446, %v3444
    %v3501 = vpack.c.b16 %v3449, %v3447
    %v3502 = vpack.c.b16 %v3450, %v3448
    %v3503 = vpack.c.b16 %v3453, %v3451
    %v3504 = vpack.c.b16 %v3454, %v3452
    %v3505 = vpack.c.b16 %v3457, %v3455
    %v3506 = vpack.c.b16 %v3458, %v3456
    %v3507 = vpack.c.b16 %v3461, %v3459
    %v3508 = vpack.c.b16 %v3462, %v3460
    %v3509 = vpack.c.b16 %v3465, %v3463
    %v3510 = vpack.c.b16 %v3466, %v3464
    %v3511 = vpack.c.b16 %v3469, %v3467
    %v3512 = vpack.c.b16 %v3470, %v3468
    %v3513 = vpack.c.b16 %v3473, %v3471
    %v3514 = vpack.c.b16 %v3474, %v3472
    %v3515 = vpack.c.b16 %v3477, %v3475
    %v3516 = vpack.c.b16 %v3478, %v3476
    %v3517 = vpack.c.b16 %v3481, %v3479
    %v3518 = vpack.c.b16 %v3482, %v3480
    %v3519 = vpack.c.b16 %v3485, %v3483
    %v3520 = vpack.c.b16 %v3486, %v3484
    %v3521 = vpack.c.b16 %v3489, %v3487
    %v3522 = vpack.c.b16 %v3490, %v3488
    %3555 = vmatprep.subr.bf16.mxu0 %v3492
    %3556 = vmatpush1.bf16.msra.mxu0 %v3491
    %3557 = vmatprep.subr.bf16.mxu0 %v3494
    %3558 = vmatpush1.bf16.msra.mxu0 %v3493
    %3559 = vmatprep.subr.bf16.mxu0 %v3496
    %3560 = vmatpush1.bf16.msra.mxu0 %v3495
    %3561 = vmatprep.subr.bf16.mxu0 %v3498
    %3562 = vmatpush1.bf16.msra.mxu0 %v3497
    %3563 = vmatprep.subr.bf16.mxu0 %v3500
    %3564 = vmatpush1.bf16.msra.mxu0 %v3499
    %3565 = vmatprep.subr.bf16.mxu0 %v3502
    %3566 = vmatpush1.bf16.msra.mxu0 %v3501
    %3567 = vmatprep.subr.bf16.mxu0 %v3504
    %3568 = vmatpush1.bf16.msra.mxu0 %v3503
    %3569 = vmatprep.subr.bf16.mxu0 %v3506
    %3570 = vmatpush1.bf16.msra.mxu0 %v3505
    %3571 = vmatprep.subr.bf16.mxu0 %v3508
    %3572 = vmatpush1.bf16.msra.mxu0 %v3507
    %3573 = vmatprep.subr.bf16.mxu0 %v3510
    %3574 = vmatpush1.bf16.msra.mxu0 %v3509
    %3575 = vmatprep.subr.bf16.mxu0 %v3512
    %3576 = vmatpush1.bf16.msra.mxu0 %v3511
    %3577 = vmatprep.subr.bf16.mxu0 %v3514
    %3578 = vmatpush1.bf16.msra.mxu0 %v3513
    %3579 = vmatprep.subr.bf16.mxu0 %v3516
    %3580 = vmatpush1.bf16.msra.mxu0 %v3515
    %3581 = vmatprep.subr.bf16.mxu0 %v3518
    %3582 = vmatpush1.bf16.msra.mxu0 %v3517
    %3583 = vmatprep.subr.bf16.mxu0 %v3520
    %3584 = vmatpush1.bf16.msra.mxu0 %v3519
    %3585 = vmatprep.subr.bf16.mxu0 %v3522
    %3586 = vmatpush1.bf16.msra.mxu0 %v3521
    %3587 = vmatprep.mubr.bf16.mxu0 %v3354
    %3588 = vmatmul.mubr.bf16.gmra.mrb[0].mxu0 %v3353
    %v3589 = vpop.f32.mrb[0].mxu0
    %v3590 = vadd.f32 0.0, %v3589
    %v3591 = vpop.f32.mrb[0].mxu0
    %v3592 = vadd.f32 0.0, %v3591
    %v3593 = vpop.f32.mrb[0].mxu0
    %v3594 = vadd.f32 0.0, %v3593
    %v3595 = vpop.f32.mrb[0].mxu0
    %v3596 = vadd.f32 0.0, %v3595
    %3597 = vmatprep.mubr.bf16.mxu0 %v3356
    %3598 = vmatmul.mubr.bf16.gmra.mrb[0].mxu0 %v3355
    %v3599 = vpop.f32.mrb[0].mxu0
    %v3600 = vadd.f32 0.0, %v3599
    %v3601 = vpop.f32.mrb[0].mxu0
    %v3602 = vadd.f32 0.0, %v3601
    %v3603 = vpop.f32.mrb[0].mxu0
    %v3604 = vadd.f32 0.0, %v3603
    %v3605 = vpop.f32.mrb[0].mxu0
    %v3606 = vadd.f32 0.0, %v3605
    %3607 = vmatprep.mubr.bf16.mxu0 %v3358
    %3608 = vmatmul.mubr.bf16.gmra.mrb[0].mxu0 %v3357
    %v3609 = vpop.f32.mrb[0].mxu0
    %v3610 = vadd.f32 0.0, %v3609
    %v3611 = vpop.f32.mrb[0].mxu0
    %v3612 = vadd.f32 0.0, %v3611
    %v3613 = vpop.f32.mrb[0].mxu0
    %v3614 = vadd.f32 0.0, %v3613
    %v3615 = vpop.f32.mrb[0].mxu0
    %v3616 = vadd.f32 0.0, %v3615
    %3617 = vmatprep.mubr.bf16.mxu0 %v3360
    %3618 = vmatmul.mubr.bf16.gmra.mrb[0].mxu0 %v3359
    %v3619 = vpop.f32.mrb[0].mxu0
    %v3620 = vadd.f32 0.0, %v3619
    %v3621 = vpop.f32.mrb[0].mxu0
    %v3622 = vadd.f32 0.0, %v3621
    %v3623 = vpop.f32.mrb[0].mxu0
    %v3624 = vadd.f32 0.0, %v3623
    %v3625 = vpop.f32.mrb[0].mxu0
    %v3626 = vadd.f32 0.0, %v3625
    %3627 = vmatprep.mubr.bf16.mxu0 %v3362
    %3628 = vmatmul.mubr.bf16.gmra.mrb[0].mxu0 %v3361
    %v3629 = vpop.f32.mrb[0].mxu0
    %v3630 = vadd.f32 0.0, %v3629
    %v3631 = vpop.f32.mrb[0].mxu0
    %v3632 = vadd.f32 0.0, %v3631
    %v3633 = vpop.f32.mrb[0].mxu0
    %v3634 = vadd.f32 0.0, %v3633
    %v3635 = vpop.f32.mrb[0].mxu0
    %v3636 = vadd.f32 0.0, %v3635
    %3637 = vdwg.mxu0
    %v3638 = vmax.f32 %v3590, %v3592
    %v3639 = vmax.f32 %v3594, %v3596
    %v3640 = vmax.f32 %v3600, %v3602
    %v3641 = vmax.f32 %v3604, %v3606
    %v3642 = vmax.f32 %v3610, %v3612
    %v3643 = vmax.f32 %v3614, %v3616
    %v3644 = vmax.f32 %v3620, %v3622
    %v3645 = vmax.f32 %v3624, %v3626
    %v3646 = vmax.f32 %v3630, %v3632
    %v3647 = vmax.f32 %v3634, %v3636
    %v3648 = vld [vmem:[%s6] sm:$0x1]
    %v3650 = vlaneseq
    %v3651 = vshrl.u32 %v3650, 7
    %v3652 = vsub.s32 0, %v3651
    %v3653 = vrot.slane %v3648, %v3652
    %v3655 = vadd.f32 %v3638, %v3653
    %v3656 = vadd.f32 %v3639, %v3653
    %v3657 = vadd.f32 %v3640, %v3653
    %v3658 = vadd.f32 %v3641, %v3653
    %v3659 = vadd.f32 %v3642, %v3653
    %v3660 = vadd.f32 %v3643, %v3653
    %v3661 = vadd.f32 %v3644, %v3653
    %v3662 = vadd.f32 %v3645, %v3653
    %v3663 = vadd.f32 %v3646, %v3653
    %v3664 = vadd.f32 %v3647, %v3653
    %v3665 = vmax.f32 %v3655, 0.0
    %v3666 = vmax.f32 %v3656, 0.0
    %v3667 = vmax.f32 %v3657, 0.0
    %v3668 = vmax.f32 %v3658, 0.0
    %v3669 = vmax.f32 %v3659, 0.0
    %v3670 = vmax.f32 %v3660, 0.0
    %v3671 = vmax.f32 %v3661, 0.0
    %v3672 = vmax.f32 %v3662, 0.0
    %v3673 = vmax.f32 %v3663, 0.0
    %v3674 = vmax.f32 %v3664, 0.0
    %3675 = vst [vmem:[#allocation4] sm:$0xff] %v3665
    %3676 = vst [vmem:[#allocation4 + $0x8] sm:$0xff] %v3666
    %3677 = vst [vmem:[#allocation4 + $0x10] sm:$0xff] %v3667
    %3678 = vst [vmem:[#allocation4 + $0x18] sm:$0xff] %v3668
    %3679 = vst [vmem:[#allocation4 + $0x20] sm:$0xff] %v3669
    %3680 = vst [vmem:[#allocation4 + $0x28] sm:$0xff] %v3670
    %3681 = vst [vmem:[#allocation4 + $0x30] sm:$0xff] %v3671
    %3682 = vst [vmem:[#allocation4 + $0x38] sm:$0xff] %v3672
    %3683 = vst [vmem:[#allocation4 + $0x40] sm:$0xff] %v3673
    %3684 = vst [vmem:[#allocation4 + $0x48] sm:$0xff] %v3674
    %v3685 = vld [vmem:[#allocation4] sm:$0x3]
    %v3686 = vpack.c.bf16 %v3685, %v3685
    %3687 = vst [vmem:[#allocation5] sm:$0x1] %v3686
    %v3688 = vld [vmem:[#allocation4 + $0x2] sm:$0x3]
    %v3689 = vpack.c.bf16 %v3688, %v3688
    %3690 = vst [vmem:[#allocation5 + $0x1] sm:$0x1] %v3689
    %v3691 = vld [vmem:[#allocation4 + $0x4] sm:$0x3]
    %v3692 = vpack.c.bf16 %v3691, %v3691
    %3693 = vst [vmem:[#allocation5 + $0x2] sm:$0x1] %v3692
    %v3694 = vld [vmem:[#allocation4 + $0x6] sm:$0x3]
    %v3695 = vpack.c.bf16 %v3694, %v3694
    %3696 = vst [vmem:[#allocation5 + $0x3] sm:$0x1] %v3695
    %v3697 = vld [vmem:[#allocation4 + $0x8] sm:$0x3]
    %v3698 = vpack.c.bf16 %v3697, %v3697
    %3699 = vst [vmem:[#allocation5 + $0x4] sm:$0x1] %v3698
    %v3700 = vld [vmem:[#allocation4 + $0xa] sm:$0x3]
    %v3701 = vpack.c.bf16 %v3700, %v3700
    %3702 = vst [vmem:[#allocation5 + $0x5] sm:$0x1] %v3701
    %v3703 = vld [vmem:[#allocation4 + $0xc] sm:$0x3]
    %v3704 = vpack.c.bf16 %v3703, %v3703
    %3705 = vst [vmem:[#allocation5 + $0x6] sm:$0x1] %v3704
    %v3706 = vld [vmem:[#allocation4 + $0xe] sm:$0x3]
    %v3707 = vpack.c.bf16 %v3706, %v3706
    %3708 = vst [vmem:[#allocation5 + $0x7] sm:$0x1] %v3707
    %v3709 = vld [vmem:[#allocation4 + $0x10] sm:$0x3]
    %v3710 = vpack.c.bf16 %v3709, %v3709
    %3711 = vst [vmem:[#allocation5 + $0x8] sm:$0x1] %v3710
    %v3712 = vld [vmem:[#allocation4 + $0x12] sm:$0x3]
    %v3713 = vpack.c.bf16 %v3712, %v3712
    %3714 = vst [vmem:[#allocation5 + $0x9] sm:$0x1] %v3713
    %v3715 = vld [vmem:[#allocation4 + $0x14] sm:$0x3]
    %v3716 = vpack.c.bf16 %v3715, %v3715
    %3717 = vst [vmem:[#allocation5 + $0xa] sm:$0x1] %v3716
    %v3718 = vld [vmem:[#allocation4 + $0x16] sm:$0x3]
    %v3719 = vpack.c.bf16 %v3718, %v3718
    %3720 = vst [vmem:[#allocation5 + $0xb] sm:$0x1] %v3719
    %v3721 = vld [vmem:[#allocation4 + $0x18] sm:$0x3]
    %v3722 = vpack.c.bf16 %v3721, %v3721
    %3723 = vst [vmem:[#allocation5 + $0xc] sm:$0x1] %v3722
    %v3724 = vld [vmem:[#allocation4 + $0x1a] sm:$0x3]
    %v3725 = vpack.c.bf16 %v3724, %v3724
    %3726 = vst [vmem:[#allocation5 + $0xd] sm:$0x1] %v3725
    %v3727 = vld [vmem:[#allocation4 + $0x1c] sm:$0x3]
    %v3728 = vpack.c.bf16 %v3727, %v3727
    %3729 = vst [vmem:[#allocation5 + $0xe] sm:$0x1] %v3728
    %v3730 = vld [vmem:[#allocation4 + $0x1e] sm:$0x3]
    %v3731 = vpack.c.bf16 %v3730, %v3730
    %3732 = vst [vmem:[#allocation5 + $0xf] sm:$0x1] %v3731
    %v3733 = vld [vmem:[#allocation4 + $0x20] sm:$0x3]
    %v3734 = vpack.c.bf16 %v3733, %v3733
    %3735 = vst [vmem:[#allocation5 + $0x10] sm:$0x1] %v3734
    %v3736 = vld [vmem:[#allocation4 + $0x22] sm:$0x3]
    %v3737 = vpack.c.bf16 %v3736, %v3736
    %3738 = vst [vmem:[#allocation5 + $0x11] sm:$0x1] %v3737
    %v3739 = vld [vmem:[#allocation4 + $0x24] sm:$0x3]
    %v3740 = vpack.c.bf16 %v3739, %v3739
    %3741 = vst [vmem:[#allocation5 + $0x12] sm:$0x1] %v3740
    %v3742 = vld [vmem:[#allocation4 + $0x26] sm:$0x3]
    %v3743 = vpack.c.bf16 %v3742, %v3742
    %3744 = vst [vmem:[#allocation5 + $0x13] sm:$0x1] %v3743
    %v3745 = vld [vmem:[#allocation4 + $0x28] sm:$0x3]
    %v3746 = vpack.c.bf16 %v3745, %v3745
    %3747 = vst [vmem:[#allocation5 + $0x14] sm:$0x1] %v3746
    %v3748 = vld [vmem:[#allocation4 + $0x2a] sm:$0x3]
    %v3749 = vpack.c.bf16 %v3748, %v3748
    %3750 = vst [vmem:[#allocation5 + $0x15] sm:$0x1] %v3749
    %v3751 = vld [vmem:[#allocation4 + $0x2c] sm:$0x3]
    %v3752 = vpack.c.bf16 %v3751, %v3751
    %3753 = vst [vmem:[#allocation5 + $0x16] sm:$0x1] %v3752
    %v3754 = vld [vmem:[#allocation4 + $0x2e] sm:$0x3]
    %v3755 = vpack.c.bf16 %v3754, %v3754
    %3756 = vst [vmem:[#allocation5 + $0x17] sm:$0x1] %v3755
    %v3757 = vld [vmem:[#allocation4 + $0x30] sm:$0x3]
    %v3758 = vpack.c.bf16 %v3757, %v3757
    %3759 = vst [vmem:[#allocation5 + $0x18] sm:$0x1] %v3758
    %v3760 = vld [vmem:[#allocation4 + $0x32] sm:$0x3]
    %v3761 = vpack.c.bf16 %v3760, %v3760
    %3762 = vst [vmem:[#allocation5 + $0x19] sm:$0x1] %v3761
    %v3763 = vld [vmem:[#allocation4 + $0x34] sm:$0x3]
    %v3764 = vpack.c.bf16 %v3763, %v3763
    %3765 = vst [vmem:[#allocation5 + $0x1a] sm:$0x1] %v3764
    %v3766 = vld [vmem:[#allocation4 + $0x36] sm:$0x3]
    %v3767 = vpack.c.bf16 %v3766, %v3766
    %3768 = vst [vmem:[#allocation5 + $0x1b] sm:$0x1] %v3767
    %v3769 = vld [vmem:[#allocation4 + $0x38] sm:$0x3]
    %v3770 = vpack.c.bf16 %v3769, %v3769
    %3771 = vst [vmem:[#allocation5 + $0x1c] sm:$0x1] %v3770
    %v3772 = vld [vmem:[#allocation4 + $0x3a] sm:$0x3]
    %v3773 = vpack.c.bf16 %v3772, %v3772
    %3774 = vst [vmem:[#allocation5 + $0x1d] sm:$0x1] %v3773
    %v3775 = vld [vmem:[#allocation4 + $0x3c] sm:$0x3]
    %v3776 = vpack.c.bf16 %v3775, %v3775
    %3777 = vst [vmem:[#allocation5 + $0x1e] sm:$0x1] %v3776
    %v3778 = vld [vmem:[#allocation4 + $0x3e] sm:$0x3]
    %v3779 = vpack.c.bf16 %v3778, %v3778
    %3780 = vst [vmem:[#allocation5 + $0x1f] sm:$0x1] %v3779
    %v3781 = vld [vmem:[#allocation4 + $0x40] sm:$0x3]
    %v3782 = vpack.c.bf16 %v3781, %v3781
    %3783 = vst [vmem:[#allocation5 + $0x20] sm:$0x1] %v3782
    %v3784 = vld [vmem:[#allocation4 + $0x42] sm:$0x3]
    %v3785 = vpack.c.bf16 %v3784, %v3784
    %3786 = vst [vmem:[#allocation5 + $0x21] sm:$0x1] %v3785
    %v3787 = vld [vmem:[#allocation4 + $0x44] sm:$0x3]
    %v3788 = vpack.c.bf16 %v3787, %v3787
    %3789 = vst [vmem:[#allocation5 + $0x22] sm:$0x1] %v3788
    %v3790 = vld [vmem:[#allocation4 + $0x46] sm:$0x3]
    %v3791 = vpack.c.bf16 %v3790, %v3790
    %3792 = vst [vmem:[#allocation5 + $0x23] sm:$0x1] %v3791
    %v3793 = vld [vmem:[#allocation4 + $0x48] sm:$0x3]
    %v3794 = vpack.c.bf16 %v3793, %v3793
    %3795 = vst [vmem:[#allocation5 + $0x24] sm:$0x1] %v3794
    %v3796 = vld [vmem:[#allocation4 + $0x4a] sm:$0x3]
    %v3797 = vpack.c.bf16 %v3796, %v3796
    %3798 = vst [vmem:[#allocation5 + $0x25] sm:$0x1] %v3797
    %v3799 = vld [vmem:[#allocation4 + $0x4c] sm:$0x3]
    %v3800 = vpack.c.bf16 %v3799, %v3799
    %3801 = vst [vmem:[#allocation5 + $0x26] sm:$0x1] %v3800
    %v3802 = vld [vmem:[#allocation4 + $0x4e] sm:$0x3]
    %v3803 = vpack.c.bf16 %v3802, %v3802
    %3804 = vst [vmem:[#allocation5 + $0x27] sm:$0x1] %v3803
    %v3805 = vld [vmem:[#allocation5] sm:$0xff]
    %v3806 = vld [vmem:[#allocation5 + $0x8] sm:$0xff]
    %v3807 = vld [vmem:[#allocation5 + $0x10] sm:$0xff]
    %v3808 = vld [vmem:[#allocation5 + $0x18] sm:$0xff]
    %v3809 = vld [vmem:[#allocation5 + $0x20] sm:$0xff]
    %v3810 = vld [vmem:[%s7] sm:$0xf]
    %v3811 = vld [vmem:[%s7 + $0x4] sm:$0xf]
    %v3812 = vld [vmem:[%s7 + $0x8] sm:$0xf]
    %v3813 = vld [vmem:[%s7 + $0xc] sm:$0xf]
    %v3814 = vld [vmem:[%s7 + $0x10] sm:$0xf]
    %v3815 = vld [vmem:[%s7 + $0x14] sm:$0xf]
    %v3816 = vld [vmem:[%s7 + $0x18] sm:$0xf]
    %v3817 = vld [vmem:[%s7 + $0x1c] sm:$0xf]
    %v3818 = vld [vmem:[%s7 + $0x20] sm:$0xf]
    %v3819 = vld [vmem:[%s7 + $0x24] sm:$0xf]
    %v3820 = vld [vmem:[%s7 + $0x28] sm:$0xf]
    %v3821 = vld [vmem:[%s7 + $0x2c] sm:$0xf]
    %v3822 = vld [vmem:[%s7 + $0x30] sm:$0xf]
    %v3823 = vld [vmem:[%s7 + $0x34] sm:$0xf]
    %v3824 = vld [vmem:[%s7 + $0x38] sm:$0xf]
    %v3825 = vld [vmem:[%s7 + $0x3c] sm:$0xf]
    %v3826 = vld [vmem:[%s7 + $0x40] sm:$0xf]
    %v3827 = vld [vmem:[%s7 + $0x44] sm:$0xf]
    %v3828 = vld [vmem:[%s7 + $0x48] sm:$0xf]
    %v3829 = vld [vmem:[%s7 + $0x4c] sm:$0xf]
    %v3830 = vld [vmem:[%s7 + $0x50] sm:$0xf]
    %v3831 = vld [vmem:[%s7 + $0x54] sm:$0xf]
    %v3832 = vld [vmem:[%s7 + $0x58] sm:$0xf]
    %v3833 = vld [vmem:[%s7 + $0x5c] sm:$0xf]
    %v3834 = vld [vmem:[%s7 + $0x60] sm:$0xf]
    %v3835 = vld [vmem:[%s7 + $0x64] sm:$0xf]
    %v3836 = vld [vmem:[%s7 + $0x68] sm:$0xf]
    %v3837 = vld [vmem:[%s7 + $0x6c] sm:$0xf]
    %v3838 = vld [vmem:[%s7 + $0x70] sm:$0xf]
    %v3839 = vld [vmem:[%s7 + $0x74] sm:$0xf]
    %v3840 = vld [vmem:[%s7 + $0x78] sm:$0xf]
    %v3841 = vld [vmem:[%s7 + $0x7c] sm:$0xf]
    %v3842 = vld [vmem:[%s7 + $0x80] sm:$0xf]
    %v3843 = vld [vmem:[%s7 + $0x84] sm:$0xf]
    %v3844 = vld [vmem:[%s7 + $0x88] sm:$0xf]
    %v3845 = vld [vmem:[%s7 + $0x8c] sm:$0xf]
    %v3846 = vld [vmem:[%s7 + $0x90] sm:$0xf]
    %v3847 = vld [vmem:[%s7 + $0x94] sm:$0xf]
    %v3848 = vld [vmem:[%s7 + $0x98] sm:$0xf]
    %v3849 = vld [vmem:[%s7 + $0x9c] sm:$0xf]
    %v3850 = vld [vmem:[%s7 + $0xa0] sm:$0xf]
    %v3851 = vld [vmem:[%s7 + $0xa4] sm:$0xf]
    %v3852 = vld [vmem:[%s7 + $0xa8] sm:$0xf]
    %v3853 = vld [vmem:[%s7 + $0xac] sm:$0xf]
    %v3854 = vld [vmem:[%s7 + $0xb0] sm:$0xf]
    %v3855 = vld [vmem:[%s7 + $0xb4] sm:$0xf]
    %v3856 = vld [vmem:[%s7 + $0xb8] sm:$0xf]
    %v3857 = vld [vmem:[%s7 + $0xbc] sm:$0xf]
    %v3858 = vld [vmem:[%s7 + $0xc0] sm:$0xf]
    %v3859 = vld [vmem:[%s7 + $0xc4] sm:$0xf]
    %v3860 = vld [vmem:[%s7 + $0xc8] sm:$0xf]
    %v3861 = vld [vmem:[%s7 + $0xcc] sm:$0xf]
    %v3862 = vld [vmem:[%s7 + $0xd0] sm:$0xf]
    %v3863 = vld [vmem:[%s7 + $0xd4] sm:$0xf]
    %v3864 = vld [vmem:[%s7 + $0xd8] sm:$0xf]
    %v3865 = vld [vmem:[%s7 + $0xdc] sm:$0xf]
    %v3866 = vld [vmem:[%s7 + $0xe0] sm:$0xf]
    %v3867 = vld [vmem:[%s7 + $0xe4] sm:$0xf]
    %v3868 = vld [vmem:[%s7 + $0xe8] sm:$0xf]
    %v3869 = vld [vmem:[%s7 + $0xec] sm:$0xf]
    %v3870 = vld [vmem:[%s7 + $0xf0] sm:$0xf]
    %v3871 = vld [vmem:[%s7 + $0xf4] sm:$0xf]
    %v3872 = vld [vmem:[%s7 + $0xf8] sm:$0xf]
    %v3873 = vld [vmem:[%s7 + $0xfc] sm:$0xf]
    %v3874 = vld [vmem:[%s7 + $0x100] sm:$0xf]
    %v3875 = vld [vmem:[%s7 + $0x104] sm:$0xf]
    %v3876 = vld [vmem:[%s7 + $0x108] sm:$0xf]
    %v3877 = vld [vmem:[%s7 + $0x10c] sm:$0xf]
    %v3878 = vld [vmem:[%s7 + $0x110] sm:$0xf]
    %v3879 = vld [vmem:[%s7 + $0x114] sm:$0xf]
    %v3880 = vld [vmem:[%s7 + $0x118] sm:$0xf]
    %v3881 = vld [vmem:[%s7 + $0x11c] sm:$0xf]
    %v3882 = vld [vmem:[%s7 + $0x120] sm:$0xf]
    %v3883 = vld [vmem:[%s7 + $0x124] sm:$0xf]
    %v3884 = vld [vmem:[%s7 + $0x128] sm:$0xf]
    %v3885 = vld [vmem:[%s7 + $0x12c] sm:$0xf]
    %v3886 = vld [vmem:[%s7 + $0x130] sm:$0xf]
    %v3887 = vld [vmem:[%s7 + $0x134] sm:$0xf]
    %v3888 = vld [vmem:[%s7 + $0x138] sm:$0xf]
    %v3889 = vld [vmem:[%s7 + $0x13c] sm:$0xf]
    %v3890 = vld [vmem:[%s7 + $0x140] sm:$0xf]
    %v3891 = vld [vmem:[%s7 + $0x144] sm:$0xf]
    %v3892 = vld [vmem:[%s7 + $0x148] sm:$0xf]
    %v3893 = vld [vmem:[%s7 + $0x14c] sm:$0xf]
    %v3894 = vld [vmem:[%s7 + $0x150] sm:$0xf]
    %v3895 = vld [vmem:[%s7 + $0x154] sm:$0xf]
    %v3896 = vld [vmem:[%s7 + $0x158] sm:$0xf]
    %v3897 = vld [vmem:[%s7 + $0x15c] sm:$0xf]
    %v3898 = vld [vmem:[%s7 + $0x160] sm:$0xf]
    %v3899 = vld [vmem:[%s7 + $0x164] sm:$0xf]
    %v3900 = vld [vmem:[%s7 + $0x168] sm:$0xf]
    %v3901 = vld [vmem:[%s7 + $0x16c] sm:$0xf]
    %v3902 = vld [vmem:[%s7 + $0x170] sm:$0xf]
    %v3903 = vld [vmem:[%s7 + $0x174] sm:$0xf]
    %v3904 = vld [vmem:[%s7 + $0x178] sm:$0xf]
    %v3905 = vld [vmem:[%s7 + $0x17c] sm:$0xf]
    %v3906 = vld [vmem:[%s7 + $0x180] sm:$0xf]
    %v3907 = vld [vmem:[%s7 + $0x184] sm:$0xf]
    %v3908 = vld [vmem:[%s7 + $0x188] sm:$0xf]
    %v3909 = vld [vmem:[%s7 + $0x18c] sm:$0xf]
    %v3910 = vld [vmem:[%s7 + $0x190] sm:$0xf]
    %v3911 = vld [vmem:[%s7 + $0x194] sm:$0xf]
    %v3912 = vld [vmem:[%s7 + $0x198] sm:$0xf]
    %v3913 = vld [vmem:[%s7 + $0x19c] sm:$0xf]
    %v3914 = vld [vmem:[%s7 + $0x1a0] sm:$0xf]
    %v3915 = vld [vmem:[%s7 + $0x1a4] sm:$0xf]
    %v3916 = vld [vmem:[%s7 + $0x1a8] sm:$0xf]
    %v3917 = vld [vmem:[%s7 + $0x1ac] sm:$0xf]
    %v3918 = vld [vmem:[%s7 + $0x1b0] sm:$0xf]
    %v3919 = vld [vmem:[%s7 + $0x1b4] sm:$0xf]
    %v3920 = vld [vmem:[%s7 + $0x1b8] sm:$0xf]
    %v3921 = vld [vmem:[%s7 + $0x1bc] sm:$0xf]
    %v3922 = vld [vmem:[%s7 + $0x1c0] sm:$0xf]
    %v3923 = vld [vmem:[%s7 + $0x1c4] sm:$0xf]
    %v3924 = vld [vmem:[%s7 + $0x1c8] sm:$0xf]
    %v3925 = vld [vmem:[%s7 + $0x1cc] sm:$0xf]
    %v3926 = vld [vmem:[%s7 + $0x1d0] sm:$0xf]
    %v3927 = vld [vmem:[%s7 + $0x1d4] sm:$0xf]
    %v3928 = vld [vmem:[%s7 + $0x1d8] sm:$0xf]
    %v3929 = vld [vmem:[%s7 + $0x1dc] sm:$0xf]
    %v3930 = vld [vmem:[%s7 + $0x1e0] sm:$0xf]
    %v3931 = vld [vmem:[%s7 + $0x1e4] sm:$0xf]
    %v3932 = vld [vmem:[%s7 + $0x1e8] sm:$0xf]
    %v3933 = vld [vmem:[%s7 + $0x1ec] sm:$0xf]
    %v3934 = vld [vmem:[%s7 + $0x1f0] sm:$0xf]
    %v3935 = vld [vmem:[%s7 + $0x1f4] sm:$0xf]
    %v3936 = vld [vmem:[%s7 + $0x1f8] sm:$0xf]
    %v3937 = vld [vmem:[%s7 + $0x1fc] sm:$0xf]
    %v3938 = vld [vmem:[%s7 + $0x200] sm:$0xf]
    %v3939 = vld [vmem:[%s7 + $0x204] sm:$0xf]
    %v3940 = vld [vmem:[%s7 + $0x208] sm:$0xf]
    %v3941 = vld [vmem:[%s7 + $0x20c] sm:$0xf]
    %v3942 = vld [vmem:[%s7 + $0x210] sm:$0xf]
    %v3943 = vld [vmem:[%s7 + $0x214] sm:$0xf]
    %v3944 = vld [vmem:[%s7 + $0x218] sm:$0xf]
    %v3945 = vld [vmem:[%s7 + $0x21c] sm:$0xf]
    %v3946 = vld [vmem:[%s7 + $0x220] sm:$0xf]
    %v3947 = vld [vmem:[%s7 + $0x224] sm:$0xf]
    %v3948 = vld [vmem:[%s7 + $0x228] sm:$0xf]
    %v3949 = vld [vmem:[%s7 + $0x22c] sm:$0xf]
    %v3950 = vld [vmem:[%s7 + $0x230] sm:$0xf]
    %v3951 = vld [vmem:[%s7 + $0x234] sm:$0xf]
    %v3952 = vld [vmem:[%s7 + $0x238] sm:$0xf]
    %v3953 = vld [vmem:[%s7 + $0x23c] sm:$0xf]
    %v3954 = vld [vmem:[%s7 + $0x240] sm:$0xf]
    %v3955 = vld [vmem:[%s7 + $0x244] sm:$0xf]
    %v3956 = vld [vmem:[%s7 + $0x248] sm:$0xf]
    %v3957 = vld [vmem:[%s7 + $0x24c] sm:$0xf]
    %v3958 = vld [vmem:[%s7 + $0x250] sm:$0xf]
    %v3959 = vld [vmem:[%s7 + $0x254] sm:$0xf]
    %v3960 = vld [vmem:[%s7 + $0x258] sm:$0xf]
    %v3961 = vld [vmem:[%s7 + $0x25c] sm:$0xf]
    %v3962 = vld [vmem:[%s7 + $0x260] sm:$0xf]
    %v3963 = vld [vmem:[%s7 + $0x264] sm:$0xf]
    %v3964 = vld [vmem:[%s7 + $0x268] sm:$0xf]
    %v3965 = vld [vmem:[%s7 + $0x26c] sm:$0xf]
    %v3966 = vld [vmem:[%s7 + $0x270] sm:$0xf]
    %v3967 = vld [vmem:[%s7 + $0x274] sm:$0xf]
    %v3968 = vld [vmem:[%s7 + $0x278] sm:$0xf]
    %v3969 = vld [vmem:[%s7 + $0x27c] sm:$0xf]
    %v3970 = vld [vmem:[%s7 + $0x280] sm:$0xf]
    %v3971 = vld [vmem:[%s7 + $0x284] sm:$0xf]
    %v3972 = vld [vmem:[%s7 + $0x288] sm:$0xf]
    %v3973 = vld [vmem:[%s7 + $0x28c] sm:$0xf]
    %v3974 = vld [vmem:[%s7 + $0x290] sm:$0xf]
    %v3975 = vld [vmem:[%s7 + $0x294] sm:$0xf]
    %v3976 = vld [vmem:[%s7 + $0x298] sm:$0xf]
    %v3977 = vld [vmem:[%s7 + $0x29c] sm:$0xf]
    %v3978 = vld [vmem:[%s7 + $0x2a0] sm:$0xf]
    %v3979 = vld [vmem:[%s7 + $0x2a4] sm:$0xf]
    %v3980 = vld [vmem:[%s7 + $0x2a8] sm:$0xf]
    %v3981 = vld [vmem:[%s7 + $0x2ac] sm:$0xf]
    %v3982 = vld [vmem:[%s7 + $0x2b0] sm:$0xf]
    %v3983 = vld [vmem:[%s7 + $0x2b4] sm:$0xf]
    %v3984 = vld [vmem:[%s7 + $0x2b8] sm:$0xf]
    %v3985 = vld [vmem:[%s7 + $0x2bc] sm:$0xf]
    %v3986 = vld [vmem:[%s7 + $0x2c0] sm:$0xf]
    %v3987 = vld [vmem:[%s7 + $0x2c4] sm:$0xf]
    %v3988 = vld [vmem:[%s7 + $0x2c8] sm:$0xf]
    %v3989 = vld [vmem:[%s7 + $0x2cc] sm:$0xf]
    %v3990 = vld [vmem:[%s7 + $0x2d0] sm:$0xf]
    %v3991 = vld [vmem:[%s7 + $0x2d4] sm:$0xf]
    %v3992 = vld [vmem:[%s7 + $0x2d8] sm:$0xf]
    %v3993 = vld [vmem:[%s7 + $0x2dc] sm:$0xf]
    %v3994 = vld [vmem:[%s7 + $0x2e0] sm:$0xf]
    %v3995 = vld [vmem:[%s7 + $0x2e4] sm:$0xf]
    %v3996 = vld [vmem:[%s7 + $0x2e8] sm:$0xf]
    %v3997 = vld [vmem:[%s7 + $0x2ec] sm:$0xf]
    %v3998 = vld [vmem:[%s7 + $0x2f0] sm:$0xf]
    %v3999 = vld [vmem:[%s7 + $0x2f4] sm:$0xf]
    %v4000 = vld [vmem:[%s7 + $0x2f8] sm:$0xf]
    %v4001 = vld [vmem:[%s7 + $0x2fc] sm:$0xf]
    %v4002 = vld [vmem:[%s7 + $0x300] sm:$0xf]
    %v4003 = vld [vmem:[%s7 + $0x304] sm:$0xf]
    %v4004 = vld [vmem:[%s7 + $0x308] sm:$0xf]
    %v4005 = vld [vmem:[%s7 + $0x30c] sm:$0xf]
    %v4006 = vld [vmem:[%s7 + $0x310] sm:$0xf]
    %v4007 = vld [vmem:[%s7 + $0x314] sm:$0xf]
    %v4008 = vld [vmem:[%s7 + $0x318] sm:$0xf]
    %v4009 = vld [vmem:[%s7 + $0x31c] sm:$0xf]
    %v4010 = vld [vmem:[%s7 + $0x320] sm:$0xf]
    %v4011 = vld [vmem:[%s7 + $0x324] sm:$0xf]
    %v4012 = vld [vmem:[%s7 + $0x328] sm:$0xf]
    %v4013 = vld [vmem:[%s7 + $0x32c] sm:$0xf]
    %v4014 = vld [vmem:[%s7 + $0x330] sm:$0xf]
    %v4015 = vld [vmem:[%s7 + $0x334] sm:$0xf]
    %v4016 = vld [vmem:[%s7 + $0x338] sm:$0xf]
    %v4017 = vld [vmem:[%s7 + $0x33c] sm:$0xf]
    %v4018 = vld [vmem:[%s7 + $0x340] sm:$0xf]
    %v4019 = vld [vmem:[%s7 + $0x344] sm:$0xf]
    %v4020 = vld [vmem:[%s7 + $0x348] sm:$0xf]
    %v4021 = vld [vmem:[%s7 + $0x34c] sm:$0xf]
    %v4022 = vld [vmem:[%s7 + $0x350] sm:$0xf]
    %v4023 = vld [vmem:[%s7 + $0x354] sm:$0xf]
    %v4024 = vld [vmem:[%s7 + $0x358] sm:$0xf]
    %v4025 = vld [vmem:[%s7 + $0x35c] sm:$0xf]
    %v4026 = vld [vmem:[%s7 + $0x360] sm:$0xf]
    %v4027 = vld [vmem:[%s7 + $0x364] sm:$0xf]
    %v4028 = vld [vmem:[%s7 + $0x368] sm:$0xf]
    %v4029 = vld [vmem:[%s7 + $0x36c] sm:$0xf]
    %v4030 = vld [vmem:[%s7 + $0x370] sm:$0xf]
    %v4031 = vld [vmem:[%s7 + $0x374] sm:$0xf]
    %v4032 = vld [vmem:[%s7 + $0x378] sm:$0xf]
    %v4033 = vld [vmem:[%s7 + $0x37c] sm:$0xf]
    %v4034 = vld [vmem:[%s7 + $0x380] sm:$0xf]
    %v4035 = vld [vmem:[%s7 + $0x384] sm:$0xf]
    %v4036 = vld [vmem:[%s7 + $0x388] sm:$0xf]
    %v4037 = vld [vmem:[%s7 + $0x38c] sm:$0xf]
    %v4038 = vld [vmem:[%s7 + $0x390] sm:$0xf]
    %v4039 = vld [vmem:[%s7 + $0x394] sm:$0xf]
    %v4040 = vld [vmem:[%s7 + $0x398] sm:$0xf]
    %v4041 = vld [vmem:[%s7 + $0x39c] sm:$0xf]
    %v4042 = vld [vmem:[%s7 + $0x3a0] sm:$0xf]
    %v4043 = vld [vmem:[%s7 + $0x3a4] sm:$0xf]
    %v4044 = vld [vmem:[%s7 + $0x3a8] sm:$0xf]
    %v4045 = vld [vmem:[%s7 + $0x3ac] sm:$0xf]
    %v4046 = vld [vmem:[%s7 + $0x3b0] sm:$0xf]
    %v4047 = vld [vmem:[%s7 + $0x3b4] sm:$0xf]
    %v4048 = vld [vmem:[%s7 + $0x3b8] sm:$0xf]
    %v4049 = vld [vmem:[%s7 + $0x3bc] sm:$0xf]
    %v4050 = vld [vmem:[%s7 + $0x3c0] sm:$0xf]
    %v4051 = vld [vmem:[%s7 + $0x3c4] sm:$0xf]
    %v4052 = vld [vmem:[%s7 + $0x3c8] sm:$0xf]
    %v4053 = vld [vmem:[%s7 + $0x3cc] sm:$0xf]
    %v4054 = vld [vmem:[%s7 + $0x3d0] sm:$0xf]
    %v4055 = vld [vmem:[%s7 + $0x3d4] sm:$0xf]
    %v4056 = vld [vmem:[%s7 + $0x3d8] sm:$0xf]
    %v4057 = vld [vmem:[%s7 + $0x3dc] sm:$0xf]
    %v4058 = vld [vmem:[%s7 + $0x3e0] sm:$0xf]
    %v4059 = vld [vmem:[%s7 + $0x3e4] sm:$0xf]
    %v4060 = vld [vmem:[%s7 + $0x3e8] sm:$0xf]
    %v4061 = vld [vmem:[%s7 + $0x3ec] sm:$0xf]
    %v4062 = vld [vmem:[%s7 + $0x3f0] sm:$0xf]
    %v4063 = vld [vmem:[%s7 + $0x3f4] sm:$0xf]
    %v4064 = vld [vmem:[%s7 + $0x3f8] sm:$0xf]
    %v4065 = vld [vmem:[%s7 + $0x3fc] sm:$0xf]
    %v4066 = vld [vmem:[%s7 + $0x400] sm:$0xf]
    %v4067 = vld [vmem:[%s7 + $0x404] sm:$0xf]
    %v4068 = vld [vmem:[%s7 + $0x408] sm:$0xf]
    %v4069 = vld [vmem:[%s7 + $0x40c] sm:$0xf]
    %v4070 = vld [vmem:[%s7 + $0x410] sm:$0xf]
    %v4071 = vld [vmem:[%s7 + $0x414] sm:$0xf]
    %v4072 = vld [vmem:[%s7 + $0x418] sm:$0xf]
    %v4073 = vld [vmem:[%s7 + $0x41c] sm:$0xf]
    %v4074 = vld [vmem:[%s7 + $0x420] sm:$0xf]
    %v4075 = vld [vmem:[%s7 + $0x424] sm:$0xf]
    %v4076 = vld [vmem:[%s7 + $0x428] sm:$0xf]
    %v4077 = vld [vmem:[%s7 + $0x42c] sm:$0xf]
    %v4078 = vld [vmem:[%s7 + $0x430] sm:$0xf]
    %v4079 = vld [vmem:[%s7 + $0x434] sm:$0xf]
    %v4080 = vld [vmem:[%s7 + $0x438] sm:$0xf]
    %v4081 = vld [vmem:[%s7 + $0x43c] sm:$0xf]
    %v4082 = vld [vmem:[%s7 + $0x440] sm:$0xf]
    %v4083 = vld [vmem:[%s7 + $0x444] sm:$0xf]
    %v4084 = vld [vmem:[%s7 + $0x448] sm:$0xf]
    %v4085 = vld [vmem:[%s7 + $0x44c] sm:$0xf]
    %v4086 = vld [vmem:[%s7 + $0x450] sm:$0xf]
    %v4087 = vld [vmem:[%s7 + $0x454] sm:$0xf]
    %v4088 = vld [vmem:[%s7 + $0x458] sm:$0xf]
    %v4089 = vld [vmem:[%s7 + $0x45c] sm:$0xf]
    %v4090 = vld [vmem:[%s7 + $0x460] sm:$0xf]
    %v4091 = vld [vmem:[%s7 + $0x464] sm:$0xf]
    %v4092 = vld [vmem:[%s7 + $0x468] sm:$0xf]
    %v4093 = vld [vmem:[%s7 + $0x46c] sm:$0xf]
    %v4094 = vld [vmem:[%s7 + $0x470] sm:$0xf]
    %v4095 = vld [vmem:[%s7 + $0x474] sm:$0xf]
    %v4096 = vld [vmem:[%s7 + $0x478] sm:$0xf]
    %v4097 = vld [vmem:[%s7 + $0x47c] sm:$0xf]
    %v4098 = vld [vmem:[%s7 + $0x480] sm:$0xf]
    %v4099 = vld [vmem:[%s7 + $0x484] sm:$0xf]
    %v4100 = vld [vmem:[%s7 + $0x488] sm:$0xf]
    %v4101 = vld [vmem:[%s7 + $0x48c] sm:$0xf]
    %v4102 = vld [vmem:[%s7 + $0x490] sm:$0xf]
    %v4103 = vld [vmem:[%s7 + $0x494] sm:$0xf]
    %v4104 = vld [vmem:[%s7 + $0x498] sm:$0xf]
    %v4105 = vld [vmem:[%s7 + $0x49c] sm:$0xf]
    %v4106 = vld [vmem:[%s7 + $0x4a0] sm:$0xf]
    %v4107 = vld [vmem:[%s7 + $0x4a4] sm:$0xf]
    %v4108 = vld [vmem:[%s7 + $0x4a8] sm:$0xf]
    %v4109 = vld [vmem:[%s7 + $0x4ac] sm:$0xf]
    %v4110 = vld [vmem:[%s7 + $0x4b0] sm:$0xf]
    %v4111 = vld [vmem:[%s7 + $0x4b4] sm:$0xf]
    %v4112 = vld [vmem:[%s7 + $0x4b8] sm:$0xf]
    %v4113 = vld [vmem:[%s7 + $0x4bc] sm:$0xf]
    %v4114 = vld [vmem:[%s7 + $0x4c0] sm:$0xf]
    %v4115 = vld [vmem:[%s7 + $0x4c4] sm:$0xf]
    %v4116 = vld [vmem:[%s7 + $0x4c8] sm:$0xf]
    %v4117 = vld [vmem:[%s7 + $0x4cc] sm:$0xf]
    %v4118 = vld [vmem:[%s7 + $0x4d0] sm:$0xf]
    %v4119 = vld [vmem:[%s7 + $0x4d4] sm:$0xf]
    %v4120 = vld [vmem:[%s7 + $0x4d8] sm:$0xf]
    %v4121 = vld [vmem:[%s7 + $0x4dc] sm:$0xf]
    %v4122 = vld [vmem:[%s7 + $0x4e0] sm:$0xf]
    %v4123 = vld [vmem:[%s7 + $0x4e4] sm:$0xf]
    %v4124 = vld [vmem:[%s7 + $0x4e8] sm:$0xf]
    %v4125 = vld [vmem:[%s7 + $0x4ec] sm:$0xf]
    %v4126 = vld [vmem:[%s7 + $0x4f0] sm:$0xf]
    %v4127 = vld [vmem:[%s7 + $0x4f4] sm:$0xf]
    %v4128 = vld [vmem:[%s7 + $0x4f8] sm:$0xf]
    %v4129 = vld [vmem:[%s7 + $0x4fc] sm:$0xf]
    %v4130 = vld [vmem:[%s7 + $0x500] sm:$0xf]
    %v4131 = vld [vmem:[%s7 + $0x504] sm:$0xf]
    %v4132 = vld [vmem:[%s7 + $0x508] sm:$0xf]
    %v4133 = vld [vmem:[%s7 + $0x50c] sm:$0xf]
    %v4134 = vld [vmem:[%s7 + $0x510] sm:$0xf]
    %v4135 = vld [vmem:[%s7 + $0x514] sm:$0xf]
    %v4136 = vld [vmem:[%s7 + $0x518] sm:$0xf]
    %v4137 = vld [vmem:[%s7 + $0x51c] sm:$0xf]
    %v4138 = vld [vmem:[%s7 + $0x520] sm:$0xf]
    %v4139 = vld [vmem:[%s7 + $0x524] sm:$0xf]
    %v4140 = vld [vmem:[%s7 + $0x528] sm:$0xf]
    %v4141 = vld [vmem:[%s7 + $0x52c] sm:$0xf]
    %v4142 = vld [vmem:[%s7 + $0x530] sm:$0xf]
    %v4143 = vld [vmem:[%s7 + $0x534] sm:$0xf]
    %v4144 = vld [vmem:[%s7 + $0x538] sm:$0xf]
    %v4145 = vld [vmem:[%s7 + $0x53c] sm:$0xf]
    %v4146 = vld [vmem:[%s7 + $0x540] sm:$0xf]
    %v4147 = vld [vmem:[%s7 + $0x544] sm:$0xf]
    %v4148 = vld [vmem:[%s7 + $0x548] sm:$0xf]
    %v4149 = vld [vmem:[%s7 + $0x54c] sm:$0xf]
    %v4150 = vld [vmem:[%s7 + $0x550] sm:$0xf]
    %v4151 = vld [vmem:[%s7 + $0x554] sm:$0xf]
    %v4152 = vld [vmem:[%s7 + $0x558] sm:$0xf]
    %v4153 = vld [vmem:[%s7 + $0x55c] sm:$0xf]
    %v4154 = vld [vmem:[%s7 + $0x560] sm:$0xf]
    %v4155 = vld [vmem:[%s7 + $0x564] sm:$0xf]
    %v4156 = vld [vmem:[%s7 + $0x568] sm:$0xf]
    %v4157 = vld [vmem:[%s7 + $0x56c] sm:$0xf]
    %v4158 = vld [vmem:[%s7 + $0x570] sm:$0xf]
    %v4159 = vld [vmem:[%s7 + $0x574] sm:$0xf]
    %v4160 = vld [vmem:[%s7 + $0x578] sm:$0xf]
    %v4161 = vld [vmem:[%s7 + $0x57c] sm:$0xf]
    %v4162 = vld [vmem:[%s7 + $0x580] sm:$0xf]
    %v4163 = vld [vmem:[%s7 + $0x584] sm:$0xf]
    %v4164 = vld [vmem:[%s7 + $0x588] sm:$0xf]
    %v4165 = vld [vmem:[%s7 + $0x58c] sm:$0xf]
    %v4166 = vld [vmem:[%s7 + $0x590] sm:$0xf]
    %v4167 = vld [vmem:[%s7 + $0x594] sm:$0xf]
    %v4168 = vld [vmem:[%s7 + $0x598] sm:$0xf]
    %v4169 = vld [vmem:[%s7 + $0x59c] sm:$0xf]
    %v4170 = vld [vmem:[%s7 + $0x5a0] sm:$0xf]
    %v4171 = vld [vmem:[%s7 + $0x5a4] sm:$0xf]
    %v4172 = vld [vmem:[%s7 + $0x5a8] sm:$0xf]
    %v4173 = vld [vmem:[%s7 + $0x5ac] sm:$0xf]
    %v4174 = vld [vmem:[%s7 + $0x5b0] sm:$0xf]
    %v4175 = vld [vmem:[%s7 + $0x5b4] sm:$0xf]
    %v4176 = vld [vmem:[%s7 + $0x5b8] sm:$0xf]
    %v4177 = vld [vmem:[%s7 + $0x5bc] sm:$0xf]
    %v4178 = vld [vmem:[%s7 + $0x5c0] sm:$0xf]
    %v4179 = vld [vmem:[%s7 + $0x5c4] sm:$0xf]
    %v4180 = vld [vmem:[%s7 + $0x5c8] sm:$0xf]
    %v4181 = vld [vmem:[%s7 + $0x5cc] sm:$0xf]
    %v4182 = vld [vmem:[%s7 + $0x5d0] sm:$0xf]
    %v4183 = vld [vmem:[%s7 + $0x5d4] sm:$0xf]
    %v4184 = vld [vmem:[%s7 + $0x5d8] sm:$0xf]
    %v4185 = vld [vmem:[%s7 + $0x5dc] sm:$0xf]
    %v4186 = vld [vmem:[%s7 + $0x5e0] sm:$0xf]
    %v4187 = vld [vmem:[%s7 + $0x5e4] sm:$0xf]
    %v4188 = vld [vmem:[%s7 + $0x5e8] sm:$0xf]
    %v4189 = vld [vmem:[%s7 + $0x5ec] sm:$0xf]
    %v4190 = vld [vmem:[%s7 + $0x5f0] sm:$0xf]
    %v4191 = vld [vmem:[%s7 + $0x5f4] sm:$0xf]
    %v4192 = vld [vmem:[%s7 + $0x5f8] sm:$0xf]
    %v4193 = vld [vmem:[%s7 + $0x5fc] sm:$0xf]
    %v4194 = vld [vmem:[%s7 + $0x600] sm:$0xf]
    %v4195 = vld [vmem:[%s7 + $0x604] sm:$0xf]
    %v4196 = vld [vmem:[%s7 + $0x608] sm:$0xf]
    %v4197 = vld [vmem:[%s7 + $0x60c] sm:$0xf]
    %v4198 = vld [vmem:[%s7 + $0x610] sm:$0xf]
    %v4199 = vld [vmem:[%s7 + $0x614] sm:$0xf]
    %v4200 = vld [vmem:[%s7 + $0x618] sm:$0xf]
    %v4201 = vld [vmem:[%s7 + $0x61c] sm:$0xf]
    %v4202 = vld [vmem:[%s7 + $0x620] sm:$0xf]
    %v4203 = vld [vmem:[%s7 + $0x624] sm:$0xf]
    %v4204 = vld [vmem:[%s7 + $0x628] sm:$0xf]
    %v4205 = vld [vmem:[%s7 + $0x62c] sm:$0xf]
    %v4206 = vld [vmem:[%s7 + $0x630] sm:$0xf]
    %v4207 = vld [vmem:[%s7 + $0x634] sm:$0xf]
    %v4208 = vld [vmem:[%s7 + $0x638] sm:$0xf]
    %v4209 = vld [vmem:[%s7 + $0x63c] sm:$0xf]
    %v4210 = vld [vmem:[%s7 + $0x640] sm:$0xf]
    %v4211 = vld [vmem:[%s7 + $0x644] sm:$0xf]
    %v4212 = vld [vmem:[%s7 + $0x648] sm:$0xf]
    %v4213 = vld [vmem:[%s7 + $0x64c] sm:$0xf]
    %v4214 = vld [vmem:[%s7 + $0x650] sm:$0xf]
    %v4215 = vld [vmem:[%s7 + $0x654] sm:$0xf]
    %v4216 = vld [vmem:[%s7 + $0x658] sm:$0xf]
    %v4217 = vld [vmem:[%s7 + $0x65c] sm:$0xf]
    %v4218 = vld [vmem:[%s7 + $0x660] sm:$0xf]
    %v4219 = vld [vmem:[%s7 + $0x664] sm:$0xf]
    %v4220 = vld [vmem:[%s7 + $0x668] sm:$0xf]
    %v4221 = vld [vmem:[%s7 + $0x66c] sm:$0xf]
    %v4222 = vld [vmem:[%s7 + $0x670] sm:$0xf]
    %v4223 = vld [vmem:[%s7 + $0x674] sm:$0xf]
    %v4224 = vld [vmem:[%s7 + $0x678] sm:$0xf]
    %v4225 = vld [vmem:[%s7 + $0x67c] sm:$0xf]
    %v4226 = vld [vmem:[%s7 + $0x680] sm:$0xf]
    %v4227 = vld [vmem:[%s7 + $0x684] sm:$0xf]
    %v4228 = vld [vmem:[%s7 + $0x688] sm:$0xf]
    %v4229 = vld [vmem:[%s7 + $0x68c] sm:$0xf]
    %v4230 = vld [vmem:[%s7 + $0x690] sm:$0xf]
    %v4231 = vld [vmem:[%s7 + $0x694] sm:$0xf]
    %v4232 = vld [vmem:[%s7 + $0x698] sm:$0xf]
    %v4233 = vld [vmem:[%s7 + $0x69c] sm:$0xf]
    %v4234 = vld [vmem:[%s7 + $0x6a0] sm:$0xf]
    %v4235 = vld [vmem:[%s7 + $0x6a4] sm:$0xf]
    %v4236 = vld [vmem:[%s7 + $0x6a8] sm:$0xf]
    %v4237 = vld [vmem:[%s7 + $0x6ac] sm:$0xf]
    %v4238 = vld [vmem:[%s7 + $0x6b0] sm:$0xf]
    %v4239 = vld [vmem:[%s7 + $0x6b4] sm:$0xf]
    %v4240 = vld [vmem:[%s7 + $0x6b8] sm:$0xf]
    %v4241 = vld [vmem:[%s7 + $0x6bc] sm:$0xf]
    %v4242 = vld [vmem:[%s7 + $0x6c0] sm:$0xf]
    %v4243 = vld [vmem:[%s7 + $0x6c4] sm:$0xf]
    %v4244 = vld [vmem:[%s7 + $0x6c8] sm:$0xf]
    %v4245 = vld [vmem:[%s7 + $0x6cc] sm:$0xf]
    %v4246 = vld [vmem:[%s7 + $0x6d0] sm:$0xf]
    %v4247 = vld [vmem:[%s7 + $0x6d4] sm:$0xf]
    %v4248 = vld [vmem:[%s7 + $0x6d8] sm:$0xf]
    %v4249 = vld [vmem:[%s7 + $0x6dc] sm:$0xf]
    %v4250 = vld [vmem:[%s7 + $0x6e0] sm:$0xf]
    %v4251 = vld [vmem:[%s7 + $0x6e4] sm:$0xf]
    %v4252 = vld [vmem:[%s7 + $0x6e8] sm:$0xf]
    %v4253 = vld [vmem:[%s7 + $0x6ec] sm:$0xf]
    %v4254 = vld [vmem:[%s7 + $0x6f0] sm:$0xf]
    %v4255 = vld [vmem:[%s7 + $0x6f4] sm:$0xf]
    %v4256 = vld [vmem:[%s7 + $0x6f8] sm:$0xf]
    %v4257 = vld [vmem:[%s7 + $0x6fc] sm:$0xf]
    %v4258 = vld [vmem:[%s7 + $0x700] sm:$0xf]
    %v4259 = vld [vmem:[%s7 + $0x704] sm:$0xf]
    %v4260 = vld [vmem:[%s7 + $0x708] sm:$0xf]
    %v4261 = vld [vmem:[%s7 + $0x70c] sm:$0xf]
    %v4262 = vld [vmem:[%s7 + $0x710] sm:$0xf]
    %v4263 = vld [vmem:[%s7 + $0x714] sm:$0xf]
    %v4264 = vld [vmem:[%s7 + $0x718] sm:$0xf]
    %v4265 = vld [vmem:[%s7 + $0x71c] sm:$0xf]
    %v4266 = vld [vmem:[%s7 + $0x720] sm:$0xf]
    %v4267 = vld [vmem:[%s7 + $0x724] sm:$0xf]
    %v4268 = vld [vmem:[%s7 + $0x728] sm:$0xf]
    %v4269 = vld [vmem:[%s7 + $0x72c] sm:$0xf]
    %v4270 = vld [vmem:[%s7 + $0x730] sm:$0xf]
    %v4271 = vld [vmem:[%s7 + $0x734] sm:$0xf]
    %v4272 = vld [vmem:[%s7 + $0x738] sm:$0xf]
    %v4273 = vld [vmem:[%s7 + $0x73c] sm:$0xf]
    %v4274 = vld [vmem:[%s7 + $0x740] sm:$0xf]
    %v4275 = vld [vmem:[%s7 + $0x744] sm:$0xf]
    %v4276 = vld [vmem:[%s7 + $0x748] sm:$0xf]
    %v4277 = vld [vmem:[%s7 + $0x74c] sm:$0xf]
    %v4278 = vld [vmem:[%s7 + $0x750] sm:$0xf]
    %v4279 = vld [vmem:[%s7 + $0x754] sm:$0xf]
    %v4280 = vld [vmem:[%s7 + $0x758] sm:$0xf]
    %v4281 = vld [vmem:[%s7 + $0x75c] sm:$0xf]
    %v4282 = vld [vmem:[%s7 + $0x760] sm:$0xf]
    %v4283 = vld [vmem:[%s7 + $0x764] sm:$0xf]
    %v4284 = vld [vmem:[%s7 + $0x768] sm:$0xf]
    %v4285 = vld [vmem:[%s7 + $0x76c] sm:$0xf]
    %v4286 = vld [vmem:[%s7 + $0x770] sm:$0xf]
    %v4287 = vld [vmem:[%s7 + $0x774] sm:$0xf]
    %v4288 = vld [vmem:[%s7 + $0x778] sm:$0xf]
    %v4289 = vld [vmem:[%s7 + $0x77c] sm:$0xf]
    %v4290 = vld [vmem:[%s7 + $0x780] sm:$0xf]
    %v4291 = vld [vmem:[%s7 + $0x784] sm:$0xf]
    %v4292 = vld [vmem:[%s7 + $0x788] sm:$0xf]
    %v4293 = vld [vmem:[%s7 + $0x78c] sm:$0xf]
    %v4294 = vld [vmem:[%s7 + $0x790] sm:$0xf]
    %v4295 = vld [vmem:[%s7 + $0x794] sm:$0xf]
    %v4296 = vld [vmem:[%s7 + $0x798] sm:$0xf]
    %v4297 = vld [vmem:[%s7 + $0x79c] sm:$0xf]
    %v4298 = vld [vmem:[%s7 + $0x7a0] sm:$0xf]
    %v4299 = vld [vmem:[%s7 + $0x7a4] sm:$0xf]
    %v4300 = vld [vmem:[%s7 + $0x7a8] sm:$0xf]
    %v4301 = vld [vmem:[%s7 + $0x7ac] sm:$0xf]
    %v4302 = vld [vmem:[%s7 + $0x7b0] sm:$0xf]
    %v4303 = vld [vmem:[%s7 + $0x7b4] sm:$0xf]
    %v4304 = vld [vmem:[%s7 + $0x7b8] sm:$0xf]
    %v4305 = vld [vmem:[%s7 + $0x7bc] sm:$0xf]
    %v4306 = vld [vmem:[%s7 + $0x7c0] sm:$0xf]
    %v4307 = vld [vmem:[%s7 + $0x7c4] sm:$0xf]
    %v4308 = vld [vmem:[%s7 + $0x7c8] sm:$0xf]
    %v4309 = vld [vmem:[%s7 + $0x7cc] sm:$0xf]
    %v4310 = vld [vmem:[%s7 + $0x7d0] sm:$0xf]
    %v4311 = vld [vmem:[%s7 + $0x7d4] sm:$0xf]
    %v4312 = vld [vmem:[%s7 + $0x7d8] sm:$0xf]
    %v4313 = vld [vmem:[%s7 + $0x7dc] sm:$0xf]
    %v4314 = vld [vmem:[%s7 + $0x7e0] sm:$0xf]
    %v4315 = vld [vmem:[%s7 + $0x7e4] sm:$0xf]
    %v4316 = vld [vmem:[%s7 + $0x7e8] sm:$0xf]
    %v4317 = vld [vmem:[%s7 + $0x7ec] sm:$0xf]
    %v4318 = vld [vmem:[%s7 + $0x7f0] sm:$0xf]
    %v4319 = vld [vmem:[%s7 + $0x7f4] sm:$0xf]
    %v4320 = vld [vmem:[%s7 + $0x7f8] sm:$0xf]
    %v4321 = vld [vmem:[%s7 + $0x7fc] sm:$0xf]
    %v4322 = vld [vmem:[%s7 + $0x800] sm:$0xf]
    %v4323 = vld [vmem:[%s7 + $0x804] sm:$0xf]
    %v4324 = vld [vmem:[%s7 + $0x808] sm:$0xf]
    %v4325 = vld [vmem:[%s7 + $0x80c] sm:$0xf]
    %v4326 = vld [vmem:[%s7 + $0x810] sm:$0xf]
    %v4327 = vld [vmem:[%s7 + $0x814] sm:$0xf]
    %v4328 = vld [vmem:[%s7 + $0x818] sm:$0xf]
    %v4329 = vld [vmem:[%s7 + $0x81c] sm:$0xf]
    %v4330 = vld [vmem:[%s7 + $0x820] sm:$0xf]
    %v4331 = vld [vmem:[%s7 + $0x824] sm:$0xf]
    %v4332 = vld [vmem:[%s7 + $0x828] sm:$0xf]
    %v4333 = vld [vmem:[%s7 + $0x82c] sm:$0xf]
    %v4334 = vld [vmem:[%s7 + $0x830] sm:$0xf]
    %v4335 = vld [vmem:[%s7 + $0x834] sm:$0xf]
    %v4336 = vld [vmem:[%s7 + $0x838] sm:$0xf]
    %v4337 = vld [vmem:[%s7 + $0x83c] sm:$0xf]
    %v4338 = vld [vmem:[%s7 + $0x840] sm:$0xf]
    %v4339 = vld [vmem:[%s7 + $0x844] sm:$0xf]
    %v4340 = vld [vmem:[%s7 + $0x848] sm:$0xf]
    %v4341 = vld [vmem:[%s7 + $0x84c] sm:$0xf]
    %v4342 = vld [vmem:[%s7 + $0x850] sm:$0xf]
    %v4343 = vld [vmem:[%s7 + $0x854] sm:$0xf]
    %v4344 = vld [vmem:[%s7 + $0x858] sm:$0xf]
    %v4345 = vld [vmem:[%s7 + $0x85c] sm:$0xf]
    %v4346 = vld [vmem:[%s7 + $0x860] sm:$0xf]
    %v4347 = vld [vmem:[%s7 + $0x864] sm:$0xf]
    %v4348 = vld [vmem:[%s7 + $0x868] sm:$0xf]
    %v4349 = vld [vmem:[%s7 + $0x86c] sm:$0xf]
    %v4350 = vld [vmem:[%s7 + $0x870] sm:$0xf]
    %v4351 = vld [vmem:[%s7 + $0x874] sm:$0xf]
    %v4352 = vld [vmem:[%s7 + $0x878] sm:$0xf]
    %v4353 = vld [vmem:[%s7 + $0x87c] sm:$0xf]
    %v4354 = vld [vmem:[%s7 + $0x880] sm:$0xf]
    %v4355 = vld [vmem:[%s7 + $0x884] sm:$0xf]
    %v4356 = vld [vmem:[%s7 + $0x888] sm:$0xf]
    %v4357 = vld [vmem:[%s7 + $0x88c] sm:$0xf]
    %v4358 = vld [vmem:[%s7 + $0x890] sm:$0xf]
    %v4359 = vld [vmem:[%s7 + $0x894] sm:$0xf]
    %v4360 = vld [vmem:[%s7 + $0x898] sm:$0xf]
    %v4361 = vld [vmem:[%s7 + $0x89c] sm:$0xf]
    %v4362 = vld [vmem:[%s7 + $0x8a0] sm:$0xf]
    %v4363 = vld [vmem:[%s7 + $0x8a4] sm:$0xf]
    %v4364 = vld [vmem:[%s7 + $0x8a8] sm:$0xf]
    %v4365 = vld [vmem:[%s7 + $0x8ac] sm:$0xf]
    %v4366 = vld [vmem:[%s7 + $0x8b0] sm:$0xf]
    %v4367 = vld [vmem:[%s7 + $0x8b4] sm:$0xf]
    %v4368 = vld [vmem:[%s7 + $0x8b8] sm:$0xf]
    %v4369 = vld [vmem:[%s7 + $0x8bc] sm:$0xf]
    %v4370 = vld [vmem:[%s7 + $0x8c0] sm:$0xf]
    %v4371 = vld [vmem:[%s7 + $0x8c4] sm:$0xf]
    %v4372 = vld [vmem:[%s7 + $0x8c8] sm:$0xf]
    %v4373 = vld [vmem:[%s7 + $0x8cc] sm:$0xf]
    %v4374 = vld [vmem:[%s7 + $0x8d0] sm:$0xf]
    %v4375 = vld [vmem:[%s7 + $0x8d4] sm:$0xf]
    %v4376 = vld [vmem:[%s7 + $0x8d8] sm:$0xf]
    %v4377 = vld [vmem:[%s7 + $0x8dc] sm:$0xf]
    %v4378 = vld [vmem:[%s7 + $0x8e0] sm:$0xf]
    %v4379 = vld [vmem:[%s7 + $0x8e4] sm:$0xf]
    %v4380 = vld [vmem:[%s7 + $0x8e8] sm:$0xf]
    %v4381 = vld [vmem:[%s7 + $0x8ec] sm:$0xf]
    %v4382 = vld [vmem:[%s7 + $0x8f0] sm:$0xf]
    %v4383 = vld [vmem:[%s7 + $0x8f4] sm:$0xf]
    %v4384 = vld [vmem:[%s7 + $0x8f8] sm:$0xf]
    %v4385 = vld [vmem:[%s7 + $0x8fc] sm:$0xf]
    %v4386 = vld [vmem:[%s7 + $0x900] sm:$0xf]
    %v4387 = vld [vmem:[%s7 + $0x904] sm:$0xf]
    %v4388 = vld [vmem:[%s7 + $0x908] sm:$0xf]
    %v4389 = vld [vmem:[%s7 + $0x90c] sm:$0xf]
    %v4390 = vld [vmem:[%s7 + $0x910] sm:$0xf]
    %v4391 = vld [vmem:[%s7 + $0x914] sm:$0xf]
    %v4392 = vld [vmem:[%s7 + $0x918] sm:$0xf]
    %v4393 = vld [vmem:[%s7 + $0x91c] sm:$0xf]
    %v4394 = vld [vmem:[%s7 + $0x920] sm:$0xf]
    %v4395 = vld [vmem:[%s7 + $0x924] sm:$0xf]
    %v4396 = vld [vmem:[%s7 + $0x928] sm:$0xf]
    %v4397 = vld [vmem:[%s7 + $0x92c] sm:$0xf]
    %v4398 = vld [vmem:[%s7 + $0x930] sm:$0xf]
    %v4399 = vld [vmem:[%s7 + $0x934] sm:$0xf]
    %v4400 = vld [vmem:[%s7 + $0x938] sm:$0xf]
    %v4401 = vld [vmem:[%s7 + $0x93c] sm:$0xf]
    %v4402 = vld [vmem:[%s7 + $0x940] sm:$0xf]
    %v4403 = vld [vmem:[%s7 + $0x944] sm:$0xf]
    %v4404 = vld [vmem:[%s7 + $0x948] sm:$0xf]
    %v4405 = vld [vmem:[%s7 + $0x94c] sm:$0xf]
    %v4406 = vld [vmem:[%s7 + $0x950] sm:$0xf]
    %v4407 = vld [vmem:[%s7 + $0x954] sm:$0xf]
    %v4408 = vld [vmem:[%s7 + $0x958] sm:$0xf]
    %v4409 = vld [vmem:[%s7 + $0x95c] sm:$0xf]
    %v4410 = vld [vmem:[%s7 + $0x960] sm:$0xf]
    %v4411 = vld [vmem:[%s7 + $0x964] sm:$0xf]
    %v4412 = vld [vmem:[%s7 + $0x968] sm:$0xf]
    %v4413 = vld [vmem:[%s7 + $0x96c] sm:$0xf]
    %v4414 = vld [vmem:[%s7 + $0x970] sm:$0xf]
    %v4415 = vld [vmem:[%s7 + $0x974] sm:$0xf]
    %v4416 = vld [vmem:[%s7 + $0x978] sm:$0xf]
    %v4417 = vld [vmem:[%s7 + $0x97c] sm:$0xf]
    %v4418 = vld [vmem:[%s7 + $0x980] sm:$0xf]
    %v4419 = vld [vmem:[%s7 + $0x984] sm:$0xf]
    %v4420 = vld [vmem:[%s7 + $0x988] sm:$0xf]
    %v4421 = vld [vmem:[%s7 + $0x98c] sm:$0xf]
    %v4422 = vld [vmem:[%s7 + $0x990] sm:$0xf]
    %v4423 = vld [vmem:[%s7 + $0x994] sm:$0xf]
    %v4424 = vld [vmem:[%s7 + $0x998] sm:$0xf]
    %v4425 = vld [vmem:[%s7 + $0x99c] sm:$0xf]
    %v4426 = vld [vmem:[%s7 + $0x9a0] sm:$0xf]
    %v4427 = vld [vmem:[%s7 + $0x9a4] sm:$0xf]
    %v4428 = vld [vmem:[%s7 + $0x9a8] sm:$0xf]
    %v4429 = vld [vmem:[%s7 + $0x9ac] sm:$0xf]
    %v4430 = vld [vmem:[%s7 + $0x9b0] sm:$0xf]
    %v4431 = vld [vmem:[%s7 + $0x9b4] sm:$0xf]
    %v4432 = vld [vmem:[%s7 + $0x9b8] sm:$0xf]
    %v4433 = vld [vmem:[%s7 + $0x9bc] sm:$0xf]
    %v4434 = vld [vmem:[%s7 + $0x9c0] sm:$0xf]
    %v4435 = vld [vmem:[%s7 + $0x9c4] sm:$0xf]
    %v4436 = vld [vmem:[%s7 + $0x9c8] sm:$0xf]
    %v4437 = vld [vmem:[%s7 + $0x9cc] sm:$0xf]
    %v4438 = vld [vmem:[%s7 + $0x9d0] sm:$0xf]
    %v4439 = vld [vmem:[%s7 + $0x9d4] sm:$0xf]
    %v4440 = vld [vmem:[%s7 + $0x9d8] sm:$0xf]
    %v4441 = vld [vmem:[%s7 + $0x9dc] sm:$0xf]
    %v4442 = vld [vmem:[%s7 + $0x9e0] sm:$0xf]
    %v4443 = vld [vmem:[%s7 + $0x9e4] sm:$0xf]
    %v4444 = vld [vmem:[%s7 + $0x9e8] sm:$0xf]
    %v4445 = vld [vmem:[%s7 + $0x9ec] sm:$0xf]
    %v4446 = vld [vmem:[%s7 + $0x9f0] sm:$0xf]
    %v4447 = vld [vmem:[%s7 + $0x9f4] sm:$0xf]
    %v4448 = vld [vmem:[%s7 + $0x9f8] sm:$0xf]
    %v4449 = vld [vmem:[%s7 + $0x9fc] sm:$0xf]
    %v4450 = vld [vmem:[%s8] sm:$0x1]
    %v4452 = vlaneseq
    %v4453 = vshrl.u32 %v4452, 7
    %v4454 = vsub.s32 0, %v4453
    %v4455 = vrot.slane %v4450, %v4454
    %v4462 = vcombine.high %v3805, %v3805
    %v4464 = vunpack.c.l.s4 1966171168
    %v4465 = vunpack.c.0.s8 %v4464
    %v4466 = vlaneseq
    %v4467 = vshrl.u32 %v4466, 7
    %v4468 = vsub.s32 %v4465, %v4467
    %v4469 = vrot.slane %v3805, %v4468
    %v4471 = vunpack.c.l.s4 1966171168
    %v4472 = vunpack.c.0.s8 %v4471
    %v4473 = vlaneseq
    %v4474 = vshrl.u32 %v4473, 7
    %v4475 = vsub.s32 %v4472, %v4474
    %v4476 = vrot.slane %v4462, %v4475
    %v4477 = vcombine.high %v4469, %v4469
    %v4478 = vcombine.high %v4476, %v4476
    %v4480 = vunpack.c.l.s4 1966171168
    %v4481 = vunpack.c.0.s8 %v4480
    %v4482 = vlaneseq
    %v4483 = vshrl.u32 %v4482, 7
    %v4484 = vsub.s32 %v4481, %v4483
    %v4485 = vrot.slane %v4469, %v4484
    %v4487 = vunpack.c.l.s4 1966171168
    %v4488 = vunpack.c.0.s8 %v4487
    %v4489 = vlaneseq
    %v4490 = vshrl.u32 %v4489, 7
    %v4491 = vsub.s32 %v4488, %v4490
    %v4492 = vrot.slane %v4476, %v4491
    %v4494 = vunpack.c.l.s4 1966171168
    %v4495 = vunpack.c.0.s8 %v4494
    %v4496 = vlaneseq
    %v4497 = vshrl.u32 %v4496, 7
    %v4498 = vsub.s32 %v4495, %v4497
    %v4499 = vrot.slane %v4477, %v4498
    %v4501 = vunpack.c.l.s4 1966171168
    %v4502 = vunpack.c.0.s8 %v4501
    %v4503 = vlaneseq
    %v4504 = vshrl.u32 %v4503, 7
    %v4505 = vsub.s32 %v4502, %v4504
    %v4506 = vrot.slane %v4478, %v4505
    %v4507 = vcombine.high %v4485, %v4485
    %v4508 = vcombine.high %v4492, %v4492
    %v4509 = vcombine.high %v4499, %v4499
    %v4510 = vcombine.high %v4506, %v4506
    %v4511 = vcombine.high %v3806, %v3806
    %v4513 = vunpack.c.l.s4 1966171168
    %v4514 = vunpack.c.0.s8 %v4513
    %v4515 = vlaneseq
    %v4516 = vshrl.u32 %v4515, 7
    %v4517 = vsub.s32 %v4514, %v4516
    %v4518 = vrot.slane %v3806, %v4517
    %v4520 = vunpack.c.l.s4 1966171168
    %v4521 = vunpack.c.0.s8 %v4520
    %v4522 = vlaneseq
    %v4523 = vshrl.u32 %v4522, 7
    %v4524 = vsub.s32 %v4521, %v4523
    %v4525 = vrot.slane %v4511, %v4524
    %v4526 = vcombine.high %v4518, %v4518
    %v4527 = vcombine.high %v4525, %v4525
    %v4529 = vunpack.c.l.s4 1966171168
    %v4530 = vunpack.c.0.s8 %v4529
    %v4531 = vlaneseq
    %v4532 = vshrl.u32 %v4531, 7
    %v4533 = vsub.s32 %v4530, %v4532
    %v4534 = vrot.slane %v4518, %v4533
    %v4536 = vunpack.c.l.s4 1966171168
    %v4537 = vunpack.c.0.s8 %v4536
    %v4538 = vlaneseq
    %v4539 = vshrl.u32 %v4538, 7
    %v4540 = vsub.s32 %v4537, %v4539
    %v4541 = vrot.slane %v4525, %v4540
    %v4543 = vunpack.c.l.s4 1966171168
    %v4544 = vunpack.c.0.s8 %v4543
    %v4545 = vlaneseq
    %v4546 = vshrl.u32 %v4545, 7
    %v4547 = vsub.s32 %v4544, %v4546
    %v4548 = vrot.slane %v4526, %v4547
    %v4550 = vunpack.c.l.s4 1966171168
    %v4551 = vunpack.c.0.s8 %v4550
    %v4552 = vlaneseq
    %v4553 = vshrl.u32 %v4552, 7
    %v4554 = vsub.s32 %v4551, %v4553
    %v4555 = vrot.slane %v4527, %v4554
    %v4556 = vcombine.high %v4534, %v4534
    %v4557 = vcombine.high %v4541, %v4541
    %v4558 = vcombine.high %v4548, %v4548
    %v4559 = vcombine.high %v4555, %v4555
    %v4560 = vcombine.high %v3807, %v3807
    %v4562 = vunpack.c.l.s4 1966171168
    %v4563 = vunpack.c.0.s8 %v4562
    %v4564 = vlaneseq
    %v4565 = vshrl.u32 %v4564, 7
    %v4566 = vsub.s32 %v4563, %v4565
    %v4567 = vrot.slane %v3807, %v4566
    %v4569 = vunpack.c.l.s4 1966171168
    %v4570 = vunpack.c.0.s8 %v4569
    %v4571 = vlaneseq
    %v4572 = vshrl.u32 %v4571, 7
    %v4573 = vsub.s32 %v4570, %v4572
    %v4574 = vrot.slane %v4560, %v4573
    %v4575 = vcombine.high %v4567, %v4567
    %v4576 = vcombine.high %v4574, %v4574
    %v4578 = vunpack.c.l.s4 1966171168
    %v4579 = vunpack.c.0.s8 %v4578
    %v4580 = vlaneseq
    %v4581 = vshrl.u32 %v4580, 7
    %v4582 = vsub.s32 %v4579, %v4581
    %v4583 = vrot.slane %v4567, %v4582
    %v4585 = vunpack.c.l.s4 1966171168
    %v4586 = vunpack.c.0.s8 %v4585
    %v4587 = vlaneseq
    %v4588 = vshrl.u32 %v4587, 7
    %v4589 = vsub.s32 %v4586, %v4588
    %v4590 = vrot.slane %v4574, %v4589
    %v4592 = vunpack.c.l.s4 1966171168
    %v4593 = vunpack.c.0.s8 %v4592
    %v4594 = vlaneseq
    %v4595 = vshrl.u32 %v4594, 7
    %v4596 = vsub.s32 %v4593, %v4595
    %v4597 = vrot.slane %v4575, %v4596
    %v4599 = vunpack.c.l.s4 1966171168
    %v4600 = vunpack.c.0.s8 %v4599
    %v4601 = vlaneseq
    %v4602 = vshrl.u32 %v4601, 7
    %v4603 = vsub.s32 %v4600, %v4602
    %v4604 = vrot.slane %v4576, %v4603
    %v4605 = vcombine.high %v4583, %v4583
    %v4606 = vcombine.high %v4590, %v4590
    %v4607 = vcombine.high %v4597, %v4597
    %v4608 = vcombine.high %v4604, %v4604
    %v4609 = vcombine.high %v3808, %v3808
    %v4611 = vunpack.c.l.s4 1966171168
    %v4612 = vunpack.c.0.s8 %v4611
    %v4613 = vlaneseq
    %v4614 = vshrl.u32 %v4613, 7
    %v4615 = vsub.s32 %v4612, %v4614
    %v4616 = vrot.slane %v3808, %v4615
    %v4618 = vunpack.c.l.s4 1966171168
    %v4619 = vunpack.c.0.s8 %v4618
    %v4620 = vlaneseq
    %v4621 = vshrl.u32 %v4620, 7
    %v4622 = vsub.s32 %v4619, %v4621
    %v4623 = vrot.slane %v4609, %v4622
    %v4624 = vcombine.high %v4616, %v4616
    %v4625 = vcombine.high %v4623, %v4623
    %v4627 = vunpack.c.l.s4 1966171168
    %v4628 = vunpack.c.0.s8 %v4627
    %v4629 = vlaneseq
    %v4630 = vshrl.u32 %v4629, 7
    %v4631 = vsub.s32 %v4628, %v4630
    %v4632 = vrot.slane %v4616, %v4631
    %v4634 = vunpack.c.l.s4 1966171168
    %v4635 = vunpack.c.0.s8 %v4634
    %v4636 = vlaneseq
    %v4637 = vshrl.u32 %v4636, 7
    %v4638 = vsub.s32 %v4635, %v4637
    %v4639 = vrot.slane %v4623, %v4638
    %v4641 = vunpack.c.l.s4 1966171168
    %v4642 = vunpack.c.0.s8 %v4641
    %v4643 = vlaneseq
    %v4644 = vshrl.u32 %v4643, 7
    %v4645 = vsub.s32 %v4642, %v4644
    %v4646 = vrot.slane %v4624, %v4645
    %v4648 = vunpack.c.l.s4 1966171168
    %v4649 = vunpack.c.0.s8 %v4648
    %v4650 = vlaneseq
    %v4651 = vshrl.u32 %v4650, 7
    %v4652 = vsub.s32 %v4649, %v4651
    %v4653 = vrot.slane %v4625, %v4652
    %v4654 = vcombine.high %v4632, %v4632
    %v4655 = vcombine.high %v4639, %v4639
    %v4656 = vcombine.high %v4646, %v4646
    %v4657 = vcombine.high %v4653, %v4653
    %v4658 = vcombine.high %v3809, %v3809
    %v4660 = vunpack.c.l.s4 1966171168
    %v4661 = vunpack.c.0.s8 %v4660
    %v4662 = vlaneseq
    %v4663 = vshrl.u32 %v4662, 7
    %v4664 = vsub.s32 %v4661, %v4663
    %v4665 = vrot.slane %v3809, %v4664
    %v4667 = vunpack.c.l.s4 1966171168
    %v4668 = vunpack.c.0.s8 %v4667
    %v4669 = vlaneseq
    %v4670 = vshrl.u32 %v4669, 7
    %v4671 = vsub.s32 %v4668, %v4670
    %v4672 = vrot.slane %v4658, %v4671
    %v4673 = vcombine.high %v4665, %v4665
    %v4674 = vcombine.high %v4672, %v4672
    %v4676 = vunpack.c.l.s4 1966171168
    %v4677 = vunpack.c.0.s8 %v4676
    %v4678 = vlaneseq
    %v4679 = vshrl.u32 %v4678, 7
    %v4680 = vsub.s32 %v4677, %v4679
    %v4681 = vrot.slane %v4665, %v4680
    %v4683 = vunpack.c.l.s4 1966171168
    %v4684 = vunpack.c.0.s8 %v4683
    %v4685 = vlaneseq
    %v4686 = vshrl.u32 %v4685, 7
    %v4687 = vsub.s32 %v4684, %v4686
    %v4688 = vrot.slane %v4672, %v4687
    %v4690 = vunpack.c.l.s4 1966171168
    %v4691 = vunpack.c.0.s8 %v4690
    %v4692 = vlaneseq
    %v4693 = vshrl.u32 %v4692, 7
    %v4694 = vsub.s32 %v4691, %v4693
    %v4695 = vrot.slane %v4673, %v4694
    %v4697 = vunpack.c.l.s4 1966171168
    %v4698 = vunpack.c.0.s8 %v4697
    %v4699 = vlaneseq
    %v4700 = vshrl.u32 %v4699, 7
    %v4701 = vsub.s32 %v4698, %v4700
    %v4702 = vrot.slane %v4674, %v4701
    %v4703 = vcombine.high %v4681, %v4681
    %v4704 = vcombine.high %v4688, %v4688
    %v4705 = vcombine.high %v4695, %v4695
    %v4706 = vcombine.high %v4702, %v4702
    %v5387 = vunpack.c.l.b16 %v3810
    %v5388 = vunpack.c.l.b16 %v3811
    %v5389 = vunpack.c.l.b16 %v3812
    %v5390 = vunpack.c.l.b16 %v3813
    %v5391 = vunpack.c.l.b16 %v3814
    %v5392 = vunpack.c.l.b16 %v3815
    %v5393 = vunpack.c.l.b16 %v3816
    %v5394 = vunpack.c.l.b16 %v3817
    %v5395 = vunpack.c.l.b16 %v3818
    %v5396 = vunpack.c.l.b16 %v3819
    %v5397 = vunpack.c.l.b16 %v3820
    %v5398 = vunpack.c.l.b16 %v3821
    %v5399 = vunpack.c.l.b16 %v3822
    %v5400 = vunpack.c.l.b16 %v3823
    %v5401 = vunpack.c.l.b16 %v3824
    %v5402 = vunpack.c.l.b16 %v3825
    %v5403 = vunpack.c.l.b16 %v3826
    %v5404 = vunpack.c.l.b16 %v3827
    %v5405 = vunpack.c.l.b16 %v3828
    %v5406 = vunpack.c.l.b16 %v3829
    %v5407 = vunpack.c.l.b16 %v3830
    %v5408 = vunpack.c.l.b16 %v3831
    %v5409 = vunpack.c.l.b16 %v3832
    %v5410 = vunpack.c.l.b16 %v3833
    %v5411 = vunpack.c.l.b16 %v3834
    %v5412 = vunpack.c.l.b16 %v3835
    %v5413 = vunpack.c.l.b16 %v3836
    %v5414 = vunpack.c.l.b16 %v3837
    %v5415 = vunpack.c.l.b16 %v3838
    %v5416 = vunpack.c.l.b16 %v3839
    %v5417 = vunpack.c.l.b16 %v3840
    %v5418 = vunpack.c.l.b16 %v3841
    %v5419 = vunpack.c.l.b16 %v3842
    %v5420 = vunpack.c.l.b16 %v3843
    %v5421 = vunpack.c.l.b16 %v3844
    %v5422 = vunpack.c.l.b16 %v3845
    %v5423 = vunpack.c.l.b16 %v3846
    %v5424 = vunpack.c.l.b16 %v3847
    %v5425 = vunpack.c.l.b16 %v3848
    %v5426 = vunpack.c.l.b16 %v3849
    %v5427 = vunpack.c.l.b16 %v3850
    %v5428 = vunpack.c.l.b16 %v3851
    %v5429 = vunpack.c.l.b16 %v3852
    %v5430 = vunpack.c.l.b16 %v3853
    %v5431 = vunpack.c.l.b16 %v3854
    %v5432 = vunpack.c.l.b16 %v3855
    %v5433 = vunpack.c.l.b16 %v3856
    %v5434 = vunpack.c.l.b16 %v3857
    %v5435 = vunpack.c.l.b16 %v3858
    %v5436 = vunpack.c.l.b16 %v3859
    %v5437 = vunpack.c.l.b16 %v3860
    %v5438 = vunpack.c.l.b16 %v3861
    %v5439 = vunpack.c.l.b16 %v3862
    %v5440 = vunpack.c.l.b16 %v3863
    %v5441 = vunpack.c.l.b16 %v3864
    %v5442 = vunpack.c.l.b16 %v3865
    %v5443 = vunpack.c.l.b16 %v3866
    %v5444 = vunpack.c.l.b16 %v3867
    %v5445 = vunpack.c.l.b16 %v3868
    %v5446 = vunpack.c.l.b16 %v3869
    %v5447 = vunpack.c.l.b16 %v3870
    %v5448 = vunpack.c.l.b16 %v3871
    %v5449 = vunpack.c.l.b16 %v3872
    %v5450 = vunpack.c.l.b16 %v3873
    %v5451 = vunpack.c.l.b16 %v3874
    %v5452 = vunpack.c.l.b16 %v3875
    %v5453 = vunpack.c.l.b16 %v3876
    %v5454 = vunpack.c.l.b16 %v3877
    %v5455 = vunpack.c.l.b16 %v3878
    %v5456 = vunpack.c.l.b16 %v3879
    %v5457 = vunpack.c.l.b16 %v3880
    %v5458 = vunpack.c.l.b16 %v3881
    %v5459 = vunpack.c.l.b16 %v3882
    %v5460 = vunpack.c.l.b16 %v3883
    %v5461 = vunpack.c.l.b16 %v3884
    %v5462 = vunpack.c.l.b16 %v3885
    %v5463 = vunpack.c.l.b16 %v3886
    %v5464 = vunpack.c.l.b16 %v3887
    %v5465 = vunpack.c.l.b16 %v3888
    %v5466 = vunpack.c.l.b16 %v3889
    %v5467 = vunpack.c.l.b16 %v3890
    %v5468 = vunpack.c.l.b16 %v3891
    %v5469 = vunpack.c.l.b16 %v3892
    %v5470 = vunpack.c.l.b16 %v3893
    %v5471 = vunpack.c.l.b16 %v3894
    %v5472 = vunpack.c.l.b16 %v3895
    %v5473 = vunpack.c.l.b16 %v3896
    %v5474 = vunpack.c.l.b16 %v3897
    %v5475 = vunpack.c.l.b16 %v3898
    %v5476 = vunpack.c.l.b16 %v3899
    %v5477 = vunpack.c.l.b16 %v3900
    %v5478 = vunpack.c.l.b16 %v3901
    %v5479 = vunpack.c.l.b16 %v3902
    %v5480 = vunpack.c.l.b16 %v3903
    %v5481 = vunpack.c.l.b16 %v3904
    %v5482 = vunpack.c.l.b16 %v3905
    %v5483 = vunpack.c.l.b16 %v3906
    %v5484 = vunpack.c.l.b16 %v3907
    %v5485 = vunpack.c.l.b16 %v3908
    %v5486 = vunpack.c.l.b16 %v3909
    %v5487 = vunpack.c.l.b16 %v3910
    %v5488 = vunpack.c.l.b16 %v3911
    %v5489 = vunpack.c.l.b16 %v3912
    %v5490 = vunpack.c.l.b16 %v3913
    %v5491 = vunpack.c.l.b16 %v3914
    %v5492 = vunpack.c.l.b16 %v3915
    %v5493 = vunpack.c.l.b16 %v3916
    %v5494 = vunpack.c.l.b16 %v3917
    %v5495 = vunpack.c.l.b16 %v3918
    %v5496 = vunpack.c.l.b16 %v3919
    %v5497 = vunpack.c.l.b16 %v3920
    %v5498 = vunpack.c.l.b16 %v3921
    %v5499 = vunpack.c.l.b16 %v3922
    %v5500 = vunpack.c.l.b16 %v3923
    %v5501 = vunpack.c.l.b16 %v3924
    %v5502 = vunpack.c.l.b16 %v3925
    %v5503 = vunpack.c.l.b16 %v3926
    %v5504 = vunpack.c.l.b16 %v3927
    %v5505 = vunpack.c.l.b16 %v3928
    %v5506 = vunpack.c.l.b16 %v3929
    %v5507 = vunpack.c.l.b16 %v3930
    %v5508 = vunpack.c.l.b16 %v3931
    %v5509 = vunpack.c.l.b16 %v3932
    %v5510 = vunpack.c.l.b16 %v3933
    %v5511 = vunpack.c.l.b16 %v3934
    %v5512 = vunpack.c.l.b16 %v3935
    %v5513 = vunpack.c.l.b16 %v3936
    %v5514 = vunpack.c.l.b16 %v3937
    %v5515 = vunpack.c.l.b16 %v3938
    %v5516 = vunpack.c.l.b16 %v3939
    %v5517 = vunpack.c.l.b16 %v3940
    %v5518 = vunpack.c.l.b16 %v3941
    %v5519 = vunpack.c.l.b16 %v3942
    %v5520 = vunpack.c.l.b16 %v3943
    %v5521 = vunpack.c.l.b16 %v3944
    %v5522 = vunpack.c.l.b16 %v3945
    %v5523 = vunpack.c.l.b16 %v3946
    %v5524 = vunpack.c.l.b16 %v3947
    %v5525 = vunpack.c.l.b16 %v3948
    %v5526 = vunpack.c.l.b16 %v3949
    %v5527 = vunpack.c.l.b16 %v3950
    %v5528 = vunpack.c.l.b16 %v3951
    %v5529 = vunpack.c.l.b16 %v3952
    %v5530 = vunpack.c.l.b16 %v3953
    %v5531 = vunpack.c.l.b16 %v3954
    %v5532 = vunpack.c.l.b16 %v3955
    %v5533 = vunpack.c.l.b16 %v3956
    %v5534 = vunpack.c.l.b16 %v3957
    %v5535 = vunpack.c.l.b16 %v3958
    %v5536 = vunpack.c.l.b16 %v3959
    %v5537 = vunpack.c.l.b16 %v3960
    %v5538 = vunpack.c.l.b16 %v3961
    %v5539 = vunpack.c.l.b16 %v3962
    %v5540 = vunpack.c.l.b16 %v3963
    %v5541 = vunpack.c.l.b16 %v3964
    %v5542 = vunpack.c.l.b16 %v3965
    %v5543 = vunpack.c.l.b16 %v3966
    %v5544 = vunpack.c.l.b16 %v3967
    %v5545 = vunpack.c.l.b16 %v3968
    %v5546 = vunpack.c.l.b16 %v3969
    %v5547 = vunpack.c.l.b16 %v3970
    %v5548 = vunpack.c.l.b16 %v3971
    %v5549 = vunpack.c.l.b16 %v3972
    %v5550 = vunpack.c.l.b16 %v3973
    %v5551 = vunpack.c.l.b16 %v3974
    %v5552 = vunpack.c.l.b16 %v3975
    %v5553 = vunpack.c.l.b16 %v3976
    %v5554 = vunpack.c.l.b16 %v3977
    %v5555 = vunpack.c.l.b16 %v3978
    %v5556 = vunpack.c.l.b16 %v3979
    %v5557 = vunpack.c.l.b16 %v3980
    %v5558 = vunpack.c.l.b16 %v3981
    %v5559 = vunpack.c.l.b16 %v3982
    %v5560 = vunpack.c.l.b16 %v3983
    %v5561 = vunpack.c.l.b16 %v3984
    %v5562 = vunpack.c.l.b16 %v3985
    %v5563 = vunpack.c.l.b16 %v3986
    %v5564 = vunpack.c.l.b16 %v3987
    %v5565 = vunpack.c.l.b16 %v3988
    %v5566 = vunpack.c.l.b16 %v3989
    %v5567 = vunpack.c.l.b16 %v3990
    %v5568 = vunpack.c.l.b16 %v3991
    %v5569 = vunpack.c.l.b16 %v3992
    %v5570 = vunpack.c.l.b16 %v3993
    %v5571 = vunpack.c.l.b16 %v3994
    %v5572 = vunpack.c.l.b16 %v3995
    %v5573 = vunpack.c.l.b16 %v3996
    %v5574 = vunpack.c.l.b16 %v3997
    %v5575 = vunpack.c.l.b16 %v3998
    %v5576 = vunpack.c.l.b16 %v3999
    %v5577 = vunpack.c.l.b16 %v4000
    %v5578 = vunpack.c.l.b16 %v4001
    %v5579 = vunpack.c.l.b16 %v4002
    %v5580 = vunpack.c.l.b16 %v4003
    %v5581 = vunpack.c.l.b16 %v4004
    %v5582 = vunpack.c.l.b16 %v4005
    %v5583 = vunpack.c.l.b16 %v4006
    %v5584 = vunpack.c.l.b16 %v4007
    %v5585 = vunpack.c.l.b16 %v4008
    %v5586 = vunpack.c.l.b16 %v4009
    %v5587 = vunpack.c.l.b16 %v4010
    %v5588 = vunpack.c.l.b16 %v4011
    %v5589 = vunpack.c.l.b16 %v4012
    %v5590 = vunpack.c.l.b16 %v4013
    %v5591 = vunpack.c.l.b16 %v4014
    %v5592 = vunpack.c.l.b16 %v4015
    %v5593 = vunpack.c.l.b16 %v4016
    %v5594 = vunpack.c.l.b16 %v4017
    %v5595 = vunpack.c.l.b16 %v4018
    %v5596 = vunpack.c.l.b16 %v4019
    %v5597 = vunpack.c.l.b16 %v4020
    %v5598 = vunpack.c.l.b16 %v4021
    %v5599 = vunpack.c.l.b16 %v4022
    %v5600 = vunpack.c.l.b16 %v4023
    %v5601 = vunpack.c.l.b16 %v4024
    %v5602 = vunpack.c.l.b16 %v4025
    %v5603 = vunpack.c.l.b16 %v4026
    %v5604 = vunpack.c.l.b16 %v4027
    %v5605 = vunpack.c.l.b16 %v4028
    %v5606 = vunpack.c.l.b16 %v4029
    %v5607 = vunpack.c.l.b16 %v4030
    %v5608 = vunpack.c.l.b16 %v4031
    %v5609 = vunpack.c.l.b16 %v4032
    %v5610 = vunpack.c.l.b16 %v4033
    %v5611 = vunpack.c.l.b16 %v4034
    %v5612 = vunpack.c.l.b16 %v4035
    %v5613 = vunpack.c.l.b16 %v4036
    %v5614 = vunpack.c.l.b16 %v4037
    %v5615 = vunpack.c.l.b16 %v4038
    %v5616 = vunpack.c.l.b16 %v4039
    %v5617 = vunpack.c.l.b16 %v4040
    %v5618 = vunpack.c.l.b16 %v4041
    %v5619 = vunpack.c.l.b16 %v4042
    %v5620 = vunpack.c.l.b16 %v4043
    %v5621 = vunpack.c.l.b16 %v4044
    %v5622 = vunpack.c.l.b16 %v4045
    %v5623 = vunpack.c.l.b16 %v4046
    %v5624 = vunpack.c.l.b16 %v4047
    %v5625 = vunpack.c.l.b16 %v4048
    %v5626 = vunpack.c.l.b16 %v4049
    %v5627 = vunpack.c.l.b16 %v4050
    %v5628 = vunpack.c.l.b16 %v4051
    %v5629 = vunpack.c.l.b16 %v4052
    %v5630 = vunpack.c.l.b16 %v4053
    %v5631 = vunpack.c.l.b16 %v4054
    %v5632 = vunpack.c.l.b16 %v4055
    %v5633 = vunpack.c.l.b16 %v4056
    %v5634 = vunpack.c.l.b16 %v4057
    %v5635 = vunpack.c.l.b16 %v4058
    %v5636 = vunpack.c.l.b16 %v4059
    %v5637 = vunpack.c.l.b16 %v4060
    %v5638 = vunpack.c.l.b16 %v4061
    %v5639 = vunpack.c.l.b16 %v4062
    %v5640 = vunpack.c.l.b16 %v4063
    %v5641 = vunpack.c.l.b16 %v4064
    %v5642 = vunpack.c.l.b16 %v4065
    %v5643 = vunpack.c.l.b16 %v4066
    %v5644 = vunpack.c.l.b16 %v4067
    %v5645 = vunpack.c.l.b16 %v4068
    %v5646 = vunpack.c.l.b16 %v4069
    %v5647 = vunpack.c.l.b16 %v4070
    %v5648 = vunpack.c.l.b16 %v4071
    %v5649 = vunpack.c.l.b16 %v4072
    %v5650 = vunpack.c.l.b16 %v4073
    %v5651 = vunpack.c.l.b16 %v4074
    %v5652 = vunpack.c.l.b16 %v4075
    %v5653 = vunpack.c.l.b16 %v4076
    %v5654 = vunpack.c.l.b16 %v4077
    %v5655 = vunpack.c.l.b16 %v4078
    %v5656 = vunpack.c.l.b16 %v4079
    %v5657 = vunpack.c.l.b16 %v4080
    %v5658 = vunpack.c.l.b16 %v4081
    %v5659 = vunpack.c.l.b16 %v4082
    %v5660 = vunpack.c.l.b16 %v4083
    %v5661 = vunpack.c.l.b16 %v4084
    %v5662 = vunpack.c.l.b16 %v4085
    %v5663 = vunpack.c.l.b16 %v4086
    %v5664 = vunpack.c.l.b16 %v4087
    %v5665 = vunpack.c.l.b16 %v4088
    %v5666 = vunpack.c.l.b16 %v4089
    %v5667 = vunpack.c.l.b16 %v4090
    %v5668 = vunpack.c.l.b16 %v4091
    %v5669 = vunpack.c.l.b16 %v4092
    %v5670 = vunpack.c.l.b16 %v4093
    %v5671 = vunpack.c.l.b16 %v4094
    %v5672 = vunpack.c.l.b16 %v4095
    %v5673 = vunpack.c.l.b16 %v4096
    %v5674 = vunpack.c.l.b16 %v4097
    %v5675 = vunpack.c.l.b16 %v4098
    %v5676 = vunpack.c.l.b16 %v4099
    %v5677 = vunpack.c.l.b16 %v4100
    %v5678 = vunpack.c.l.b16 %v4101
    %v5679 = vunpack.c.l.b16 %v4102
    %v5680 = vunpack.c.l.b16 %v4103
    %v5681 = vunpack.c.l.b16 %v4104
    %v5682 = vunpack.c.l.b16 %v4105
    %v5683 = vunpack.c.l.b16 %v4106
    %v5684 = vunpack.c.l.b16 %v4107
    %v5685 = vunpack.c.l.b16 %v4108
    %v5686 = vunpack.c.l.b16 %v4109
    %v5687 = vunpack.c.l.b16 %v4110
    %v5688 = vunpack.c.l.b16 %v4111
    %v5689 = vunpack.c.l.b16 %v4112
    %v5690 = vunpack.c.l.b16 %v4113
    %v5691 = vunpack.c.l.b16 %v4114
    %v5692 = vunpack.c.l.b16 %v4115
    %v5693 = vunpack.c.l.b16 %v4116
    %v5694 = vunpack.c.l.b16 %v4117
    %v5695 = vunpack.c.l.b16 %v4118
    %v5696 = vunpack.c.l.b16 %v4119
    %v5697 = vunpack.c.l.b16 %v4120
    %v5698 = vunpack.c.l.b16 %v4121
    %v5699 = vunpack.c.l.b16 %v4122
    %v5700 = vunpack.c.l.b16 %v4123
    %v5701 = vunpack.c.l.b16 %v4124
    %v5702 = vunpack.c.l.b16 %v4125
    %v5703 = vunpack.c.l.b16 %v4126
    %v5704 = vunpack.c.l.b16 %v4127
    %v5705 = vunpack.c.l.b16 %v4128
    %v5706 = vunpack.c.l.b16 %v4129
    %v5707 = vunpack.c.l.b16 %v4130
    %v5708 = vunpack.c.l.b16 %v4131
    %v5709 = vunpack.c.l.b16 %v4132
    %v5710 = vunpack.c.l.b16 %v4133
    %v5711 = vunpack.c.l.b16 %v4134
    %v5712 = vunpack.c.l.b16 %v4135
    %v5713 = vunpack.c.l.b16 %v4136
    %v5714 = vunpack.c.l.b16 %v4137
    %v5715 = vunpack.c.l.b16 %v4138
    %v5716 = vunpack.c.l.b16 %v4139
    %v5717 = vunpack.c.l.b16 %v4140
    %v5718 = vunpack.c.l.b16 %v4141
    %v5719 = vunpack.c.l.b16 %v4142
    %v5720 = vunpack.c.l.b16 %v4143
    %v5721 = vunpack.c.l.b16 %v4144
    %v5722 = vunpack.c.l.b16 %v4145
    %v5723 = vunpack.c.l.b16 %v4146
    %v5724 = vunpack.c.l.b16 %v4147
    %v5725 = vunpack.c.l.b16 %v4148
    %v5726 = vunpack.c.l.b16 %v4149
    %v5727 = vunpack.c.l.b16 %v4150
    %v5728 = vunpack.c.l.b16 %v4151
    %v5729 = vunpack.c.l.b16 %v4152
    %v5730 = vunpack.c.l.b16 %v4153
    %v5731 = vunpack.c.l.b16 %v4154
    %v5732 = vunpack.c.l.b16 %v4155
    %v5733 = vunpack.c.l.b16 %v4156
    %v5734 = vunpack.c.l.b16 %v4157
    %v5735 = vunpack.c.l.b16 %v4158
    %v5736 = vunpack.c.l.b16 %v4159
    %v5737 = vunpack.c.l.b16 %v4160
    %v5738 = vunpack.c.l.b16 %v4161
    %v5739 = vunpack.c.l.b16 %v4162
    %v5740 = vunpack.c.l.b16 %v4163
    %v5741 = vunpack.c.l.b16 %v4164
    %v5742 = vunpack.c.l.b16 %v4165
    %v5743 = vunpack.c.l.b16 %v4166
    %v5744 = vunpack.c.l.b16 %v4167
    %v5745 = vunpack.c.l.b16 %v4168
    %v5746 = vunpack.c.l.b16 %v4169
    %v5747 = vunpack.c.l.b16 %v4170
    %v5748 = vunpack.c.l.b16 %v4171
    %v5749 = vunpack.c.l.b16 %v4172
    %v5750 = vunpack.c.l.b16 %v4173
    %v5751 = vunpack.c.l.b16 %v4174
    %v5752 = vunpack.c.l.b16 %v4175
    %v5753 = vunpack.c.l.b16 %v4176
    %v5754 = vunpack.c.l.b16 %v4177
    %v5755 = vunpack.c.l.b16 %v4178
    %v5756 = vunpack.c.l.b16 %v4179
    %v5757 = vunpack.c.l.b16 %v4180
    %v5758 = vunpack.c.l.b16 %v4181
    %v5759 = vunpack.c.l.b16 %v4182
    %v5760 = vunpack.c.l.b16 %v4183
    %v5761 = vunpack.c.l.b16 %v4184
    %v5762 = vunpack.c.l.b16 %v4185
    %v5763 = vunpack.c.l.b16 %v4186
    %v5764 = vunpack.c.l.b16 %v4187
    %v5765 = vunpack.c.l.b16 %v4188
    %v5766 = vunpack.c.l.b16 %v4189
    %v5767 = vunpack.c.l.b16 %v4190
    %v5768 = vunpack.c.l.b16 %v4191
    %v5769 = vunpack.c.l.b16 %v4192
    %v5770 = vunpack.c.l.b16 %v4193
    %v5771 = vunpack.c.l.b16 %v4194
    %v5772 = vunpack.c.l.b16 %v4195
    %v5773 = vunpack.c.l.b16 %v4196
    %v5774 = vunpack.c.l.b16 %v4197
    %v5775 = vunpack.c.l.b16 %v4198
    %v5776 = vunpack.c.l.b16 %v4199
    %v5777 = vunpack.c.l.b16 %v4200
    %v5778 = vunpack.c.l.b16 %v4201
    %v5779 = vunpack.c.l.b16 %v4202
    %v5780 = vunpack.c.l.b16 %v4203
    %v5781 = vunpack.c.l.b16 %v4204
    %v5782 = vunpack.c.l.b16 %v4205
    %v5783 = vunpack.c.l.b16 %v4206
    %v5784 = vunpack.c.l.b16 %v4207
    %v5785 = vunpack.c.l.b16 %v4208
    %v5786 = vunpack.c.l.b16 %v4209
    %v5787 = vunpack.c.l.b16 %v4210
    %v5788 = vunpack.c.l.b16 %v4211
    %v5789 = vunpack.c.l.b16 %v4212
    %v5790 = vunpack.c.l.b16 %v4213
    %v5791 = vunpack.c.l.b16 %v4214
    %v5792 = vunpack.c.l.b16 %v4215
    %v5793 = vunpack.c.l.b16 %v4216
    %v5794 = vunpack.c.l.b16 %v4217
    %v5795 = vunpack.c.l.b16 %v4218
    %v5796 = vunpack.c.l.b16 %v4219
    %v5797 = vunpack.c.l.b16 %v4220
    %v5798 = vunpack.c.l.b16 %v4221
    %v5799 = vunpack.c.l.b16 %v4222
    %v5800 = vunpack.c.l.b16 %v4223
    %v5801 = vunpack.c.l.b16 %v4224
    %v5802 = vunpack.c.l.b16 %v4225
    %v5803 = vunpack.c.l.b16 %v4226
    %v5804 = vunpack.c.l.b16 %v4227
    %v5805 = vunpack.c.l.b16 %v4228
    %v5806 = vunpack.c.l.b16 %v4229
    %v5807 = vunpack.c.l.b16 %v4230
    %v5808 = vunpack.c.l.b16 %v4231
    %v5809 = vunpack.c.l.b16 %v4232
    %v5810 = vunpack.c.l.b16 %v4233
    %v5811 = vunpack.c.l.b16 %v4234
    %v5812 = vunpack.c.l.b16 %v4235
    %v5813 = vunpack.c.l.b16 %v4236
    %v5814 = vunpack.c.l.b16 %v4237
    %v5815 = vunpack.c.l.b16 %v4238
    %v5816 = vunpack.c.l.b16 %v4239
    %v5817 = vunpack.c.l.b16 %v4240
    %v5818 = vunpack.c.l.b16 %v4241
    %v5819 = vunpack.c.l.b16 %v4242
    %v5820 = vunpack.c.l.b16 %v4243
    %v5821 = vunpack.c.l.b16 %v4244
    %v5822 = vunpack.c.l.b16 %v4245
    %v5823 = vunpack.c.l.b16 %v4246
    %v5824 = vunpack.c.l.b16 %v4247
    %v5825 = vunpack.c.l.b16 %v4248
    %v5826 = vunpack.c.l.b16 %v4249
    %v5827 = vunpack.c.l.b16 %v4250
    %v5828 = vunpack.c.l.b16 %v4251
    %v5829 = vunpack.c.l.b16 %v4252
    %v5830 = vunpack.c.l.b16 %v4253
    %v5831 = vunpack.c.l.b16 %v4254
    %v5832 = vunpack.c.l.b16 %v4255
    %v5833 = vunpack.c.l.b16 %v4256
    %v5834 = vunpack.c.l.b16 %v4257
    %v5835 = vunpack.c.l.b16 %v4258
    %v5836 = vunpack.c.l.b16 %v4259
    %v5837 = vunpack.c.l.b16 %v4260
    %v5838 = vunpack.c.l.b16 %v4261
    %v5839 = vunpack.c.l.b16 %v4262
    %v5840 = vunpack.c.l.b16 %v4263
    %v5841 = vunpack.c.l.b16 %v4264
    %v5842 = vunpack.c.l.b16 %v4265
    %v5843 = vunpack.c.l.b16 %v4266
    %v5844 = vunpack.c.l.b16 %v4267
    %v5845 = vunpack.c.l.b16 %v4268
    %v5846 = vunpack.c.l.b16 %v4269
    %v5847 = vunpack.c.l.b16 %v4270
    %v5848 = vunpack.c.l.b16 %v4271
    %v5849 = vunpack.c.l.b16 %v4272
    %v5850 = vunpack.c.l.b16 %v4273
    %v5851 = vunpack.c.l.b16 %v4274
    %v5852 = vunpack.c.l.b16 %v4275
    %v5853 = vunpack.c.l.b16 %v4276
    %v5854 = vunpack.c.l.b16 %v4277
    %v5855 = vunpack.c.l.b16 %v4278
    %v5856 = vunpack.c.l.b16 %v4279
    %v5857 = vunpack.c.l.b16 %v4280
    %v5858 = vunpack.c.l.b16 %v4281
    %v5859 = vunpack.c.l.b16 %v4282
    %v5860 = vunpack.c.l.b16 %v4283
    %v5861 = vunpack.c.l.b16 %v4284
    %v5862 = vunpack.c.l.b16 %v4285
    %v5863 = vunpack.c.l.b16 %v4286
    %v5864 = vunpack.c.l.b16 %v4287
    %v5865 = vunpack.c.l.b16 %v4288
    %v5866 = vunpack.c.l.b16 %v4289
    %v5867 = vunpack.c.l.b16 %v4290
    %v5868 = vunpack.c.l.b16 %v4291
    %v5869 = vunpack.c.l.b16 %v4292
    %v5870 = vunpack.c.l.b16 %v4293
    %v5871 = vunpack.c.l.b16 %v4294
    %v5872 = vunpack.c.l.b16 %v4295
    %v5873 = vunpack.c.l.b16 %v4296
    %v5874 = vunpack.c.l.b16 %v4297
    %v5875 = vunpack.c.l.b16 %v4298
    %v5876 = vunpack.c.l.b16 %v4299
    %v5877 = vunpack.c.l.b16 %v4300
    %v5878 = vunpack.c.l.b16 %v4301
    %v5879 = vunpack.c.l.b16 %v4302
    %v5880 = vunpack.c.l.b16 %v4303
    %v5881 = vunpack.c.l.b16 %v4304
    %v5882 = vunpack.c.l.b16 %v4305
    %v5883 = vunpack.c.l.b16 %v4306
    %v5884 = vunpack.c.l.b16 %v4307
    %v5885 = vunpack.c.l.b16 %v4308
    %v5886 = vunpack.c.l.b16 %v4309
    %v5887 = vunpack.c.l.b16 %v4310
    %v5888 = vunpack.c.l.b16 %v4311
    %v5889 = vunpack.c.l.b16 %v4312
    %v5890 = vunpack.c.l.b16 %v4313
    %v5891 = vunpack.c.l.b16 %v4314
    %v5892 = vunpack.c.l.b16 %v4315
    %v5893 = vunpack.c.l.b16 %v4316
    %v5894 = vunpack.c.l.b16 %v4317
    %v5895 = vunpack.c.l.b16 %v4318
    %v5896 = vunpack.c.l.b16 %v4319
    %v5897 = vunpack.c.l.b16 %v4320
    %v5898 = vunpack.c.l.b16 %v4321
    %v5899 = vunpack.c.l.b16 %v4322
    %v5900 = vunpack.c.l.b16 %v4323
    %v5901 = vunpack.c.l.b16 %v4324
    %v5902 = vunpack.c.l.b16 %v4325
    %v5903 = vunpack.c.l.b16 %v4326
    %v5904 = vunpack.c.l.b16 %v4327
    %v5905 = vunpack.c.l.b16 %v4328
    %v5906 = vunpack.c.l.b16 %v4329
    %v5907 = vunpack.c.l.b16 %v4330
    %v5908 = vunpack.c.l.b16 %v4331
    %v5909 = vunpack.c.l.b16 %v4332
    %v5910 = vunpack.c.l.b16 %v4333
    %v5911 = vunpack.c.l.b16 %v4334
    %v5912 = vunpack.c.l.b16 %v4335
    %v5913 = vunpack.c.l.b16 %v4336
    %v5914 = vunpack.c.l.b16 %v4337
    %v5915 = vunpack.c.l.b16 %v4338
    %v5916 = vunpack.c.l.b16 %v4339
    %v5917 = vunpack.c.l.b16 %v4340
    %v5918 = vunpack.c.l.b16 %v4341
    %v5919 = vunpack.c.l.b16 %v4342
    %v5920 = vunpack.c.l.b16 %v4343
    %v5921 = vunpack.c.l.b16 %v4344
    %v5922 = vunpack.c.l.b16 %v4345
    %v5923 = vunpack.c.l.b16 %v4346
    %v5924 = vunpack.c.l.b16 %v4347
    %v5925 = vunpack.c.l.b16 %v4348
    %v5926 = vunpack.c.l.b16 %v4349
    %v5927 = vunpack.c.l.b16 %v4350
    %v5928 = vunpack.c.l.b16 %v4351
    %v5929 = vunpack.c.l.b16 %v4352
    %v5930 = vunpack.c.l.b16 %v4353
    %v5931 = vunpack.c.l.b16 %v4354
    %v5932 = vunpack.c.l.b16 %v4355
    %v5933 = vunpack.c.l.b16 %v4356
    %v5934 = vunpack.c.l.b16 %v4357
    %v5935 = vunpack.c.l.b16 %v4358
    %v5936 = vunpack.c.l.b16 %v4359
    %v5937 = vunpack.c.l.b16 %v4360
    %v5938 = vunpack.c.l.b16 %v4361
    %v5939 = vunpack.c.l.b16 %v4362
    %v5940 = vunpack.c.l.b16 %v4363
    %v5941 = vunpack.c.l.b16 %v4364
    %v5942 = vunpack.c.l.b16 %v4365
    %v5943 = vunpack.c.l.b16 %v4366
    %v5944 = vunpack.c.l.b16 %v4367
    %v5945 = vunpack.c.l.b16 %v4368
    %v5946 = vunpack.c.l.b16 %v4369
    %v5947 = vunpack.c.l.b16 %v4370
    %v5948 = vunpack.c.l.b16 %v4371
    %v5949 = vunpack.c.l.b16 %v4372
    %v5950 = vunpack.c.l.b16 %v4373
    %v5951 = vunpack.c.l.b16 %v4374
    %v5952 = vunpack.c.l.b16 %v4375
    %v5953 = vunpack.c.l.b16 %v4376
    %v5954 = vunpack.c.l.b16 %v4377
    %v5955 = vunpack.c.l.b16 %v4378
    %v5956 = vunpack.c.l.b16 %v4379
    %v5957 = vunpack.c.l.b16 %v4380
    %v5958 = vunpack.c.l.b16 %v4381
    %v5959 = vunpack.c.l.b16 %v4382
    %v5960 = vunpack.c.l.b16 %v4383
    %v5961 = vunpack.c.l.b16 %v4384
    %v5962 = vunpack.c.l.b16 %v4385
    %v5963 = vunpack.c.l.b16 %v4386
    %v5964 = vunpack.c.l.b16 %v4387
    %v5965 = vunpack.c.l.b16 %v4388
    %v5966 = vunpack.c.l.b16 %v4389
    %v5967 = vunpack.c.l.b16 %v4390
    %v5968 = vunpack.c.l.b16 %v4391
    %v5969 = vunpack.c.l.b16 %v4392
    %v5970 = vunpack.c.l.b16 %v4393
    %v5971 = vunpack.c.l.b16 %v4394
    %v5972 = vunpack.c.l.b16 %v4395
    %v5973 = vunpack.c.l.b16 %v4396
    %v5974 = vunpack.c.l.b16 %v4397
    %v5975 = vunpack.c.l.b16 %v4398
    %v5976 = vunpack.c.l.b16 %v4399
    %v5977 = vunpack.c.l.b16 %v4400
    %v5978 = vunpack.c.l.b16 %v4401
    %v5979 = vunpack.c.l.b16 %v4402
    %v5980 = vunpack.c.l.b16 %v4403
    %v5981 = vunpack.c.l.b16 %v4404
    %v5982 = vunpack.c.l.b16 %v4405
    %v5983 = vunpack.c.l.b16 %v4406
    %v5984 = vunpack.c.l.b16 %v4407
    %v5985 = vunpack.c.l.b16 %v4408
    %v5986 = vunpack.c.l.b16 %v4409
    %v5987 = vunpack.c.l.b16 %v4410
    %v5988 = vunpack.c.l.b16 %v4411
    %v5989 = vunpack.c.l.b16 %v4412
    %v5990 = vunpack.c.l.b16 %v4413
    %v5991 = vunpack.c.l.b16 %v4414
    %v5992 = vunpack.c.l.b16 %v4415
    %v5993 = vunpack.c.l.b16 %v4416
    %v5994 = vunpack.c.l.b16 %v4417
    %v5995 = vunpack.c.l.b16 %v4418
    %v5996 = vunpack.c.l.b16 %v4419
    %v5997 = vunpack.c.l.b16 %v4420
    %v5998 = vunpack.c.l.b16 %v4421
    %v5999 = vunpack.c.l.b16 %v4422
    %v6000 = vunpack.c.l.b16 %v4423
    %v6001 = vunpack.c.l.b16 %v4424
    %v6002 = vunpack.c.l.b16 %v4425
    %v6003 = vunpack.c.l.b16 %v4426
    %v6004 = vunpack.c.l.b16 %v4427
    %v6005 = vunpack.c.l.b16 %v4428
    %v6006 = vunpack.c.l.b16 %v4429
    %v6007 = vunpack.c.l.b16 %v4430
    %v6008 = vunpack.c.l.b16 %v4431
    %v6009 = vunpack.c.l.b16 %v4432
    %v6010 = vunpack.c.l.b16 %v4433
    %v6011 = vunpack.c.l.b16 %v4434
    %v6012 = vunpack.c.l.b16 %v4435
    %v6013 = vunpack.c.l.b16 %v4436
    %v6014 = vunpack.c.l.b16 %v4437
    %v6015 = vunpack.c.l.b16 %v4438
    %v6016 = vunpack.c.l.b16 %v4439
    %v6017 = vunpack.c.l.b16 %v4440
    %v6018 = vunpack.c.l.b16 %v4441
    %v6019 = vunpack.c.l.b16 %v4442
    %v6020 = vunpack.c.l.b16 %v4443
    %v6021 = vunpack.c.l.b16 %v4444
    %v6022 = vunpack.c.l.b16 %v4445
    %v6023 = vunpack.c.l.b16 %v4446
    %v6024 = vunpack.c.l.b16 %v4447
    %v6025 = vunpack.c.l.b16 %v4448
    %v6026 = vunpack.c.l.b16 %v4449
    %v6027 = vpack.c.b16 %v5388, %v5387
    %v6028 = vpack.c.b16 %v5390, %v5389
    %v6029 = vpack.c.b16 %v5392, %v5391
    %v6030 = vpack.c.b16 %v5394, %v5393
    %v6031 = vpack.c.b16 %v5396, %v5395
    %v6032 = vpack.c.b16 %v5398, %v5397
    %v6033 = vpack.c.b16 %v5400, %v5399
    %v6034 = vpack.c.b16 %v5402, %v5401
    %v6035 = vpack.c.b16 %v5404, %v5403
    %v6036 = vpack.c.b16 %v5406, %v5405
    %v6037 = vpack.c.b16 %v5408, %v5407
    %v6038 = vpack.c.b16 %v5410, %v5409
    %v6039 = vpack.c.b16 %v5412, %v5411
    %v6040 = vpack.c.b16 %v5414, %v5413
    %v6041 = vpack.c.b16 %v5416, %v5415
    %v6042 = vpack.c.b16 %v5418, %v5417
    %v6043 = vpack.c.b16 %v5420, %v5419
    %v6044 = vpack.c.b16 %v5422, %v5421
    %v6045 = vpack.c.b16 %v5424, %v5423
    %v6046 = vpack.c.b16 %v5426, %v5425
    %v6047 = vpack.c.b16 %v5428, %v5427
    %v6048 = vpack.c.b16 %v5430, %v5429
    %v6049 = vpack.c.b16 %v5432, %v5431
    %v6050 = vpack.c.b16 %v5434, %v5433
    %v6051 = vpack.c.b16 %v5436, %v5435
    %v6052 = vpack.c.b16 %v5438, %v5437
    %v6053 = vpack.c.b16 %v5440, %v5439
    %v6054 = vpack.c.b16 %v5442, %v5441
    %v6055 = vpack.c.b16 %v5444, %v5443
    %v6056 = vpack.c.b16 %v5446, %v5445
    %v6057 = vpack.c.b16 %v5448, %v5447
    %v6058 = vpack.c.b16 %v5450, %v5449
    %v6059 = vpack.c.b16 %v5452, %v5451
    %v6060 = vpack.c.b16 %v5454, %v5453
    %v6061 = vpack.c.b16 %v5456, %v5455
    %v6062 = vpack.c.b16 %v5458, %v5457
    %v6063 = vpack.c.b16 %v5460, %v5459
    %v6064 = vpack.c.b16 %v5462, %v5461
    %v6065 = vpack.c.b16 %v5464, %v5463
    %v6066 = vpack.c.b16 %v5466, %v5465
    %v6067 = vpack.c.b16 %v5468, %v5467
    %v6068 = vpack.c.b16 %v5470, %v5469
    %v6069 = vpack.c.b16 %v5472, %v5471
    %v6070 = vpack.c.b16 %v5474, %v5473
    %v6071 = vpack.c.b16 %v5476, %v5475
    %v6072 = vpack.c.b16 %v5478, %v5477
    %v6073 = vpack.c.b16 %v5480, %v5479
    %v6074 = vpack.c.b16 %v5482, %v5481
    %v6075 = vpack.c.b16 %v5484, %v5483
    %v6076 = vpack.c.b16 %v5486, %v5485
    %v6077 = vpack.c.b16 %v5488, %v5487
    %v6078 = vpack.c.b16 %v5490, %v5489
    %v6079 = vpack.c.b16 %v5492, %v5491
    %v6080 = vpack.c.b16 %v5494, %v5493
    %v6081 = vpack.c.b16 %v5496, %v5495
    %v6082 = vpack.c.b16 %v5498, %v5497
    %v6083 = vpack.c.b16 %v5500, %v5499
    %v6084 = vpack.c.b16 %v5502, %v5501
    %v6085 = vpack.c.b16 %v5504, %v5503
    %v6086 = vpack.c.b16 %v5506, %v5505
    %v6087 = vpack.c.b16 %v5508, %v5507
    %v6088 = vpack.c.b16 %v5510, %v5509
    %v6089 = vpack.c.b16 %v5512, %v5511
    %v6090 = vpack.c.b16 %v5514, %v5513
    %v6091 = vpack.c.b16 %v5516, %v5515
    %v6092 = vpack.c.b16 %v5518, %v5517
    %v6093 = vpack.c.b16 %v5520, %v5519
    %v6094 = vpack.c.b16 %v5522, %v5521
    %v6095 = vpack.c.b16 %v5524, %v5523
    %v6096 = vpack.c.b16 %v5526, %v5525
    %v6097 = vpack.c.b16 %v5528, %v5527
    %v6098 = vpack.c.b16 %v5530, %v5529
    %v6099 = vpack.c.b16 %v5532, %v5531
    %v6100 = vpack.c.b16 %v5534, %v5533
    %v6101 = vpack.c.b16 %v5536, %v5535
    %v6102 = vpack.c.b16 %v5538, %v5537
    %v6103 = vpack.c.b16 %v5540, %v5539
    %v6104 = vpack.c.b16 %v5542, %v5541
    %v6105 = vpack.c.b16 %v5544, %v5543
    %v6106 = vpack.c.b16 %v5546, %v5545
    %v6107 = vpack.c.b16 %v5548, %v5547
    %v6108 = vpack.c.b16 %v5550, %v5549
    %v6109 = vpack.c.b16 %v5552, %v5551
    %v6110 = vpack.c.b16 %v5554, %v5553
    %v6111 = vpack.c.b16 %v5556, %v5555
    %v6112 = vpack.c.b16 %v5558, %v5557
    %v6113 = vpack.c.b16 %v5560, %v5559
    %v6114 = vpack.c.b16 %v5562, %v5561
    %v6115 = vpack.c.b16 %v5564, %v5563
    %v6116 = vpack.c.b16 %v5566, %v5565
    %v6117 = vpack.c.b16 %v5568, %v5567
    %v6118 = vpack.c.b16 %v5570, %v5569
    %v6119 = vpack.c.b16 %v5572, %v5571
    %v6120 = vpack.c.b16 %v5574, %v5573
    %v6121 = vpack.c.b16 %v5576, %v5575
    %v6122 = vpack.c.b16 %v5578, %v5577
    %v6123 = vpack.c.b16 %v5580, %v5579
    %v6124 = vpack.c.b16 %v5582, %v5581
    %v6125 = vpack.c.b16 %v5584, %v5583
    %v6126 = vpack.c.b16 %v5586, %v5585
    %v6127 = vpack.c.b16 %v5588, %v5587
    %v6128 = vpack.c.b16 %v5590, %v5589
    %v6129 = vpack.c.b16 %v5592, %v5591
    %v6130 = vpack.c.b16 %v5594, %v5593
    %v6131 = vpack.c.b16 %v5596, %v5595
    %v6132 = vpack.c.b16 %v5598, %v5597
    %v6133 = vpack.c.b16 %v5600, %v5599
    %v6134 = vpack.c.b16 %v5602, %v5601
    %v6135 = vpack.c.b16 %v5604, %v5603
    %v6136 = vpack.c.b16 %v5606, %v5605
    %v6137 = vpack.c.b16 %v5608, %v5607
    %v6138 = vpack.c.b16 %v5610, %v5609
    %v6139 = vpack.c.b16 %v5612, %v5611
    %v6140 = vpack.c.b16 %v5614, %v5613
    %v6141 = vpack.c.b16 %v5616, %v5615
    %v6142 = vpack.c.b16 %v5618, %v5617
    %v6143 = vpack.c.b16 %v5620, %v5619
    %v6144 = vpack.c.b16 %v5622, %v5621
    %v6145 = vpack.c.b16 %v5624, %v5623
    %v6146 = vpack.c.b16 %v5626, %v5625
    %v6147 = vpack.c.b16 %v5628, %v5627
    %v6148 = vpack.c.b16 %v5630, %v5629
    %v6149 = vpack.c.b16 %v5632, %v5631
    %v6150 = vpack.c.b16 %v5634, %v5633
    %v6151 = vpack.c.b16 %v5636, %v5635
    %v6152 = vpack.c.b16 %v5638, %v5637
    %v6153 = vpack.c.b16 %v5640, %v5639
    %v6154 = vpack.c.b16 %v5642, %v5641
    %v6155 = vpack.c.b16 %v5644, %v5643
    %v6156 = vpack.c.b16 %v5646, %v5645
    %v6157 = vpack.c.b16 %v5648, %v5647
    %v6158 = vpack.c.b16 %v5650, %v5649
    %v6159 = vpack.c.b16 %v5652, %v5651
    %v6160 = vpack.c.b16 %v5654, %v5653
    %v6161 = vpack.c.b16 %v5656, %v5655
    %v6162 = vpack.c.b16 %v5658, %v5657
    %v6163 = vpack.c.b16 %v5660, %v5659
    %v6164 = vpack.c.b16 %v5662, %v5661
    %v6165 = vpack.c.b16 %v5664, %v5663
    %v6166 = vpack.c.b16 %v5666, %v5665
    %v6167 = vpack.c.b16 %v5668, %v5667
    %v6168 = vpack.c.b16 %v5670, %v5669
    %v6169 = vpack.c.b16 %v5672, %v5671
    %v6170 = vpack.c.b16 %v5674, %v5673
    %v6171 = vpack.c.b16 %v5676, %v5675
    %v6172 = vpack.c.b16 %v5678, %v5677
    %v6173 = vpack.c.b16 %v5680, %v5679
    %v6174 = vpack.c.b16 %v5682, %v5681
    %v6175 = vpack.c.b16 %v5684, %v5683
    %v6176 = vpack.c.b16 %v5686, %v5685
    %v6177 = vpack.c.b16 %v5688, %v5687
    %v6178 = vpack.c.b16 %v5690, %v5689
    %v6179 = vpack.c.b16 %v5692, %v5691
    %v6180 = vpack.c.b16 %v5694, %v5693
    %v6181 = vpack.c.b16 %v5696, %v5695
    %v6182 = vpack.c.b16 %v5698, %v5697
    %v6183 = vpack.c.b16 %v5700, %v5699
    %v6184 = vpack.c.b16 %v5702, %v5701
    %v6185 = vpack.c.b16 %v5704, %v5703
    %v6186 = vpack.c.b16 %v5706, %v5705
    %v6187 = vpack.c.b16 %v5708, %v5707
    %v6188 = vpack.c.b16 %v5710, %v5709
    %v6189 = vpack.c.b16 %v5712, %v5711
    %v6190 = vpack.c.b16 %v5714, %v5713
    %v6191 = vpack.c.b16 %v5716, %v5715
    %v6192 = vpack.c.b16 %v5718, %v5717
    %v6193 = vpack.c.b16 %v5720, %v5719
    %v6194 = vpack.c.b16 %v5722, %v5721
    %v6195 = vpack.c.b16 %v5724, %v5723
    %v6196 = vpack.c.b16 %v5726, %v5725
    %v6197 = vpack.c.b16 %v5728, %v5727
    %v6198 = vpack.c.b16 %v5730, %v5729
    %v6199 = vpack.c.b16 %v5732, %v5731
    %v6200 = vpack.c.b16 %v5734, %v5733
    %v6201 = vpack.c.b16 %v5736, %v5735
    %v6202 = vpack.c.b16 %v5738, %v5737
    %v6203 = vpack.c.b16 %v5740, %v5739
    %v6204 = vpack.c.b16 %v5742, %v5741
    %v6205 = vpack.c.b16 %v5744, %v5743
    %v6206 = vpack.c.b16 %v5746, %v5745
    %v6207 = vpack.c.b16 %v5748, %v5747
    %v6208 = vpack.c.b16 %v5750, %v5749
    %v6209 = vpack.c.b16 %v5752, %v5751
    %v6210 = vpack.c.b16 %v5754, %v5753
    %v6211 = vpack.c.b16 %v5756, %v5755
    %v6212 = vpack.c.b16 %v5758, %v5757
    %v6213 = vpack.c.b16 %v5760, %v5759
    %v6214 = vpack.c.b16 %v5762, %v5761
    %v6215 = vpack.c.b16 %v5764, %v5763
    %v6216 = vpack.c.b16 %v5766, %v5765
    %v6217 = vpack.c.b16 %v5768, %v5767
    %v6218 = vpack.c.b16 %v5770, %v5769
    %v6219 = vpack.c.b16 %v5772, %v5771
    %v6220 = vpack.c.b16 %v5774, %v5773
    %v6221 = vpack.c.b16 %v5776, %v5775
    %v6222 = vpack.c.b16 %v5778, %v5777
    %v6223 = vpack.c.b16 %v5780, %v5779
    %v6224 = vpack.c.b16 %v5782, %v5781
    %v6225 = vpack.c.b16 %v5784, %v5783
    %v6226 = vpack.c.b16 %v5786, %v5785
    %v6227 = vpack.c.b16 %v5788, %v5787
    %v6228 = vpack.c.b16 %v5790, %v5789
    %v6229 = vpack.c.b16 %v5792, %v5791
    %v6230 = vpack.c.b16 %v5794, %v5793
    %v6231 = vpack.c.b16 %v5796, %v5795
    %v6232 = vpack.c.b16 %v5798, %v5797
    %v6233 = vpack.c.b16 %v5800, %v5799
    %v6234 = vpack.c.b16 %v5802, %v5801
    %v6235 = vpack.c.b16 %v5804, %v5803
    %v6236 = vpack.c.b16 %v5806, %v5805
    %v6237 = vpack.c.b16 %v5808, %v5807
    %v6238 = vpack.c.b16 %v5810, %v5809
    %v6239 = vpack.c.b16 %v5812, %v5811
    %v6240 = vpack.c.b16 %v5814, %v5813
    %v6241 = vpack.c.b16 %v5816, %v5815
    %v6242 = vpack.c.b16 %v5818, %v5817
    %v6243 = vpack.c.b16 %v5820, %v5819
    %v6244 = vpack.c.b16 %v5822, %v5821
    %v6245 = vpack.c.b16 %v5824, %v5823
    %v6246 = vpack.c.b16 %v5826, %v5825
    %v6247 = vpack.c.b16 %v5828, %v5827
    %v6248 = vpack.c.b16 %v5830, %v5829
    %v6249 = vpack.c.b16 %v5832, %v5831
    %v6250 = vpack.c.b16 %v5834, %v5833
    %v6251 = vpack.c.b16 %v5836, %v5835
    %v6252 = vpack.c.b16 %v5838, %v5837
    %v6253 = vpack.c.b16 %v5840, %v5839
    %v6254 = vpack.c.b16 %v5842, %v5841
    %v6255 = vpack.c.b16 %v5844, %v5843
    %v6256 = vpack.c.b16 %v5846, %v5845
    %v6257 = vpack.c.b16 %v5848, %v5847
    %v6258 = vpack.c.b16 %v5850, %v5849
    %v6259 = vpack.c.b16 %v5852, %v5851
    %v6260 = vpack.c.b16 %v5854, %v5853
    %v6261 = vpack.c.b16 %v5856, %v5855
    %v6262 = vpack.c.b16 %v5858, %v5857
    %v6263 = vpack.c.b16 %v5860, %v5859
    %v6264 = vpack.c.b16 %v5862, %v5861
    %v6265 = vpack.c.b16 %v5864, %v5863
    %v6266 = vpack.c.b16 %v5866, %v5865
    %v6267 = vpack.c.b16 %v5868, %v5867
    %v6268 = vpack.c.b16 %v5870, %v5869
    %v6269 = vpack.c.b16 %v5872, %v5871
    %v6270 = vpack.c.b16 %v5874, %v5873
    %v6271 = vpack.c.b16 %v5876, %v5875
    %v6272 = vpack.c.b16 %v5878, %v5877
    %v6273 = vpack.c.b16 %v5880, %v5879
    %v6274 = vpack.c.b16 %v5882, %v5881
    %v6275 = vpack.c.b16 %v5884, %v5883
    %v6276 = vpack.c.b16 %v5886, %v5885
    %v6277 = vpack.c.b16 %v5888, %v5887
    %v6278 = vpack.c.b16 %v5890, %v5889
    %v6279 = vpack.c.b16 %v5892, %v5891
    %v6280 = vpack.c.b16 %v5894, %v5893
    %v6281 = vpack.c.b16 %v5896, %v5895
    %v6282 = vpack.c.b16 %v5898, %v5897
    %v6283 = vpack.c.b16 %v5900, %v5899
    %v6284 = vpack.c.b16 %v5902, %v5901
    %v6285 = vpack.c.b16 %v5904, %v5903
    %v6286 = vpack.c.b16 %v5906, %v5905
    %v6287 = vpack.c.b16 %v5908, %v5907
    %v6288 = vpack.c.b16 %v5910, %v5909
    %v6289 = vpack.c.b16 %v5912, %v5911
    %v6290 = vpack.c.b16 %v5914, %v5913
    %v6291 = vpack.c.b16 %v5916, %v5915
    %v6292 = vpack.c.b16 %v5918, %v5917
    %v6293 = vpack.c.b16 %v5920, %v5919
    %v6294 = vpack.c.b16 %v5922, %v5921
    %v6295 = vpack.c.b16 %v5924, %v5923
    %v6296 = vpack.c.b16 %v5926, %v5925
    %v6297 = vpack.c.b16 %v5928, %v5927
    %v6298 = vpack.c.b16 %v5930, %v5929
    %v6299 = vpack.c.b16 %v5932, %v5931
    %v6300 = vpack.c.b16 %v5934, %v5933
    %v6301 = vpack.c.b16 %v5936, %v5935
    %v6302 = vpack.c.b16 %v5938, %v5937
    %v6303 = vpack.c.b16 %v5940, %v5939
    %v6304 = vpack.c.b16 %v5942, %v5941
    %v6305 = vpack.c.b16 %v5944, %v5943
    %v6306 = vpack.c.b16 %v5946, %v5945
    %v6307 = vpack.c.b16 %v5948, %v5947
    %v6308 = vpack.c.b16 %v5950, %v5949
    %v6309 = vpack.c.b16 %v5952, %v5951
    %v6310 = vpack.c.b16 %v5954, %v5953
    %v6311 = vpack.c.b16 %v5956, %v5955
    %v6312 = vpack.c.b16 %v5958, %v5957
    %v6313 = vpack.c.b16 %v5960, %v5959
    %v6314 = vpack.c.b16 %v5962, %v5961
    %v6315 = vpack.c.b16 %v5964, %v5963
    %v6316 = vpack.c.b16 %v5966, %v5965
    %v6317 = vpack.c.b16 %v5968, %v5967
    %v6318 = vpack.c.b16 %v5970, %v5969
    %v6319 = vpack.c.b16 %v5972, %v5971
    %v6320 = vpack.c.b16 %v5974, %v5973
    %v6321 = vpack.c.b16 %v5976, %v5975
    %v6322 = vpack.c.b16 %v5978, %v5977
    %v6323 = vpack.c.b16 %v5980, %v5979
    %v6324 = vpack.c.b16 %v5982, %v5981
    %v6325 = vpack.c.b16 %v5984, %v5983
    %v6326 = vpack.c.b16 %v5986, %v5985
    %v6327 = vpack.c.b16 %v5988, %v5987
    %v6328 = vpack.c.b16 %v5990, %v5989
    %v6329 = vpack.c.b16 %v5992, %v5991
    %v6330 = vpack.c.b16 %v5994, %v5993
    %v6331 = vpack.c.b16 %v5996, %v5995
    %v6332 = vpack.c.b16 %v5998, %v5997
    %v6333 = vpack.c.b16 %v6000, %v5999
    %v6334 = vpack.c.b16 %v6002, %v6001
    %v6335 = vpack.c.b16 %v6004, %v6003
    %v6336 = vpack.c.b16 %v6006, %v6005
    %v6337 = vpack.c.b16 %v6008, %v6007
    %v6338 = vpack.c.b16 %v6010, %v6009
    %v6339 = vpack.c.b16 %v6012, %v6011
    %v6340 = vpack.c.b16 %v6014, %v6013
    %v6341 = vpack.c.b16 %v6016, %v6015
    %v6342 = vpack.c.b16 %v6018, %v6017
    %v6343 = vpack.c.b16 %v6020, %v6019
    %v6344 = vpack.c.b16 %v6022, %v6021
    %v6345 = vpack.c.b16 %v6024, %v6023
    %v6346 = vpack.c.b16 %v6026, %v6025
    %6667 = vmatprep.subr.bf16.mxu0 0
    %6668 = vmatpush1.bf16.msra.mxu0 %v6027
    %6669 = vmatprep.subr.bf16.mxu0 0
    %6670 = vmatpush1.bf16.msra.mxu0 %v6028
    %6671 = vmatprep.subr.bf16.mxu0 0
    %6672 = vmatpush1.bf16.msra.mxu0 %v6029
    %6673 = vmatprep.subr.bf16.mxu0 0
    %6674 = vmatpush1.bf16.msra.mxu0 %v6030
    %6675 = vmatprep.subr.bf16.mxu0 0
    %6676 = vmatpush1.bf16.msra.mxu0 %v6031
    %6677 = vmatprep.subr.bf16.mxu0 0
    %6678 = vmatpush1.bf16.msra.mxu0 %v6032
    %6679 = vmatprep.subr.bf16.mxu0 0
    %6680 = vmatpush1.bf16.msra.mxu0 %v6033
    %6681 = vmatprep.subr.bf16.mxu0 0
    %6682 = vmatpush1.bf16.msra.mxu0 %v6034
    %6683 = vmatprep.subr.bf16.mxu0 0
    %6684 = vmatpush1.bf16.msra.mxu0 %v6035
    %6685 = vmatprep.subr.bf16.mxu0 0
    %6686 = vmatpush1.bf16.msra.mxu0 %v6036
    %6687 = vmatprep.subr.bf16.mxu0 0
    %6688 = vmatpush1.bf16.msra.mxu0 %v6037
    %6689 = vmatprep.subr.bf16.mxu0 0
    %6690 = vmatpush1.bf16.msra.mxu0 %v6038
    %6691 = vmatprep.subr.bf16.mxu0 0
    %6692 = vmatpush1.bf16.msra.mxu0 %v6039
    %6693 = vmatprep.subr.bf16.mxu0 0
    %6694 = vmatpush1.bf16.msra.mxu0 %v6040
    %6695 = vmatprep.subr.bf16.mxu0 0
    %6696 = vmatpush1.bf16.msra.mxu0 %v6041
    %6697 = vmatprep.subr.bf16.mxu0 0
    %6698 = vmatpush1.bf16.msra.mxu0 %v6042
    %6699 = vmatprep.mubr.bf16.mxu0 %v4499
    %6700 = vmatmul.mubr.bf16.gmra.mrb[0].mxu0 %v4485
    %v6701 = vpop.f32.mrb[0].mxu0
    %v6702 = vadd.f32 %v4455, %v6701
    %v6703 = vpop.f32.mrb[0].mxu0
    %v6704 = vpop.f32.mrb[0].mxu0
    %v6705 = vpop.f32.mrb[0].mxu0
    %6706 = vdwg.mxu0
    %6707 = vmatprep.subr.bf16.mxu0 0
    %6708 = vmatpush1.bf16.msra.mxu0 %v6043
    %6709 = vmatprep.subr.bf16.mxu0 0
    %6710 = vmatpush1.bf16.msra.mxu0 %v6044
    %6711 = vmatprep.subr.bf16.mxu0 0
    %6712 = vmatpush1.bf16.msra.mxu0 %v6045
    %6713 = vmatprep.subr.bf16.mxu0 0
    %6714 = vmatpush1.bf16.msra.mxu0 %v6046
    %6715 = vmatprep.subr.bf16.mxu0 0
    %6716 = vmatpush1.bf16.msra.mxu0 %v6047
    %6717 = vmatprep.subr.bf16.mxu0 0
    %6718 = vmatpush1.bf16.msra.mxu0 %v6048
    %6719 = vmatprep.subr.bf16.mxu0 0
    %6720 = vmatpush1.bf16.msra.mxu0 %v6049
    %6721 = vmatprep.subr.bf16.mxu0 0
    %6722 = vmatpush1.bf16.msra.mxu0 %v6050
    %6723 = vmatprep.subr.bf16.mxu0 0
    %6724 = vmatpush1.bf16.msra.mxu0 %v6051
    %6725 = vmatprep.subr.bf16.mxu0 0
    %6726 = vmatpush1.bf16.msra.mxu0 %v6052
    %6727 = vmatprep.subr.bf16.mxu0 0
    %6728 = vmatpush1.bf16.msra.mxu0 %v6053
    %6729 = vmatprep.subr.bf16.mxu0 0
    %6730 = vmatpush1.bf16.msra.mxu0 %v6054
    %6731 = vmatprep.subr.bf16.mxu0 0
    %6732 = vmatpush1.bf16.msra.mxu0 %v6055
    %6733 = vmatprep.subr.bf16.mxu0 0
    %6734 = vmatpush1.bf16.msra.mxu0 %v6056
    %6735 = vmatprep.subr.bf16.mxu0 0
    %6736 = vmatpush1.bf16.msra.mxu0 %v6057
    %6737 = vmatprep.subr.bf16.mxu0 0
    %6738 = vmatpush1.bf16.msra.mxu0 %v6058
    %6739 = vmatprep.mubr.bf16.mxu0 %v4509
    %6740 = vmatmul.mubr.bf16.gmra.mrb[0].mxu0 %v4507
    %v6741 = vpop.f32.mrb[0].mxu0
    %v6742 = vadd.f32 %v6702, %v6741
    %v6743 = vpop.f32.mrb[0].mxu0
    %v6744 = vpop.f32.mrb[0].mxu0
    %v6745 = vpop.f32.mrb[0].mxu0
    %6746 = vdwg.mxu0
    %6747 = vmatprep.subr.bf16.mxu0 0
    %6748 = vmatpush1.bf16.msra.mxu0 %v6059
    %6749 = vmatprep.subr.bf16.mxu0 0
    %6750 = vmatpush1.bf16.msra.mxu0 %v6060
    %6751 = vmatprep.subr.bf16.mxu0 0
    %6752 = vmatpush1.bf16.msra.mxu0 %v6061
    %6753 = vmatprep.subr.bf16.mxu0 0
    %6754 = vmatpush1.bf16.msra.mxu0 %v6062
    %6755 = vmatprep.subr.bf16.mxu0 0
    %6756 = vmatpush1.bf16.msra.mxu0 %v6063
    %6757 = vmatprep.subr.bf16.mxu0 0
    %6758 = vmatpush1.bf16.msra.mxu0 %v6064
    %6759 = vmatprep.subr.bf16.mxu0 0
    %6760 = vmatpush1.bf16.msra.mxu0 %v6065
    %6761 = vmatprep.subr.bf16.mxu0 0
    %6762 = vmatpush1.bf16.msra.mxu0 %v6066
    %6763 = vmatprep.subr.bf16.mxu0 0
    %6764 = vmatpush1.bf16.msra.mxu0 %v6067
    %6765 = vmatprep.subr.bf16.mxu0 0
    %6766 = vmatpush1.bf16.msra.mxu0 %v6068
    %6767 = vmatprep.subr.bf16.mxu0 0
    %6768 = vmatpush1.bf16.msra.mxu0 %v6069
    %6769 = vmatprep.subr.bf16.mxu0 0
    %6770 = vmatpush1.bf16.msra.mxu0 %v6070
    %6771 = vmatprep.subr.bf16.mxu0 0
    %6772 = vmatpush1.bf16.msra.mxu0 %v6071
    %6773 = vmatprep.subr.bf16.mxu0 0
    %6774 = vmatpush1.bf16.msra.mxu0 %v6072
    %6775 = vmatprep.subr.bf16.mxu0 0
    %6776 = vmatpush1.bf16.msra.mxu0 %v6073
    %6777 = vmatprep.subr.bf16.mxu0 0
    %6778 = vmatpush1.bf16.msra.mxu0 %v6074
    %6779 = vmatprep.mubr.bf16.mxu0 %v4506
    %6780 = vmatmul.mubr.bf16.gmra.mrb[0].mxu0 %v4492
    %v6781 = vpop.f32.mrb[0].mxu0
    %v6782 = vadd.f32 %v6742, %v6781
    %v6783 = vpop.f32.mrb[0].mxu0
    %v6784 = vpop.f32.mrb[0].mxu0
    %v6785 = vpop.f32.mrb[0].mxu0
    %6786 = vdwg.mxu0
    %6787 = vmatprep.subr.bf16.mxu0 0
    %6788 = vmatpush1.bf16.msra.mxu0 %v6075
    %6789 = vmatprep.subr.bf16.mxu0 0
    %6790 = vmatpush1.bf16.msra.mxu0 %v6076
    %6791 = vmatprep.subr.bf16.mxu0 0
    %6792 = vmatpush1.bf16.msra.mxu0 %v6077
    %6793 = vmatprep.subr.bf16.mxu0 0
    %6794 = vmatpush1.bf16.msra.mxu0 %v6078
    %6795 = vmatprep.subr.bf16.mxu0 0
    %6796 = vmatpush1.bf16.msra.mxu0 %v6079
    %6797 = vmatprep.subr.bf16.mxu0 0
    %6798 = vmatpush1.bf16.msra.mxu0 %v6080
    %6799 = vmatprep.subr.bf16.mxu0 0
    %6800 = vmatpush1.bf16.msra.mxu0 %v6081
    %6801 = vmatprep.subr.bf16.mxu0 0
    %6802 = vmatpush1.bf16.msra.mxu0 %v6082
    %6803 = vmatprep.subr.bf16.mxu0 0
    %6804 = vmatpush1.bf16.msra.mxu0 %v6083
    %6805 = vmatprep.subr.bf16.mxu0 0
    %6806 = vmatpush1.bf16.msra.mxu0 %v6084
    %6807 = vmatprep.subr.bf16.mxu0 0
    %6808 = vmatpush1.bf16.msra.mxu0 %v6085
    %6809 = vmatprep.subr.bf16.mxu0 0
    %6810 = vmatpush1.bf16.msra.mxu0 %v6086
    %6811 = vmatprep.subr.bf16.mxu0 0
    %6812 = vmatpush1.bf16.msra.mxu0 %v6087
    %6813 = vmatprep.subr.bf16.mxu0 0
    %6814 = vmatpush1.bf16.msra.mxu0 %v6088
    %6815 = vmatprep.subr.bf16.mxu0 0
    %6816 = vmatpush1.bf16.msra.mxu0 %v6089
    %6817 = vmatprep.subr.bf16.mxu0 0
    %6818 = vmatpush1.bf16.msra.mxu0 %v6090
    %6819 = vmatprep.mubr.bf16.mxu0 %v4510
    %6820 = vmatmul.mubr.bf16.gmra.mrb[0].mxu0 %v4508
    %v6821 = vpop.f32.mrb[0].mxu0
    %v6822 = vadd.f32 %v6782, %v6821
    %v6823 = vpop.f32.mrb[0].mxu0
    %v6824 = vpop.f32.mrb[0].mxu0
    %v6825 = vpop.f32.mrb[0].mxu0
    %6826 = vdwg.mxu0
    %6827 = vmatprep.subr.bf16.mxu0 0
    %6828 = vmatpush1.bf16.msra.mxu0 %v6091
    %6829 = vmatprep.subr.bf16.mxu0 0
    %6830 = vmatpush1.bf16.msra.mxu0 %v6092
    %6831 = vmatprep.subr.bf16.mxu0 0
    %6832 = vmatpush1.bf16.msra.mxu0 %v6093
    %6833 = vmatprep.subr.bf16.mxu0 0
    %6834 = vmatpush1.bf16.msra.mxu0 %v6094
    %6835 = vmatprep.subr.bf16.mxu0 0
    %6836 = vmatpush1.bf16.msra.mxu0 %v6095
    %6837 = vmatprep.subr.bf16.mxu0 0
    %6838 = vmatpush1.bf16.msra.mxu0 %v6096
    %6839 = vmatprep.subr.bf16.mxu0 0
    %6840 = vmatpush1.bf16.msra.mxu0 %v6097
    %6841 = vmatprep.subr.bf16.mxu0 0
    %6842 = vmatpush1.bf16.msra.mxu0 %v6098
    %6843 = vmatprep.subr.bf16.mxu0 0
    %6844 = vmatpush1.bf16.msra.mxu0 %v6099
    %6845 = vmatprep.subr.bf16.mxu0 0
    %6846 = vmatpush1.bf16.msra.mxu0 %v6100
    %6847 = vmatprep.subr.bf16.mxu0 0
    %6848 = vmatpush1.bf16.msra.mxu0 %v6101
    %6849 = vmatprep.subr.bf16.mxu0 0
    %6850 = vmatpush1.bf16.msra.mxu0 %v6102
    %6851 = vmatprep.subr.bf16.mxu0 0
    %6852 = vmatpush1.bf16.msra.mxu0 %v6103
    %6853 = vmatprep.subr.bf16.mxu0 0
    %6854 = vmatpush1.bf16.msra.mxu0 %v6104
    %6855 = vmatprep.subr.bf16.mxu0 0
    %6856 = vmatpush1.bf16.msra.mxu0 %v6105
    %6857 = vmatprep.subr.bf16.mxu0 0
    %6858 = vmatpush1.bf16.msra.mxu0 %v6106
    %6859 = vmatprep.mubr.bf16.mxu0 %v4548
    %6860 = vmatmul.mubr.bf16.gmra.mrb[0].mxu0 %v4534
    %v6861 = vpop.f32.mrb[0].mxu0
    %v6862 = vadd.f32 %v6822, %v6861
    %v6863 = vpop.f32.mrb[0].mxu0
    %v6864 = vpop.f32.mrb[0].mxu0
    %v6865 = vpop.f32.mrb[0].mxu0
    %6866 = vdwg.mxu0
    %6867 = vmatprep.subr.bf16.mxu0 0
    %6868 = vmatpush1.bf16.msra.mxu0 %v6107
    %6869 = vmatprep.subr.bf16.mxu0 0
    %6870 = vmatpush1.bf16.msra.mxu0 %v6108
    %6871 = vmatprep.subr.bf16.mxu0 0
    %6872 = vmatpush1.bf16.msra.mxu0 %v6109
    %6873 = vmatprep.subr.bf16.mxu0 0
    %6874 = vmatpush1.bf16.msra.mxu0 %v6110
    %6875 = vmatprep.subr.bf16.mxu0 0
    %6876 = vmatpush1.bf16.msra.mxu0 %v6111
    %6877 = vmatprep.subr.bf16.mxu0 0
    %6878 = vmatpush1.bf16.msra.mxu0 %v6112
    %6879 = vmatprep.subr.bf16.mxu0 0
    %6880 = vmatpush1.bf16.msra.mxu0 %v6113
    %6881 = vmatprep.subr.bf16.mxu0 0
    %6882 = vmatpush1.bf16.msra.mxu0 %v6114
    %6883 = vmatprep.subr.bf16.mxu0 0
    %6884 = vmatpush1.bf16.msra.mxu0 %v6115
    %6885 = vmatprep.subr.bf16.mxu0 0
    %6886 = vmatpush1.bf16.msra.mxu0 %v6116
    %6887 = vmatprep.subr.bf16.mxu0 0
    %6888 = vmatpush1.bf16.msra.mxu0 %v6117
    %6889 = vmatprep.subr.bf16.mxu0 0
    %6890 = vmatpush1.bf16.msra.mxu0 %v6118
    %6891 = vmatprep.subr.bf16.mxu0 0
    %6892 = vmatpush1.bf16.msra.mxu0 %v6119
    %6893 = vmatprep.subr.bf16.mxu0 0
    %6894 = vmatpush1.bf16.msra.mxu0 %v6120
    %6895 = vmatprep.subr.bf16.mxu0 0
    %6896 = vmatpush1.bf16.msra.mxu0 %v6121
    %6897 = vmatprep.subr.bf16.mxu0 0
    %6898 = vmatpush1.bf16.msra.mxu0 %v6122
    %6899 = vmatprep.mubr.bf16.mxu0 %v4558
    %6900 = vmatmul.mubr.bf16.gmra.mrb[0].mxu0 %v4556
    %v6901 = vpop.f32.mrb[0].mxu0
    %v6902 = vadd.f32 %v6862, %v6901
    %v6903 = vpop.f32.mrb[0].mxu0
    %v6904 = vpop.f32.mrb[0].mxu0
    %v6905 = vpop.f32.mrb[0].mxu0
    %6906 = vdwg.mxu0
    %6907 = vmatprep.subr.bf16.mxu0 0
    %6908 = vmatpush1.bf16.msra.mxu0 %v6123
    %6909 = vmatprep.subr.bf16.mxu0 0
    %6910 = vmatpush1.bf16.msra.mxu0 %v6124
    %6911 = vmatprep.subr.bf16.mxu0 0
    %6912 = vmatpush1.bf16.msra.mxu0 %v6125
    %6913 = vmatprep.subr.bf16.mxu0 0
    %6914 = vmatpush1.bf16.msra.mxu0 %v6126
    %6915 = vmatprep.subr.bf16.mxu0 0
    %6916 = vmatpush1.bf16.msra.mxu0 %v6127
    %6917 = vmatprep.subr.bf16.mxu0 0
    %6918 = vmatpush1.bf16.msra.mxu0 %v6128
    %6919 = vmatprep.subr.bf16.mxu0 0
    %6920 = vmatpush1.bf16.msra.mxu0 %v6129
    %6921 = vmatprep.subr.bf16.mxu0 0
    %6922 = vmatpush1.bf16.msra.mxu0 %v6130
    %6923 = vmatprep.subr.bf16.mxu0 0
    %6924 = vmatpush1.bf16.msra.mxu0 %v6131
    %6925 = vmatprep.subr.bf16.mxu0 0
    %6926 = vmatpush1.bf16.msra.mxu0 %v6132
    %6927 = vmatprep.subr.bf16.mxu0 0
    %6928 = vmatpush1.bf16.msra.mxu0 %v6133
    %6929 = vmatprep.subr.bf16.mxu0 0
    %6930 = vmatpush1.bf16.msra.mxu0 %v6134
    %6931 = vmatprep.subr.bf16.mxu0 0
    %6932 = vmatpush1.bf16.msra.mxu0 %v6135
    %6933 = vmatprep.subr.bf16.mxu0 0
    %6934 = vmatpush1.bf16.msra.mxu0 %v6136
    %6935 = vmatprep.subr.bf16.mxu0 0
    %6936 = vmatpush1.bf16.msra.mxu0 %v6137
    %6937 = vmatprep.subr.bf16.mxu0 0
    %6938 = vmatpush1.bf16.msra.mxu0 %v6138
    %6939 = vmatprep.mubr.bf16.mxu0 %v4555
    %6940 = vmatmul.mubr.bf16.gmra.mrb[0].mxu0 %v4541
    %v6941 = vpop.f32.mrb[0].mxu0
    %v6942 = vadd.f32 %v6902, %v6941
    %v6943 = vpop.f32.mrb[0].mxu0
    %v6944 = vpop.f32.mrb[0].mxu0
    %v6945 = vpop.f32.mrb[0].mxu0
    %6946 = vdwg.mxu0
    %6947 = vmatprep.subr.bf16.mxu0 0
    %6948 = vmatpush1.bf16.msra.mxu0 %v6139
    %6949 = vmatprep.subr.bf16.mxu0 0
    %6950 = vmatpush1.bf16.msra.mxu0 %v6140
    %6951 = vmatprep.subr.bf16.mxu0 0
    %6952 = vmatpush1.bf16.msra.mxu0 %v6141
    %6953 = vmatprep.subr.bf16.mxu0 0
    %6954 = vmatpush1.bf16.msra.mxu0 %v6142
    %6955 = vmatprep.subr.bf16.mxu0 0
    %6956 = vmatpush1.bf16.msra.mxu0 %v6143
    %6957 = vmatprep.subr.bf16.mxu0 0
    %6958 = vmatpush1.bf16.msra.mxu0 %v6144
    %6959 = vmatprep.subr.bf16.mxu0 0
    %6960 = vmatpush1.bf16.msra.mxu0 %v6145
    %6961 = vmatprep.subr.bf16.mxu0 0
    %6962 = vmatpush1.bf16.msra.mxu0 %v6146
    %6963 = vmatprep.subr.bf16.mxu0 0
    %6964 = vmatpush1.bf16.msra.mxu0 %v6147
    %6965 = vmatprep.subr.bf16.mxu0 0
    %6966 = vmatpush1.bf16.msra.mxu0 %v6148
    %6967 = vmatprep.subr.bf16.mxu0 0
    %6968 = vmatpush1.bf16.msra.mxu0 %v6149
    %6969 = vmatprep.subr.bf16.mxu0 0
    %6970 = vmatpush1.bf16.msra.mxu0 %v6150
    %6971 = vmatprep.subr.bf16.mxu0 0
    %6972 = vmatpush1.bf16.msra.mxu0 %v6151
    %6973 = vmatprep.subr.bf16.mxu0 0
    %6974 = vmatpush1.bf16.msra.mxu0 %v6152
    %6975 = vmatprep.subr.bf16.mxu0 0
    %6976 = vmatpush1.bf16.msra.mxu0 %v6153
    %6977 = vmatprep.subr.bf16.mxu0 0
    %6978 = vmatpush1.bf16.msra.mxu0 %v6154
    %6979 = vmatprep.mubr.bf16.mxu0 %v4559
    %6980 = vmatmul.mubr.bf16.gmra.mrb[0].mxu0 %v4557
    %v6981 = vpop.f32.mrb[0].mxu0
    %v6982 = vadd.f32 %v6942, %v6981
    %v6983 = vpop.f32.mrb[0].mxu0
    %v6984 = vpop.f32.mrb[0].mxu0
    %v6985 = vpop.f32.mrb[0].mxu0
    %6986 = vdwg.mxu0
    %6987 = vmatprep.subr.bf16.mxu0 0
    %6988 = vmatpush1.bf16.msra.mxu0 %v6155
    %6989 = vmatprep.subr.bf16.mxu0 0
    %6990 = vmatpush1.bf16.msra.mxu0 %v6156
    %6991 = vmatprep.subr.bf16.mxu0 0
    %6992 = vmatpush1.bf16.msra.mxu0 %v6157
    %6993 = vmatprep.subr.bf16.mxu0 0
    %6994 = vmatpush1.bf16.msra.mxu0 %v6158
    %6995 = vmatprep.subr.bf16.mxu0 0
    %6996 = vmatpush1.bf16.msra.mxu0 %v6159
    %6997 = vmatprep.subr.bf16.mxu0 0
    %6998 = vmatpush1.bf16.msra.mxu0 %v6160
    %6999 = vmatprep.subr.bf16.mxu0 0
    %7000 = vmatpush1.bf16.msra.mxu0 %v6161
    %7001 = vmatprep.subr.bf16.mxu0 0
    %7002 = vmatpush1.bf16.msra.mxu0 %v6162
    %7003 = vmatprep.subr.bf16.mxu0 0
    %7004 = vmatpush1.bf16.msra.mxu0 %v6163
    %7005 = vmatprep.subr.bf16.mxu0 0
    %7006 = vmatpush1.bf16.msra.mxu0 %v6164
    %7007 = vmatprep.subr.bf16.mxu0 0
    %7008 = vmatpush1.bf16.msra.mxu0 %v6165
    %7009 = vmatprep.subr.bf16.mxu0 0
    %7010 = vmatpush1.bf16.msra.mxu0 %v6166
    %7011 = vmatprep.subr.bf16.mxu0 0
    %7012 = vmatpush1.bf16.msra.mxu0 %v6167
    %7013 = vmatprep.subr.bf16.mxu0 0
    %7014 = vmatpush1.bf16.msra.mxu0 %v6168
    %7015 = vmatprep.subr.bf16.mxu0 0
    %7016 = vmatpush1.bf16.msra.mxu0 %v6169
    %7017 = vmatprep.subr.bf16.mxu0 0
    %7018 = vmatpush1.bf16.msra.mxu0 %v6170
    %7019 = vmatprep.mubr.bf16.mxu0 %v4597
    %7020 = vmatmul.mubr.bf16.gmra.mrb[0].mxu0 %v4583
    %v7021 = vpop.f32.mrb[0].mxu0
    %v7022 = vadd.f32 %v6982, %v7021
    %v7023 = vpop.f32.mrb[0].mxu0
    %v7024 = vpop.f32.mrb[0].mxu0
    %v7025 = vpop.f32.mrb[0].mxu0
    %7026 = vdwg.mxu0
    %7027 = vmatprep.subr.bf16.mxu0 0
    %7028 = vmatpush1.bf16.msra.mxu0 %v6171
    %7029 = vmatprep.subr.bf16.mxu0 0
    %7030 = vmatpush1.bf16.msra.mxu0 %v6172
    %7031 = vmatprep.subr.bf16.mxu0 0
    %7032 = vmatpush1.bf16.msra.mxu0 %v6173
    %7033 = vmatprep.subr.bf16.mxu0 0
    %7034 = vmatpush1.bf16.msra.mxu0 %v6174
    %7035 = vmatprep.subr.bf16.mxu0 0
    %7036 = vmatpush1.bf16.msra.mxu0 %v6175
    %7037 = vmatprep.subr.bf16.mxu0 0
    %7038 = vmatpush1.bf16.msra.mxu0 %v6176
    %7039 = vmatprep.subr.bf16.mxu0 0
    %7040 = vmatpush1.bf16.msra.mxu0 %v6177
    %7041 = vmatprep.subr.bf16.mxu0 0
    %7042 = vmatpush1.bf16.msra.mxu0 %v6178
    %7043 = vmatprep.subr.bf16.mxu0 0
    %7044 = vmatpush1.bf16.msra.mxu0 %v6179
    %7045 = vmatprep.subr.bf16.mxu0 0
    %7046 = vmatpush1.bf16.msra.mxu0 %v6180
    %7047 = vmatprep.subr.bf16.mxu0 0
    %7048 = vmatpush1.bf16.msra.mxu0 %v6181
    %7049 = vmatprep.subr.bf16.mxu0 0
    %7050 = vmatpush1.bf16.msra.mxu0 %v6182
    %7051 = vmatprep.subr.bf16.mxu0 0
    %7052 = vmatpush1.bf16.msra.mxu0 %v6183
    %7053 = vmatprep.subr.bf16.mxu0 0
    %7054 = vmatpush1.bf16.msra.mxu0 %v6184
    %7055 = vmatprep.subr.bf16.mxu0 0
    %7056 = vmatpush1.bf16.msra.mxu0 %v6185
    %7057 = vmatprep.subr.bf16.mxu0 0
    %7058 = vmatpush1.bf16.msra.mxu0 %v6186
    %7059 = vmatprep.mubr.bf16.mxu0 %v4607
    %7060 = vmatmul.mubr.bf16.gmra.mrb[0].mxu0 %v4605
    %v7061 = vpop.f32.mrb[0].mxu0
    %v7062 = vadd.f32 %v7022, %v7061
    %v7063 = vpop.f32.mrb[0].mxu0
    %v7064 = vpop.f32.mrb[0].mxu0
    %v7065 = vpop.f32.mrb[0].mxu0
    %7066 = vdwg.mxu0
    %7067 = vmatprep.subr.bf16.mxu0 0
    %7068 = vmatpush1.bf16.msra.mxu0 %v6187
    %7069 = vmatprep.subr.bf16.mxu0 0
    %7070 = vmatpush1.bf16.msra.mxu0 %v6188
    %7071 = vmatprep.subr.bf16.mxu0 0
    %7072 = vmatpush1.bf16.msra.mxu0 %v6189
    %7073 = vmatprep.subr.bf16.mxu0 0
    %7074 = vmatpush1.bf16.msra.mxu0 %v6190
    %7075 = vmatprep.subr.bf16.mxu0 0
    %7076 = vmatpush1.bf16.msra.mxu0 %v6191
    %7077 = vmatprep.subr.bf16.mxu0 0
    %7078 = vmatpush1.bf16.msra.mxu0 %v6192
    %7079 = vmatprep.subr.bf16.mxu0 0
    %7080 = vmatpush1.bf16.msra.mxu0 %v6193
    %7081 = vmatprep.subr.bf16.mxu0 0
    %7082 = vmatpush1.bf16.msra.mxu0 %v6194
    %7083 = vmatprep.subr.bf16.mxu0 0
    %7084 = vmatpush1.bf16.msra.mxu0 %v6195
    %7085 = vmatprep.subr.bf16.mxu0 0
    %7086 = vmatpush1.bf16.msra.mxu0 %v6196
    %7087 = vmatprep.subr.bf16.mxu0 0
    %7088 = vmatpush1.bf16.msra.mxu0 %v6197
    %7089 = vmatprep.subr.bf16.mxu0 0
    %7090 = vmatpush1.bf16.msra.mxu0 %v6198
    %7091 = vmatprep.subr.bf16.mxu0 0
    %7092 = vmatpush1.bf16.msra.mxu0 %v6199
    %7093 = vmatprep.subr.bf16.mxu0 0
    %7094 = vmatpush1.bf16.msra.mxu0 %v6200
    %7095 = vmatprep.subr.bf16.mxu0 0
    %7096 = vmatpush1.bf16.msra.mxu0 %v6201
    %7097 = vmatprep.subr.bf16.mxu0 0
    %7098 = vmatpush1.bf16.msra.mxu0 %v6202
    %7099 = vmatprep.mubr.bf16.mxu0 %v4604
    %7100 = vmatmul.mubr.bf16.gmra.mrb[0].mxu0 %v4590
    %v7101 = vpop.f32.mrb[0].mxu0
    %v7102 = vadd.f32 %v7062, %v7101
    %v7103 = vpop.f32.mrb[0].mxu0
    %v7104 = vpop.f32.mrb[0].mxu0
    %v7105 = vpop.f32.mrb[0].mxu0
    %7106 = vdwg.mxu0
    %7107 = vmatprep.subr.bf16.mxu0 0
    %7108 = vmatpush1.bf16.msra.mxu0 %v6203
    %7109 = vmatprep.subr.bf16.mxu0 0
    %7110 = vmatpush1.bf16.msra.mxu0 %v6204
    %7111 = vmatprep.subr.bf16.mxu0 0
    %7112 = vmatpush1.bf16.msra.mxu0 %v6205
    %7113 = vmatprep.subr.bf16.mxu0 0
    %7114 = vmatpush1.bf16.msra.mxu0 %v6206
    %7115 = vmatprep.subr.bf16.mxu0 0
    %7116 = vmatpush1.bf16.msra.mxu0 %v6207
    %7117 = vmatprep.subr.bf16.mxu0 0
    %7118 = vmatpush1.bf16.msra.mxu0 %v6208
    %7119 = vmatprep.subr.bf16.mxu0 0
    %7120 = vmatpush1.bf16.msra.mxu0 %v6209
    %7121 = vmatprep.subr.bf16.mxu0 0
    %7122 = vmatpush1.bf16.msra.mxu0 %v6210
    %7123 = vmatprep.subr.bf16.mxu0 0
    %7124 = vmatpush1.bf16.msra.mxu0 %v6211
    %7125 = vmatprep.subr.bf16.mxu0 0
    %7126 = vmatpush1.bf16.msra.mxu0 %v6212
    %7127 = vmatprep.subr.bf16.mxu0 0
    %7128 = vmatpush1.bf16.msra.mxu0 %v6213
    %7129 = vmatprep.subr.bf16.mxu0 0
    %7130 = vmatpush1.bf16.msra.mxu0 %v6214
    %7131 = vmatprep.subr.bf16.mxu0 0
    %7132 = vmatpush1.bf16.msra.mxu0 %v6215
    %7133 = vmatprep.subr.bf16.mxu0 0
    %7134 = vmatpush1.bf16.msra.mxu0 %v6216
    %7135 = vmatprep.subr.bf16.mxu0 0
    %7136 = vmatpush1.bf16.msra.mxu0 %v6217
    %7137 = vmatprep.subr.bf16.mxu0 0
    %7138 = vmatpush1.bf16.msra.mxu0 %v6218
    %7139 = vmatprep.mubr.bf16.mxu0 %v4608
    %7140 = vmatmul.mubr.bf16.gmra.mrb[0].mxu0 %v4606
    %v7141 = vpop.f32.mrb[0].mxu0
    %v7142 = vadd.f32 %v7102, %v7141
    %v7143 = vpop.f32.mrb[0].mxu0
    %v7144 = vpop.f32.mrb[0].mxu0
    %v7145 = vpop.f32.mrb[0].mxu0
    %7146 = vdwg.mxu0
    %7147 = vmatprep.subr.bf16.mxu0 0
    %7148 = vmatpush1.bf16.msra.mxu0 %v6219
    %7149 = vmatprep.subr.bf16.mxu0 0
    %7150 = vmatpush1.bf16.msra.mxu0 %v6220
    %7151 = vmatprep.subr.bf16.mxu0 0
    %7152 = vmatpush1.bf16.msra.mxu0 %v6221
    %7153 = vmatprep.subr.bf16.mxu0 0
    %7154 = vmatpush1.bf16.msra.mxu0 %v6222
    %7155 = vmatprep.subr.bf16.mxu0 0
    %7156 = vmatpush1.bf16.msra.mxu0 %v6223
    %7157 = vmatprep.subr.bf16.mxu0 0
    %7158 = vmatpush1.bf16.msra.mxu0 %v6224
    %7159 = vmatprep.subr.bf16.mxu0 0
    %7160 = vmatpush1.bf16.msra.mxu0 %v6225
    %7161 = vmatprep.subr.bf16.mxu0 0
    %7162 = vmatpush1.bf16.msra.mxu0 %v6226
    %7163 = vmatprep.subr.bf16.mxu0 0
    %7164 = vmatpush1.bf16.msra.mxu0 %v6227
    %7165 = vmatprep.subr.bf16.mxu0 0
    %7166 = vmatpush1.bf16.msra.mxu0 %v6228
    %7167 = vmatprep.subr.bf16.mxu0 0
    %7168 = vmatpush1.bf16.msra.mxu0 %v6229
    %7169 = vmatprep.subr.bf16.mxu0 0
    %7170 = vmatpush1.bf16.msra.mxu0 %v6230
    %7171 = vmatprep.subr.bf16.mxu0 0
    %7172 = vmatpush1.bf16.msra.mxu0 %v6231
    %7173 = vmatprep.subr.bf16.mxu0 0
    %7174 = vmatpush1.bf16.msra.mxu0 %v6232
    %7175 = vmatprep.subr.bf16.mxu0 0
    %7176 = vmatpush1.bf16.msra.mxu0 %v6233
    %7177 = vmatprep.subr.bf16.mxu0 0
    %7178 = vmatpush1.bf16.msra.mxu0 %v6234
    %7179 = vmatprep.mubr.bf16.mxu0 %v4646
    %7180 = vmatmul.mubr.bf16.gmra.mrb[0].mxu0 %v4632
    %v7181 = vpop.f32.mrb[0].mxu0
    %v7182 = vadd.f32 %v7142, %v7181
    %v7183 = vpop.f32.mrb[0].mxu0
    %v7184 = vpop.f32.mrb[0].mxu0
    %v7185 = vpop.f32.mrb[0].mxu0
    %7186 = vdwg.mxu0
    %7187 = vmatprep.subr.bf16.mxu0 0
    %7188 = vmatpush1.bf16.msra.mxu0 %v6235
    %7189 = vmatprep.subr.bf16.mxu0 0
    %7190 = vmatpush1.bf16.msra.mxu0 %v6236
    %7191 = vmatprep.subr.bf16.mxu0 0
    %7192 = vmatpush1.bf16.msra.mxu0 %v6237
    %7193 = vmatprep.subr.bf16.mxu0 0
    %7194 = vmatpush1.bf16.msra.mxu0 %v6238
    %7195 = vmatprep.subr.bf16.mxu0 0
    %7196 = vmatpush1.bf16.msra.mxu0 %v6239
    %7197 = vmatprep.subr.bf16.mxu0 0
    %7198 = vmatpush1.bf16.msra.mxu0 %v6240
    %7199 = vmatprep.subr.bf16.mxu0 0
    %7200 = vmatpush1.bf16.msra.mxu0 %v6241
    %7201 = vmatprep.subr.bf16.mxu0 0
    %7202 = vmatpush1.bf16.msra.mxu0 %v6242
    %7203 = vmatprep.subr.bf16.mxu0 0
    %7204 = vmatpush1.bf16.msra.mxu0 %v6243
    %7205 = vmatprep.subr.bf16.mxu0 0
    %7206 = vmatpush1.bf16.msra.mxu0 %v6244
    %7207 = vmatprep.subr.bf16.mxu0 0
    %7208 = vmatpush1.bf16.msra.mxu0 %v6245
    %7209 = vmatprep.subr.bf16.mxu0 0
    %7210 = vmatpush1.bf16.msra.mxu0 %v6246
    %7211 = vmatprep.subr.bf16.mxu0 0
    %7212 = vmatpush1.bf16.msra.mxu0 %v6247
    %7213 = vmatprep.subr.bf16.mxu0 0
    %7214 = vmatpush1.bf16.msra.mxu0 %v6248
    %7215 = vmatprep.subr.bf16.mxu0 0
    %7216 = vmatpush1.bf16.msra.mxu0 %v6249
    %7217 = vmatprep.subr.bf16.mxu0 0
    %7218 = vmatpush1.bf16.msra.mxu0 %v6250
    %7219 = vmatprep.mubr.bf16.mxu0 %v4656
    %7220 = vmatmul.mubr.bf16.gmra.mrb[0].mxu0 %v4654
    %v7221 = vpop.f32.mrb[0].mxu0
    %v7222 = vadd.f32 %v7182, %v7221
    %v7223 = vpop.f32.mrb[0].mxu0
    %v7224 = vpop.f32.mrb[0].mxu0
    %v7225 = vpop.f32.mrb[0].mxu0
    %7226 = vdwg.mxu0
    %7227 = vmatprep.subr.bf16.mxu0 0
    %7228 = vmatpush1.bf16.msra.mxu0 %v6251
    %7229 = vmatprep.subr.bf16.mxu0 0
    %7230 = vmatpush1.bf16.msra.mxu0 %v6252
    %7231 = vmatprep.subr.bf16.mxu0 0
    %7232 = vmatpush1.bf16.msra.mxu0 %v6253
    %7233 = vmatprep.subr.bf16.mxu0 0
    %7234 = vmatpush1.bf16.msra.mxu0 %v6254
    %7235 = vmatprep.subr.bf16.mxu0 0
    %7236 = vmatpush1.bf16.msra.mxu0 %v6255
    %7237 = vmatprep.subr.bf16.mxu0 0
    %7238 = vmatpush1.bf16.msra.mxu0 %v6256
    %7239 = vmatprep.subr.bf16.mxu0 0
    %7240 = vmatpush1.bf16.msra.mxu0 %v6257
    %7241 = vmatprep.subr.bf16.mxu0 0
    %7242 = vmatpush1.bf16.msra.mxu0 %v6258
    %7243 = vmatprep.subr.bf16.mxu0 0
    %7244 = vmatpush1.bf16.msra.mxu0 %v6259
    %7245 = vmatprep.subr.bf16.mxu0 0
    %7246 = vmatpush1.bf16.msra.mxu0 %v6260
    %7247 = vmatprep.subr.bf16.mxu0 0
    %7248 = vmatpush1.bf16.msra.mxu0 %v6261
    %7249 = vmatprep.subr.bf16.mxu0 0
    %7250 = vmatpush1.bf16.msra.mxu0 %v6262
    %7251 = vmatprep.subr.bf16.mxu0 0
    %7252 = vmatpush1.bf16.msra.mxu0 %v6263
    %7253 = vmatprep.subr.bf16.mxu0 0
    %7254 = vmatpush1.bf16.msra.mxu0 %v6264
    %7255 = vmatprep.subr.bf16.mxu0 0
    %7256 = vmatpush1.bf16.msra.mxu0 %v6265
    %7257 = vmatprep.subr.bf16.mxu0 0
    %7258 = vmatpush1.bf16.msra.mxu0 %v6266
    %7259 = vmatprep.mubr.bf16.mxu0 %v4653
    %7260 = vmatmul.mubr.bf16.gmra.mrb[0].mxu0 %v4639
    %v7261 = vpop.f32.mrb[0].mxu0
    %v7262 = vadd.f32 %v7222, %v7261
    %v7263 = vpop.f32.mrb[0].mxu0
    %v7264 = vpop.f32.mrb[0].mxu0
    %v7265 = vpop.f32.mrb[0].mxu0
    %7266 = vdwg.mxu0
    %7267 = vmatprep.subr.bf16.mxu0 0
    %7268 = vmatpush1.bf16.msra.mxu0 %v6267
    %7269 = vmatprep.subr.bf16.mxu0 0
    %7270 = vmatpush1.bf16.msra.mxu0 %v6268
    %7271 = vmatprep.subr.bf16.mxu0 0
    %7272 = vmatpush1.bf16.msra.mxu0 %v6269
    %7273 = vmatprep.subr.bf16.mxu0 0
    %7274 = vmatpush1.bf16.msra.mxu0 %v6270
    %7275 = vmatprep.subr.bf16.mxu0 0
    %7276 = vmatpush1.bf16.msra.mxu0 %v6271
    %7277 = vmatprep.subr.bf16.mxu0 0
    %7278 = vmatpush1.bf16.msra.mxu0 %v6272
    %7279 = vmatprep.subr.bf16.mxu0 0
    %7280 = vmatpush1.bf16.msra.mxu0 %v6273
    %7281 = vmatprep.subr.bf16.mxu0 0
    %7282 = vmatpush1.bf16.msra.mxu0 %v6274
    %7283 = vmatprep.subr.bf16.mxu0 0
    %7284 = vmatpush1.bf16.msra.mxu0 %v6275
    %7285 = vmatprep.subr.bf16.mxu0 0
    %7286 = vmatpush1.bf16.msra.mxu0 %v6276
    %7287 = vmatprep.subr.bf16.mxu0 0
    %7288 = vmatpush1.bf16.msra.mxu0 %v6277
    %7289 = vmatprep.subr.bf16.mxu0 0
    %7290 = vmatpush1.bf16.msra.mxu0 %v6278
    %7291 = vmatprep.subr.bf16.mxu0 0
    %7292 = vmatpush1.bf16.msra.mxu0 %v6279
    %7293 = vmatprep.subr.bf16.mxu0 0
    %7294 = vmatpush1.bf16.msra.mxu0 %v6280
    %7295 = vmatprep.subr.bf16.mxu0 0
    %7296 = vmatpush1.bf16.msra.mxu0 %v6281
    %7297 = vmatprep.subr.bf16.mxu0 0
    %7298 = vmatpush1.bf16.msra.mxu0 %v6282
    %7299 = vmatprep.mubr.bf16.mxu0 %v4657
    %7300 = vmatmul.mubr.bf16.gmra.mrb[0].mxu0 %v4655
    %v7301 = vpop.f32.mrb[0].mxu0
    %v7302 = vadd.f32 %v7262, %v7301
    %v7303 = vpop.f32.mrb[0].mxu0
    %v7304 = vpop.f32.mrb[0].mxu0
    %v7305 = vpop.f32.mrb[0].mxu0
    %7306 = vdwg.mxu0
    %7307 = vmatprep.subr.bf16.mxu0 0
    %7308 = vmatpush1.bf16.msra.mxu0 %v6283
    %7309 = vmatprep.subr.bf16.mxu0 0
    %7310 = vmatpush1.bf16.msra.mxu0 %v6284
    %7311 = vmatprep.subr.bf16.mxu0 0
    %7312 = vmatpush1.bf16.msra.mxu0 %v6285
    %7313 = vmatprep.subr.bf16.mxu0 0
    %7314 = vmatpush1.bf16.msra.mxu0 %v6286
    %7315 = vmatprep.subr.bf16.mxu0 0
    %7316 = vmatpush1.bf16.msra.mxu0 %v6287
    %7317 = vmatprep.subr.bf16.mxu0 0
    %7318 = vmatpush1.bf16.msra.mxu0 %v6288
    %7319 = vmatprep.subr.bf16.mxu0 0
    %7320 = vmatpush1.bf16.msra.mxu0 %v6289
    %7321 = vmatprep.subr.bf16.mxu0 0
    %7322 = vmatpush1.bf16.msra.mxu0 %v6290
    %7323 = vmatprep.subr.bf16.mxu0 0
    %7324 = vmatpush1.bf16.msra.mxu0 %v6291
    %7325 = vmatprep.subr.bf16.mxu0 0
    %7326 = vmatpush1.bf16.msra.mxu0 %v6292
    %7327 = vmatprep.subr.bf16.mxu0 0
    %7328 = vmatpush1.bf16.msra.mxu0 %v6293
    %7329 = vmatprep.subr.bf16.mxu0 0
    %7330 = vmatpush1.bf16.msra.mxu0 %v6294
    %7331 = vmatprep.subr.bf16.mxu0 0
    %7332 = vmatpush1.bf16.msra.mxu0 %v6295
    %7333 = vmatprep.subr.bf16.mxu0 0
    %7334 = vmatpush1.bf16.msra.mxu0 %v6296
    %7335 = vmatprep.subr.bf16.mxu0 0
    %7336 = vmatpush1.bf16.msra.mxu0 %v6297
    %7337 = vmatprep.subr.bf16.mxu0 0
    %7338 = vmatpush1.bf16.msra.mxu0 %v6298
    %7339 = vmatprep.mubr.bf16.mxu0 %v4695
    %7340 = vmatmul.mubr.bf16.gmra.mrb[0].mxu0 %v4681
    %v7341 = vpop.f32.mrb[0].mxu0
    %v7342 = vadd.f32 %v7302, %v7341
    %v7343 = vpop.f32.mrb[0].mxu0
    %v7344 = vpop.f32.mrb[0].mxu0
    %v7345 = vpop.f32.mrb[0].mxu0
    %7346 = vdwg.mxu0
    %7347 = vmatprep.subr.bf16.mxu0 0
    %7348 = vmatpush1.bf16.msra.mxu0 %v6299
    %7349 = vmatprep.subr.bf16.mxu0 0
    %7350 = vmatpush1.bf16.msra.mxu0 %v6300
    %7351 = vmatprep.subr.bf16.mxu0 0
    %7352 = vmatpush1.bf16.msra.mxu0 %v6301
    %7353 = vmatprep.subr.bf16.mxu0 0
    %7354 = vmatpush1.bf16.msra.mxu0 %v6302
    %7355 = vmatprep.subr.bf16.mxu0 0
    %7356 = vmatpush1.bf16.msra.mxu0 %v6303
    %7357 = vmatprep.subr.bf16.mxu0 0
    %7358 = vmatpush1.bf16.msra.mxu0 %v6304
    %7359 = vmatprep.subr.bf16.mxu0 0
    %7360 = vmatpush1.bf16.msra.mxu0 %v6305
    %7361 = vmatprep.subr.bf16.mxu0 0
    %7362 = vmatpush1.bf16.msra.mxu0 %v6306
    %7363 = vmatprep.subr.bf16.mxu0 0
    %7364 = vmatpush1.bf16.msra.mxu0 %v6307
    %7365 = vmatprep.subr.bf16.mxu0 0
    %7366 = vmatpush1.bf16.msra.mxu0 %v6308
    %7367 = vmatprep.subr.bf16.mxu0 0
    %7368 = vmatpush1.bf16.msra.mxu0 %v6309
    %7369 = vmatprep.subr.bf16.mxu0 0
    %7370 = vmatpush1.bf16.msra.mxu0 %v6310
    %7371 = vmatprep.subr.bf16.mxu0 0
    %7372 = vmatpush1.bf16.msra.mxu0 %v6311
    %7373 = vmatprep.subr.bf16.mxu0 0
    %7374 = vmatpush1.bf16.msra.mxu0 %v6312
    %7375 = vmatprep.subr.bf16.mxu0 0
    %7376 = vmatpush1.bf16.msra.mxu0 %v6313
    %7377 = vmatprep.subr.bf16.mxu0 0
    %7378 = vmatpush1.bf16.msra.mxu0 %v6314
    %7379 = vmatprep.mubr.bf16.mxu0 %v4705
    %7380 = vmatmul.mubr.bf16.gmra.mrb[0].mxu0 %v4703
    %v7381 = vpop.f32.mrb[0].mxu0
    %v7382 = vadd.f32 %v7342, %v7381
    %v7383 = vpop.f32.mrb[0].mxu0
    %v7384 = vpop.f32.mrb[0].mxu0
    %v7385 = vpop.f32.mrb[0].mxu0
    %7386 = vdwg.mxu0
    %7387 = vmatprep.subr.bf16.mxu0 0
    %7388 = vmatpush1.bf16.msra.mxu0 %v6315
    %7389 = vmatprep.subr.bf16.mxu0 0
    %7390 = vmatpush1.bf16.msra.mxu0 %v6316
    %7391 = vmatprep.subr.bf16.mxu0 0
    %7392 = vmatpush1.bf16.msra.mxu0 %v6317
    %7393 = vmatprep.subr.bf16.mxu0 0
    %7394 = vmatpush1.bf16.msra.mxu0 %v6318
    %7395 = vmatprep.subr.bf16.mxu0 0
    %7396 = vmatpush1.bf16.msra.mxu0 %v6319
    %7397 = vmatprep.subr.bf16.mxu0 0
    %7398 = vmatpush1.bf16.msra.mxu0 %v6320
    %7399 = vmatprep.subr.bf16.mxu0 0
    %7400 = vmatpush1.bf16.msra.mxu0 %v6321
    %7401 = vmatprep.subr.bf16.mxu0 0
    %7402 = vmatpush1.bf16.msra.mxu0 %v6322
    %7403 = vmatprep.subr.bf16.mxu0 0
    %7404 = vmatpush1.bf16.msra.mxu0 %v6323
    %7405 = vmatprep.subr.bf16.mxu0 0
    %7406 = vmatpush1.bf16.msra.mxu0 %v6324
    %7407 = vmatprep.subr.bf16.mxu0 0
    %7408 = vmatpush1.bf16.msra.mxu0 %v6325
    %7409 = vmatprep.subr.bf16.mxu0 0
    %7410 = vmatpush1.bf16.msra.mxu0 %v6326
    %7411 = vmatprep.subr.bf16.mxu0 0
    %7412 = vmatpush1.bf16.msra.mxu0 %v6327
    %7413 = vmatprep.subr.bf16.mxu0 0
    %7414 = vmatpush1.bf16.msra.mxu0 %v6328
    %7415 = vmatprep.subr.bf16.mxu0 0
    %7416 = vmatpush1.bf16.msra.mxu0 %v6329
    %7417 = vmatprep.subr.bf16.mxu0 0
    %7418 = vmatpush1.bf16.msra.mxu0 %v6330
    %7419 = vmatprep.mubr.bf16.mxu0 %v4702
    %7420 = vmatmul.mubr.bf16.gmra.mrb[0].mxu0 %v4688
    %v7421 = vpop.f32.mrb[0].mxu0
    %v7422 = vadd.f32 %v7382, %v7421
    %v7423 = vpop.f32.mrb[0].mxu0
    %v7424 = vpop.f32.mrb[0].mxu0
    %v7425 = vpop.f32.mrb[0].mxu0
    %7426 = vdwg.mxu0
    %7427 = vmatprep.subr.bf16.mxu0 0
    %7428 = vmatpush1.bf16.msra.mxu0 %v6331
    %7429 = vmatprep.subr.bf16.mxu0 0
    %7430 = vmatpush1.bf16.msra.mxu0 %v6332
    %7431 = vmatprep.subr.bf16.mxu0 0
    %7432 = vmatpush1.bf16.msra.mxu0 %v6333
    %7433 = vmatprep.subr.bf16.mxu0 0
    %7434 = vmatpush1.bf16.msra.mxu0 %v6334
    %7435 = vmatprep.subr.bf16.mxu0 0
    %7436 = vmatpush1.bf16.msra.mxu0 %v6335
    %7437 = vmatprep.subr.bf16.mxu0 0
    %7438 = vmatpush1.bf16.msra.mxu0 %v6336
    %7439 = vmatprep.subr.bf16.mxu0 0
    %7440 = vmatpush1.bf16.msra.mxu0 %v6337
    %7441 = vmatprep.subr.bf16.mxu0 0
    %7442 = vmatpush1.bf16.msra.mxu0 %v6338
    %7443 = vmatprep.subr.bf16.mxu0 0
    %7444 = vmatpush1.bf16.msra.mxu0 %v6339
    %7445 = vmatprep.subr.bf16.mxu0 0
    %7446 = vmatpush1.bf16.msra.mxu0 %v6340
    %7447 = vmatprep.subr.bf16.mxu0 0
    %7448 = vmatpush1.bf16.msra.mxu0 %v6341
    %7449 = vmatprep.subr.bf16.mxu0 0
    %7450 = vmatpush1.bf16.msra.mxu0 %v6342
    %7451 = vmatprep.subr.bf16.mxu0 0
    %7452 = vmatpush1.bf16.msra.mxu0 %v6343
    %7453 = vmatprep.subr.bf16.mxu0 0
    %7454 = vmatpush1.bf16.msra.mxu0 %v6344
    %7455 = vmatprep.subr.bf16.mxu0 0
    %7456 = vmatpush1.bf16.msra.mxu0 %v6345
    %7457 = vmatprep.subr.bf16.mxu0 0
    %7458 = vmatpush1.bf16.msra.mxu0 %v6346
    %7459 = vmatprep.mubr.bf16.mxu0 %v4706
    %7460 = vmatmul.mubr.bf16.gmra.mrb[0].mxu0 %v4704
    %v7461 = vpop.f32.mrb[0].mxu0
    %v7462 = vadd.f32 %v7422, %v7461
    %v7463 = vpop.f32.mrb[0].mxu0
    %v7464 = vpop.f32.mrb[0].mxu0
    %v7465 = vpop.f32.mrb[0].mxu0
    %7466 = vdwg.mxu0
    %v7467 = vmax.f32 %v7462, 0.0
    %s7468 = smul.u32 0, 2
    %s7469 = scalar_lea.vmem [#allocation6], %s7468
    %7470 = vst [vmem:[%s7469] sm:$0x3] %v7467
    %p7471 = scmp.eq.s32.totalorder 0, 0
    // Predicated region
    $region50: #{cnn_lstm_forward.1} parent=1 // pred_check
      %p7472 = pneg %p7471
    $region51: #{cnn_lstm_forward.1} parent=1 // pred_check_branch
      %7474 = sbr.rel (%p7472) target = $region53
    $region52: #{cnn_lstm_forward.1} parent=1 // pred_region
      %v7475 = vld [vmem:[#allocation6] sm:$0x3]
      %v7476 = vld [vmem:[%s9] sm:$0xff]
      %v7477 = vld [vmem:[%s9 + $0x8] sm:$0xff]
      %v7478 = vld [vmem:[%s9 + $0x10] sm:$0xff]
      %v7479 = vld [vmem:[%s9 + $0x18] sm:$0xff]
      %v7480 = vld [vmem:[%s9 + $0x20] sm:$0xff]
      %v7481 = vld [vmem:[%s9 + $0x28] sm:$0xff]
      %v7482 = vld [vmem:[%s9 + $0x30] sm:$0xff]
      %v7483 = vld [vmem:[%s9 + $0x38] sm:$0xff]
      %v7484 = vld [vmem:[%s9 + $0x40] sm:$0xff]
      %v7485 = vld [vmem:[%s9 + $0x48] sm:$0xff]
      %v7486 = vld [vmem:[%s9 + $0x50] sm:$0xff]
      %v7487 = vld [vmem:[%s9 + $0x58] sm:$0xff]
      %v7488 = vld [vmem:[%s9 + $0x60] sm:$0xff]
      %v7489 = vld [vmem:[%s9 + $0x68] sm:$0xff]
      %v7490 = vld [vmem:[%s9 + $0x70] sm:$0xff]
      %v7491 = vld [vmem:[%s9 + $0x78] sm:$0xff]
      %v7492 = vld [vmem:[%s9 + $0x80] sm:$0xff]
      %v7493 = vld [vmem:[%s9 + $0x88] sm:$0xff]
      %v7494 = vld [vmem:[%s9 + $0x90] sm:$0xff]
      %v7495 = vld [vmem:[%s9 + $0x98] sm:$0xff]
      %v7496 = vld [vmem:[%s9 + $0xa0] sm:$0xff]
      %v7497 = vld [vmem:[%s9 + $0xa8] sm:$0xff]
      %v7498 = vld [vmem:[%s9 + $0xb0] sm:$0xff]
      %v7499 = vld [vmem:[%s9 + $0xb8] sm:$0xff]
      %v7500 = vld [vmem:[%s9 + $0xc0] sm:$0xff]
      %v7501 = vld [vmem:[%s9 + $0xc8] sm:$0xff]
      %v7502 = vld [vmem:[%s9 + $0xd0] sm:$0xff]
      %v7503 = vld [vmem:[%s9 + $0xd8] sm:$0xff]
      %v7504 = vld [vmem:[%s9 + $0xe0] sm:$0xff]
      %v7505 = vld [vmem:[%s9 + $0xe8] sm:$0xff]
      %v7506 = vld [vmem:[%s9 + $0xf0] sm:$0xff]
      %v7507 = vld [vmem:[%s9 + $0xf8] sm:$0xff]
      %v7508 = vld [vmem:[%s9 + $0x100] sm:$0xff]
      %v7509 = vld [vmem:[%s9 + $0x108] sm:$0xff]
      %v7510 = vld [vmem:[%s9 + $0x110] sm:$0xff]
      %v7511 = vld [vmem:[%s9 + $0x118] sm:$0xff]
      %v7512 = vld [vmem:[%s9 + $0x120] sm:$0xff]
      %v7513 = vld [vmem:[%s9 + $0x128] sm:$0xff]
      %v7514 = vld [vmem:[%s9 + $0x130] sm:$0xff]
      %v7515 = vld [vmem:[%s9 + $0x138] sm:$0xff]
      %v7516 = vld [vmem:[%s9 + $0x140] sm:$0xff]
      %v7517 = vld [vmem:[%s9 + $0x148] sm:$0xff]
      %v7518 = vld [vmem:[%s9 + $0x150] sm:$0xff]
      %v7519 = vld [vmem:[%s9 + $0x158] sm:$0xff]
      %v7520 = vld [vmem:[%s9 + $0x160] sm:$0xff]
      %v7521 = vld [vmem:[%s9 + $0x168] sm:$0xff]
      %v7522 = vld [vmem:[%s9 + $0x170] sm:$0xff]
      %v7523 = vld [vmem:[%s9 + $0x178] sm:$0xff]
      %v7524 = vld [vmem:[%s9 + $0x180] sm:$0xff]
      %v7525 = vld [vmem:[%s9 + $0x188] sm:$0xff]
      %v7526 = vld [vmem:[%s9 + $0x190] sm:$0xff]
      %v7527 = vld [vmem:[%s9 + $0x198] sm:$0xff]
      %v7528 = vld [vmem:[%s9 + $0x1a0] sm:$0xff]
      %v7529 = vld [vmem:[%s9 + $0x1a8] sm:$0xff]
      %v7530 = vld [vmem:[%s9 + $0x1b0] sm:$0xff]
      %v7531 = vld [vmem:[%s9 + $0x1b8] sm:$0xff]
      %v7532 = vld [vmem:[%s9 + $0x1c0] sm:$0xff]
      %v7533 = vld [vmem:[%s9 + $0x1c8] sm:$0xff]
      %v7534 = vld [vmem:[%s9 + $0x1d0] sm:$0xff]
      %v7535 = vld [vmem:[%s9 + $0x1d8] sm:$0xff]
      %v7536 = vld [vmem:[%s9 + $0x1e0] sm:$0xff]
      %v7537 = vld [vmem:[%s9 + $0x1e8] sm:$0xff]
      %v7538 = vld [vmem:[%s9 + $0x1f0] sm:$0xff]
      %v7539 = vld [vmem:[%s9 + $0x1f8] sm:$0xff]
      %v7540 = vld [vmem:[%s11] sm:$0xf]
      %v7542 = vlaneseq
      %v7543 = vshrl.u32 %v7542, 7
      %v7544 = vsub.s32 0, %v7543
      %v7545 = vrot.slane %v7540, %v7544
      %v7546 = vlaneseq
      %v7547 = vshrl.u32 %v7546, 7
      %v7548 = vsub.s32 1, %v7547
      %v7549 = vrot.slane %v7540, %v7548
      %v7550 = vlaneseq
      %v7551 = vshrl.u32 %v7550, 7
      %v7552 = vsub.s32 2, %v7551
      %v7553 = vrot.slane %v7540, %v7552
      %v7554 = vlaneseq
      %v7555 = vshrl.u32 %v7554, 7
      %v7556 = vsub.s32 3, %v7555
      %v7557 = vrot.slane %v7540, %v7556
      %7562 = vmatprep.subr.mxu0 %v7477
      %7563 = vmatpush1.msra.mxu0 %v7476
      %7564 = vmatprep.subr.mxu0 %v7481
      %7565 = vmatpush1.msra.mxu0 %v7480
      %7566 = vmatprep.subr.mxu0 %v7485
      %7567 = vmatpush1.msra.mxu0 %v7484
      %7568 = vmatprep.subr.mxu0 %v7489
      %7569 = vmatpush1.msra.mxu0 %v7488
      %7570 = vmatprep.subr.mxu0 %v7493
      %7571 = vmatpush1.msra.mxu0 %v7492
      %7572 = vmatprep.subr.mxu0 %v7497
      %7573 = vmatpush1.msra.mxu0 %v7496
      %7574 = vmatprep.subr.mxu0 %v7501
      %7575 = vmatpush1.msra.mxu0 %v7500
      %7576 = vmatprep.subr.mxu0 %v7505
      %7577 = vmatpush1.msra.mxu0 %v7504
      %7578 = vmatprep.subr.mxu0 %v7509
      %7579 = vmatpush1.msra.mxu0 %v7508
      %7580 = vmatprep.subr.mxu0 %v7513
      %7581 = vmatpush1.msra.mxu0 %v7512
      %7582 = vmatprep.subr.mxu0 %v7517
      %7583 = vmatpush1.msra.mxu0 %v7516
      %7584 = vmatprep.subr.mxu0 %v7521
      %7585 = vmatpush1.msra.mxu0 %v7520
      %7586 = vmatprep.subr.mxu0 %v7525
      %7587 = vmatpush1.msra.mxu0 %v7524
      %7588 = vmatprep.subr.mxu0 %v7529
      %7589 = vmatpush1.msra.mxu0 %v7528
      %7590 = vmatprep.subr.mxu0 %v7533
      %7591 = vmatpush1.msra.mxu0 %v7532
      %7592 = vmatprep.subr.mxu0 %v7537
      %7593 = vmatpush1.msra.mxu0 %v7536
      %7594 = vmatprep.subr.mxu0 0.0
      %7595 = vmatpush1.msra.mxu0 0.0
      %7596 = vmatprep.subr.mxu0 0.0
      %7597 = vmatpush1.msra.mxu0 0.0
      %7598 = vmatprep.subr.mxu0 0.0
      %7599 = vmatpush1.msra.mxu0 0.0
      %7600 = vmatprep.subr.mxu0 0.0
      %7601 = vmatpush1.msra.mxu0 0.0
      %7602 = vmatprep.subr.mxu0 0.0
      %7603 = vmatpush1.msra.mxu0 0.0
      %7604 = vmatprep.subr.mxu0 0.0
      %7605 = vmatpush1.msra.mxu0 0.0
      %7606 = vmatprep.subr.mxu0 0.0
      %7607 = vmatpush1.msra.mxu0 0.0
      %7608 = vmatprep.subr.mxu0 0.0
      %7609 = vmatpush1.msra.mxu0 0.0
      %7610 = vmatprep.subr.mxu0 0.0
      %7611 = vmatpush1.msra.mxu0 0.0
      %7612 = vmatprep.subr.mxu0 0.0
      %7613 = vmatpush1.msra.mxu0 0.0
      %7614 = vmatprep.subr.mxu0 0.0
      %7615 = vmatpush1.msra.mxu0 0.0
      %7616 = vmatprep.subr.mxu0 0.0
      %7617 = vmatpush1.msra.mxu0 0.0
      %7618 = vmatprep.subr.mxu0 0.0
      %7619 = vmatpush1.msra.mxu0 0.0
      %7620 = vmatprep.subr.mxu0 0.0
      %7621 = vmatpush1.msra.mxu0 0.0
      %7622 = vmatprep.subr.mxu0 0.0
      %7623 = vmatpush1.msra.mxu0 0.0
      %7624 = vmatprep.subr.mxu0 0.0
      %7625 = vmatpush1.msra.mxu0 0.0
      %7626 = vmatprep.mubr.f32.mxu0 0.0
      %7627 = vmatmul.mubr.f32.gmra.mrb[0].mxu0 %v7475
      %v7628 = vpop.f32.mrb[0].mxu0
      %v7629 = vadd.f32 %v7545, %v7628
      %v7630 = vpop.f32.mrb[0].mxu0
      %v7631 = vadd.f32 %v7549, %v7630
      %7632 = vdwg.mxu0
      %7633 = vmatprep.subr.mxu0 %v7479
      %7634 = vmatpush1.msra.mxu0 %v7478
      %7635 = vmatprep.subr.mxu0 %v7483
      %7636 = vmatpush1.msra.mxu0 %v7482
      %7637 = vmatprep.subr.mxu0 %v7487
      %7638 = vmatpush1.msra.mxu0 %v7486
      %7639 = vmatprep.subr.mxu0 %v7491
      %7640 = vmatpush1.msra.mxu0 %v7490
      %7641 = vmatprep.subr.mxu0 %v7495
      %7642 = vmatpush1.msra.mxu0 %v7494
      %7643 = vmatprep.subr.mxu0 %v7499
      %7644 = vmatpush1.msra.mxu0 %v7498
      %7645 = vmatprep.subr.mxu0 %v7503
      %7646 = vmatpush1.msra.mxu0 %v7502
      %7647 = vmatprep.subr.mxu0 %v7507
      %7648 = vmatpush1.msra.mxu0 %v7506
      %7649 = vmatprep.subr.mxu0 %v7511
      %7650 = vmatpush1.msra.mxu0 %v7510
      %7651 = vmatprep.subr.mxu0 %v7515
      %7652 = vmatpush1.msra.mxu0 %v7514
      %7653 = vmatprep.subr.mxu0 %v7519
      %7654 = vmatpush1.msra.mxu0 %v7518
      %7655 = vmatprep.subr.mxu0 %v7523
      %7656 = vmatpush1.msra.mxu0 %v7522
      %7657 = vmatprep.subr.mxu0 %v7527
      %7658 = vmatpush1.msra.mxu0 %v7526
      %7659 = vmatprep.subr.mxu0 %v7531
      %7660 = vmatpush1.msra.mxu0 %v7530
      %7661 = vmatprep.subr.mxu0 %v7535
      %7662 = vmatpush1.msra.mxu0 %v7534
      %7663 = vmatprep.subr.mxu0 %v7539
      %7664 = vmatpush1.msra.mxu0 %v7538
      %7665 = vmatprep.subr.mxu0 0.0
      %7666 = vmatpush1.msra.mxu0 0.0
      %7667 = vmatprep.subr.mxu0 0.0
      %7668 = vmatpush1.msra.mxu0 0.0
      %7669 = vmatprep.subr.mxu0 0.0
      %7670 = vmatpush1.msra.mxu0 0.0
      %7671 = vmatprep.subr.mxu0 0.0
      %7672 = vmatpush1.msra.mxu0 0.0
      %7673 = vmatprep.subr.mxu0 0.0
      %7674 = vmatpush1.msra.mxu0 0.0
      %7675 = vmatprep.subr.mxu0 0.0
      %7676 = vmatpush1.msra.mxu0 0.0
      %7677 = vmatprep.subr.mxu0 0.0
      %7678 = vmatpush1.msra.mxu0 0.0
      %7679 = vmatprep.subr.mxu0 0.0
      %7680 = vmatpush1.msra.mxu0 0.0
      %7681 = vmatprep.subr.mxu0 0.0
      %7682 = vmatpush1.msra.mxu0 0.0
      %7683 = vmatprep.subr.mxu0 0.0
      %7684 = vmatpush1.msra.mxu0 0.0
      %7685 = vmatprep.subr.mxu0 0.0
      %7686 = vmatpush1.msra.mxu0 0.0
      %7687 = vmatprep.subr.mxu0 0.0
      %7688 = vmatpush1.msra.mxu0 0.0
      %7689 = vmatprep.subr.mxu0 0.0
      %7690 = vmatpush1.msra.mxu0 0.0
      %7691 = vmatprep.subr.mxu0 0.0
      %7692 = vmatpush1.msra.mxu0 0.0
      %7693 = vmatprep.subr.mxu0 0.0
      %7694 = vmatpush1.msra.mxu0 0.0
      %7695 = vmatprep.subr.mxu0 0.0
      %7696 = vmatpush1.msra.mxu0 0.0
      %7697 = vmatprep.mubr.f32.mxu0 0.0
      %7698 = vmatmul.mubr.f32.gmra.mrb[0].mxu0 %v7475
      %v7699 = vpop.f32.mrb[0].mxu0
      %v7700 = vadd.f32 %v7553, %v7699
      %v7701 = vpop.f32.mrb[0].mxu0
      %v7702 = vadd.f32 %v7557, %v7701
      %7703 = vdwg.mxu0
      %v7704 = vld [vmem:[%s10] sm:$0xff]
      %v7705 = vld [vmem:[%s10 + $0x8] sm:$0xff]
      %v7706 = vld [vmem:[%s10 + $0x10] sm:$0xff]
      %v7707 = vld [vmem:[%s10 + $0x18] sm:$0xff]
      %v7708 = vld [vmem:[%s10 + $0x20] sm:$0xff]
      %v7709 = vld [vmem:[%s10 + $0x28] sm:$0xff]
      %v7710 = vld [vmem:[%s10 + $0x30] sm:$0xff]
      %v7711 = vld [vmem:[%s10 + $0x38] sm:$0xff]
      %v7712 = vld [vmem:[%s10 + $0x40] sm:$0xff]
      %v7713 = vld [vmem:[%s10 + $0x48] sm:$0xff]
      %v7714 = vld [vmem:[%s10 + $0x50] sm:$0xff]
      %v7715 = vld [vmem:[%s10 + $0x58] sm:$0xff]
      %v7716 = vld [vmem:[%s10 + $0x60] sm:$0xff]
      %v7717 = vld [vmem:[%s10 + $0x68] sm:$0xff]
      %v7718 = vld [vmem:[%s10 + $0x70] sm:$0xff]
      %v7719 = vld [vmem:[%s10 + $0x78] sm:$0xff]
      %v7720 = vld [vmem:[%s10 + $0x80] sm:$0xff]
      %v7721 = vld [vmem:[%s10 + $0x88] sm:$0xff]
      %v7722 = vld [vmem:[%s10 + $0x90] sm:$0xff]
      %v7723 = vld [vmem:[%s10 + $0x98] sm:$0xff]
      %v7724 = vld [vmem:[%s10 + $0xa0] sm:$0xff]
      %v7725 = vld [vmem:[%s10 + $0xa8] sm:$0xff]
      %v7726 = vld [vmem:[%s10 + $0xb0] sm:$0xff]
      %v7727 = vld [vmem:[%s10 + $0xb8] sm:$0xff]
      %v7728 = vld [vmem:[%s10 + $0xc0] sm:$0xff]
      %v7729 = vld [vmem:[%s10 + $0xc8] sm:$0xff]
      %v7730 = vld [vmem:[%s10 + $0xd0] sm:$0xff]
      %v7731 = vld [vmem:[%s10 + $0xd8] sm:$0xff]
      %v7732 = vld [vmem:[%s10 + $0xe0] sm:$0xff]
      %v7733 = vld [vmem:[%s10 + $0xe8] sm:$0xff]
      %v7734 = vld [vmem:[%s10 + $0xf0] sm:$0xff]
      %v7735 = vld [vmem:[%s10 + $0xf8] sm:$0xff]
      %v7736 = vld [vmem:[%s10 + $0x100] sm:$0xff]
      %v7737 = vld [vmem:[%s10 + $0x108] sm:$0xff]
      %v7738 = vld [vmem:[%s10 + $0x110] sm:$0xff]
      %v7739 = vld [vmem:[%s10 + $0x118] sm:$0xff]
      %v7740 = vld [vmem:[%s10 + $0x120] sm:$0xff]
      %v7741 = vld [vmem:[%s10 + $0x128] sm:$0xff]
      %v7742 = vld [vmem:[%s10 + $0x130] sm:$0xff]
      %v7743 = vld [vmem:[%s10 + $0x138] sm:$0xff]
      %v7744 = vld [vmem:[%s10 + $0x140] sm:$0xff]
      %v7745 = vld [vmem:[%s10 + $0x148] sm:$0xff]
      %v7746 = vld [vmem:[%s10 + $0x150] sm:$0xff]
      %v7747 = vld [vmem:[%s10 + $0x158] sm:$0xff]
      %v7748 = vld [vmem:[%s10 + $0x160] sm:$0xff]
      %v7749 = vld [vmem:[%s10 + $0x168] sm:$0xff]
      %v7750 = vld [vmem:[%s10 + $0x170] sm:$0xff]
      %v7751 = vld [vmem:[%s10 + $0x178] sm:$0xff]
      %v7752 = vld [vmem:[%s10 + $0x180] sm:$0xff]
      %v7753 = vld [vmem:[%s10 + $0x188] sm:$0xff]
      %v7754 = vld [vmem:[%s10 + $0x190] sm:$0xff]
      %v7755 = vld [vmem:[%s10 + $0x198] sm:$0xff]
      %v7756 = vld [vmem:[%s10 + $0x1a0] sm:$0xff]
      %v7757 = vld [vmem:[%s10 + $0x1a8] sm:$0xff]
      %v7758 = vld [vmem:[%s10 + $0x1b0] sm:$0xff]
      %v7759 = vld [vmem:[%s10 + $0x1b8] sm:$0xff]
      %v7760 = vld [vmem:[%s10 + $0x1c0] sm:$0xff]
      %v7761 = vld [vmem:[%s10 + $0x1c8] sm:$0xff]
      %v7762 = vld [vmem:[%s10 + $0x1d0] sm:$0xff]
      %v7763 = vld [vmem:[%s10 + $0x1d8] sm:$0xff]
      %v7764 = vld [vmem:[%s10 + $0x1e0] sm:$0xff]
      %v7765 = vld [vmem:[%s10 + $0x1e8] sm:$0xff]
      %v7766 = vld [vmem:[%s10 + $0x1f0] sm:$0xff]
      %v7767 = vld [vmem:[%s10 + $0x1f8] sm:$0xff]
      %7768 = vmatprep.subr.mxu0 %v7705
      %7769 = vmatpush1.msra.mxu0 %v7704
      %7770 = vmatprep.subr.mxu0 %v7709
      %7771 = vmatpush1.msra.mxu0 %v7708
      %7772 = vmatprep.subr.mxu0 %v7713
      %7773 = vmatpush1.msra.mxu0 %v7712
      %7774 = vmatprep.subr.mxu0 %v7717
      %7775 = vmatpush1.msra.mxu0 %v7716
      %7776 = vmatprep.subr.mxu0 %v7721
      %7777 = vmatpush1.msra.mxu0 %v7720
      %7778 = vmatprep.subr.mxu0 %v7725
      %7779 = vmatpush1.msra.mxu0 %v7724
      %7780 = vmatprep.subr.mxu0 %v7729
      %7781 = vmatpush1.msra.mxu0 %v7728
      %7782 = vmatprep.subr.mxu0 %v7733
      %7783 = vmatpush1.msra.mxu0 %v7732
      %7784 = vmatprep.subr.mxu0 %v7737
      %7785 = vmatpush1.msra.mxu0 %v7736
      %7786 = vmatprep.subr.mxu0 %v7741
      %7787 = vmatpush1.msra.mxu0 %v7740
      %7788 = vmatprep.subr.mxu0 %v7745
      %7789 = vmatpush1.msra.mxu0 %v7744
      %7790 = vmatprep.subr.mxu0 %v7749
      %7791 = vmatpush1.msra.mxu0 %v7748
      %7792 = vmatprep.subr.mxu0 %v7753
      %7793 = vmatpush1.msra.mxu0 %v7752
      %7794 = vmatprep.subr.mxu0 %v7757
      %7795 = vmatpush1.msra.mxu0 %v7756
      %7796 = vmatprep.subr.mxu0 %v7761
      %7797 = vmatpush1.msra.mxu0 %v7760
      %7798 = vmatprep.subr.mxu0 %v7765
      %7799 = vmatpush1.msra.mxu0 %v7764
      %7800 = vmatprep.subr.mxu0 0.0
      %7801 = vmatpush1.msra.mxu0 0.0
      %7802 = vmatprep.subr.mxu0 0.0
      %7803 = vmatpush1.msra.mxu0 0.0
      %7804 = vmatprep.subr.mxu0 0.0
      %7805 = vmatpush1.msra.mxu0 0.0
      %7806 = vmatprep.subr.mxu0 0.0
      %7807 = vmatpush1.msra.mxu0 0.0
      %7808 = vmatprep.subr.mxu0 0.0
      %7809 = vmatpush1.msra.mxu0 0.0
      %7810 = vmatprep.subr.mxu0 0.0
      %7811 = vmatpush1.msra.mxu0 0.0
      %7812 = vmatprep.subr.mxu0 0.0
      %7813 = vmatpush1.msra.mxu0 0.0
      %7814 = vmatprep.subr.mxu0 0.0
      %7815 = vmatpush1.msra.mxu0 0.0
      %7816 = vmatprep.subr.mxu0 0.0
      %7817 = vmatpush1.msra.mxu0 0.0
      %7818 = vmatprep.subr.mxu0 0.0
      %7819 = vmatpush1.msra.mxu0 0.0
      %7820 = vmatprep.subr.mxu0 0.0
      %7821 = vmatpush1.msra.mxu0 0.0
      %7822 = vmatprep.subr.mxu0 0.0
      %7823 = vmatpush1.msra.mxu0 0.0
      %7824 = vmatprep.subr.mxu0 0.0
      %7825 = vmatpush1.msra.mxu0 0.0
      %7826 = vmatprep.subr.mxu0 0.0
      %7827 = vmatpush1.msra.mxu0 0.0
      %7828 = vmatprep.subr.mxu0 0.0
      %7829 = vmatpush1.msra.mxu0 0.0
      %7830 = vmatprep.subr.mxu0 0.0
      %7831 = vmatpush1.msra.mxu0 0.0
      %7832 = vmatprep.mubr.f32.mxu0 0.0
      %7833 = vmatmul.mubr.f32.gmra.mrb[0].mxu0 0.0
      %v7834 = vpop.f32.mrb[0].mxu0
      %v7835 = vadd.f32 0.0, %v7834
      %v7836 = vpop.f32.mrb[0].mxu0
      %v7837 = vadd.f32 0.0, %v7836
      %7838 = vdwg.mxu0
      %7839 = vmatprep.subr.mxu0 %v7707
      %7840 = vmatpush1.msra.mxu0 %v7706
      %7841 = vmatprep.subr.mxu0 %v7711
      %7842 = vmatpush1.msra.mxu0 %v7710
      %7843 = vmatprep.subr.mxu0 %v7715
      %7844 = vmatpush1.msra.mxu0 %v7714
      %7845 = vmatprep.subr.mxu0 %v7719
      %7846 = vmatpush1.msra.mxu0 %v7718
      %7847 = vmatprep.subr.mxu0 %v7723
      %7848 = vmatpush1.msra.mxu0 %v7722
      %7849 = vmatprep.subr.mxu0 %v7727
      %7850 = vmatpush1.msra.mxu0 %v7726
      %7851 = vmatprep.subr.mxu0 %v7731
      %7852 = vmatpush1.msra.mxu0 %v7730
      %7853 = vmatprep.subr.mxu0 %v7735
      %7854 = vmatpush1.msra.mxu0 %v7734
      %7855 = vmatprep.subr.mxu0 %v7739
      %7856 = vmatpush1.msra.mxu0 %v7738
      %7857 = vmatprep.subr.mxu0 %v7743
      %7858 = vmatpush1.msra.mxu0 %v7742
      %7859 = vmatprep.subr.mxu0 %v7747
      %7860 = vmatpush1.msra.mxu0 %v7746
      %7861 = vmatprep.subr.mxu0 %v7751
      %7862 = vmatpush1.msra.mxu0 %v7750
      %7863 = vmatprep.subr.mxu0 %v7755
      %7864 = vmatpush1.msra.mxu0 %v7754
      %7865 = vmatprep.subr.mxu0 %v7759
      %7866 = vmatpush1.msra.mxu0 %v7758
      %7867 = vmatprep.subr.mxu0 %v7763
      %7868 = vmatpush1.msra.mxu0 %v7762
      %7869 = vmatprep.subr.mxu0 %v7767
      %7870 = vmatpush1.msra.mxu0 %v7766
      %7871 = vmatprep.subr.mxu0 0.0
      %7872 = vmatpush1.msra.mxu0 0.0
      %7873 = vmatprep.subr.mxu0 0.0
      %7874 = vmatpush1.msra.mxu0 0.0
      %7875 = vmatprep.subr.mxu0 0.0
      %7876 = vmatpush1.msra.mxu0 0.0
      %7877 = vmatprep.subr.mxu0 0.0
      %7878 = vmatpush1.msra.mxu0 0.0
      %7879 = vmatprep.subr.mxu0 0.0
      %7880 = vmatpush1.msra.mxu0 0.0
      %7881 = vmatprep.subr.mxu0 0.0
      %7882 = vmatpush1.msra.mxu0 0.0
      %7883 = vmatprep.subr.mxu0 0.0
      %7884 = vmatpush1.msra.mxu0 0.0
      %7885 = vmatprep.subr.mxu0 0.0
      %7886 = vmatpush1.msra.mxu0 0.0
      %7887 = vmatprep.subr.mxu0 0.0
      %7888 = vmatpush1.msra.mxu0 0.0
      %7889 = vmatprep.subr.mxu0 0.0
      %7890 = vmatpush1.msra.mxu0 0.0
      %7891 = vmatprep.subr.mxu0 0.0
      %7892 = vmatpush1.msra.mxu0 0.0
      %7893 = vmatprep.subr.mxu0 0.0
      %7894 = vmatpush1.msra.mxu0 0.0
      %7895 = vmatprep.subr.mxu0 0.0
      %7896 = vmatpush1.msra.mxu0 0.0
      %7897 = vmatprep.subr.mxu0 0.0
      %7898 = vmatpush1.msra.mxu0 0.0
      %7899 = vmatprep.subr.mxu0 0.0
      %7900 = vmatpush1.msra.mxu0 0.0
      %7901 = vmatprep.subr.mxu0 0.0
      %7902 = vmatpush1.msra.mxu0 0.0
      %7903 = vmatprep.mubr.f32.mxu0 0.0
      %7904 = vmatmul.mubr.f32.gmra.mrb[0].mxu0 0.0
      %v7905 = vpop.f32.mrb[0].mxu0
      %v7906 = vadd.f32 0.0, %v7905
      %v7907 = vpop.f32.mrb[0].mxu0
      %v7908 = vadd.f32 0.0, %v7907
      %7909 = vdwg.mxu0
      %v7910 = vadd.f32 %v7629, %v7835
      %v7911 = vadd.f32 %v7631, %v7837
      %v7912 = vadd.f32 %v7700, %v7906
      %v7913 = vadd.f32 %v7702, %v7908
      %v7914 = vxor.u32 %v7910, 2147483648
      %v7915 = vmul.f32 %v7914, 1.442695
      %v7916 = vpow.pop %v7915
      %v7917 = vadd.f32 %v7916, 1.0
      %v7918 = vrcp.pop %v7917
      %v7919 = vmul.f32 1.0, %v7918
      %v7920 = vxor.u32 %v7911, 2147483648
      %v7921 = vmul.f32 %v7920, 1.442695
      %v7922 = vpow.pop %v7921
      %v7923 = vadd.f32 %v7922, 1.0
      %v7924 = vrcp.pop %v7923
      %v7925 = vmul.f32 1.0, %v7924
      %v7926 = vtanh.pop %v7912
      %v7927 = vxor.u32 %v7913, 2147483648
      %v7928 = vmul.f32 %v7927, 1.442695
      %v7929 = vpow.pop %v7928
      %v7930 = vadd.f32 %v7929, 1.0
      %v7931 = vrcp.pop %v7930
      %v7932 = vmul.f32 1.0, %v7931
      %v7933 = vmul.f32 %v7925, 0.0
      %v7934 = vmul.f32 %v7919, %v7926
      %v7935 = vadd.f32 %v7933, %v7934
      %v7936 = vtanh.pop %v7935
      %v7937 = vmul.f32 %v7932, %v7936
      %7938 = vst [vmem:[#allocation7] sm:$0x1] %v7937
      %v7939 = vld [vmem:[%s10] sm:$0xff]
      %v7940 = vld [vmem:[%s10 + $0x8] sm:$0xff]
      %v7941 = vld [vmem:[%s10 + $0x10] sm:$0xff]
      %v7942 = vld [vmem:[%s10 + $0x18] sm:$0xff]
      %v7943 = vld [vmem:[%s10 + $0x20] sm:$0xff]
      %v7944 = vld [vmem:[%s10 + $0x28] sm:$0xff]
      %v7945 = vld [vmem:[%s10 + $0x30] sm:$0xff]
      %v7946 = vld [vmem:[%s10 + $0x38] sm:$0xff]
      %v7947 = vld [vmem:[%s10 + $0x40] sm:$0xff]
      %v7948 = vld [vmem:[%s10 + $0x48] sm:$0xff]
      %v7949 = vld [vmem:[%s10 + $0x50] sm:$0xff]
      %v7950 = vld [vmem:[%s10 + $0x58] sm:$0xff]
      %v7951 = vld [vmem:[%s10 + $0x60] sm:$0xff]
      %v7952 = vld [vmem:[%s10 + $0x68] sm:$0xff]
      %v7953 = vld [vmem:[%s10 + $0x70] sm:$0xff]
      %v7954 = vld [vmem:[%s10 + $0x78] sm:$0xff]
      %v7955 = vld [vmem:[%s10 + $0x80] sm:$0xff]
      %v7956 = vld [vmem:[%s10 + $0x88] sm:$0xff]
      %v7957 = vld [vmem:[%s10 + $0x90] sm:$0xff]
      %v7958 = vld [vmem:[%s10 + $0x98] sm:$0xff]
      %v7959 = vld [vmem:[%s10 + $0xa0] sm:$0xff]
      %v7960 = vld [vmem:[%s10 + $0xa8] sm:$0xff]
      %v7961 = vld [vmem:[%s10 + $0xb0] sm:$0xff]
      %v7962 = vld [vmem:[%s10 + $0xb8] sm:$0xff]
      %v7963 = vld [vmem:[%s10 + $0xc0] sm:$0xff]
      %v7964 = vld [vmem:[%s10 + $0xc8] sm:$0xff]
      %v7965 = vld [vmem:[%s10 + $0xd0] sm:$0xff]
      %v7966 = vld [vmem:[%s10 + $0xd8] sm:$0xff]
      %v7967 = vld [vmem:[%s10 + $0xe0] sm:$0xff]
      %v7968 = vld [vmem:[%s10 + $0xe8] sm:$0xff]
      %v7969 = vld [vmem:[%s10 + $0xf0] sm:$0xff]
      %v7970 = vld [vmem:[%s10 + $0xf8] sm:$0xff]
      %v7971 = vld [vmem:[%s10 + $0x100] sm:$0xff]
      %v7972 = vld [vmem:[%s10 + $0x108] sm:$0xff]
      %v7973 = vld [vmem:[%s10 + $0x110] sm:$0xff]
      %v7974 = vld [vmem:[%s10 + $0x118] sm:$0xff]
      %v7975 = vld [vmem:[%s10 + $0x120] sm:$0xff]
      %v7976 = vld [vmem:[%s10 + $0x128] sm:$0xff]
      %v7977 = vld [vmem:[%s10 + $0x130] sm:$0xff]
      %v7978 = vld [vmem:[%s10 + $0x138] sm:$0xff]
      %v7979 = vld [vmem:[%s10 + $0x140] sm:$0xff]
      %v7980 = vld [vmem:[%s10 + $0x148] sm:$0xff]
      %v7981 = vld [vmem:[%s10 + $0x150] sm:$0xff]
      %v7982 = vld [vmem:[%s10 + $0x158] sm:$0xff]
      %v7983 = vld [vmem:[%s10 + $0x160] sm:$0xff]
      %v7984 = vld [vmem:[%s10 + $0x168] sm:$0xff]
      %v7985 = vld [vmem:[%s10 + $0x170] sm:$0xff]
      %v7986 = vld [vmem:[%s10 + $0x178] sm:$0xff]
      %v7987 = vld [vmem:[%s10 + $0x180] sm:$0xff]
      %v7988 = vld [vmem:[%s10 + $0x188] sm:$0xff]
      %v7989 = vld [vmem:[%s10 + $0x190] sm:$0xff]
      %v7990 = vld [vmem:[%s10 + $0x198] sm:$0xff]
      %v7991 = vld [vmem:[%s10 + $0x1a0] sm:$0xff]
      %v7992 = vld [vmem:[%s10 + $0x1a8] sm:$0xff]
      %v7993 = vld [vmem:[%s10 + $0x1b0] sm:$0xff]
      %v7994 = vld [vmem:[%s10 + $0x1b8] sm:$0xff]
      %v7995 = vld [vmem:[%s10 + $0x1c0] sm:$0xff]
      %v7996 = vld [vmem:[%s10 + $0x1c8] sm:$0xff]
      %v7997 = vld [vmem:[%s10 + $0x1d0] sm:$0xff]
      %v7998 = vld [vmem:[%s10 + $0x1d8] sm:$0xff]
      %v7999 = vld [vmem:[%s10 + $0x1e0] sm:$0xff]
      %v8000 = vld [vmem:[%s10 + $0x1e8] sm:$0xff]
      %v8001 = vld [vmem:[%s10 + $0x1f0] sm:$0xff]
      %v8002 = vld [vmem:[%s10 + $0x1f8] sm:$0xff]
      %8003 = vmatprep.subr.mxu0 %v7940
      %8004 = vmatpush1.msra.mxu0 %v7939
      %8005 = vmatprep.subr.mxu0 %v7944
      %8006 = vmatpush1.msra.mxu0 %v7943
      %8007 = vmatprep.subr.mxu0 %v7948
      %8008 = vmatpush1.msra.mxu0 %v7947
      %8009 = vmatprep.subr.mxu0 %v7952
      %8010 = vmatpush1.msra.mxu0 %v7951
      %8011 = vmatprep.subr.mxu0 %v7956
      %8012 = vmatpush1.msra.mxu0 %v7955
      %8013 = vmatprep.subr.mxu0 %v7960
      %8014 = vmatpush1.msra.mxu0 %v7959
      %8015 = vmatprep.subr.mxu0 %v7964
      %8016 = vmatpush1.msra.mxu0 %v7963
      %8017 = vmatprep.subr.mxu0 %v7968
      %8018 = vmatpush1.msra.mxu0 %v7967
      %8019 = vmatprep.subr.mxu0 %v7972
      %8020 = vmatpush1.msra.mxu0 %v7971
      %8021 = vmatprep.subr.mxu0 %v7976
      %8022 = vmatpush1.msra.mxu0 %v7975
      %8023 = vmatprep.subr.mxu0 %v7980
      %8024 = vmatpush1.msra.mxu0 %v7979
      %8025 = vmatprep.subr.mxu0 %v7984
      %8026 = vmatpush1.msra.mxu0 %v7983
      %8027 = vmatprep.subr.mxu0 %v7988
      %8028 = vmatpush1.msra.mxu0 %v7987
      %8029 = vmatprep.subr.mxu0 %v7992
      %8030 = vmatpush1.msra.mxu0 %v7991
      %8031 = vmatprep.subr.mxu0 %v7996
      %8032 = vmatpush1.msra.mxu0 %v7995
      %8033 = vmatprep.subr.mxu0 %v8000
      %8034 = vmatpush1.msra.mxu0 %v7999
      %8035 = vmatprep.subr.mxu0 0.0
      %8036 = vmatpush1.msra.mxu0 0.0
      %8037 = vmatprep.subr.mxu0 0.0
      %8038 = vmatpush1.msra.mxu0 0.0
      %8039 = vmatprep.subr.mxu0 0.0
      %8040 = vmatpush1.msra.mxu0 0.0
      %8041 = vmatprep.subr.mxu0 0.0
      %8042 = vmatpush1.msra.mxu0 0.0
      %8043 = vmatprep.subr.mxu0 0.0
      %8044 = vmatpush1.msra.mxu0 0.0
      %8045 = vmatprep.subr.mxu0 0.0
      %8046 = vmatpush1.msra.mxu0 0.0
      %8047 = vmatprep.subr.mxu0 0.0
      %8048 = vmatpush1.msra.mxu0 0.0
      %8049 = vmatprep.subr.mxu0 0.0
      %8050 = vmatpush1.msra.mxu0 0.0
      %8051 = vmatprep.subr.mxu0 0.0
      %8052 = vmatpush1.msra.mxu0 0.0
      %8053 = vmatprep.subr.mxu0 0.0
      %8054 = vmatpush1.msra.mxu0 0.0
      %8055 = vmatprep.subr.mxu0 0.0
      %8056 = vmatpush1.msra.mxu0 0.0
      %8057 = vmatprep.subr.mxu0 0.0
      %8058 = vmatpush1.msra.mxu0 0.0
      %8059 = vmatprep.subr.mxu0 0.0
      %8060 = vmatpush1.msra.mxu0 0.0
      %8061 = vmatprep.subr.mxu0 0.0
      %8062 = vmatpush1.msra.mxu0 0.0
      %8063 = vmatprep.subr.mxu0 0.0
      %8064 = vmatpush1.msra.mxu0 0.0
      %8065 = vmatprep.subr.mxu0 0.0
      %8066 = vmatpush1.msra.mxu0 0.0
      %8067 = vmatprep.mubr.f32.mxu0 0.0
      %8068 = vmatmul.mubr.f32.gmra.mrb[0].mxu0 %v7937
      %v8069 = vpop.f32.mrb[0].mxu0
      %v8070 = vadd.f32 0.0, %v8069
      %v8071 = vpop.f32.mrb[0].mxu0
      %v8072 = vadd.f32 0.0, %v8071
      %8073 = vdwg.mxu0
      %8074 = vmatprep.subr.mxu0 %v7942
      %8075 = vmatpush1.msra.mxu0 %v7941
      %8076 = vmatprep.subr.mxu0 %v7946
      %8077 = vmatpush1.msra.mxu0 %v7945
      %8078 = vmatprep.subr.mxu0 %v7950
      %8079 = vmatpush1.msra.mxu0 %v7949
      %8080 = vmatprep.subr.mxu0 %v7954
      %8081 = vmatpush1.msra.mxu0 %v7953
      %8082 = vmatprep.subr.mxu0 %v7958
      %8083 = vmatpush1.msra.mxu0 %v7957
      %8084 = vmatprep.subr.mxu0 %v7962
      %8085 = vmatpush1.msra.mxu0 %v7961
      %8086 = vmatprep.subr.mxu0 %v7966
      %8087 = vmatpush1.msra.mxu0 %v7965
      %8088 = vmatprep.subr.mxu0 %v7970
      %8089 = vmatpush1.msra.mxu0 %v7969
      %8090 = vmatprep.subr.mxu0 %v7974
      %8091 = vmatpush1.msra.mxu0 %v7973
      %8092 = vmatprep.subr.mxu0 %v7978
      %8093 = vmatpush1.msra.mxu0 %v7977
      %8094 = vmatprep.subr.mxu0 %v7982
      %8095 = vmatpush1.msra.mxu0 %v7981
      %8096 = vmatprep.subr.mxu0 %v7986
      %8097 = vmatpush1.msra.mxu0 %v7985
      %8098 = vmatprep.subr.mxu0 %v7990
      %8099 = vmatpush1.msra.mxu0 %v7989
      %8100 = vmatprep.subr.mxu0 %v7994
      %8101 = vmatpush1.msra.mxu0 %v7993
      %8102 = vmatprep.subr.mxu0 %v7998
      %8103 = vmatpush1.msra.mxu0 %v7997
      %8104 = vmatprep.subr.mxu0 %v8002
      %8105 = vmatpush1.msra.mxu0 %v8001
      %8106 = vmatprep.subr.mxu0 0.0
      %8107 = vmatpush1.msra.mxu0 0.0
      %8108 = vmatprep.subr.mxu0 0.0
      %8109 = vmatpush1.msra.mxu0 0.0
      %8110 = vmatprep.subr.mxu0 0.0
      %8111 = vmatpush1.msra.mxu0 0.0
      %8112 = vmatprep.subr.mxu0 0.0
      %8113 = vmatpush1.msra.mxu0 0.0
      %8114 = vmatprep.subr.mxu0 0.0
      %8115 = vmatpush1.msra.mxu0 0.0
      %8116 = vmatprep.subr.mxu0 0.0
      %8117 = vmatpush1.msra.mxu0 0.0
      %8118 = vmatprep.subr.mxu0 0.0
      %8119 = vmatpush1.msra.mxu0 0.0
      %8120 = vmatprep.subr.mxu0 0.0
      %8121 = vmatpush1.msra.mxu0 0.0
      %8122 = vmatprep.subr.mxu0 0.0
      %8123 = vmatpush1.msra.mxu0 0.0
      %8124 = vmatprep.subr.mxu0 0.0
      %8125 = vmatpush1.msra.mxu0 0.0
      %8126 = vmatprep.subr.mxu0 0.0
      %8127 = vmatpush1.msra.mxu0 0.0
      %8128 = vmatprep.subr.mxu0 0.0
      %8129 = vmatpush1.msra.mxu0 0.0
      %8130 = vmatprep.subr.mxu0 0.0
      %8131 = vmatpush1.msra.mxu0 0.0
      %8132 = vmatprep.subr.mxu0 0.0
      %8133 = vmatpush1.msra.mxu0 0.0
      %8134 = vmatprep.subr.mxu0 0.0
      %8135 = vmatpush1.msra.mxu0 0.0
      %8136 = vmatprep.subr.mxu0 0.0
      %8137 = vmatpush1.msra.mxu0 0.0
      %8138 = vmatprep.mubr.f32.mxu0 0.0
      %8139 = vmatmul.mubr.f32.gmra.mrb[0].mxu0 %v7937
      %v8140 = vpop.f32.mrb[0].mxu0
      %v8141 = vadd.f32 0.0, %v8140
      %v8142 = vpop.f32.mrb[0].mxu0
      %v8143 = vadd.f32 0.0, %v8142
      %8144 = vdwg.mxu0
      %v8149 = vrot.slane %v8070, 7
      %v8150 = vrot.slane %v8072, 7
      %v8151 = vrot.slane %v8141, 7
      %v8152 = vrot.slane %v8143, 7
      %v8157 = vadd.f32 %v7629, %v8149
      %v8158 = vadd.f32 %v7631, %v8150
      %v8159 = vadd.f32 %v7700, %v8151
      %v8160 = vadd.f32 %v7702, %v8152
      %v8161 = vxor.u32 %v8157, 2147483648
      %v8162 = vmul.f32 %v8161, 1.442695
      %v8163 = vpow.pop %v8162
      %v8164 = vadd.f32 %v8163, 1.0
      %v8165 = vrcp.pop %v8164
      %v8166 = vmul.f32 1.0, %v8165
      %v8167 = vxor.u32 %v8158, 2147483648
      %v8168 = vmul.f32 %v8167, 1.442695
      %v8169 = vpow.pop %v8168
      %v8170 = vadd.f32 %v8169, 1.0
      %v8171 = vrcp.pop %v8170
      %v8172 = vmul.f32 1.0, %v8171
      %v8173 = vtanh.pop %v8159
      %v8174 = vxor.u32 %v8160, 2147483648
      %v8175 = vmul.f32 %v8174, 1.442695
      %v8176 = vpow.pop %v8175
      %v8177 = vadd.f32 %v8176, 1.0
      %v8178 = vrcp.pop %v8177
      %v8179 = vmul.f32 1.0, %v8178
      %v8181 = vrot.slane %v7935, 7
      %v8183 = vmul.f32 %v8172, %v8181
      %v8184 = vmul.f32 %v8166, %v8173
      %v8185 = vadd.f32 %v8183, %v8184
      %v8186 = vtanh.pop %v8185
      %v8187 = vmul.f32 %v8179, %v8186
      %8188 = vst [vmem:[#allocation7] sm:$0x2] %v8187
    $region53: #{cnn_lstm_forward.1} parent=1 // pred_fallthru
      _
    // Predicated region
    $region54: #{cnn_lstm_forward.1} parent=1 // pred_check
      _
    $region55: #{cnn_lstm_forward.1} parent=1 // pred_check_branch
      %8190 = sbr.rel (0) target = $region57
    $region56: #{cnn_lstm_forward.1} parent=1 // pred_region
      %s8192 = ssub.s32 32, 32
      %8193 = vsyncadd [#allocation8], %s8192
      %s8195 = sshll.u32 [#allocation7], 4
      %s8196 = int_to_ptr.vmem [resolvable:$true] %s8195
      %8198 = dma.vmem_to_hbm [thread:$0]  %s8196, 32, %s12, [#allocation8]
    $region57: #{cnn_lstm_forward.1} parent=1 // pred_fallthru
      _
    // Predicated region
    $region58: #{cnn_lstm_forward.1} parent=1 // pred_check
      _
    $region59: #{cnn_lstm_forward.1} parent=1 // pred_check_branch
      %8200 = sbr.rel (0) target = $region61
    $region60: #{cnn_lstm_forward.1} parent=1 // pred_region
      %8201 = dma.done [#allocation8], 32
    $region61: #{cnn_lstm_forward.1} parent=1 // pred_fallthru
      _
    %8202 = vsyncpa [#allocation8], 1

</llo_original>
